<compile_context>
chip_gen: v7x
topology: tpu7x:2x2x1
jax: 0.10.0
libtpu: 0.0.40
codegen_flags: <defaults>
</compile_context>

<pallas_src>
import functools
import math

import jax
import jax.numpy as jnp
from jax import lax
from jax.experimental import pallas as pl
from jax.experimental.pallas import tpu as pltpu


def _layer_norm(x, gamma, beta, eps):
    mu = jnp.mean(x, axis=-1, keepdims=True)
    xc = x - mu
    var = jnp.mean(xc * xc, axis=-1, keepdims=True)
    return xc * lax.rsqrt(var + eps) * gamma + beta


def _fusion_kernel(
    x1_ref, x2_ref,
    w_fc1_ref, b_fc1_ref, w_fc2_ref, b_fc2_ref,
    w_fus_a_ref, w_fus_b_ref, b_fus_ref,
    wq_ref, bq_ref, wk_ref, bk_ref, wv_ref, bv_ref,
    wo_ref, bo_ref, ln1g_ref, ln1b_ref,
    wff1_ref, bff1_ref, wff2_ref, bff2_ref, ln2g_ref, ln2b_ref,
    w_out_ref, b_out_ref,
    o_ref,
    x_scratch, attn_scratch,
    *, num_heads, group_size, num_groups, eps):
    f32 = jnp.float32
    bf16 = jnp.bfloat16
    layer = pl.program_id(1)

    # ---- modality projections + feature-level fusion (only at the first layer step) ----
    @pl.when(layer == 0)
    def _fuse():
        h1 = jnp.dot(x1_ref[...].astype(bf16), w_fc1_ref[...],
                     preferred_element_type=f32) + b_fc1_ref[...]
        h1 = jnp.maximum(h1, 0.0)
        h2 = jnp.dot(x2_ref[...].astype(bf16), w_fc2_ref[...],
                     preferred_element_type=f32) + b_fc2_ref[...]
        h2 = jnp.maximum(h2, 0.0)
        # concat + Linear(2H -> H)  ==  h1 @ W_top + h2 @ W_bot   (no (R, 2H) copy)
        x0 = (jnp.dot(h1.astype(bf16), w_fus_a_ref[...], preferred_element_type=f32)
              + jnp.dot(h2.astype(bf16), w_fus_b_ref[...], preferred_element_type=f32)
              + b_fus_ref[...])
        x_scratch[...] = jnp.maximum(x0, 0.0)

    # ---- one post-norm transformer encoder layer (this layer's weights streamed in) ----
    x = x_scratch[...]                             # (R, H) f32 residual stream
    hidden = x.shape[-1]
    dh = hidden // num_heads
    scale = 1.0 / math.sqrt(dh)

    xb = x.astype(bf16)
    q = (jnp.dot(xb, wq_ref[...], preferred_element_type=f32) + bq_ref[...]) * scale
    k = jnp.dot(xb, wk_ref[...], preferred_element_type=f32) + bk_ref[...]
    v = jnp.dot(xb, wv_ref[...], preferred_element_type=f32) + bv_ref[...]

    # Block-diagonal attention: rows [g*B, (g+1)*B) share a sequence position and attend
    # only within that group -> S independent (B, B) attentions, no mask, no (T, T) scores.
    for g in range(num_groups):
        r0 = g * group_size
        qg = q[r0:r0 + group_size, :]
        kg = k[r0:r0 + group_size, :]
        vg = v[r0:r0 + group_size, :]
        for h in range(num_heads):
            c0 = h * dh
            qh = qg[:, c0:c0 + dh]
            kh = kg[:, c0:c0 + dh]
            vh = vg[:, c0:c0 + dh]
            s = lax.dot_general(qh, kh, (((1,), (1,)), ((), ())),
                                preferred_element_type=f32)           # (B, B) f32
            s = s - jnp.max(s, axis=-1, keepdims=True)
            p = jnp.exp(s)
            p = p * pl.reciprocal(jnp.sum(p, axis=-1, keepdims=True), approx=True)
            attn_scratch[r0:r0 + group_size, c0:c0 + dh] = jnp.dot(
                p, vh, preferred_element_type=f32)

    attn = jnp.dot(attn_scratch[...].astype(bf16), wo_ref[...],
                   preferred_element_type=f32) + bo_ref[...]
    x = _layer_norm(x + attn, ln1g_ref[...], ln1b_ref[...], eps)

    ff = jnp.dot(x.astype(bf16), wff1_ref[...], preferred_element_type=f32) + bff1_ref[...]
    ff = jnp.maximum(ff, 0.0)
    ff = jnp.dot(ff.astype(bf16), wff2_ref[...], preferred_element_type=f32) + bff2_ref[...]
    x = _layer_norm(x + ff, ln2g_ref[...], ln2b_ref[...], eps)
    x_scratch[...] = x

    # ---- output head (lane-padded slab), only after the last layer ----
    @pl.when(layer == pl.num_programs(1) - 1)
    def _head():
        o_ref[...] = jnp.dot(x.astype(bf16), w_out_ref[...],
                             preferred_element_type=f32) + b_out_ref[...]


def _pick_seq_tile(seq_len, batch, target_rows=512):
    """Largest divisor of seq_len whose row count (tile*batch) is 8-aligned (or full) and <= target."""
    feasible = [d for d in range(1, seq_len + 1)
                if seq_len % d == 0 and (d == seq_len or (d * batch) % 8 == 0)]
    under = [d for d in feasible if d * batch <= max(target_rows, batch)]
    return max(under) if under else min(feasible)


def feature_level_fusion_forward(x1, x2, params, *, num_heads, num_layers, eps=1e-5):
    Bsz, S, I1 = x1.shape
    _, _, I2 = x2.shape
    H = params["w_fc1"].shape[-1]
    F = params["wff1"].shape[-1]
    O = params["w_out"].shape[-1]
    L = num_layers
    assert H % num_heads == 0

    s_tile = _pick_seq_tile(S, Bsz)
    R = s_tile * Bsz                   # rows per token tile (sequence-major)
    num_si = S // s_tile
    T = S * Bsz

    O_pad = ((O + 127) // 128) * 128   # lane-dense output slab; sliced back below
    f32, bf16 = jnp.float32, jnp.bfloat16

    # sequence-major token layout: row = s*Bsz + b
    x1f = x1.astype(f32).transpose(1, 0, 2).reshape(T, I1)
    x2f = x2.astype(f32).transpose(1, 0, 2).reshape(T, I2)

    w_out_p = jnp.zeros((H, O_pad), bf16).at[:, :O].set(params["w_out"].astype(bf16))
    b_out_p = jnp.zeros((1, O_pad), f32).at[:, :O].set(params["b_out"].astype(f32))

    tok = lambda si, l: (si, 0)        # token-tiled arrays (resident across the layer axis)
    fix = lambda si, l: (0, 0)         # fixed weights (fetched once)
    lyr = lambda si, l: (l, 0, 0)      # per-layer weights (streamed + double-buffered)

    inputs_and_specs = [
        (x1f,                            pl.BlockSpec((R, I1), tok)),
        (x2f,                            pl.BlockSpec((R, I2), tok)),
        (params["w_fc1"].astype(bf16),   pl.BlockSpec((I1, H), fix)),
        (params["b_fc1"].astype(f32),    pl.BlockSpec((1, H), fix)),
        (params["w_fc2"].astype(bf16),   pl.BlockSpec((I2, H), fix)),
        (params["b_fc2"].astype(f32),    pl.BlockSpec((1, H), fix)),
        (params["w_fus_a"].astype(bf16), pl.BlockSpec((H, H), fix)),
        (params["w_fus_b"].astype(bf16), pl.BlockSpec((H, H), fix)),
        (params["b_fus"].astype(f32),    pl.BlockSpec((1, H), fix)),
        (params["wq"].astype(bf16),      pl.BlockSpec((None, H, H), lyr)),
        (params["bq"].astype(f32),       pl.BlockSpec((None, 1, H), lyr)),
        (params["wk"].astype(bf16),      pl.BlockSpec((None, H, H), lyr)),
        (params["bk"].astype(f32),       pl.BlockSpec((None, 1, H), lyr)),
        (params["wv"].astype(bf16),      pl.BlockSpec((None, H, H), lyr)),
        (params["bv"].astype(f32),       pl.BlockSpec((None, 1, H), lyr)),
        (params["wo"].astype(bf16),      pl.BlockSpec((None, H, H), lyr)),
        (params["bo"].astype(f32),       pl.BlockSpec((None, 1, H), lyr)),
        (params["ln1g"].astype(f32),     pl.BlockSpec((None, 1, H), lyr)),
        (params["ln1b"].astype(f32),     pl.BlockSpec((None, 1, H), lyr)),
        (params["wff1"].astype(bf16),    pl.BlockSpec((None, H, F), lyr)),
        (params["bff1"].astype(f32),     pl.BlockSpec((None, 1, F), lyr)),
        (params["wff2"].astype(bf16),    pl.BlockSpec((None, F, H), lyr)),
        (params["bff2"].astype(f32),     pl.BlockSpec((None, 1, H), lyr)),
        (params["ln2g"].astype(f32),     pl.BlockSpec((None, 1, H), lyr)),
        (params["ln2b"].astype(f32),     pl.BlockSpec((None, 1, H), lyr)),
        (w_out_p,                        pl.BlockSpec((H, O_pad), fix)),
        (b_out_p,                        pl.BlockSpec((1, O_pad), fix)),
    ]
    inputs = [a for a, _ in inputs_and_specs]
    in_specs = [s for _, s in inputs_and_specs]

    # explicit VMEM budget: 2x-buffered streamed layer weights + tiles + scratch + headroom
    per_layer_w = (4 * H * H + 2 * H * F) * 2 + (8 * H + 2 * F) * 4
    fixed_w = ((I1 + I2 + 2 * H) * H + H * O_pad) * 2 + (3 * H + O_pad) * 4
    tiles = (R * (I1 + I2) * 4 + R * O_pad * 4) * 2
    scratch_bytes = 2 * R * H * 4
    interm = R * F * 4 * 2 + R * H * 4 * 8
    est = 2 * per_layer_w + fixed_w + tiles + scratch_bytes + interm
    vmem_limit = int(min(max(2 * est + (4 << 20), 16 << 20), 48 << 20))

    kernel = functools.partial(_fusion_kernel, num_heads=num_heads,
                               group_size=Bsz, num_groups=s_tile, eps=eps)

    out2d = pl.pallas_call(
        kernel,
        out_shape=jax.ShapeDtypeStruct((T, O_pad), f32),
        grid_spec=pltpu.PrefetchScalarGridSpec(
            num_scalar_prefetch=0,
            grid=(num_si, L),
            in_specs=in_specs,
            out_specs=pl.BlockSpec((R, O_pad), tok),
            scratch_shapes=[pltpu.VMEM((R, H), f32),    # residual stream carried across layers
                            pltpu.VMEM((R, H), f32)]),  # per-layer attention output assembly
        compiler_params=pltpu.CompilerParams(
            dimension_semantics=("parallel", "arbitrary"),
            vmem_limit_bytes=vmem_limit),
    )(*inputs)

    return out2d[:, :O].reshape(S, Bsz, O).transpose(1, 0, 2)


def init_params(key, *, input_size1, input_size2, hidden_size, num_heads, num_layers,
                output_size, dim_feedforward=2048):
    # dim_feedforward=2048 is the nn.TransformerEncoderLayer default.
    H, F, L = hidden_size, dim_feedforward, num_layers
    keys = jax.random.split(key, 20)
    f32, bf16 = jnp.float32, jnp.bfloat16

    def w(k, shape, scale=0.05):   # (in, out) layout: kernel computes x @ W + b
        return (scale * jax.random.normal(k, shape)).astype(bf16)

    def b(k, shape, scale=0.05):
        return (scale * jax.random.normal(k, shape)).astype(f32)

    return {
        "w_fc1": w(keys[0], (input_size1, H)), "b_fc1": b(keys[1], (1, H)),
        "w_fc2": w(keys[2], (input_size2, H)), "b_fc2": b(keys[3], (1, H)),
        "w_fus_a": w(keys[4], (H, H)), "w_fus_b": w(keys[5], (H, H)),
        "b_fus": b(keys[6], (1, H)),
        "wq": w(keys[7], (L, H, H)), "bq": b(keys[8], (L, 1, H)),
        "wk": w(keys[9], (L, H, H)), "bk": b(keys[10], (L, 1, H)),
        "wv": w(keys[11], (L, H, H)), "bv": b(keys[12], (L, 1, H)),
        "wo": w(keys[13], (L, H, H)), "bo": b(keys[14], (L, 1, H)),
        "ln1g": jnp.ones((L, 1, H), f32), "ln1b": jnp.zeros((L, 1, H), f32),
        "wff1": w(keys[15], (L, H, F)), "bff1": b(keys[16], (L, 1, F)),
        "wff2": w(keys[17], (L, F, H)), "bff2": b(keys[18], (L, 1, H)),
        "ln2g": jnp.ones((L, 1, H), f32), "ln2b": jnp.zeros((L, 1, H), f32),
        "w_out": w(keys[19], (H, output_size)),
        "b_out": jnp.zeros((1, output_size), f32),
    }


def _reference_forward(x1, x2, params, *, num_heads, num_layers, eps=1e-5):
    """Pure-JAX f32 reference mirroring the PyTorch module semantics (eval mode)."""
    f32 = jnp.float32
    hi = jax.lax.Precision.HIGHEST
    B, S, _ = x1.shape

    def lin(x, w_, b_):
        return jnp.einsum('...i,ih->...h', x, w_.astype(f32), precision=hi) + b_.astype(f32)

    def ln(y, g, b_):
        mu = y.mean(-1, keepdims=True)
        var = ((y - mu) ** 2).mean(-1, keepdims=True)
        return (y - mu) * lax.rsqrt(var + eps) * g.astype(f32) + b_.astype(f32)

    h1 = jax.nn.relu(lin(x1.astype(f32), params["w_fc1"], params["b_fc1"]))
    h2 = jax.nn.relu(lin(x2.astype(f32), params["w_fc2"], params["b_fc2"]))
    x = jax.nn.relu(
        jnp.einsum('...h,hk->...k', h1, params["w_fus_a"].astype(f32), precision=hi)
        + jnp.einsum('...h,hk->...k', h2, params["w_fus_b"].astype(f32), precision=hi)
        + params["b_fus"].astype(f32))

    H = x.shape[-1]
    dh = H // num_heads
    scale = 1.0 / math.sqrt(dh)
    for l in range(num_layers):
        q = lin(x, params["wq"][l], params["bq"][l]) * scale
        k = lin(x, params["wk"][l], params["bk"][l])
        v = lin(x, params["wv"][l], params["bv"][l])
        qh = q.reshape(B, S, num_heads, dh)
        kh = k.reshape(B, S, num_heads, dh)
        vh = v.reshape(B, S, num_heads, dh)
        # attention over the batch axis (batch_first=False semantics of the original module)
        scores = jnp.einsum('bshd,cshd->shbc', qh, kh, precision=hi)
        p = jax.nn.softmax(scores, axis=-1)
        attn = jnp.einsum('shbc,cshd->bshd', p, vh, precision=hi).reshape(B, S, H)
        attn = lin(attn, params["wo"][l], params["bo"][l])
        x = ln(x + attn, params["ln1g"][l], params["ln1b"][l])
        ff = jax.nn.relu(lin(x, params["wff1"][l], params["bff1"][l]))
        ff = lin(ff, params["wff2"][l], params["bff2"][l])
        x = ln(x + ff, params["ln2g"][l], params["ln2b"][l])
    return lin(x, params["w_out"], params["b_out"])


if __name__ == "__main__":
    B, S = 2, 8            # batch, seq_len
    I1, I2 = 16, 12        # EEG / EOG feature sizes
    H, NH, NL, O = 32, 4, 2, 3

    root = jax.random.PRNGKey(0)
    kx1, kx2, kp = jax.random.split(root, 3)
    x1 = jax.random.normal(kx1, (B, S, I1), dtype=jnp.float32)
    x2 = jax.random.normal(kx2, (B, S, I2), dtype=jnp.float32)
    params = init_params(kp, input_size1=I1, input_size2=I2, hidden_size=H,
                         num_heads=NH, num_layers=NL, output_size=O)

    out = feature_level_fusion_forward(x1, x2, params, num_heads=NH, num_layers=NL)
    out = jax.block_until_ready(out)
    assert out.shape == (B, S, O), out.shape
    assert bool(jnp.all(jnp.isfinite(out)))

    ref = _reference_forward(x1, x2, params, num_heads=NH, num_layers=NL)
    max_err = float(jnp.max(jnp.abs(out - ref)))
    assert max_err < 1e-1, f"max abs diff vs reference too large: {max_err}"
    print("KERNEL_OK")
</pallas_src>

<mosaic_0001>
module attributes {stable_mosaic.version = 11 : i64} {
  func.func @_fusion_kernel(%arg0: i32, %arg1: i32, %arg2: memref<16x16xf32, #tpu.memory_space<vmem>>, %arg3: memref<16x12xf32, #tpu.memory_space<vmem>>, %arg4: memref<16x32xbf16, #tpu.memory_space<vmem>>, %arg5: memref<1x32xf32, #tpu.memory_space<vmem>>, %arg6: memref<12x32xbf16, #tpu.memory_space<vmem>>, %arg7: memref<1x32xf32, #tpu.memory_space<vmem>>, %arg8: memref<32x32xbf16, #tpu.memory_space<vmem>>, %arg9: memref<32x32xbf16, #tpu.memory_space<vmem>>, %arg10: memref<1x32xf32, #tpu.memory_space<vmem>>, %arg11: memref<1x32x32xbf16, #tpu.memory_space<vmem>>, %arg12: memref<1x1x32xf32, #tpu.memory_space<vmem>>, %arg13: memref<1x32x32xbf16, #tpu.memory_space<vmem>>, %arg14: memref<1x1x32xf32, #tpu.memory_space<vmem>>, %arg15: memref<1x32x32xbf16, #tpu.memory_space<vmem>>, %arg16: memref<1x1x32xf32, #tpu.memory_space<vmem>>, %arg17: memref<1x32x32xbf16, #tpu.memory_space<vmem>>, %arg18: memref<1x1x32xf32, #tpu.memory_space<vmem>>, %arg19: memref<1x1x32xf32, #tpu.memory_space<vmem>>, %arg20: memref<1x1x32xf32, #tpu.memory_space<vmem>>, %arg21: memref<1x32x2048xbf16, #tpu.memory_space<vmem>>, %arg22: memref<1x1x2048xf32, #tpu.memory_space<vmem>>, %arg23: memref<1x2048x32xbf16, #tpu.memory_space<vmem>>, %arg24: memref<1x1x32xf32, #tpu.memory_space<vmem>>, %arg25: memref<1x1x32xf32, #tpu.memory_space<vmem>>, %arg26: memref<1x1x32xf32, #tpu.memory_space<vmem>>, %arg27: memref<32x128xbf16, #tpu.memory_space<vmem>>, %arg28: memref<1x128xf32, #tpu.memory_space<vmem>>, %arg29: memref<16x128xf32, #tpu.memory_space<vmem>>, %arg30: memref<16x32xf32, #tpu.memory_space<vmem>>, %arg31: memref<16x32xf32, #tpu.memory_space<vmem>>) attributes {dimension_semantics = [#tpu.dimension_semantics<parallel>, #tpu.dimension_semantics<arbitrary>], iteration_bounds = array<i64: 1, 2>, scalar_prefetch = 0 : i64, scratch_operands = 2 : i64, tpu.core_type = #tpu.core_type<tc>, window_params = [{transform_indices = @transform_0, window_bounds = array<i64: 16, 16>}, {transform_indices = @transform_1, window_bounds = array<i64: 16, 12>}, {pipeline_mode = #tpu.pipeline_mode<synchronous>, transform_indices = @transform_2, window_bounds = array<i64: 16, 32>}, {pipeline_mode = #tpu.pipeline_mode<synchronous>, transform_indices = @transform_3, window_bounds = array<i64: 1, 32>}, {pipeline_mode = #tpu.pipeline_mode<synchronous>, transform_indices = @transform_4, window_bounds = array<i64: 12, 32>}, {pipeline_mode = #tpu.pipeline_mode<synchronous>, transform_indices = @transform_5, window_bounds = array<i64: 1, 32>}, {pipeline_mode = #tpu.pipeline_mode<synchronous>, transform_indices = @transform_6, window_bounds = array<i64: 32, 32>}, {pipeline_mode = #tpu.pipeline_mode<synchronous>, transform_indices = @transform_7, window_bounds = array<i64: 32, 32>}, {pipeline_mode = #tpu.pipeline_mode<synchronous>, transform_indices = @transform_8, window_bounds = array<i64: 1, 32>}, {transform_indices = @transform_9, window_bounds = array<i64: 1, 32, 32>}, {transform_indices = @transform_10, window_bounds = array<i64: 1, 1, 32>}, {transform_indices = @transform_11, window_bounds = array<i64: 1, 32, 32>}, {transform_indices = @transform_12, window_bounds = array<i64: 1, 1, 32>}, {transform_indices = @transform_13, window_bounds = array<i64: 1, 32, 32>}, {transform_indices = @transform_14, window_bounds = array<i64: 1, 1, 32>}, {transform_indices = @transform_15, window_bounds = array<i64: 1, 32, 32>}, {transform_indices = @transform_16, window_bounds = array<i64: 1, 1, 32>}, {transform_indices = @transform_17, window_bounds = array<i64: 1, 1, 32>}, {transform_indices = @transform_18, window_bounds = array<i64: 1, 1, 32>}, {transform_indices = @transform_19, window_bounds = array<i64: 1, 32, 2048>}, {transform_indices = @transform_20, window_bounds = array<i64: 1, 1, 2048>}, {transform_indices = @transform_21, window_bounds = array<i64: 1, 2048, 32>}, {transform_indices = @transform_22, window_bounds = array<i64: 1, 1, 32>}, {transform_indices = @transform_23, window_bounds = array<i64: 1, 1, 32>}, {transform_indices = @transform_24, window_bounds = array<i64: 1, 1, 32>}, {pipeline_mode = #tpu.pipeline_mode<synchronous>, transform_indices = @transform_25, window_bounds = array<i64: 32, 128>}, {pipeline_mode = #tpu.pipeline_mode<synchronous>, transform_indices = @transform_26, window_bounds = array<i64: 1, 128>}, {transform_indices = @transform_27, window_bounds = array<i64: 16, 128>}]} {
    %c0_i32 = arith.constant 0 : i32
    %0 = arith.cmpi eq, %arg1, %c0_i32 : i32
    %1 = arith.extui %0 : i1 to i32
    %c0_i32_0 = arith.constant 0 : i32
    %2 = arith.cmpi ne, %1, %c0_i32_0 : i32
    scf.if %2 {
      %c0_255 = arith.constant 0 : index
      %c0_256 = arith.constant 0 : index
      %645 = vector.load %arg2[%c0_255, %c0_256] : memref<16x16xf32, #tpu.memory_space<vmem>>, vector<16x16xf32>
      %646 = arith.truncf %645 : vector<16x16xf32> to vector<16x16xbf16>
      %c0_257 = arith.constant 0 : index
      %c0_258 = arith.constant 0 : index
      %647 = vector.load %arg4[%c0_257, %c0_258] : memref<16x32xbf16, #tpu.memory_space<vmem>>, vector<16x32xbf16>
      %cst_259 = arith.constant dense<0.000000e+00> : vector<16x32xf32>
      %648 = tpu.matmul %646, %647, %cst_259 {dimension_numbers = #tpu.dot_dimension_numbers<[1], [0], [0], [1], [0, 0, 1, 1], [], []>} : vector<16x16xbf16>, vector<16x32xbf16>, vector<16x32xf32> -> vector<16x32xf32>
      %c0_260 = arith.constant 0 : index
      %c0_261 = arith.constant 0 : index
      %649 = vector.load %arg5[%c0_260, %c0_261] : memref<1x32xf32, #tpu.memory_space<vmem>>, vector<1x32xf32>
      %650 = vector.broadcast %649 : vector<1x32xf32> to vector<16x32xf32>
      %651 = arith.addf %648, %650 : vector<16x32xf32>
      %cst_262 = arith.constant 0.000000e+00 : f32
      %652 = vector.broadcast %cst_262 : f32 to vector<16x32xf32>
      %653 = arith.maximumf %651, %652 : vector<16x32xf32>
      %c0_263 = arith.constant 0 : index
      %c0_264 = arith.constant 0 : index
      %654 = vector.load %arg3[%c0_263, %c0_264] : memref<16x12xf32, #tpu.memory_space<vmem>>, vector<16x12xf32>
      %655 = arith.truncf %654 : vector<16x12xf32> to vector<16x12xbf16>
      %c0_265 = arith.constant 0 : index
      %c0_266 = arith.constant 0 : index
      %656 = vector.load %arg6[%c0_265, %c0_266] : memref<12x32xbf16, #tpu.memory_space<vmem>>, vector<12x32xbf16>
      %cst_267 = arith.constant dense<0.000000e+00> : vector<16x32xf32>
      %657 = tpu.matmul %655, %656, %cst_267 {dimension_numbers = #tpu.dot_dimension_numbers<[1], [0], [0], [1], [0, 0, 1, 1], [], []>} : vector<16x12xbf16>, vector<12x32xbf16>, vector<16x32xf32> -> vector<16x32xf32>
      %c0_268 = arith.constant 0 : index
      %c0_269 = arith.constant 0 : index
      %658 = vector.load %arg7[%c0_268, %c0_269] : memref<1x32xf32, #tpu.memory_space<vmem>>, vector<1x32xf32>
      %659 = vector.broadcast %658 : vector<1x32xf32> to vector<16x32xf32>
      %660 = arith.addf %657, %659 : vector<16x32xf32>
      %cst_270 = arith.constant 0.000000e+00 : f32
      %661 = vector.broadcast %cst_270 : f32 to vector<16x32xf32>
      %662 = arith.maximumf %660, %661 : vector<16x32xf32>
      %663 = arith.truncf %653 : vector<16x32xf32> to vector<16x32xbf16>
      %c0_271 = arith.constant 0 : index
      %c0_272 = arith.constant 0 : index
      %664 = vector.load %arg8[%c0_271, %c0_272] : memref<32x32xbf16, #tpu.memory_space<vmem>>, vector<32x32xbf16>
      %cst_273 = arith.constant dense<0.000000e+00> : vector<16x32xf32>
      %665 = tpu.matmul %663, %664, %cst_273 {dimension_numbers = #tpu.dot_dimension_numbers<[1], [0], [0], [1], [0, 0, 1, 1], [], []>} : vector<16x32xbf16>, vector<32x32xbf16>, vector<16x32xf32> -> vector<16x32xf32>
      %666 = arith.truncf %662 : vector<16x32xf32> to vector<16x32xbf16>
      %c0_274 = arith.constant 0 : index
      %c0_275 = arith.constant 0 : index
      %667 = vector.load %arg9[%c0_274, %c0_275] : memref<32x32xbf16, #tpu.memory_space<vmem>>, vector<32x32xbf16>
      %cst_276 = arith.constant dense<0.000000e+00> : vector<16x32xf32>
      %668 = tpu.matmul %666, %667, %cst_276 {dimension_numbers = #tpu.dot_dimension_numbers<[1], [0], [0], [1], [0, 0, 1, 1], [], []>} : vector<16x32xbf16>, vector<32x32xbf16>, vector<16x32xf32> -> vector<16x32xf32>
      %669 = arith.addf %665, %668 : vector<16x32xf32>
      %c0_277 = arith.constant 0 : index
      %c0_278 = arith.constant 0 : index
      %670 = vector.load %arg10[%c0_277, %c0_278] : memref<1x32xf32, #tpu.memory_space<vmem>>, vector<1x32xf32>
      %671 = vector.broadcast %670 : vector<1x32xf32> to vector<16x32xf32>
      %672 = arith.addf %669, %671 : vector<16x32xf32>
      %cst_279 = arith.constant 0.000000e+00 : f32
      %673 = vector.broadcast %cst_279 : f32 to vector<16x32xf32>
      %674 = arith.maximumf %672, %673 : vector<16x32xf32>
      %c0_280 = arith.constant 0 : index
      %c0_281 = arith.constant 0 : index
      %675 = vector.load %arg30[%c0_280, %c0_281] : memref<16x32xf32, #tpu.memory_space<vmem>>, vector<16x32xf32>
      tpu.vector_store %arg30[%c0_280, %c0_281], %674 {strides = array<i32>} : memref<16x32xf32, #tpu.memory_space<vmem>>, vector<16x32xf32>,
    } else {
    }
    %c0 = arith.constant 0 : index
    %c0_1 = arith.constant 0 : index
    %3 = vector.load %arg30[%c0, %c0_1] : memref<16x32xf32, #tpu.memory_space<vmem>>, vector<16x32xf32>
    %4 = arith.truncf %3 : vector<16x32xf32> to vector<16x32xbf16>
    %c0_2 = arith.constant 0 : index
    %c0_3 = arith.constant 0 : index
    %c0_4 = arith.constant 0 : index
    %5 = vector.load %arg11[%c0_2, %c0_3, %c0_4] : memref<1x32x32xbf16, #tpu.memory_space<vmem>>, vector<1x32x32xbf16>
    %6 = vector.shape_cast %5 : vector<1x32x32xbf16> to vector<32x32xbf16>
    %cst = arith.constant dense<0.000000e+00> : vector<16x32xf32>
    %7 = tpu.matmul %4, %6, %cst {dimension_numbers = #tpu.dot_dimension_numbers<[1], [0], [0], [1], [0, 0, 1, 1], [], []>} : vector<16x32xbf16>, vector<32x32xbf16>, vector<16x32xf32> -> vector<16x32xf32>
    %c0_5 = arith.constant 0 : index
    %c0_6 = arith.constant 0 : index
    %c0_7 = arith.constant 0 : index
    %8 = vector.load %arg12[%c0_5, %c0_6, %c0_7] : memref<1x1x32xf32, #tpu.memory_space<vmem>>, vector<1x1x32xf32>
    %9 = vector.shape_cast %8 : vector<1x1x32xf32> to vector<1x32xf32>
    %10 = vector.broadcast %9 : vector<1x32xf32> to vector<16x32xf32>
    %11 = arith.addf %7, %10 : vector<16x32xf32>
    %cst_8 = arith.constant 0.353553385 : f32
    %12 = vector.broadcast %cst_8 : f32 to vector<16x32xf32>
    %13 = arith.mulf %11, %12 : vector<16x32xf32>
    %c0_9 = arith.constant 0 : index
    %c0_10 = arith.constant 0 : index
    %c0_11 = arith.constant 0 : index
    %14 = vector.load %arg13[%c0_9, %c0_10, %c0_11] : memref<1x32x32xbf16, #tpu.memory_space<vmem>>, vector<1x32x32xbf16>
    %15 = vector.shape_cast %14 : vector<1x32x32xbf16> to vector<32x32xbf16>
    %cst_12 = arith.constant dense<0.000000e+00> : vector<16x32xf32>
    %16 = tpu.matmul %4, %15, %cst_12 {dimension_numbers = #tpu.dot_dimension_numbers<[1], [0], [0], [1], [0, 0, 1, 1], [], []>} : vector<16x32xbf16>, vector<32x32xbf16>, vector<16x32xf32> -> vector<16x32xf32>
    %c0_13 = arith.constant 0 : index
    %c0_14 = arith.constant 0 : index
    %c0_15 = arith.constant 0 : index
    %17 = vector.load %arg14[%c0_13, %c0_14, %c0_15] : memref<1x1x32xf32, #tpu.memory_space<vmem>>, vector<1x1x32xf32>
    %18 = vector.shape_cast %17 : vector<1x1x32xf32> to vector<1x32xf32>
    %19 = vector.broadcast %18 : vector<1x32xf32> to vector<16x32xf32>
    %20 = arith.addf %16, %19 : vector<16x32xf32>
    %c0_16 = arith.constant 0 : index
    %c0_17 = arith.constant 0 : index
    %c0_18 = arith.constant 0 : index
    %21 = vector.load %arg15[%c0_16, %c0_17, %c0_18] : memref<1x32x32xbf16, #tpu.memory_space<vmem>>, vector<1x32x32xbf16>
    %22 = vector.shape_cast %21 : vector<1x32x32xbf16> to vector<32x32xbf16>
    %cst_19 = arith.constant dense<0.000000e+00> : vector<16x32xf32>
    %23 = tpu.matmul %4, %22, %cst_19 {dimension_numbers = #tpu.dot_dimension_numbers<[1], [0], [0], [1], [0, 0, 1, 1], [], []>} : vector<16x32xbf16>, vector<32x32xbf16>, vector<16x32xf32> -> vector<16x32xf32>
    %c0_20 = arith.constant 0 : index
    %c0_21 = arith.constant 0 : index
    %c0_22 = arith.constant 0 : index
    %24 = vector.load %arg16[%c0_20, %c0_21, %c0_22] : memref<1x1x32xf32, #tpu.memory_space<vmem>>, vector<1x1x32xf32>
    %25 = vector.shape_cast %24 : vector<1x1x32xf32> to vector<1x32xf32>
    %26 = vector.broadcast %25 : vector<1x32xf32> to vector<16x32xf32>
    %27 = arith.addf %23, %26 : vector<16x32xf32>
    %28 = vector.extract_strided_slice %13 {offsets = [0, 0], sizes = [2, 32], strides = [1, 1]} : vector<16x32xf32> to vector<2x32xf32>
    %29 = vector.extract_strided_slice %20 {offsets = [0, 0], sizes = [2, 32], strides = [1, 1]} : vector<16x32xf32> to vector<2x32xf32>
    %30 = vector.extract_strided_slice %27 {offsets = [0, 0], sizes = [2, 32], strides = [1, 1]} : vector<16x32xf32> to vector<2x32xf32>
    %31 = vector.extract_strided_slice %28 {offsets = [0, 0], sizes = [2, 8], strides = [1, 1]} : vector<2x32xf32> to vector<2x8xf32>
    %32 = vector.extract_strided_slice %29 {offsets = [0, 0], sizes = [2, 8], strides = [1, 1]} : vector<2x32xf32> to vector<2x8xf32>
    %33 = vector.extract_strided_slice %30 {offsets = [0, 0], sizes = [2, 8], strides = [1, 1]} : vector<2x32xf32> to vector<2x8xf32>
    %cst_23 = arith.constant dense<0.000000e+00> : vector<2x2xf32>
    %34 = tpu.matmul %31, %32, %cst_23 {dimension_numbers = #tpu.dot_dimension_numbers<[1], [1], [0], [0], [0, 0, 1, 0], [], []>} : vector<2x8xf32>, vector<2x8xf32>, vector<2x2xf32> -> vector<2x2xf32>
    %cst_24 = arith.constant dense<0xFF800000> : vector<2xf32>
    %35 = vector.multi_reduction <maximumf>, %34, %cst_24 [1] : vector<2x2xf32> to vector<2xf32>
    %36 = vector.shape_cast %35 : vector<2xf32> to vector<2x1xf32>
    %37 = vector.broadcast %36 : vector<2x1xf32> to vector<2x2xf32>
    %38 = arith.subf %34, %37 : vector<2x2xf32>
    %39 = math.exp %38 : vector<2x2xf32>
    %cst_25 = arith.constant dense<0.000000e+00> : vector<2xf32>
    %40 = vector.multi_reduction <add>, %39, %cst_25 [1] : vector<2x2xf32> to vector<2xf32>
    %41 = vector.shape_cast %40 : vector<2xf32> to vector<2x1xf32>
    %42 = tpu.reciprocal %41 {approx = true} : vector<2x1xf32> -> vector<2x1xf32>
    %43 = vector.broadcast %42 : vector<2x1xf32> to vector<2x2xf32>
    %44 = arith.mulf %39, %43 : vector<2x2xf32>
    %cst_26 = arith.constant dense<0.000000e+00> : vector<2x8xf32>
    %45 = tpu.matmul %44, %33, %cst_26 {dimension_numbers = #tpu.dot_dimension_numbers<[1], [0], [0], [1], [0, 0, 1, 1], [], []>} : vector<2x2xf32>, vector<2x8xf32>, vector<2x8xf32> -> vector<2x8xf32>
    %c0_27 = arith.constant 0 : index
    %c0_28 = arith.constant 0 : index
    %46 = vector.load %arg31[%c0_27, %c0_28] : memref<16x32xf32, #tpu.memory_space<vmem>>, vector<2x8xf32>
    tpu.vector_store %arg31[%c0_27, %c0_28], %45 {strides = array<i32>} : memref<16x32xf32, #tpu.memory_space<vmem>>, vector<2x8xf32>,
    %47 = vector.extract_strided_slice %28 {offsets = [0, 8], sizes = [2, 8], strides = [1, 1]} : vector<2x32xf32> to vector<2x8xf32>
    %48 = vector.extract_strided_slice %29 {offsets = [0, 8], sizes = [2, 8], strides = [1, 1]} : vector<2x32xf32> to vector<2x8xf32>
    %49 = vector.extract_strided_slice %30 {offsets = [0, 8], sizes = [2, 8], strides = [1, 1]} : vector<2x32xf32> to vector<2x8xf32>
    %cst_29 = arith.constant dense<0.000000e+00> : vector<2x2xf32>
    %50 = tpu.matmul %47, %48, %cst_29 {dimension_numbers = #tpu.dot_dimension_numbers<[1], [1], [0], [0], [0, 0, 1, 0], [], []>} : vector<2x8xf32>, vector<2x8xf32>, vector<2x2xf32> -> vector<2x2xf32>
    %cst_30 = arith.constant dense<0xFF800000> : vector<2xf32>
    %51 = vector.multi_reduction <maximumf>, %50, %cst_30 [1] : vector<2x2xf32> to vector<2xf32>
    %52 = vector.shape_cast %51 : vector<2xf32> to vector<2x1xf32>
    %53 = vector.broadcast %52 : vector<2x1xf32> to vector<2x2xf32>
    %54 = arith.subf %50, %53 : vector<2x2xf32>
    %55 = math.exp %54 : vector<2x2xf32>
    %cst_31 = arith.constant dense<0.000000e+00> : vector<2xf32>
    %56 = vector.multi_reduction <add>, %55, %cst_31 [1] : vector<2x2xf32> to vector<2xf32>
    %57 = vector.shape_cast %56 : vector<2xf32> to vector<2x1xf32>
    %58 = tpu.reciprocal %57 {approx = true} : vector<2x1xf32> -> vector<2x1xf32>
    %59 = vector.broadcast %58 : vector<2x1xf32> to vector<2x2xf32>
    %60 = arith.mulf %55, %59 : vector<2x2xf32>
    %cst_32 = arith.constant dense<0.000000e+00> : vector<2x8xf32>
    %61 = tpu.matmul %60, %49, %cst_32 {dimension_numbers = #tpu.dot_dimension_numbers<[1], [0], [0], [1], [0, 0, 1, 1], [], []>} : vector<2x2xf32>, vector<2x8xf32>, vector<2x8xf32> -> vector<2x8xf32>
    %c0_33 = arith.constant 0 : index
    %c8 = arith.constant 8 : index
    %62 = vector.load %arg31[%c0_33, %c8] : memref<16x32xf32, #tpu.memory_space<vmem>>, vector<2x8xf32>
    tpu.vector_store %arg31[%c0_33, %c8], %61 {strides = array<i32>} : memref<16x32xf32, #tpu.memory_space<vmem>>, vector<2x8xf32>,
    %63 = vector.extract_strided_slice %28 {offsets = [0, 16], sizes = [2, 8], strides = [1, 1]} : vector<2x32xf32> to vector<2x8xf32>
    %64 = vector.extract_strided_slice %29 {offsets = [0, 16], sizes = [2, 8], strides = [1, 1]} : vector<2x32xf32> to vector<2x8xf32>
    %65 = vector.extract_strided_slice %30 {offsets = [0, 16], sizes = [2, 8], strides = [1, 1]} : vector<2x32xf32> to vector<2x8xf32>
    %cst_34 = arith.constant dense<0.000000e+00> : vector<2x2xf32>
    %66 = tpu.matmul %63, %64, %cst_34 {dimension_numbers = #tpu.dot_dimension_numbers<[1], [1], [0], [0], [0, 0, 1, 0], [], []>} : vector<2x8xf32>, vector<2x8xf32>, vector<2x2xf32> -> vector<2x2xf32>
    %cst_35 = arith.constant dense<0xFF800000> : vector<2xf32>
    %67 = vector.multi_reduction <maximumf>, %66, %cst_35 [1] : vector<2x2xf32> to vector<2xf32>
    %68 = vector.shape_cast %67 : vector<2xf32> to vector<2x1xf32>
    %69 = vector.broadcast %68 : vector<2x1xf32> to vector<2x2xf32>
    %70 = arith.subf %66, %69 : vector<2x2xf32>
    %71 = math.exp %70 : vector<2x2xf32>
    %cst_36 = arith.constant dense<0.000000e+00> : vector<2xf32>
    %72 = vector.multi_reduction <add>, %71, %cst_36 [1] : vector<2x2xf32> to vector<2xf32>
    %73 = vector.shape_cast %72 : vector<2xf32> to vector<2x1xf32>
    %74 = tpu.reciprocal %73 {approx = true} : vector<2x1xf32> -> vector<2x1xf32>
    %75 = vector.broadcast %74 : vector<2x1xf32> to vector<2x2xf32>
    %76 = arith.mulf %71, %75 : vector<2x2xf32>
    %cst_37 = arith.constant dense<0.000000e+00> : vector<2x8xf32>
    %77 = tpu.matmul %76, %65, %cst_37 {dimension_numbers = #tpu.dot_dimension_numbers<[1], [0], [0], [1], [0, 0, 1, 1], [], []>} : vector<2x2xf32>, vector<2x8xf32>, vector<2x8xf32> -> vector<2x8xf32>
    %c0_38 = arith.constant 0 : index
    %c16 = arith.constant 16 : index
    %78 = vector.load %arg31[%c0_38, %c16] : memref<16x32xf32, #tpu.memory_space<vmem>>, vector<2x8xf32>
    tpu.vector_store %arg31[%c0_38, %c16], %77 {strides = array<i32>} : memref<16x32xf32, #tpu.memory_space<vmem>>, vector<2x8xf32>,
    %79 = vector.extract_strided_slice %28 {offsets = [0, 24], sizes = [2, 8], strides = [1, 1]} : vector<2x32xf32> to vector<2x8xf32>
    %80 = vector.extract_strided_slice %29 {offsets = [0, 24], sizes = [2, 8], strides = [1, 1]} : vector<2x32xf32> to vector<2x8xf32>
    %81 = vector.extract_strided_slice %30 {offsets = [0, 24], sizes = [2, 8], strides = [1, 1]} : vector<2x32xf32> to vector<2x8xf32>
    %cst_39 = arith.constant dense<0.000000e+00> : vector<2x2xf32>
    %82 = tpu.matmul %79, %80, %cst_39 {dimension_numbers = #tpu.dot_dimension_numbers<[1], [1], [0], [0], [0, 0, 1, 0], [], []>} : vector<2x8xf32>, vector<2x8xf32>, vector<2x2xf32> -> vector<2x2xf32>
    %cst_40 = arith.constant dense<0xFF800000> : vector<2xf32>
    %83 = vector.multi_reduction <maximumf>, %82, %cst_40 [1] : vector<2x2xf32> to vector<2xf32>
    %84 = vector.shape_cast %83 : vector<2xf32> to vector<2x1xf32>
    %85 = vector.broadcast %84 : vector<2x1xf32> to vector<2x2xf32>
    %86 = arith.subf %82, %85 : vector<2x2xf32>
    %87 = math.exp %86 : vector<2x2xf32>
    %cst_41 = arith.constant dense<0.000000e+00> : vector<2xf32>
    %88 = vector.multi_reduction <add>, %87, %cst_41 [1] : vector<2x2xf32> to vector<2xf32>
    %89 = vector.shape_cast %88 : vector<2xf32> to vector<2x1xf32>
    %90 = tpu.reciprocal %89 {approx = true} : vector<2x1xf32> -> vector<2x1xf32>
    %91 = vector.broadcast %90 : vector<2x1xf32> to vector<2x2xf32>
    %92 = arith.mulf %87, %91 : vector<2x2xf32>
    %cst_42 = arith.constant dense<0.000000e+00> : vector<2x8xf32>
    %93 = tpu.matmul %92, %81, %cst_42 {dimension_numbers = #tpu.dot_dimension_numbers<[1], [0], [0], [1], [0, 0, 1, 1], [], []>} : vector<2x2xf32>, vector<2x8xf32>, vector<2x8xf32> -> vector<2x8xf32>
    %c0_43 = arith.constant 0 : index
    %c24 = arith.constant 24 : index
    %94 = vector.load %arg31[%c0_43, %c24] : memref<16x32xf32, #tpu.memory_space<vmem>>, vector<2x8xf32>
    tpu.vector_store %arg31[%c0_43, %c24], %93 {strides = array<i32>} : memref<16x32xf32, #tpu.memory_space<vmem>>, vector<2x8xf32>,
    %95 = vector.extract_strided_slice %13 {offsets = [2, 0], sizes = [2, 32], strides = [1, 1]} : vector<16x32xf32> to vector<2x32xf32>
    %96 = vector.extract_strided_slice %20 {offsets = [2, 0], sizes = [2, 32], strides = [1, 1]} : vector<16x32xf32> to vector<2x32xf32>
    %97 = vector.extract_strided_slice %27 {offsets = [2, 0], sizes = [2, 32], strides = [1, 1]} : vector<16x32xf32> to vector<2x32xf32>
    %98 = vector.extract_strided_slice %95 {offsets = [0, 0], sizes = [2, 8], strides = [1, 1]} : vector<2x32xf32> to vector<2x8xf32>
    %99 = vector.extract_strided_slice %96 {offsets = [0, 0], sizes = [2, 8], strides = [1, 1]} : vector<2x32xf32> to vector<2x8xf32>
    %100 = vector.extract_strided_slice %97 {offsets = [0, 0], sizes = [2, 8], strides = [1, 1]} : vector<2x32xf32> to vector<2x8xf32>
    %cst_44 = arith.constant dense<0.000000e+00> : vector<2x2xf32>
    %101 = tpu.matmul %98, %99, %cst_44 {dimension_numbers = #tpu.dot_dimension_numbers<[1], [1], [0], [0], [0, 0, 1, 0], [], []>} : vector<2x8xf32>, vector<2x8xf32>, vector<2x2xf32> -> vector<2x2xf32>
    %cst_45 = arith.constant dense<0xFF800000> : vector<2xf32>
    %102 = vector.multi_reduction <maximumf>, %101, %cst_45 [1] : vector<2x2xf32> to vector<2xf32>
    %103 = vector.shape_cast %102 : vector<2xf32> to vector<2x1xf32>
    %104 = vector.broadcast %103 : vector<2x1xf32> to vector<2x2xf32>
    %105 = arith.subf %101, %104 : vector<2x2xf32>
    %106 = math.exp %105 : vector<2x2xf32>
    %cst_46 = arith.constant dense<0.000000e+00> : vector<2xf32>
    %107 = vector.multi_reduction <add>, %106, %cst_46 [1] : vector<2x2xf32> to vector<2xf32>
    %108 = vector.shape_cast %107 : vector<2xf32> to vector<2x1xf32>
    %109 = tpu.reciprocal %108 {approx = true} : vector<2x1xf32> -> vector<2x1xf32>
    %110 = vector.broadcast %109 : vector<2x1xf32> to vector<2x2xf32>
    %111 = arith.mulf %106, %110 : vector<2x2xf32>
    %cst_47 = arith.constant dense<0.000000e+00> : vector<2x8xf32>
    %112 = tpu.matmul %111, %100, %cst_47 {dimension_numbers = #tpu.dot_dimension_numbers<[1], [0], [0], [1], [0, 0, 1, 1], [], []>} : vector<2x2xf32>, vector<2x8xf32>, vector<2x8xf32> -> vector<2x8xf32>
    %c2 = arith.constant 2 : index
    %c0_48 = arith.constant 0 : index
    %113 = vector.load %arg31[%c2, %c0_48] : memref<16x32xf32, #tpu.memory_space<vmem>>, vector<2x8xf32>
    tpu.vector_store %arg31[%c2, %c0_48], %112 {strides = array<i32>} : memref<16x32xf32, #tpu.memory_space<vmem>>, vector<2x8xf32>,
    %114 = vector.extract_strided_slice %95 {offsets = [0, 8], sizes = [2, 8], strides = [1, 1]} : vector<2x32xf32> to vector<2x8xf32>
    %115 = vector.extract_strided_slice %96 {offsets = [0, 8], sizes = [2, 8], strides = [1, 1]} : vector<2x32xf32> to vector<2x8xf32>
    %116 = vector.extract_strided_slice %97 {offsets = [0, 8], sizes = [2, 8], strides = [1, 1]} : vector<2x32xf32> to vector<2x8xf32>
    %cst_49 = arith.constant dense<0.000000e+00> : vector<2x2xf32>
    %117 = tpu.matmul %114, %115, %cst_49 {dimension_numbers = #tpu.dot_dimension_numbers<[1], [1], [0], [0], [0, 0, 1, 0], [], []>} : vector<2x8xf32>, vector<2x8xf32>, vector<2x2xf32> -> vector<2x2xf32>
    %cst_50 = arith.constant dense<0xFF800000> : vector<2xf32>
    %118 = vector.multi_reduction <maximumf>, %117, %cst_50 [1] : vector<2x2xf32> to vector<2xf32>
    %119 = vector.shape_cast %118 : vector<2xf32> to vector<2x1xf32>
    %120 = vector.broadcast %119 : vector<2x1xf32> to vector<2x2xf32>
    %121 = arith.subf %117, %120 : vector<2x2xf32>
    %122 = math.exp %121 : vector<2x2xf32>
    %cst_51 = arith.constant dense<0.000000e+00> : vector<2xf32>
    %123 = vector.multi_reduction <add>, %122, %cst_51 [1] : vector<2x2xf32> to vector<2xf32>
    %124 = vector.shape_cast %123 : vector<2xf32> to vector<2x1xf32>
    %125 = tpu.reciprocal %124 {approx = true} : vector<2x1xf32> -> vector<2x1xf32>
    %126 = vector.broadcast %125 : vector<2x1xf32> to vector<2x2xf32>
    %127 = arith.mulf %122, %126 : vector<2x2xf32>
    %cst_52 = arith.constant dense<0.000000e+00> : vector<2x8xf32>
    %128 = tpu.matmul %127, %116, %cst_52 {dimension_numbers = #tpu.dot_dimension_numbers<[1], [0], [0], [1], [0, 0, 1, 1], [], []>} : vector<2x2xf32>, vector<2x8xf32>, vector<2x8xf32> -> vector<2x8xf32>
    %c2_53 = arith.constant 2 : index
    %c8_54 = arith.constant 8 : index
    %129 = vector.load %arg31[%c2_53, %c8_54] : memref<16x32xf32, #tpu.memory_space<vmem>>, vector<2x8xf32>
    tpu.vector_store %arg31[%c2_53, %c8_54], %128 {strides = array<i32>} : memref<16x32xf32, #tpu.memory_space<vmem>>, vector<2x8xf32>,
    %130 = vector.extract_strided_slice %95 {offsets = [0, 16], sizes = [2, 8], strides = [1, 1]} : vector<2x32xf32> to vector<2x8xf32>
    %131 = vector.extract_strided_slice %96 {offsets = [0, 16], sizes = [2, 8], strides = [1, 1]} : vector<2x32xf32> to vector<2x8xf32>
    %132 = vector.extract_strided_slice %97 {offsets = [0, 16], sizes = [2, 8], strides = [1, 1]} : vector<2x32xf32> to vector<2x8xf32>
    %cst_55 = arith.constant dense<0.000000e+00> : vector<2x2xf32>
    %133 = tpu.matmul %130, %131, %cst_55 {dimension_numbers = #tpu.dot_dimension_numbers<[1], [1], [0], [0], [0, 0, 1, 0], [], []>} : vector<2x8xf32>, vector<2x8xf32>, vector<2x2xf32> -> vector<2x2xf32>
    %cst_56 = arith.constant dense<0xFF800000> : vector<2xf32>
    %134 = vector.multi_reduction <maximumf>, %133, %cst_56 [1] : vector<2x2xf32> to vector<2xf32>
    %135 = vector.shape_cast %134 : vector<2xf32> to vector<2x1xf32>
    %136 = vector.broadcast %135 : vector<2x1xf32> to vector<2x2xf32>
    %137 = arith.subf %133, %136 : vector<2x2xf32>
    %138 = math.exp %137 : vector<2x2xf32>
    %cst_57 = arith.constant dense<0.000000e+00> : vector<2xf32>
    %139 = vector.multi_reduction <add>, %138, %cst_57 [1] : vector<2x2xf32> to vector<2xf32>
    %140 = vector.shape_cast %139 : vector<2xf32> to vector<2x1xf32>
    %141 = tpu.reciprocal %140 {approx = true} : vector<2x1xf32> -> vector<2x1xf32>
    %142 = vector.broadcast %141 : vector<2x1xf32> to vector<2x2xf32>
    %143 = arith.mulf %138, %142 : vector<2x2xf32>
    %cst_58 = arith.constant dense<0.000000e+00> : vector<2x8xf32>
    %144 = tpu.matmul %143, %132, %cst_58 {dimension_numbers = #tpu.dot_dimension_numbers<[1], [0], [0], [1], [0, 0, 1, 1], [], []>} : vector<2x2xf32>, vector<2x8xf32>, vector<2x8xf32> -> vector<2x8xf32>
    %c2_59 = arith.constant 2 : index
    %c16_60 = arith.constant 16 : index
    %145 = vector.load %arg31[%c2_59, %c16_60] : memref<16x32xf32, #tpu.memory_space<vmem>>, vector<2x8xf32>
    tpu.vector_store %arg31[%c2_59, %c16_60], %144 {strides = array<i32>} : memref<16x32xf32, #tpu.memory_space<vmem>>, vector<2x8xf32>,
    %146 = vector.extract_strided_slice %95 {offsets = [0, 24], sizes = [2, 8], strides = [1, 1]} : vector<2x32xf32> to vector<2x8xf32>
    %147 = vector.extract_strided_slice %96 {offsets = [0, 24], sizes = [2, 8], strides = [1, 1]} : vector<2x32xf32> to vector<2x8xf32>
    %148 = vector.extract_strided_slice %97 {offsets = [0, 24], sizes = [2, 8], strides = [1, 1]} : vector<2x32xf32> to vector<2x8xf32>
    %cst_61 = arith.constant dense<0.000000e+00> : vector<2x2xf32>
    %149 = tpu.matmul %146, %147, %cst_61 {dimension_numbers = #tpu.dot_dimension_numbers<[1], [1], [0], [0], [0, 0, 1, 0], [], []>} : vector<2x8xf32>, vector<2x8xf32>, vector<2x2xf32> -> vector<2x2xf32>
    %cst_62 = arith.constant dense<0xFF800000> : vector<2xf32>
    %150 = vector.multi_reduction <maximumf>, %149, %cst_62 [1] : vector<2x2xf32> to vector<2xf32>
    %151 = vector.shape_cast %150 : vector<2xf32> to vector<2x1xf32>
    %152 = vector.broadcast %151 : vector<2x1xf32> to vector<2x2xf32>
    %153 = arith.subf %149, %152 : vector<2x2xf32>
    %154 = math.exp %153 : vector<2x2xf32>
    %cst_63 = arith.constant dense<0.000000e+00> : vector<2xf32>
    %155 = vector.multi_reduction <add>, %154, %cst_63 [1] : vector<2x2xf32> to vector<2xf32>
    %156 = vector.shape_cast %155 : vector<2xf32> to vector<2x1xf32>
    %157 = tpu.reciprocal %156 {approx = true} : vector<2x1xf32> -> vector<2x1xf32>
    %158 = vector.broadcast %157 : vector<2x1xf32> to vector<2x2xf32>
    %159 = arith.mulf %154, %158 : vector<2x2xf32>
    %cst_64 = arith.constant dense<0.000000e+00> : vector<2x8xf32>
    %160 = tpu.matmul %159, %148, %cst_64 {dimension_numbers = #tpu.dot_dimension_numbers<[1], [0], [0], [1], [0, 0, 1, 1], [], []>} : vector<2x2xf32>, vector<2x8xf32>, vector<2x8xf32> -> vector<2x8xf32>
    %c2_65 = arith.constant 2 : index
    %c24_66 = arith.constant 24 : index
    %161 = vector.load %arg31[%c2_65, %c24_66] : memref<16x32xf32, #tpu.memory_space<vmem>>, vector<2x8xf32>
    tpu.vector_store %arg31[%c2_65, %c24_66], %160 {strides = array<i32>} : memref<16x32xf32, #tpu.memory_space<vmem>>, vector<2x8xf32>,
    %162 = vector.extract_strided_slice %13 {offsets = [4, 0], sizes = [2, 32], strides = [1, 1]} : vector<16x32xf32> to vector<2x32xf32>
    %163 = vector.extract_strided_slice %20 {offsets = [4, 0], sizes = [2, 32], strides = [1, 1]} : vector<16x32xf32> to vector<2x32xf32>
    %164 = vector.extract_strided_slice %27 {offsets = [4, 0], sizes = [2, 32], strides = [1, 1]} : vector<16x32xf32> to vector<2x32xf32>
    %165 = vector.extract_strided_slice %162 {offsets = [0, 0], sizes = [2, 8], strides = [1, 1]} : vector<2x32xf32> to vector<2x8xf32>
    %166 = vector.extract_strided_slice %163 {offsets = [0, 0], sizes = [2, 8], strides = [1, 1]} : vector<2x32xf32> to vector<2x8xf32>
    %167 = vector.extract_strided_slice %164 {offsets = [0, 0], sizes = [2, 8], strides = [1, 1]} : vector<2x32xf32> to vector<2x8xf32>
    %cst_67 = arith.constant dense<0.000000e+00> : vector<2x2xf32>
    %168 = tpu.matmul %165, %166, %cst_67 {dimension_numbers = #tpu.dot_dimension_numbers<[1], [1], [0], [0], [0, 0, 1, 0], [], []>} : vector<2x8xf32>, vector<2x8xf32>, vector<2x2xf32> -> vector<2x2xf32>
    %cst_68 = arith.constant dense<0xFF800000> : vector<2xf32>
    %169 = vector.multi_reduction <maximumf>, %168, %cst_68 [1] : vector<2x2xf32> to vector<2xf32>
    %170 = vector.shape_cast %169 : vector<2xf32> to vector<2x1xf32>
    %171 = vector.broadcast %170 : vector<2x1xf32> to vector<2x2xf32>
    %172 = arith.subf %168, %171 : vector<2x2xf32>
    %173 = math.exp %172 : vector<2x2xf32>
    %cst_69 = arith.constant dense<0.000000e+00> : vector<2xf32>
    %174 = vector.multi_reduction <add>, %173, %cst_69 [1] : vector<2x2xf32> to vector<2xf32>
    %175 = vector.shape_cast %174 : vector<2xf32> to vector<2x1xf32>
    %176 = tpu.reciprocal %175 {approx = true} : vector<2x1xf32> -> vector<2x1xf32>
    %177 = vector.broadcast %176 : vector<2x1xf32> to vector<2x2xf32>
    %178 = arith.mulf %173, %177 : vector<2x2xf32>
    %cst_70 = arith.constant dense<0.000000e+00> : vector<2x8xf32>
    %179 = tpu.matmul %178, %167, %cst_70 {dimension_numbers = #tpu.dot_dimension_numbers<[1], [0], [0], [1], [0, 0, 1, 1], [], []>} : vector<2x2xf32>, vector<2x8xf32>, vector<2x8xf32> -> vector<2x8xf32>
    %c4 = arith.constant 4 : index
    %c0_71 = arith.constant 0 : index
    %180 = vector.load %arg31[%c4, %c0_71] : memref<16x32xf32, #tpu.memory_space<vmem>>, vector<2x8xf32>
    tpu.vector_store %arg31[%c4, %c0_71], %179 {strides = array<i32>} : memref<16x32xf32, #tpu.memory_space<vmem>>, vector<2x8xf32>,
    %181 = vector.extract_strided_slice %162 {offsets = [0, 8], sizes = [2, 8], strides = [1, 1]} : vector<2x32xf32> to vector<2x8xf32>
    %182 = vector.extract_strided_slice %163 {offsets = [0, 8], sizes = [2, 8], strides = [1, 1]} : vector<2x32xf32> to vector<2x8xf32>
    %183 = vector.extract_strided_slice %164 {offsets = [0, 8], sizes = [2, 8], strides = [1, 1]} : vector<2x32xf32> to vector<2x8xf32>
    %cst_72 = arith.constant dense<0.000000e+00> : vector<2x2xf32>
    %184 = tpu.matmul %181, %182, %cst_72 {dimension_numbers = #tpu.dot_dimension_numbers<[1], [1], [0], [0], [0, 0, 1, 0], [], []>} : vector<2x8xf32>, vector<2x8xf32>, vector<2x2xf32> -> vector<2x2xf32>
    %cst_73 = arith.constant dense<0xFF800000> : vector<2xf32>
    %185 = vector.multi_reduction <maximumf>, %184, %cst_73 [1] : vector<2x2xf32> to vector<2xf32>
    %186 = vector.shape_cast %185 : vector<2xf32> to vector<2x1xf32>
    %187 = vector.broadcast %186 : vector<2x1xf32> to vector<2x2xf32>
    %188 = arith.subf %184, %187 : vector<2x2xf32>
    %189 = math.exp %188 : vector<2x2xf32>
    %cst_74 = arith.constant dense<0.000000e+00> : vector<2xf32>
    %190 = vector.multi_reduction <add>, %189, %cst_74 [1] : vector<2x2xf32> to vector<2xf32>
    %191 = vector.shape_cast %190 : vector<2xf32> to vector<2x1xf32>
    %192 = tpu.reciprocal %191 {approx = true} : vector<2x1xf32> -> vector<2x1xf32>
    %193 = vector.broadcast %192 : vector<2x1xf32> to vector<2x2xf32>
    %194 = arith.mulf %189, %193 : vector<2x2xf32>
    %cst_75 = arith.constant dense<0.000000e+00> : vector<2x8xf32>
    %195 = tpu.matmul %194, %183, %cst_75 {dimension_numbers = #tpu.dot_dimension_numbers<[1], [0], [0], [1], [0, 0, 1, 1], [], []>} : vector<2x2xf32>, vector<2x8xf32>, vector<2x8xf32> -> vector<2x8xf32>
    %c4_76 = arith.constant 4 : index
    %c8_77 = arith.constant 8 : index
    %196 = vector.load %arg31[%c4_76, %c8_77] : memref<16x32xf32, #tpu.memory_space<vmem>>, vector<2x8xf32>
    tpu.vector_store %arg31[%c4_76, %c8_77], %195 {strides = array<i32>} : memref<16x32xf32, #tpu.memory_space<vmem>>, vector<2x8xf32>,
    %197 = vector.extract_strided_slice %162 {offsets = [0, 16], sizes = [2, 8], strides = [1, 1]} : vector<2x32xf32> to vector<2x8xf32>
    %198 = vector.extract_strided_slice %163 {offsets = [0, 16], sizes = [2, 8], strides = [1, 1]} : vector<2x32xf32> to vector<2x8xf32>
    %199 = vector.extract_strided_slice %164 {offsets = [0, 16], sizes = [2, 8], strides = [1, 1]} : vector<2x32xf32> to vector<2x8xf32>
    %cst_78 = arith.constant dense<0.000000e+00> : vector<2x2xf32>
    %200 = tpu.matmul %197, %198, %cst_78 {dimension_numbers = #tpu.dot_dimension_numbers<[1], [1], [0], [0], [0, 0, 1, 0], [], []>} : vector<2x8xf32>, vector<2x8xf32>, vector<2x2xf32> -> vector<2x2xf32>
    %cst_79 = arith.constant dense<0xFF800000> : vector<2xf32>
    %201 = vector.multi_reduction <maximumf>, %200, %cst_79 [1] : vector<2x2xf32> to vector<2xf32>
    %202 = vector.shape_cast %201 : vector<2xf32> to vector<2x1xf32>
    %203 = vector.broadcast %202 : vector<2x1xf32> to vector<2x2xf32>
    %204 = arith.subf %200, %203 : vector<2x2xf32>
    %205 = math.exp %204 : vector<2x2xf32>
    %cst_80 = arith.constant dense<0.000000e+00> : vector<2xf32>
    %206 = vector.multi_reduction <add>, %205, %cst_80 [1] : vector<2x2xf32> to vector<2xf32>
    %207 = vector.shape_cast %206 : vector<2xf32> to vector<2x1xf32>
    %208 = tpu.reciprocal %207 {approx = true} : vector<2x1xf32> -> vector<2x1xf32>
    %209 = vector.broadcast %208 : vector<2x1xf32> to vector<2x2xf32>
    %210 = arith.mulf %205, %209 : vector<2x2xf32>
    %cst_81 = arith.constant dense<0.000000e+00> : vector<2x8xf32>
    %211 = tpu.matmul %210, %199, %cst_81 {dimension_numbers = #tpu.dot_dimension_numbers<[1], [0], [0], [1], [0, 0, 1, 1], [], []>} : vector<2x2xf32>, vector<2x8xf32>, vector<2x8xf32> -> vector<2x8xf32>
    %c4_82 = arith.constant 4 : index
    %c16_83 = arith.constant 16 : index
    %212 = vector.load %arg31[%c4_82, %c16_83] : memref<16x32xf32, #tpu.memory_space<vmem>>, vector<2x8xf32>
    tpu.vector_store %arg31[%c4_82, %c16_83], %211 {strides = array<i32>} : memref<16x32xf32, #tpu.memory_space<vmem>>, vector<2x8xf32>,
    %213 = vector.extract_strided_slice %162 {offsets = [0, 24], sizes = [2, 8], strides = [1, 1]} : vector<2x32xf32> to vector<2x8xf32>
    %214 = vector.extract_strided_slice %163 {offsets = [0, 24], sizes = [2, 8], strides = [1, 1]} : vector<2x32xf32> to vector<2x8xf32>
    %215 = vector.extract_strided_slice %164 {offsets = [0, 24], sizes = [2, 8], strides = [1, 1]} : vector<2x32xf32> to vector<2x8xf32>
    %cst_84 = arith.constant dense<0.000000e+00> : vector<2x2xf32>
    %216 = tpu.matmul %213, %214, %cst_84 {dimension_numbers = #tpu.dot_dimension_numbers<[1], [1], [0], [0], [0, 0, 1, 0], [], []>} : vector<2x8xf32>, vector<2x8xf32>, vector<2x2xf32> -> vector<2x2xf32>
    %cst_85 = arith.constant dense<0xFF800000> : vector<2xf32>
    %217 = vector.multi_reduction <maximumf>, %216, %cst_85 [1] : vector<2x2xf32> to vector<2xf32>
    %218 = vector.shape_cast %217 : vector<2xf32> to vector<2x1xf32>
    %219 = vector.broadcast %218 : vector<2x1xf32> to vector<2x2xf32>
    %220 = arith.subf %216, %219 : vector<2x2xf32>
    %221 = math.exp %220 : vector<2x2xf32>
    %cst_86 = arith.constant dense<0.000000e+00> : vector<2xf32>
    %222 = vector.multi_reduction <add>, %221, %cst_86 [1] : vector<2x2xf32> to vector<2xf32>
    %223 = vector.shape_cast %222 : vector<2xf32> to vector<2x1xf32>
    %224 = tpu.reciprocal %223 {approx = true} : vector<2x1xf32> -> vector<2x1xf32>
    %225 = vector.broadcast %224 : vector<2x1xf32> to vector<2x2xf32>
    %226 = arith.mulf %221, %225 : vector<2x2xf32>
    %cst_87 = arith.constant dense<0.000000e+00> : vector<2x8xf32>
    %227 = tpu.matmul %226, %215, %cst_87 {dimension_numbers = #tpu.dot_dimension_numbers<[1], [0], [0], [1], [0, 0, 1, 1], [], []>} : vector<2x2xf32>, vector<2x8xf32>, vector<2x8xf32> -> vector<2x8xf32>
    %c4_88 = arith.constant 4 : index
    %c24_89 = arith.constant 24 : index
    %228 = vector.load %arg31[%c4_88, %c24_89] : memref<16x32xf32, #tpu.memory_space<vmem>>, vector<2x8xf32>
    tpu.vector_store %arg31[%c4_88, %c24_89], %227 {strides = array<i32>} : memref<16x32xf32, #tpu.memory_space<vmem>>, vector<2x8xf32>,
    %229 = vector.extract_strided_slice %13 {offsets = [6, 0], sizes = [2, 32], strides = [1, 1]} : vector<16x32xf32> to vector<2x32xf32>
    %230 = vector.extract_strided_slice %20 {offsets = [6, 0], sizes = [2, 32], strides = [1, 1]} : vector<16x32xf32> to vector<2x32xf32>
    %231 = vector.extract_strided_slice %27 {offsets = [6, 0], sizes = [2, 32], strides = [1, 1]} : vector<16x32xf32> to vector<2x32xf32>
    %232 = vector.extract_strided_slice %229 {offsets = [0, 0], sizes = [2, 8], strides = [1, 1]} : vector<2x32xf32> to vector<2x8xf32>
    %233 = vector.extract_strided_slice %230 {offsets = [0, 0], sizes = [2, 8], strides = [1, 1]} : vector<2x32xf32> to vector<2x8xf32>
    %234 = vector.extract_strided_slice %231 {offsets = [0, 0], sizes = [2, 8], strides = [1, 1]} : vector<2x32xf32> to vector<2x8xf32>
    %cst_90 = arith.constant dense<0.000000e+00> : vector<2x2xf32>
    %235 = tpu.matmul %232, %233, %cst_90 {dimension_numbers = #tpu.dot_dimension_numbers<[1], [1], [0], [0], [0, 0, 1, 0], [], []>} : vector<2x8xf32>, vector<2x8xf32>, vector<2x2xf32> -> vector<2x2xf32>
    %cst_91 = arith.constant dense<0xFF800000> : vector<2xf32>
    %236 = vector.multi_reduction <maximumf>, %235, %cst_91 [1] : vector<2x2xf32> to vector<2xf32>
    %237 = vector.shape_cast %236 : vector<2xf32> to vector<2x1xf32>
    %238 = vector.broadcast %237 : vector<2x1xf32> to vector<2x2xf32>
    %239 = arith.subf %235, %238 : vector<2x2xf32>
    %240 = math.exp %239 : vector<2x2xf32>
    %cst_92 = arith.constant dense<0.000000e+00> : vector<2xf32>
    %241 = vector.multi_reduction <add>, %240, %cst_92 [1] : vector<2x2xf32> to vector<2xf32>
    %242 = vector.shape_cast %241 : vector<2xf32> to vector<2x1xf32>
    %243 = tpu.reciprocal %242 {approx = true} : vector<2x1xf32> -> vector<2x1xf32>
    %244 = vector.broadcast %243 : vector<2x1xf32> to vector<2x2xf32>
    %245 = arith.mulf %240, %244 : vector<2x2xf32>
    %cst_93 = arith.constant dense<0.000000e+00> : vector<2x8xf32>
    %246 = tpu.matmul %245, %234, %cst_93 {dimension_numbers = #tpu.dot_dimension_numbers<[1], [0], [0], [1], [0, 0, 1, 1], [], []>} : vector<2x2xf32>, vector<2x8xf32>, vector<2x8xf32> -> vector<2x8xf32>
    %c6 = arith.constant 6 : index
    %c0_94 = arith.constant 0 : index
    %247 = vector.load %arg31[%c6, %c0_94] : memref<16x32xf32, #tpu.memory_space<vmem>>, vector<2x8xf32>
    tpu.vector_store %arg31[%c6, %c0_94], %246 {strides = array<i32>} : memref<16x32xf32, #tpu.memory_space<vmem>>, vector<2x8xf32>,
    %248 = vector.extract_strided_slice %229 {offsets = [0, 8], sizes = [2, 8], strides = [1, 1]} : vector<2x32xf32> to vector<2x8xf32>
    %249 = vector.extract_strided_slice %230 {offsets = [0, 8], sizes = [2, 8], strides = [1, 1]} : vector<2x32xf32> to vector<2x8xf32>
    %250 = vector.extract_strided_slice %231 {offsets = [0, 8], sizes = [2, 8], strides = [1, 1]} : vector<2x32xf32> to vector<2x8xf32>
    %cst_95 = arith.constant dense<0.000000e+00> : vector<2x2xf32>
    %251 = tpu.matmul %248, %249, %cst_95 {dimension_numbers = #tpu.dot_dimension_numbers<[1], [1], [0], [0], [0, 0, 1, 0], [], []>} : vector<2x8xf32>, vector<2x8xf32>, vector<2x2xf32> -> vector<2x2xf32>
    %cst_96 = arith.constant dense<0xFF800000> : vector<2xf32>
    %252 = vector.multi_reduction <maximumf>, %251, %cst_96 [1] : vector<2x2xf32> to vector<2xf32>
    %253 = vector.shape_cast %252 : vector<2xf32> to vector<2x1xf32>
    %254 = vector.broadcast %253 : vector<2x1xf32> to vector<2x2xf32>
    %255 = arith.subf %251, %254 : vector<2x2xf32>
    %256 = math.exp %255 : vector<2x2xf32>
    %cst_97 = arith.constant dense<0.000000e+00> : vector<2xf32>
    %257 = vector.multi_reduction <add>, %256, %cst_97 [1] : vector<2x2xf32> to vector<2xf32>
    %258 = vector.shape_cast %257 : vector<2xf32> to vector<2x1xf32>
    %259 = tpu.reciprocal %258 {approx = true} : vector<2x1xf32> -> vector<2x1xf32>
    %260 = vector.broadcast %259 : vector<2x1xf32> to vector<2x2xf32>
    %261 = arith.mulf %256, %260 : vector<2x2xf32>
    %cst_98 = arith.constant dense<0.000000e+00> : vector<2x8xf32>
    %262 = tpu.matmul %261, %250, %cst_98 {dimension_numbers = #tpu.dot_dimension_numbers<[1], [0], [0], [1], [0, 0, 1, 1], [], []>} : vector<2x2xf32>, vector<2x8xf32>, vector<2x8xf32> -> vector<2x8xf32>
    %c6_99 = arith.constant 6 : index
    %c8_100 = arith.constant 8 : index
    %263 = vector.load %arg31[%c6_99, %c8_100] : memref<16x32xf32, #tpu.memory_space<vmem>>, vector<2x8xf32>
    tpu.vector_store %arg31[%c6_99, %c8_100], %262 {strides = array<i32>} : memref<16x32xf32, #tpu.memory_space<vmem>>, vector<2x8xf32>,
    %264 = vector.extract_strided_slice %229 {offsets = [0, 16], sizes = [2, 8], strides = [1, 1]} : vector<2x32xf32> to vector<2x8xf32>
    %265 = vector.extract_strided_slice %230 {offsets = [0, 16], sizes = [2, 8], strides = [1, 1]} : vector<2x32xf32> to vector<2x8xf32>
    %266 = vector.extract_strided_slice %231 {offsets = [0, 16], sizes = [2, 8], strides = [1, 1]} : vector<2x32xf32> to vector<2x8xf32>
    %cst_101 = arith.constant dense<0.000000e+00> : vector<2x2xf32>
    %267 = tpu.matmul %264, %265, %cst_101 {dimension_numbers = #tpu.dot_dimension_numbers<[1], [1], [0], [0], [0, 0, 1, 0], [], []>} : vector<2x8xf32>, vector<2x8xf32>, vector<2x2xf32> -> vector<2x2xf32>
    %cst_102 = arith.constant dense<0xFF800000> : vector<2xf32>
    %268 = vector.multi_reduction <maximumf>, %267, %cst_102 [1] : vector<2x2xf32> to vector<2xf32>
    %269 = vector.shape_cast %268 : vector<2xf32> to vector<2x1xf32>
    %270 = vector.broadcast %269 : vector<2x1xf32> to vector<2x2xf32>
    %271 = arith.subf %267, %270 : vector<2x2xf32>
    %272 = math.exp %271 : vector<2x2xf32>
    %cst_103 = arith.constant dense<0.000000e+00> : vector<2xf32>
    %273 = vector.multi_reduction <add>, %272, %cst_103 [1] : vector<2x2xf32> to vector<2xf32>
    %274 = vector.shape_cast %273 : vector<2xf32> to vector<2x1xf32>
    %275 = tpu.reciprocal %274 {approx = true} : vector<2x1xf32> -> vector<2x1xf32>
    %276 = vector.broadcast %275 : vector<2x1xf32> to vector<2x2xf32>
    %277 = arith.mulf %272, %276 : vector<2x2xf32>
    %cst_104 = arith.constant dense<0.000000e+00> : vector<2x8xf32>
    %278 = tpu.matmul %277, %266, %cst_104 {dimension_numbers = #tpu.dot_dimension_numbers<[1], [0], [0], [1], [0, 0, 1, 1], [], []>} : vector<2x2xf32>, vector<2x8xf32>, vector<2x8xf32> -> vector<2x8xf32>
    %c6_105 = arith.constant 6 : index
    %c16_106 = arith.constant 16 : index
    %279 = vector.load %arg31[%c6_105, %c16_106] : memref<16x32xf32, #tpu.memory_space<vmem>>, vector<2x8xf32>
    tpu.vector_store %arg31[%c6_105, %c16_106], %278 {strides = array<i32>} : memref<16x32xf32, #tpu.memory_space<vmem>>, vector<2x8xf32>,
    %280 = vector.extract_strided_slice %229 {offsets = [0, 24], sizes = [2, 8], strides = [1, 1]} : vector<2x32xf32> to vector<2x8xf32>
    %281 = vector.extract_strided_slice %230 {offsets = [0, 24], sizes = [2, 8], strides = [1, 1]} : vector<2x32xf32> to vector<2x8xf32>
    %282 = vector.extract_strided_slice %231 {offsets = [0, 24], sizes = [2, 8], strides = [1, 1]} : vector<2x32xf32> to vector<2x8xf32>
    %cst_107 = arith.constant dense<0.000000e+00> : vector<2x2xf32>
    %283 = tpu.matmul %280, %281, %cst_107 {dimension_numbers = #tpu.dot_dimension_numbers<[1], [1], [0], [0], [0, 0, 1, 0], [], []>} : vector<2x8xf32>, vector<2x8xf32>, vector<2x2xf32> -> vector<2x2xf32>
    %cst_108 = arith.constant dense<0xFF800000> : vector<2xf32>
    %284 = vector.multi_reduction <maximumf>, %283, %cst_108 [1] : vector<2x2xf32> to vector<2xf32>
    %285 = vector.shape_cast %284 : vector<2xf32> to vector<2x1xf32>
    %286 = vector.broadcast %285 : vector<2x1xf32> to vector<2x2xf32>
    %287 = arith.subf %283, %286 : vector<2x2xf32>
    %288 = math.exp %287 : vector<2x2xf32>
    %cst_109 = arith.constant dense<0.000000e+00> : vector<2xf32>
    %289 = vector.multi_reduction <add>, %288, %cst_109 [1] : vector<2x2xf32> to vector<2xf32>
    %290 = vector.shape_cast %289 : vector<2xf32> to vector<2x1xf32>
    %291 = tpu.reciprocal %290 {approx = true} : vector<2x1xf32> -> vector<2x1xf32>
    %292 = vector.broadcast %291 : vector<2x1xf32> to vector<2x2xf32>
    %293 = arith.mulf %288, %292 : vector<2x2xf32>
    %cst_110 = arith.constant dense<0.000000e+00> : vector<2x8xf32>
    %294 = tpu.matmul %293, %282, %cst_110 {dimension_numbers = #tpu.dot_dimension_numbers<[1], [0], [0], [1], [0, 0, 1, 1], [], []>} : vector<2x2xf32>, vector<2x8xf32>, vector<2x8xf32> -> vector<2x8xf32>
    %c6_111 = arith.constant 6 : index
    %c24_112 = arith.constant 24 : index
    %295 = vector.load %arg31[%c6_111, %c24_112] : memref<16x32xf32, #tpu.memory_space<vmem>>, vector<2x8xf32>
    tpu.vector_store %arg31[%c6_111, %c24_112], %294 {strides = array<i32>} : memref<16x32xf32, #tpu.memory_space<vmem>>, vector<2x8xf32>,
    %296 = vector.extract_strided_slice %13 {offsets = [8, 0], sizes = [2, 32], strides = [1, 1]} : vector<16x32xf32> to vector<2x32xf32>
    %297 = vector.extract_strided_slice %20 {offsets = [8, 0], sizes = [2, 32], strides = [1, 1]} : vector<16x32xf32> to vector<2x32xf32>
    %298 = vector.extract_strided_slice %27 {offsets = [8, 0], sizes = [2, 32], strides = [1, 1]} : vector<16x32xf32> to vector<2x32xf32>
    %299 = vector.extract_strided_slice %296 {offsets = [0, 0], sizes = [2, 8], strides = [1, 1]} : vector<2x32xf32> to vector<2x8xf32>
    %300 = vector.extract_strided_slice %297 {offsets = [0, 0], sizes = [2, 8], strides = [1, 1]} : vector<2x32xf32> to vector<2x8xf32>
    %301 = vector.extract_strided_slice %298 {offsets = [0, 0], sizes = [2, 8], strides = [1, 1]} : vector<2x32xf32> to vector<2x8xf32>
    %cst_113 = arith.constant dense<0.000000e+00> : vector<2x2xf32>
    %302 = tpu.matmul %299, %300, %cst_113 {dimension_numbers = #tpu.dot_dimension_numbers<[1], [1], [0], [0], [0, 0, 1, 0], [], []>} : vector<2x8xf32>, vector<2x8xf32>, vector<2x2xf32> -> vector<2x2xf32>
    %cst_114 = arith.constant dense<0xFF800000> : vector<2xf32>
    %303 = vector.multi_reduction <maximumf>, %302, %cst_114 [1] : vector<2x2xf32> to vector<2xf32>
    %304 = vector.shape_cast %303 : vector<2xf32> to vector<2x1xf32>
    %305 = vector.broadcast %304 : vector<2x1xf32> to vector<2x2xf32>
    %306 = arith.subf %302, %305 : vector<2x2xf32>
    %307 = math.exp %306 : vector<2x2xf32>
    %cst_115 = arith.constant dense<0.000000e+00> : vector<2xf32>
    %308 = vector.multi_reduction <add>, %307, %cst_115 [1] : vector<2x2xf32> to vector<2xf32>
    %309 = vector.shape_cast %308 : vector<2xf32> to vector<2x1xf32>
    %310 = tpu.reciprocal %309 {approx = true} : vector<2x1xf32> -> vector<2x1xf32>
    %311 = vector.broadcast %310 : vector<2x1xf32> to vector<2x2xf32>
    %312 = arith.mulf %307, %311 : vector<2x2xf32>
    %cst_116 = arith.constant dense<0.000000e+00> : vector<2x8xf32>
    %313 = tpu.matmul %312, %301, %cst_116 {dimension_numbers = #tpu.dot_dimension_numbers<[1], [0], [0], [1], [0, 0, 1, 1], [], []>} : vector<2x2xf32>, vector<2x8xf32>, vector<2x8xf32> -> vector<2x8xf32>
    %c8_117 = arith.constant 8 : index
    %c0_118 = arith.constant 0 : index
    %314 = vector.load %arg31[%c8_117, %c0_118] : memref<16x32xf32, #tpu.memory_space<vmem>>, vector<2x8xf32>
    tpu.vector_store %arg31[%c8_117, %c0_118], %313 {strides = array<i32>} : memref<16x32xf32, #tpu.memory_space<vmem>>, vector<2x8xf32>,
    %315 = vector.extract_strided_slice %296 {offsets = [0, 8], sizes = [2, 8], strides = [1, 1]} : vector<2x32xf32> to vector<2x8xf32>
    %316 = vector.extract_strided_slice %297 {offsets = [0, 8], sizes = [2, 8], strides = [1, 1]} : vector<2x32xf32> to vector<2x8xf32>
    %317 = vector.extract_strided_slice %298 {offsets = [0, 8], sizes = [2, 8], strides = [1, 1]} : vector<2x32xf32> to vector<2x8xf32>
    %cst_119 = arith.constant dense<0.000000e+00> : vector<2x2xf32>
    %318 = tpu.matmul %315, %316, %cst_119 {dimension_numbers = #tpu.dot_dimension_numbers<[1], [1], [0], [0], [0, 0, 1, 0], [], []>} : vector<2x8xf32>, vector<2x8xf32>, vector<2x2xf32> -> vector<2x2xf32>
    %cst_120 = arith.constant dense<0xFF800000> : vector<2xf32>
    %319 = vector.multi_reduction <maximumf>, %318, %cst_120 [1] : vector<2x2xf32> to vector<2xf32>
    %320 = vector.shape_cast %319 : vector<2xf32> to vector<2x1xf32>
    %321 = vector.broadcast %320 : vector<2x1xf32> to vector<2x2xf32>
    %322 = arith.subf %318, %321 : vector<2x2xf32>
    %323 = math.exp %322 : vector<2x2xf32>
    %cst_121 = arith.constant dense<0.000000e+00> : vector<2xf32>
    %324 = vector.multi_reduction <add>, %323, %cst_121 [1] : vector<2x2xf32> to vector<2xf32>
    %325 = vector.shape_cast %324 : vector<2xf32> to vector<2x1xf32>
    %326 = tpu.reciprocal %325 {approx = true} : vector<2x1xf32> -> vector<2x1xf32>
    %327 = vector.broadcast %326 : vector<2x1xf32> to vector<2x2xf32>
    %328 = arith.mulf %323, %327 : vector<2x2xf32>
    %cst_122 = arith.constant dense<0.000000e+00> : vector<2x8xf32>
    %329 = tpu.matmul %328, %317, %cst_122 {dimension_numbers = #tpu.dot_dimension_numbers<[1], [0], [0], [1], [0, 0, 1, 1], [], []>} : vector<2x2xf32>, vector<2x8xf32>, vector<2x8xf32> -> vector<2x8xf32>
    %c8_123 = arith.constant 8 : index
    %c8_124 = arith.constant 8 : index
    %330 = vector.load %arg31[%c8_123, %c8_124] : memref<16x32xf32, #tpu.memory_space<vmem>>, vector<2x8xf32>
    tpu.vector_store %arg31[%c8_123, %c8_124], %329 {strides = array<i32>} : memref<16x32xf32, #tpu.memory_space<vmem>>, vector<2x8xf32>,
    %331 = vector.extract_strided_slice %296 {offsets = [0, 16], sizes = [2, 8], strides = [1, 1]} : vector<2x32xf32> to vector<2x8xf32>
    %332 = vector.extract_strided_slice %297 {offsets = [0, 16], sizes = [2, 8], strides = [1, 1]} : vector<2x32xf32> to vector<2x8xf32>
    %333 = vector.extract_strided_slice %298 {offsets = [0, 16], sizes = [2, 8], strides = [1, 1]} : vector<2x32xf32> to vector<2x8xf32>
    %cst_125 = arith.constant dense<0.000000e+00> : vector<2x2xf32>
    %334 = tpu.matmul %331, %332, %cst_125 {dimension_numbers = #tpu.dot_dimension_numbers<[1], [1], [0], [0], [0, 0, 1, 0], [], []>} : vector<2x8xf32>, vector<2x8xf32>, vector<2x2xf32> -> vector<2x2xf32>
    %cst_126 = arith.constant dense<0xFF800000> : vector<2xf32>
    %335 = vector.multi_reduction <maximumf>, %334, %cst_126 [1] : vector<2x2xf32> to vector<2xf32>
    %336 = vector.shape_cast %335 : vector<2xf32> to vector<2x1xf32>
    %337 = vector.broadcast %336 : vector<2x1xf32> to vector<2x2xf32>
    %338 = arith.subf %334, %337 : vector<2x2xf32>
    %339 = math.exp %338 : vector<2x2xf32>
    %cst_127 = arith.constant dense<0.000000e+00> : vector<2xf32>
    %340 = vector.multi_reduction <add>, %339, %cst_127 [1] : vector<2x2xf32> to vector<2xf32>
    %341 = vector.shape_cast %340 : vector<2xf32> to vector<2x1xf32>
    %342 = tpu.reciprocal %341 {approx = true} : vector<2x1xf32> -> vector<2x1xf32>
    %343 = vector.broadcast %342 : vector<2x1xf32> to vector<2x2xf32>
    %344 = arith.mulf %339, %343 : vector<2x2xf32>
    %cst_128 = arith.constant dense<0.000000e+00> : vector<2x8xf32>
    %345 = tpu.matmul %344, %333, %cst_128 {dimension_numbers = #tpu.dot_dimension_numbers<[1], [0], [0], [1], [0, 0, 1, 1], [], []>} : vector<2x2xf32>, vector<2x8xf32>, vector<2x8xf32> -> vector<2x8xf32>
    %c8_129 = arith.constant 8 : index
    %c16_130 = arith.constant 16 : index
    %346 = vector.load %arg31[%c8_129, %c16_130] : memref<16x32xf32, #tpu.memory_space<vmem>>, vector<2x8xf32>
    tpu.vector_store %arg31[%c8_129, %c16_130], %345 {strides = array<i32>} : memref<16x32xf32, #tpu.memory_space<vmem>>, vector<2x8xf32>,
    %347 = vector.extract_strided_slice %296 {offsets = [0, 24], sizes = [2, 8], strides = [1, 1]} : vector<2x32xf32> to vector<2x8xf32>
    %348 = vector.extract_strided_slice %297 {offsets = [0, 24], sizes = [2, 8], strides = [1, 1]} : vector<2x32xf32> to vector<2x8xf32>
    %349 = vector.extract_strided_slice %298 {offsets = [0, 24], sizes = [2, 8], strides = [1, 1]} : vector<2x32xf32> to vector<2x8xf32>
    %cst_131 = arith.constant dense<0.000000e+00> : vector<2x2xf32>
    %350 = tpu.matmul %347, %348, %cst_131 {dimension_numbers = #tpu.dot_dimension_numbers<[1], [1], [0], [0], [0, 0, 1, 0], [], []>} : vector<2x8xf32>, vector<2x8xf32>, vector<2x2xf32> -> vector<2x2xf32>
    %cst_132 = arith.constant dense<0xFF800000> : vector<2xf32>
    %351 = vector.multi_reduction <maximumf>, %350, %cst_132 [1] : vector<2x2xf32> to vector<2xf32>
    %352 = vector.shape_cast %351 : vector<2xf32> to vector<2x1xf32>
    %353 = vector.broadcast %352 : vector<2x1xf32> to vector<2x2xf32>
    %354 = arith.subf %350, %353 : vector<2x2xf32>
    %355 = math.exp %354 : vector<2x2xf32>
    %cst_133 = arith.constant dense<0.000000e+00> : vector<2xf32>
    %356 = vector.multi_reduction <add>, %355, %cst_133 [1] : vector<2x2xf32> to vector<2xf32>
    %357 = vector.shape_cast %356 : vector<2xf32> to vector<2x1xf32>
    %358 = tpu.reciprocal %357 {approx = true} : vector<2x1xf32> -> vector<2x1xf32>
    %359 = vector.broadcast %358 : vector<2x1xf32> to vector<2x2xf32>
    %360 = arith.mulf %355, %359 : vector<2x2xf32>
    %cst_134 = arith.constant dense<0.000000e+00> : vector<2x8xf32>
    %361 = tpu.matmul %360, %349, %cst_134 {dimension_numbers = #tpu.dot_dimension_numbers<[1], [0], [0], [1], [0, 0, 1, 1], [], []>} : vector<2x2xf32>, vector<2x8xf32>, vector<2x8xf32> -> vector<2x8xf32>
    %c8_135 = arith.constant 8 : index
    %c24_136 = arith.constant 24 : index
    %362 = vector.load %arg31[%c8_135, %c24_136] : memref<16x32xf32, #tpu.memory_space<vmem>>, vector<2x8xf32>
    tpu.vector_store %arg31[%c8_135, %c24_136], %361 {strides = array<i32>} : memref<16x32xf32, #tpu.memory_space<vmem>>, vector<2x8xf32>,
    %363 = vector.extract_strided_slice %13 {offsets = [10, 0], sizes = [2, 32], strides = [1, 1]} : vector<16x32xf32> to vector<2x32xf32>
    %364 = vector.extract_strided_slice %20 {offsets = [10, 0], sizes = [2, 32], strides = [1, 1]} : vector<16x32xf32> to vector<2x32xf32>
    %365 = vector.extract_strided_slice %27 {offsets = [10, 0], sizes = [2, 32], strides = [1, 1]} : vector<16x32xf32> to vector<2x32xf32>
    %366 = vector.extract_strided_slice %363 {offsets = [0, 0], sizes = [2, 8], strides = [1, 1]} : vector<2x32xf32> to vector<2x8xf32>
    %367 = vector.extract_strided_slice %364 {offsets = [0, 0], sizes = [2, 8], strides = [1, 1]} : vector<2x32xf32> to vector<2x8xf32>
    %368 = vector.extract_strided_slice %365 {offsets = [0, 0], sizes = [2, 8], strides = [1, 1]} : vector<2x32xf32> to vector<2x8xf32>
    %cst_137 = arith.constant dense<0.000000e+00> : vector<2x2xf32>
    %369 = tpu.matmul %366, %367, %cst_137 {dimension_numbers = #tpu.dot_dimension_numbers<[1], [1], [0], [0], [0, 0, 1, 0], [], []>} : vector<2x8xf32>, vector<2x8xf32>, vector<2x2xf32> -> vector<2x2xf32>
    %cst_138 = arith.constant dense<0xFF800000> : vector<2xf32>
    %370 = vector.multi_reduction <maximumf>, %369, %cst_138 [1] : vector<2x2xf32> to vector<2xf32>
    %371 = vector.shape_cast %370 : vector<2xf32> to vector<2x1xf32>
    %372 = vector.broadcast %371 : vector<2x1xf32> to vector<2x2xf32>
    %373 = arith.subf %369, %372 : vector<2x2xf32>
    %374 = math.exp %373 : vector<2x2xf32>
    %cst_139 = arith.constant dense<0.000000e+00> : vector<2xf32>
    %375 = vector.multi_reduction <add>, %374, %cst_139 [1] : vector<2x2xf32> to vector<2xf32>
    %376 = vector.shape_cast %375 : vector<2xf32> to vector<2x1xf32>
    %377 = tpu.reciprocal %376 {approx = true} : vector<2x1xf32> -> vector<2x1xf32>
    %378 = vector.broadcast %377 : vector<2x1xf32> to vector<2x2xf32>
    %379 = arith.mulf %374, %378 : vector<2x2xf32>
    %cst_140 = arith.constant dense<0.000000e+00> : vector<2x8xf32>
    %380 = tpu.matmul %379, %368, %cst_140 {dimension_numbers = #tpu.dot_dimension_numbers<[1], [0], [0], [1], [0, 0, 1, 1], [], []>} : vector<2x2xf32>, vector<2x8xf32>, vector<2x8xf32> -> vector<2x8xf32>
    %c10 = arith.constant 10 : index
    %c0_141 = arith.constant 0 : index
    %381 = vector.load %arg31[%c10, %c0_141] : memref<16x32xf32, #tpu.memory_space<vmem>>, vector<2x8xf32>
    tpu.vector_store %arg31[%c10, %c0_141], %380 {strides = array<i32>} : memref<16x32xf32, #tpu.memory_space<vmem>>, vector<2x8xf32>,
    %382 = vector.extract_strided_slice %363 {offsets = [0, 8], sizes = [2, 8], strides = [1, 1]} : vector<2x32xf32> to vector<2x8xf32>
    %383 = vector.extract_strided_slice %364 {offsets = [0, 8], sizes = [2, 8], strides = [1, 1]} : vector<2x32xf32> to vector<2x8xf32>
    %384 = vector.extract_strided_slice %365 {offsets = [0, 8], sizes = [2, 8], strides = [1, 1]} : vector<2x32xf32> to vector<2x8xf32>
    %cst_142 = arith.constant dense<0.000000e+00> : vector<2x2xf32>
    %385 = tpu.matmul %382, %383, %cst_142 {dimension_numbers = #tpu.dot_dimension_numbers<[1], [1], [0], [0], [0, 0, 1, 0], [], []>} : vector<2x8xf32>, vector<2x8xf32>, vector<2x2xf32> -> vector<2x2xf32>
    %cst_143 = arith.constant dense<0xFF800000> : vector<2xf32>
    %386 = vector.multi_reduction <maximumf>, %385, %cst_143 [1] : vector<2x2xf32> to vector<2xf32>
    %387 = vector.shape_cast %386 : vector<2xf32> to vector<2x1xf32>
    %388 = vector.broadcast %387 : vector<2x1xf32> to vector<2x2xf32>
    %389 = arith.subf %385, %388 : vector<2x2xf32>
    %390 = math.exp %389 : vector<2x2xf32>
    %cst_144 = arith.constant dense<0.000000e+00> : vector<2xf32>
    %391 = vector.multi_reduction <add>, %390, %cst_144 [1] : vector<2x2xf32> to vector<2xf32>
    %392 = vector.shape_cast %391 : vector<2xf32> to vector<2x1xf32>
    %393 = tpu.reciprocal %392 {approx = true} : vector<2x1xf32> -> vector<2x1xf32>
    %394 = vector.broadcast %393 : vector<2x1xf32> to vector<2x2xf32>
    %395 = arith.mulf %390, %394 : vector<2x2xf32>
    %cst_145 = arith.constant dense<0.000000e+00> : vector<2x8xf32>
    %396 = tpu.matmul %395, %384, %cst_145 {dimension_numbers = #tpu.dot_dimension_numbers<[1], [0], [0], [1], [0, 0, 1, 1], [], []>} : vector<2x2xf32>, vector<2x8xf32>, vector<2x8xf32> -> vector<2x8xf32>
    %c10_146 = arith.constant 10 : index
    %c8_147 = arith.constant 8 : index
    %397 = vector.load %arg31[%c10_146, %c8_147] : memref<16x32xf32, #tpu.memory_space<vmem>>, vector<2x8xf32>
    tpu.vector_store %arg31[%c10_146, %c8_147], %396 {strides = array<i32>} : memref<16x32xf32, #tpu.memory_space<vmem>>, vector<2x8xf32>,
    %398 = vector.extract_strided_slice %363 {offsets = [0, 16], sizes = [2, 8], strides = [1, 1]} : vector<2x32xf32> to vector<2x8xf32>
    %399 = vector.extract_strided_slice %364 {offsets = [0, 16], sizes = [2, 8], strides = [1, 1]} : vector<2x32xf32> to vector<2x8xf32>
    %400 = vector.extract_strided_slice %365 {offsets = [0, 16], sizes = [2, 8], strides = [1, 1]} : vector<2x32xf32> to vector<2x8xf32>
    %cst_148 = arith.constant dense<0.000000e+00> : vector<2x2xf32>
    %401 = tpu.matmul %398, %399, %cst_148 {dimension_numbers = #tpu.dot_dimension_numbers<[1], [1], [0], [0], [0, 0, 1, 0], [], []>} : vector<2x8xf32>, vector<2x8xf32>, vector<2x2xf32> -> vector<2x2xf32>
    %cst_149 = arith.constant dense<0xFF800000> : vector<2xf32>
    %402 = vector.multi_reduction <maximumf>, %401, %cst_149 [1] : vector<2x2xf32> to vector<2xf32>
    %403 = vector.shape_cast %402 : vector<2xf32> to vector<2x1xf32>
    %404 = vector.broadcast %403 : vector<2x1xf32> to vector<2x2xf32>
    %405 = arith.subf %401, %404 : vector<2x2xf32>
    %406 = math.exp %405 : vector<2x2xf32>
    %cst_150 = arith.constant dense<0.000000e+00> : vector<2xf32>
    %407 = vector.multi_reduction <add>, %406, %cst_150 [1] : vector<2x2xf32> to vector<2xf32>
    %408 = vector.shape_cast %407 : vector<2xf32> to vector<2x1xf32>
    %409 = tpu.reciprocal %408 {approx = true} : vector<2x1xf32> -> vector<2x1xf32>
    %410 = vector.broadcast %409 : vector<2x1xf32> to vector<2x2xf32>
    %411 = arith.mulf %406, %410 : vector<2x2xf32>
    %cst_151 = arith.constant dense<0.000000e+00> : vector<2x8xf32>
    %412 = tpu.matmul %411, %400, %cst_151 {dimension_numbers = #tpu.dot_dimension_numbers<[1], [0], [0], [1], [0, 0, 1, 1], [], []>} : vector<2x2xf32>, vector<2x8xf32>, vector<2x8xf32> -> vector<2x8xf32>
    %c10_152 = arith.constant 10 : index
    %c16_153 = arith.constant 16 : index
    %413 = vector.load %arg31[%c10_152, %c16_153] : memref<16x32xf32, #tpu.memory_space<vmem>>, vector<2x8xf32>
    tpu.vector_store %arg31[%c10_152, %c16_153], %412 {strides = array<i32>} : memref<16x32xf32, #tpu.memory_space<vmem>>, vector<2x8xf32>,
    %414 = vector.extract_strided_slice %363 {offsets = [0, 24], sizes = [2, 8], strides = [1, 1]} : vector<2x32xf32> to vector<2x8xf32>
    %415 = vector.extract_strided_slice %364 {offsets = [0, 24], sizes = [2, 8], strides = [1, 1]} : vector<2x32xf32> to vector<2x8xf32>
    %416 = vector.extract_strided_slice %365 {offsets = [0, 24], sizes = [2, 8], strides = [1, 1]} : vector<2x32xf32> to vector<2x8xf32>
    %cst_154 = arith.constant dense<0.000000e+00> : vector<2x2xf32>
    %417 = tpu.matmul %414, %415, %cst_154 {dimension_numbers = #tpu.dot_dimension_numbers<[1], [1], [0], [0], [0, 0, 1, 0], [], []>} : vector<2x8xf32>, vector<2x8xf32>, vector<2x2xf32> -> vector<2x2xf32>
    %cst_155 = arith.constant dense<0xFF800000> : vector<2xf32>
    %418 = vector.multi_reduction <maximumf>, %417, %cst_155 [1] : vector<2x2xf32> to vector<2xf32>
    %419 = vector.shape_cast %418 : vector<2xf32> to vector<2x1xf32>
    %420 = vector.broadcast %419 : vector<2x1xf32> to vector<2x2xf32>
    %421 = arith.subf %417, %420 : vector<2x2xf32>
    %422 = math.exp %421 : vector<2x2xf32>
    %cst_156 = arith.constant dense<0.000000e+00> : vector<2xf32>
    %423 = vector.multi_reduction <add>, %422, %cst_156 [1] : vector<2x2xf32> to vector<2xf32>
    %424 = vector.shape_cast %423 : vector<2xf32> to vector<2x1xf32>
    %425 = tpu.reciprocal %424 {approx = true} : vector<2x1xf32> -> vector<2x1xf32>
    %426 = vector.broadcast %425 : vector<2x1xf32> to vector<2x2xf32>
    %427 = arith.mulf %422, %426 : vector<2x2xf32>
    %cst_157 = arith.constant dense<0.000000e+00> : vector<2x8xf32>
    %428 = tpu.matmul %427, %416, %cst_157 {dimension_numbers = #tpu.dot_dimension_numbers<[1], [0], [0], [1], [0, 0, 1, 1], [], []>} : vector<2x2xf32>, vector<2x8xf32>, vector<2x8xf32> -> vector<2x8xf32>
    %c10_158 = arith.constant 10 : index
    %c24_159 = arith.constant 24 : index
    %429 = vector.load %arg31[%c10_158, %c24_159] : memref<16x32xf32, #tpu.memory_space<vmem>>, vector<2x8xf32>
    tpu.vector_store %arg31[%c10_158, %c24_159], %428 {strides = array<i32>} : memref<16x32xf32, #tpu.memory_space<vmem>>, vector<2x8xf32>,
    %430 = vector.extract_strided_slice %13 {offsets = [12, 0], sizes = [2, 32], strides = [1, 1]} : vector<16x32xf32> to vector<2x32xf32>
    %431 = vector.extract_strided_slice %20 {offsets = [12, 0], sizes = [2, 32], strides = [1, 1]} : vector<16x32xf32> to vector<2x32xf32>
    %432 = vector.extract_strided_slice %27 {offsets = [12, 0], sizes = [2, 32], strides = [1, 1]} : vector<16x32xf32> to vector<2x32xf32>
    %433 = vector.extract_strided_slice %430 {offsets = [0, 0], sizes = [2, 8], strides = [1, 1]} : vector<2x32xf32> to vector<2x8xf32>
    %434 = vector.extract_strided_slice %431 {offsets = [0, 0], sizes = [2, 8], strides = [1, 1]} : vector<2x32xf32> to vector<2x8xf32>
    %435 = vector.extract_strided_slice %432 {offsets = [0, 0], sizes = [2, 8], strides = [1, 1]} : vector<2x32xf32> to vector<2x8xf32>
    %cst_160 = arith.constant dense<0.000000e+00> : vector<2x2xf32>
    %436 = tpu.matmul %433, %434, %cst_160 {dimension_numbers = #tpu.dot_dimension_numbers<[1], [1], [0], [0], [0, 0, 1, 0], [], []>} : vector<2x8xf32>, vector<2x8xf32>, vector<2x2xf32> -> vector<2x2xf32>
    %cst_161 = arith.constant dense<0xFF800000> : vector<2xf32>
    %437 = vector.multi_reduction <maximumf>, %436, %cst_161 [1] : vector<2x2xf32> to vector<2xf32>
    %438 = vector.shape_cast %437 : vector<2xf32> to vector<2x1xf32>
    %439 = vector.broadcast %438 : vector<2x1xf32> to vector<2x2xf32>
    %440 = arith.subf %436, %439 : vector<2x2xf32>
    %441 = math.exp %440 : vector<2x2xf32>
    %cst_162 = arith.constant dense<0.000000e+00> : vector<2xf32>
    %442 = vector.multi_reduction <add>, %441, %cst_162 [1] : vector<2x2xf32> to vector<2xf32>
    %443 = vector.shape_cast %442 : vector<2xf32> to vector<2x1xf32>
    %444 = tpu.reciprocal %443 {approx = true} : vector<2x1xf32> -> vector<2x1xf32>
    %445 = vector.broadcast %444 : vector<2x1xf32> to vector<2x2xf32>
    %446 = arith.mulf %441, %445 : vector<2x2xf32>
    %cst_163 = arith.constant dense<0.000000e+00> : vector<2x8xf32>
    %447 = tpu.matmul %446, %435, %cst_163 {dimension_numbers = #tpu.dot_dimension_numbers<[1], [0], [0], [1], [0, 0, 1, 1], [], []>} : vector<2x2xf32>, vector<2x8xf32>, vector<2x8xf32> -> vector<2x8xf32>
    %c12 = arith.constant 12 : index
    %c0_164 = arith.constant 0 : index
    %448 = vector.load %arg31[%c12, %c0_164] : memref<16x32xf32, #tpu.memory_space<vmem>>, vector<2x8xf32>
    tpu.vector_store %arg31[%c12, %c0_164], %447 {strides = array<i32>} : memref<16x32xf32, #tpu.memory_space<vmem>>, vector<2x8xf32>,
    %449 = vector.extract_strided_slice %430 {offsets = [0, 8], sizes = [2, 8], strides = [1, 1]} : vector<2x32xf32> to vector<2x8xf32>
    %450 = vector.extract_strided_slice %431 {offsets = [0, 8], sizes = [2, 8], strides = [1, 1]} : vector<2x32xf32> to vector<2x8xf32>
    %451 = vector.extract_strided_slice %432 {offsets = [0, 8], sizes = [2, 8], strides = [1, 1]} : vector<2x32xf32> to vector<2x8xf32>
    %cst_165 = arith.constant dense<0.000000e+00> : vector<2x2xf32>
    %452 = tpu.matmul %449, %450, %cst_165 {dimension_numbers = #tpu.dot_dimension_numbers<[1], [1], [0], [0], [0, 0, 1, 0], [], []>} : vector<2x8xf32>, vector<2x8xf32>, vector<2x2xf32> -> vector<2x2xf32>
    %cst_166 = arith.constant dense<0xFF800000> : vector<2xf32>
    %453 = vector.multi_reduction <maximumf>, %452, %cst_166 [1] : vector<2x2xf32> to vector<2xf32>
    %454 = vector.shape_cast %453 : vector<2xf32> to vector<2x1xf32>
    %455 = vector.broadcast %454 : vector<2x1xf32> to vector<2x2xf32>
    %456 = arith.subf %452, %455 : vector<2x2xf32>
    %457 = math.exp %456 : vector<2x2xf32>
    %cst_167 = arith.constant dense<0.000000e+00> : vector<2xf32>
    %458 = vector.multi_reduction <add>, %457, %cst_167 [1] : vector<2x2xf32> to vector<2xf32>
    %459 = vector.shape_cast %458 : vector<2xf32> to vector<2x1xf32>
    %460 = tpu.reciprocal %459 {approx = true} : vector<2x1xf32> -> vector<2x1xf32>
    %461 = vector.broadcast %460 : vector<2x1xf32> to vector<2x2xf32>
    %462 = arith.mulf %457, %461 : vector<2x2xf32>
    %cst_168 = arith.constant dense<0.000000e+00> : vector<2x8xf32>
    %463 = tpu.matmul %462, %451, %cst_168 {dimension_numbers = #tpu.dot_dimension_numbers<[1], [0], [0], [1], [0, 0, 1, 1], [], []>} : vector<2x2xf32>, vector<2x8xf32>, vector<2x8xf32> -> vector<2x8xf32>
    %c12_169 = arith.constant 12 : index
    %c8_170 = arith.constant 8 : index
    %464 = vector.load %arg31[%c12_169, %c8_170] : memref<16x32xf32, #tpu.memory_space<vmem>>, vector<2x8xf32>
    tpu.vector_store %arg31[%c12_169, %c8_170], %463 {strides = array<i32>} : memref<16x32xf32, #tpu.memory_space<vmem>>, vector<2x8xf32>,
    %465 = vector.extract_strided_slice %430 {offsets = [0, 16], sizes = [2, 8], strides = [1, 1]} : vector<2x32xf32> to vector<2x8xf32>
    %466 = vector.extract_strided_slice %431 {offsets = [0, 16], sizes = [2, 8], strides = [1, 1]} : vector<2x32xf32> to vector<2x8xf32>
    %467 = vector.extract_strided_slice %432 {offsets = [0, 16], sizes = [2, 8], strides = [1, 1]} : vector<2x32xf32> to vector<2x8xf32>
    %cst_171 = arith.constant dense<0.000000e+00> : vector<2x2xf32>
    %468 = tpu.matmul %465, %466, %cst_171 {dimension_numbers = #tpu.dot_dimension_numbers<[1], [1], [0], [0], [0, 0, 1, 0], [], []>} : vector<2x8xf32>, vector<2x8xf32>, vector<2x2xf32> -> vector<2x2xf32>
    %cst_172 = arith.constant dense<0xFF800000> : vector<2xf32>
    %469 = vector.multi_reduction <maximumf>, %468, %cst_172 [1] : vector<2x2xf32> to vector<2xf32>
    %470 = vector.shape_cast %469 : vector<2xf32> to vector<2x1xf32>
    %471 = vector.broadcast %470 : vector<2x1xf32> to vector<2x2xf32>
    %472 = arith.subf %468, %471 : vector<2x2xf32>
    %473 = math.exp %472 : vector<2x2xf32>
    %cst_173 = arith.constant dense<0.000000e+00> : vector<2xf32>
    %474 = vector.multi_reduction <add>, %473, %cst_173 [1] : vector<2x2xf32> to vector<2xf32>
    %475 = vector.shape_cast %474 : vector<2xf32> to vector<2x1xf32>
    %476 = tpu.reciprocal %475 {approx = true} : vector<2x1xf32> -> vector<2x1xf32>
    %477 = vector.broadcast %476 : vector<2x1xf32> to vector<2x2xf32>
    %478 = arith.mulf %473, %477 : vector<2x2xf32>
    %cst_174 = arith.constant dense<0.000000e+00> : vector<2x8xf32>
    %479 = tpu.matmul %478, %467, %cst_174 {dimension_numbers = #tpu.dot_dimension_numbers<[1], [0], [0], [1], [0, 0, 1, 1], [], []>} : vector<2x2xf32>, vector<2x8xf32>, vector<2x8xf32> -> vector<2x8xf32>
    %c12_175 = arith.constant 12 : index
    %c16_176 = arith.constant 16 : index
    %480 = vector.load %arg31[%c12_175, %c16_176] : memref<16x32xf32, #tpu.memory_space<vmem>>, vector<2x8xf32>
    tpu.vector_store %arg31[%c12_175, %c16_176], %479 {strides = array<i32>} : memref<16x32xf32, #tpu.memory_space<vmem>>, vector<2x8xf32>,
    %481 = vector.extract_strided_slice %430 {offsets = [0, 24], sizes = [2, 8], strides = [1, 1]} : vector<2x32xf32> to vector<2x8xf32>
    %482 = vector.extract_strided_slice %431 {offsets = [0, 24], sizes = [2, 8], strides = [1, 1]} : vector<2x32xf32> to vector<2x8xf32>
    %483 = vector.extract_strided_slice %432 {offsets = [0, 24], sizes = [2, 8], strides = [1, 1]} : vector<2x32xf32> to vector<2x8xf32>
    %cst_177 = arith.constant dense<0.000000e+00> : vector<2x2xf32>
    %484 = tpu.matmul %481, %482, %cst_177 {dimension_numbers = #tpu.dot_dimension_numbers<[1], [1], [0], [0], [0, 0, 1, 0], [], []>} : vector<2x8xf32>, vector<2x8xf32>, vector<2x2xf32> -> vector<2x2xf32>
    %cst_178 = arith.constant dense<0xFF800000> : vector<2xf32>
    %485 = vector.multi_reduction <maximumf>, %484, %cst_178 [1] : vector<2x2xf32> to vector<2xf32>
    %486 = vector.shape_cast %485 : vector<2xf32> to vector<2x1xf32>
    %487 = vector.broadcast %486 : vector<2x1xf32> to vector<2x2xf32>
    %488 = arith.subf %484, %487 : vector<2x2xf32>
    %489 = math.exp %488 : vector<2x2xf32>
    %cst_179 = arith.constant dense<0.000000e+00> : vector<2xf32>
    %490 = vector.multi_reduction <add>, %489, %cst_179 [1] : vector<2x2xf32> to vector<2xf32>
    %491 = vector.shape_cast %490 : vector<2xf32> to vector<2x1xf32>
    %492 = tpu.reciprocal %491 {approx = true} : vector<2x1xf32> -> vector<2x1xf32>
    %493 = vector.broadcast %492 : vector<2x1xf32> to vector<2x2xf32>
    %494 = arith.mulf %489, %493 : vector<2x2xf32>
    %cst_180 = arith.constant dense<0.000000e+00> : vector<2x8xf32>
    %495 = tpu.matmul %494, %483, %cst_180 {dimension_numbers = #tpu.dot_dimension_numbers<[1], [0], [0], [1], [0, 0, 1, 1], [], []>} : vector<2x2xf32>, vector<2x8xf32>, vector<2x8xf32> -> vector<2x8xf32>
    %c12_181 = arith.constant 12 : index
    %c24_182 = arith.constant 24 : index
    %496 = vector.load %arg31[%c12_181, %c24_182] : memref<16x32xf32, #tpu.memory_space<vmem>>, vector<2x8xf32>
    tpu.vector_store %arg31[%c12_181, %c24_182], %495 {strides = array<i32>} : memref<16x32xf32, #tpu.memory_space<vmem>>, vector<2x8xf32>,
    %497 = vector.extract_strided_slice %13 {offsets = [14, 0], sizes = [2, 32], strides = [1, 1]} : vector<16x32xf32> to vector<2x32xf32>
    %498 = vector.extract_strided_slice %20 {offsets = [14, 0], sizes = [2, 32], strides = [1, 1]} : vector<16x32xf32> to vector<2x32xf32>
    %499 = vector.extract_strided_slice %27 {offsets = [14, 0], sizes = [2, 32], strides = [1, 1]} : vector<16x32xf32> to vector<2x32xf32>
    %500 = vector.extract_strided_slice %497 {offsets = [0, 0], sizes = [2, 8], strides = [1, 1]} : vector<2x32xf32> to vector<2x8xf32>
    %501 = vector.extract_strided_slice %498 {offsets = [0, 0], sizes = [2, 8], strides = [1, 1]} : vector<2x32xf32> to vector<2x8xf32>
    %502 = vector.extract_strided_slice %499 {offsets = [0, 0], sizes = [2, 8], strides = [1, 1]} : vector<2x32xf32> to vector<2x8xf32>
    %cst_183 = arith.constant dense<0.000000e+00> : vector<2x2xf32>
    %503 = tpu.matmul %500, %501, %cst_183 {dimension_numbers = #tpu.dot_dimension_numbers<[1], [1], [0], [0], [0, 0, 1, 0], [], []>} : vector<2x8xf32>, vector<2x8xf32>, vector<2x2xf32> -> vector<2x2xf32>
    %cst_184 = arith.constant dense<0xFF800000> : vector<2xf32>
    %504 = vector.multi_reduction <maximumf>, %503, %cst_184 [1] : vector<2x2xf32> to vector<2xf32>
    %505 = vector.shape_cast %504 : vector<2xf32> to vector<2x1xf32>
    %506 = vector.broadcast %505 : vector<2x1xf32> to vector<2x2xf32>
    %507 = arith.subf %503, %506 : vector<2x2xf32>
    %508 = math.exp %507 : vector<2x2xf32>
    %cst_185 = arith.constant dense<0.000000e+00> : vector<2xf32>
    %509 = vector.multi_reduction <add>, %508, %cst_185 [1] : vector<2x2xf32> to vector<2xf32>
    %510 = vector.shape_cast %509 : vector<2xf32> to vector<2x1xf32>
    %511 = tpu.reciprocal %510 {approx = true} : vector<2x1xf32> -> vector<2x1xf32>
    %512 = vector.broadcast %511 : vector<2x1xf32> to vector<2x2xf32>
    %513 = arith.mulf %508, %512 : vector<2x2xf32>
    %cst_186 = arith.constant dense<0.000000e+00> : vector<2x8xf32>
    %514 = tpu.matmul %513, %502, %cst_186 {dimension_numbers = #tpu.dot_dimension_numbers<[1], [0], [0], [1], [0, 0, 1, 1], [], []>} : vector<2x2xf32>, vector<2x8xf32>, vector<2x8xf32> -> vector<2x8xf32>
    %c14 = arith.constant 14 : index
    %c0_187 = arith.constant 0 : index
    %515 = vector.load %arg31[%c14, %c0_187] : memref<16x32xf32, #tpu.memory_space<vmem>>, vector<2x8xf32>
    tpu.vector_store %arg31[%c14, %c0_187], %514 {strides = array<i32>} : memref<16x32xf32, #tpu.memory_space<vmem>>, vector<2x8xf32>,
    %516 = vector.extract_strided_slice %497 {offsets = [0, 8], sizes = [2, 8], strides = [1, 1]} : vector<2x32xf32> to vector<2x8xf32>
    %517 = vector.extract_strided_slice %498 {offsets = [0, 8], sizes = [2, 8], strides = [1, 1]} : vector<2x32xf32> to vector<2x8xf32>
    %518 = vector.extract_strided_slice %499 {offsets = [0, 8], sizes = [2, 8], strides = [1, 1]} : vector<2x32xf32> to vector<2x8xf32>
    %cst_188 = arith.constant dense<0.000000e+00> : vector<2x2xf32>
    %519 = tpu.matmul %516, %517, %cst_188 {dimension_numbers = #tpu.dot_dimension_numbers<[1], [1], [0], [0], [0, 0, 1, 0], [], []>} : vector<2x8xf32>, vector<2x8xf32>, vector<2x2xf32> -> vector<2x2xf32>
    %cst_189 = arith.constant dense<0xFF800000> : vector<2xf32>
    %520 = vector.multi_reduction <maximumf>, %519, %cst_189 [1] : vector<2x2xf32> to vector<2xf32>
    %521 = vector.shape_cast %520 : vector<2xf32> to vector<2x1xf32>
    %522 = vector.broadcast %521 : vector<2x1xf32> to vector<2x2xf32>
    %523 = arith.subf %519, %522 : vector<2x2xf32>
    %524 = math.exp %523 : vector<2x2xf32>
    %cst_190 = arith.constant dense<0.000000e+00> : vector<2xf32>
    %525 = vector.multi_reduction <add>, %524, %cst_190 [1] : vector<2x2xf32> to vector<2xf32>
    %526 = vector.shape_cast %525 : vector<2xf32> to vector<2x1xf32>
    %527 = tpu.reciprocal %526 {approx = true} : vector<2x1xf32> -> vector<2x1xf32>
    %528 = vector.broadcast %527 : vector<2x1xf32> to vector<2x2xf32>
    %529 = arith.mulf %524, %528 : vector<2x2xf32>
    %cst_191 = arith.constant dense<0.000000e+00> : vector<2x8xf32>
    %530 = tpu.matmul %529, %518, %cst_191 {dimension_numbers = #tpu.dot_dimension_numbers<[1], [0], [0], [1], [0, 0, 1, 1], [], []>} : vector<2x2xf32>, vector<2x8xf32>, vector<2x8xf32> -> vector<2x8xf32>
    %c14_192 = arith.constant 14 : index
    %c8_193 = arith.constant 8 : index
    %531 = vector.load %arg31[%c14_192, %c8_193] : memref<16x32xf32, #tpu.memory_space<vmem>>, vector<2x8xf32>
    tpu.vector_store %arg31[%c14_192, %c8_193], %530 {strides = array<i32>} : memref<16x32xf32, #tpu.memory_space<vmem>>, vector<2x8xf32>,
    %532 = vector.extract_strided_slice %497 {offsets = [0, 16], sizes = [2, 8], strides = [1, 1]} : vector<2x32xf32> to vector<2x8xf32>
    %533 = vector.extract_strided_slice %498 {offsets = [0, 16], sizes = [2, 8], strides = [1, 1]} : vector<2x32xf32> to vector<2x8xf32>
    %534 = vector.extract_strided_slice %499 {offsets = [0, 16], sizes = [2, 8], strides = [1, 1]} : vector<2x32xf32> to vector<2x8xf32>
    %cst_194 = arith.constant dense<0.000000e+00> : vector<2x2xf32>
    %535 = tpu.matmul %532, %533, %cst_194 {dimension_numbers = #tpu.dot_dimension_numbers<[1], [1], [0], [0], [0, 0, 1, 0], [], []>} : vector<2x8xf32>, vector<2x8xf32>, vector<2x2xf32> -> vector<2x2xf32>
    %cst_195 = arith.constant dense<0xFF800000> : vector<2xf32>
    %536 = vector.multi_reduction <maximumf>, %535, %cst_195 [1] : vector<2x2xf32> to vector<2xf32>
    %537 = vector.shape_cast %536 : vector<2xf32> to vector<2x1xf32>
    %538 = vector.broadcast %537 : vector<2x1xf32> to vector<2x2xf32>
    %539 = arith.subf %535, %538 : vector<2x2xf32>
    %540 = math.exp %539 : vector<2x2xf32>
    %cst_196 = arith.constant dense<0.000000e+00> : vector<2xf32>
    %541 = vector.multi_reduction <add>, %540, %cst_196 [1] : vector<2x2xf32> to vector<2xf32>
    %542 = vector.shape_cast %541 : vector<2xf32> to vector<2x1xf32>
    %543 = tpu.reciprocal %542 {approx = true} : vector<2x1xf32> -> vector<2x1xf32>
    %544 = vector.broadcast %543 : vector<2x1xf32> to vector<2x2xf32>
    %545 = arith.mulf %540, %544 : vector<2x2xf32>
    %cst_197 = arith.constant dense<0.000000e+00> : vector<2x8xf32>
    %546 = tpu.matmul %545, %534, %cst_197 {dimension_numbers = #tpu.dot_dimension_numbers<[1], [0], [0], [1], [0, 0, 1, 1], [], []>} : vector<2x2xf32>, vector<2x8xf32>, vector<2x8xf32> -> vector<2x8xf32>
    %c14_198 = arith.constant 14 : index
    %c16_199 = arith.constant 16 : index
    %547 = vector.load %arg31[%c14_198, %c16_199] : memref<16x32xf32, #tpu.memory_space<vmem>>, vector<2x8xf32>
    tpu.vector_store %arg31[%c14_198, %c16_199], %546 {strides = array<i32>} : memref<16x32xf32, #tpu.memory_space<vmem>>, vector<2x8xf32>,
    %548 = vector.extract_strided_slice %497 {offsets = [0, 24], sizes = [2, 8], strides = [1, 1]} : vector<2x32xf32> to vector<2x8xf32>
    %549 = vector.extract_strided_slice %498 {offsets = [0, 24], sizes = [2, 8], strides = [1, 1]} : vector<2x32xf32> to vector<2x8xf32>
    %550 = vector.extract_strided_slice %499 {offsets = [0, 24], sizes = [2, 8], strides = [1, 1]} : vector<2x32xf32> to vector<2x8xf32>
    %cst_200 = arith.constant dense<0.000000e+00> : vector<2x2xf32>
    %551 = tpu.matmul %548, %549, %cst_200 {dimension_numbers = #tpu.dot_dimension_numbers<[1], [1], [0], [0], [0, 0, 1, 0], [], []>} : vector<2x8xf32>, vector<2x8xf32>, vector<2x2xf32> -> vector<2x2xf32>
    %cst_201 = arith.constant dense<0xFF800000> : vector<2xf32>
    %552 = vector.multi_reduction <maximumf>, %551, %cst_201 [1] : vector<2x2xf32> to vector<2xf32>
    %553 = vector.shape_cast %552 : vector<2xf32> to vector<2x1xf32>
    %554 = vector.broadcast %553 : vector<2x1xf32> to vector<2x2xf32>
    %555 = arith.subf %551, %554 : vector<2x2xf32>
    %556 = math.exp %555 : vector<2x2xf32>
    %cst_202 = arith.constant dense<0.000000e+00> : vector<2xf32>
    %557 = vector.multi_reduction <add>, %556, %cst_202 [1] : vector<2x2xf32> to vector<2xf32>
    %558 = vector.shape_cast %557 : vector<2xf32> to vector<2x1xf32>
    %559 = tpu.reciprocal %558 {approx = true} : vector<2x1xf32> -> vector<2x1xf32>
    %560 = vector.broadcast %559 : vector<2x1xf32> to vector<2x2xf32>
    %561 = arith.mulf %556, %560 : vector<2x2xf32>
    %cst_203 = arith.constant dense<0.000000e+00> : vector<2x8xf32>
    %562 = tpu.matmul %561, %550, %cst_203 {dimension_numbers = #tpu.dot_dimension_numbers<[1], [0], [0], [1], [0, 0, 1, 1], [], []>} : vector<2x2xf32>, vector<2x8xf32>, vector<2x8xf32> -> vector<2x8xf32>
    %c14_204 = arith.constant 14 : index
    %c24_205 = arith.constant 24 : index
    %563 = vector.load %arg31[%c14_204, %c24_205] : memref<16x32xf32, #tpu.memory_space<vmem>>, vector<2x8xf32>
    tpu.vector_store %arg31[%c14_204, %c24_205], %562 {strides = array<i32>} : memref<16x32xf32, #tpu.memory_space<vmem>>, vector<2x8xf32>,
    %c0_206 = arith.constant 0 : index
    %c0_207 = arith.constant 0 : index
    %564 = vector.load %arg31[%c0_206, %c0_207] : memref<16x32xf32, #tpu.memory_space<vmem>>, vector<16x32xf32>
    %565 = arith.truncf %564 : vector<16x32xf32> to vector<16x32xbf16>
    %c0_208 = arith.constant 0 : index
    %c0_209 = arith.constant 0 : index
    %c0_210 = arith.constant 0 : index
    %566 = vector.load %arg17[%c0_208, %c0_209, %c0_210] : memref<1x32x32xbf16, #tpu.memory_space<vmem>>, vector<1x32x32xbf16>
    %567 = vector.shape_cast %566 : vector<1x32x32xbf16> to vector<32x32xbf16>
    %cst_211 = arith.constant dense<0.000000e+00> : vector<16x32xf32>
    %568 = tpu.matmul %565, %567, %cst_211 {dimension_numbers = #tpu.dot_dimension_numbers<[1], [0], [0], [1], [0, 0, 1, 1], [], []>} : vector<16x32xbf16>, vector<32x32xbf16>, vector<16x32xf32> -> vector<16x32xf32>
    %c0_212 = arith.constant 0 : index
    %c0_213 = arith.constant 0 : index
    %c0_214 = arith.constant 0 : index
    %569 = vector.load %arg18[%c0_212, %c0_213, %c0_214] : memref<1x1x32xf32, #tpu.memory_space<vmem>>, vector<1x1x32xf32>
    %570 = vector.shape_cast %569 : vector<1x1x32xf32> to vector<1x32xf32>
    %571 = vector.broadcast %570 : vector<1x32xf32> to vector<16x32xf32>
    %572 = arith.addf %568, %571 : vector<16x32xf32>
    %573 = arith.addf %3, %572 : vector<16x32xf32>
    %c0_215 = arith.constant 0 : index
    %c0_216 = arith.constant 0 : index
    %c0_217 = arith.constant 0 : index
    %574 = vector.load %arg19[%c0_215, %c0_216, %c0_217] : memref<1x1x32xf32, #tpu.memory_space<vmem>>, vector<1x1x32xf32>
    %575 = vector.shape_cast %574 : vector<1x1x32xf32> to vector<1x32xf32>
    %c0_218 = arith.constant 0 : index
    %c0_219 = arith.constant 0 : index
    %c0_220 = arith.constant 0 : index
    %576 = vector.load %arg20[%c0_218, %c0_219, %c0_220] : memref<1x1x32xf32, #tpu.memory_space<vmem>>, vector<1x1x32xf32>
    %577 = vector.shape_cast %576 : vector<1x1x32xf32> to vector<1x32xf32>
    %cst_221 = arith.constant dense<0.000000e+00> : vector<16xf32>
    %578 = vector.multi_reduction <add>, %573, %cst_221 [1] : vector<16x32xf32> to vector<16xf32>
    %579 = vector.shape_cast %578 : vector<16xf32> to vector<16x1xf32>
    %cst_222 = arith.constant 3.200000e+01 : f32
    %580 = vector.broadcast %cst_222 : f32 to vector<16x1xf32>
    %581 = arith.divf %579, %580 : vector<16x1xf32>
    %582 = vector.broadcast %581 : vector<16x1xf32> to vector<16x32xf32>
    %583 = arith.subf %573, %582 : vector<16x32xf32>
    %584 = arith.mulf %583, %583 : vector<16x32xf32>
    %cst_223 = arith.constant dense<0.000000e+00> : vector<16xf32>
    %585 = vector.multi_reduction <add>, %584, %cst_223 [1] : vector<16x32xf32> to vector<16xf32>
    %586 = vector.shape_cast %585 : vector<16xf32> to vector<16x1xf32>
    %cst_224 = arith.constant 3.200000e+01 : f32
    %587 = vector.broadcast %cst_224 : f32 to vector<16x1xf32>
    %588 = arith.divf %586, %587 : vector<16x1xf32>
    %cst_225 = arith.constant 9.99999974E-6 : f32
    %589 = vector.broadcast %cst_225 : f32 to vector<16x1xf32>
    %590 = arith.addf %588, %589 : vector<16x1xf32>
    %591 = math.rsqrt %590 : vector<16x1xf32>
    %592 = vector.broadcast %591 : vector<16x1xf32> to vector<16x32xf32>
    %593 = arith.mulf %583, %592 : vector<16x32xf32>
    %594 = vector.broadcast %575 : vector<1x32xf32> to vector<16x32xf32>
    %595 = arith.mulf %593, %594 : vector<16x32xf32>
    %596 = vector.broadcast %577 : vector<1x32xf32> to vector<16x32xf32>
    %597 = arith.addf %595, %596 : vector<16x32xf32>
    %598 = arith.truncf %597 : vector<16x32xf32> to vector<16x32xbf16>
    %c0_226 = arith.constant 0 : index
    %c0_227 = arith.constant 0 : index
    %c0_228 = arith.constant 0 : index
    %599 = vector.load %arg21[%c0_226, %c0_227, %c0_228] : memref<1x32x2048xbf16, #tpu.memory_space<vmem>>, vector<1x32x2048xbf16>
    %600 = vector.shape_cast %599 : vector<1x32x2048xbf16> to vector<32x2048xbf16>
    %cst_229 = arith.constant dense<0.000000e+00> : vector<16x2048xf32>
    %601 = tpu.matmul %598, %600, %cst_229 {dimension_numbers = #tpu.dot_dimension_numbers<[1], [0], [0], [1], [0, 0, 1, 1], [], []>} : vector<16x32xbf16>, vector<32x2048xbf16>, vector<16x2048xf32> -> vector<16x2048xf32>
    %c0_230 = arith.constant 0 : index
    %c0_231 = arith.constant 0 : index
    %c0_232 = arith.constant 0 : index
    %602 = vector.load %arg22[%c0_230, %c0_231, %c0_232] : memref<1x1x2048xf32, #tpu.memory_space<vmem>>, vector<1x1x2048xf32>
    %603 = vector.shape_cast %602 : vector<1x1x2048xf32> to vector<1x2048xf32>
    %604 = vector.broadcast %603 : vector<1x2048xf32> to vector<16x2048xf32>
    %605 = arith.addf %601, %604 : vector<16x2048xf32>
    %cst_233 = arith.constant 0.000000e+00 : f32
    %606 = vector.broadcast %cst_233 : f32 to vector<16x2048xf32>
    %607 = arith.maximumf %605, %606 : vector<16x2048xf32>
    %608 = arith.truncf %607 : vector<16x2048xf32> to vector<16x2048xbf16>
    %c0_234 = arith.constant 0 : index
    %c0_235 = arith.constant 0 : index
    %c0_236 = arith.constant 0 : index
    %609 = vector.load %arg23[%c0_234, %c0_235, %c0_236] : memref<1x2048x32xbf16, #tpu.memory_space<vmem>>, vector<1x2048x32xbf16>
    %610 = vector.shape_cast %609 : vector<1x2048x32xbf16> to vector<2048x32xbf16>
    %cst_237 = arith.constant dense<0.000000e+00> : vector<16x32xf32>
    %611 = tpu.matmul %608, %610, %cst_237 {dimension_numbers = #tpu.dot_dimension_numbers<[1], [0], [0], [1], [0, 0, 1, 1], [], []>} : vector<16x2048xbf16>, vector<2048x32xbf16>, vector<16x32xf32> -> vector<16x32xf32>
    %c0_238 = arith.constant 0 : index
    %c0_239 = arith.constant 0 : index
    %c0_240 = arith.constant 0 : index
    %612 = vector.load %arg24[%c0_238, %c0_239, %c0_240] : memref<1x1x32xf32, #tpu.memory_space<vmem>>, vector<1x1x32xf32>
    %613 = vector.shape_cast %612 : vector<1x1x32xf32> to vector<1x32xf32>
    %614 = vector.broadcast %613 : vector<1x32xf32> to vector<16x32xf32>
    %615 = arith.addf %611, %614 : vector<16x32xf32>
    %616 = arith.addf %597, %615 : vector<16x32xf32>
    %c0_241 = arith.constant 0 : index
    %c0_242 = arith.constant 0 : index
    %c0_243 = arith.constant 0 : index
    %617 = vector.load %arg25[%c0_241, %c0_242, %c0_243] : memref<1x1x32xf32, #tpu.memory_space<vmem>>, vector<1x1x32xf32>
    %618 = vector.shape_cast %617 : vector<1x1x32xf32> to vector<1x32xf32>
    %c0_244 = arith.constant 0 : index
    %c0_245 = arith.constant 0 : index
    %c0_246 = arith.constant 0 : index
    %619 = vector.load %arg26[%c0_244, %c0_245, %c0_246] : memref<1x1x32xf32, #tpu.memory_space<vmem>>, vector<1x1x32xf32>
    %620 = vector.shape_cast %619 : vector<1x1x32xf32> to vector<1x32xf32>
    %cst_247 = arith.constant dense<0.000000e+00> : vector<16xf32>
    %621 = vector.multi_reduction <add>, %616, %cst_247 [1] : vector<16x32xf32> to vector<16xf32>
    %622 = vector.shape_cast %621 : vector<16xf32> to vector<16x1xf32>
    %cst_248 = arith.constant 3.200000e+01 : f32
    %623 = vector.broadcast %cst_248 : f32 to vector<16x1xf32>
    %624 = arith.divf %622, %623 : vector<16x1xf32>
    %625 = vector.broadcast %624 : vector<16x1xf32> to vector<16x32xf32>
    %626 = arith.subf %616, %625 : vector<16x32xf32>
    %627 = arith.mulf %626, %626 : vector<16x32xf32>
    %cst_249 = arith.constant dense<0.000000e+00> : vector<16xf32>
    %628 = vector.multi_reduction <add>, %627, %cst_249 [1] : vector<16x32xf32> to vector<16xf32>
    %629 = vector.shape_cast %628 : vector<16xf32> to vector<16x1xf32>
    %cst_250 = arith.constant 3.200000e+01 : f32
    %630 = vector.broadcast %cst_250 : f32 to vector<16x1xf32>
    %631 = arith.divf %629, %630 : vector<16x1xf32>
    %cst_251 = arith.constant 9.99999974E-6 : f32
    %632 = vector.broadcast %cst_251 : f32 to vector<16x1xf32>
    %633 = arith.addf %631, %632 : vector<16x1xf32>
    %634 = math.rsqrt %633 : vector<16x1xf32>
    %635 = vector.broadcast %634 : vector<16x1xf32> to vector<16x32xf32>
    %636 = arith.mulf %626, %635 : vector<16x32xf32>
    %637 = vector.broadcast %618 : vector<1x32xf32> to vector<16x32xf32>
    %638 = arith.mulf %636, %637 : vector<16x32xf32>
    %639 = vector.broadcast %620 : vector<1x32xf32> to vector<16x32xf32>
    %640 = arith.addf %638, %639 : vector<16x32xf32>
    %c0_252 = arith.constant 0 : index
    %c0_253 = arith.constant 0 : index
    %641 = vector.load %arg30[%c0_252, %c0_253] : memref<16x32xf32, #tpu.memory_space<vmem>>, vector<16x32xf32>
    tpu.vector_store %arg30[%c0_252, %c0_253], %640 {strides = array<i32>} : memref<16x32xf32, #tpu.memory_space<vmem>>, vector<16x32xf32>,
    %c1_i32 = arith.constant 1 : i32
    %642 = arith.cmpi eq, %arg1, %c1_i32 : i32
    %643 = arith.extui %642 : i1 to i32
    %c0_i32_254 = arith.constant 0 : i32
    %644 = arith.cmpi ne, %643, %c0_i32_254 : i32
    scf.if %644 {
      %645 = arith.truncf %640 : vector<16x32xf32> to vector<16x32xbf16>
      %c0_255 = arith.constant 0 : index
      %c0_256 = arith.constant 0 : index
      %646 = vector.load %arg27[%c0_255, %c0_256] : memref<32x128xbf16, #tpu.memory_space<vmem>>, vector<32x128xbf16>
      %cst_257 = arith.constant dense<0.000000e+00> : vector<16x128xf32>
      %647 = tpu.matmul %645, %646, %cst_257 {dimension_numbers = #tpu.dot_dimension_numbers<[1], [0], [0], [1], [0, 0, 1, 1], [], []>} : vector<16x32xbf16>, vector<32x128xbf16>, vector<16x128xf32> -> vector<16x128xf32>
      %c0_258 = arith.constant 0 : index
      %c0_259 = arith.constant 0 : index
      %648 = vector.load %arg28[%c0_258, %c0_259] : memref<1x128xf32, #tpu.memory_space<vmem>>, vector<1x128xf32>
      %649 = vector.broadcast %648 : vector<1x128xf32> to vector<16x128xf32>
      %650 = arith.addf %647, %649 : vector<16x128xf32>
      %c0_260 = arith.constant 0 : index
      %c0_261 = arith.constant 0 : index
      %651 = vector.load %arg29[%c0_260, %c0_261] : memref<16x128xf32, #tpu.memory_space<vmem>>, vector<16x128xf32>
      tpu.vector_store %arg29[%c0_260, %c0_261], %650 {strides = array<i32>} : memref<16x128xf32, #tpu.memory_space<vmem>>, vector<16x128xf32>,
    } else {
    }
    return
  }
  func.func @transform_0(%arg0: i32, %arg1: i32) -> (i32, i32) {
    %c0_i32 = arith.constant 0 : i32
    %c0_i32_0 = arith.constant 0 : i32
    return %arg0, %c0_i32 : i32, i32
  }
  func.func @transform_1(%arg0: i32, %arg1: i32) -> (i32, i32) {
    %c0_i32 = arith.constant 0 : i32
    %c0_i32_0 = arith.constant 0 : i32
    return %arg0, %c0_i32 : i32, i32
  }
  func.func @transform_2(%arg0: i32, %arg1: i32) -> (i32, i32) {
    %c0_i32 = arith.constant 0 : i32
    %c0_i32_0 = arith.constant 0 : i32
    %c0_i32_1 = arith.constant 0 : i32
    return %c0_i32, %c0_i32_0 : i32, i32
  }
  func.func @transform_3(%arg0: i32, %arg1: i32) -> (i32, i32) {
    %c0_i32 = arith.constant 0 : i32
    %c0_i32_0 = arith.constant 0 : i32
    %c0_i32_1 = arith.constant 0 : i32
    return %c0_i32, %c0_i32_0 : i32, i32
  }
  func.func @transform_4(%arg0: i32, %arg1: i32) -> (i32, i32) {
    %c0_i32 = arith.constant 0 : i32
    %c0_i32_0 = arith.constant 0 : i32
    %c0_i32_1 = arith.constant 0 : i32
    return %c0_i32, %c0_i32_0 : i32, i32
  }
  func.func @transform_5(%arg0: i32, %arg1: i32) -> (i32, i32) {
    %c0_i32 = arith.constant 0 : i32
    %c0_i32_0 = arith.constant 0 : i32
    %c0_i32_1 = arith.constant 0 : i32
    return %c0_i32, %c0_i32_0 : i32, i32
  }
  func.func @transform_6(%arg0: i32, %arg1: i32) -> (i32, i32) {
    %c0_i32 = arith.constant 0 : i32
    %c0_i32_0 = arith.constant 0 : i32
    %c0_i32_1 = arith.constant 0 : i32
    return %c0_i32, %c0_i32_0 : i32, i32
  }
  func.func @transform_7(%arg0: i32, %arg1: i32) -> (i32, i32) {
    %c0_i32 = arith.constant 0 : i32
    %c0_i32_0 = arith.constant 0 : i32
    %c0_i32_1 = arith.constant 0 : i32
    return %c0_i32, %c0_i32_0 : i32, i32
  }
  func.func @transform_8(%arg0: i32, %arg1: i32) -> (i32, i32) {
    %c0_i32 = arith.constant 0 : i32
    %c0_i32_0 = arith.constant 0 : i32
    %c0_i32_1 = arith.constant 0 : i32
    return %c0_i32, %c0_i32_0 : i32, i32
  }
  func.func @transform_9(%arg0: i32, %arg1: i32) -> (i32, i32, i32) {
    %c0_i32 = arith.constant 0 : i32
    %c0_i32_0 = arith.constant 0 : i32
    %c0_i32_1 = arith.constant 0 : i32
    return %arg1, %c0_i32, %c0_i32_0 : i32, i32, i32
  }
  func.func @transform_10(%arg0: i32, %arg1: i32) -> (i32, i32, i32) {
    %c0_i32 = arith.constant 0 : i32
    %c0_i32_0 = arith.constant 0 : i32
    %c0_i32_1 = arith.constant 0 : i32
    return %arg1, %c0_i32, %c0_i32_0 : i32, i32, i32
  }
  func.func @transform_11(%arg0: i32, %arg1: i32) -> (i32, i32, i32) {
    %c0_i32 = arith.constant 0 : i32
    %c0_i32_0 = arith.constant 0 : i32
    %c0_i32_1 = arith.constant 0 : i32
    return %arg1, %c0_i32, %c0_i32_0 : i32, i32, i32
  }
  func.func @transform_12(%arg0: i32, %arg1: i32) -> (i32, i32, i32) {
    %c0_i32 = arith.constant 0 : i32
    %c0_i32_0 = arith.constant 0 : i32
    %c0_i32_1 = arith.constant 0 : i32
    return %arg1, %c0_i32, %c0_i32_0 : i32, i32, i32
  }
  func.func @transform_13(%arg0: i32, %arg1: i32) -> (i32, i32, i32) {
    %c0_i32 = arith.constant 0 : i32
    %c0_i32_0 = arith.constant 0 : i32
    %c0_i32_1 = arith.constant 0 : i32
    return %arg1, %c0_i32, %c0_i32_0 : i32, i32, i32
  }
  func.func @transform_14(%arg0: i32, %arg1: i32) -> (i32, i32, i32) {
    %c0_i32 = arith.constant 0 : i32
    %c0_i32_0 = arith.constant 0 : i32
    %c0_i32_1 = arith.constant 0 : i32
    return %arg1, %c0_i32, %c0_i32_0 : i32, i32, i32
  }
  func.func @transform_15(%arg0: i32, %arg1: i32) -> (i32, i32, i32) {
    %c0_i32 = arith.constant 0 : i32
    %c0_i32_0 = arith.constant 0 : i32
    %c0_i32_1 = arith.constant 0 : i32
    return %arg1, %c0_i32, %c0_i32_0 : i32, i32, i32
  }
  func.func @transform_16(%arg0: i32, %arg1: i32) -> (i32, i32, i32) {
    %c0_i32 = arith.constant 0 : i32
    %c0_i32_0 = arith.constant 0 : i32
    %c0_i32_1 = arith.constant 0 : i32
    return %arg1, %c0_i32, %c0_i32_0 : i32, i32, i32
  }
  func.func @transform_17(%arg0: i32, %arg1: i32) -> (i32, i32, i32) {
    %c0_i32 = arith.constant 0 : i32
    %c0_i32_0 = arith.constant 0 : i32
    %c0_i32_1 = arith.constant 0 : i32
    return %arg1, %c0_i32, %c0_i32_0 : i32, i32, i32
  }
  func.func @transform_18(%arg0: i32, %arg1: i32) -> (i32, i32, i32) {
    %c0_i32 = arith.constant 0 : i32
    %c0_i32_0 = arith.constant 0 : i32
    %c0_i32_1 = arith.constant 0 : i32
    return %arg1, %c0_i32, %c0_i32_0 : i32, i32, i32
  }
  func.func @transform_19(%arg0: i32, %arg1: i32) -> (i32, i32, i32) {
    %c0_i32 = arith.constant 0 : i32
    %c0_i32_0 = arith.constant 0 : i32
    %c0_i32_1 = arith.constant 0 : i32
    return %arg1, %c0_i32, %c0_i32_0 : i32, i32, i32
  }
  func.func @transform_20(%arg0: i32, %arg1: i32) -> (i32, i32, i32) {
    %c0_i32 = arith.constant 0 : i32
    %c0_i32_0 = arith.constant 0 : i32
    %c0_i32_1 = arith.constant 0 : i32
    return %arg1, %c0_i32, %c0_i32_0 : i32, i32, i32
  }
  func.func @transform_21(%arg0: i32, %arg1: i32) -> (i32, i32, i32) {
    %c0_i32 = arith.constant 0 : i32
    %c0_i32_0 = arith.constant 0 : i32
    %c0_i32_1 = arith.constant 0 : i32
    return %arg1, %c0_i32, %c0_i32_0 : i32, i32, i32
  }
  func.func @transform_22(%arg0: i32, %arg1: i32) -> (i32, i32, i32) {
    %c0_i32 = arith.constant 0 : i32
    %c0_i32_0 = arith.constant 0 : i32
    %c0_i32_1 = arith.constant 0 : i32
    return %arg1, %c0_i32, %c0_i32_0 : i32, i32, i32
  }
  func.func @transform_23(%arg0: i32, %arg1: i32) -> (i32, i32, i32) {
    %c0_i32 = arith.constant 0 : i32
    %c0_i32_0 = arith.constant 0 : i32
    %c0_i32_1 = arith.constant 0 : i32
    return %arg1, %c0_i32, %c0_i32_0 : i32, i32, i32
  }
  func.func @transform_24(%arg0: i32, %arg1: i32) -> (i32, i32, i32) {
    %c0_i32 = arith.constant 0 : i32
    %c0_i32_0 = arith.constant 0 : i32
    %c0_i32_1 = arith.constant 0 : i32
    return %arg1, %c0_i32, %c0_i32_0 : i32, i32, i32
  }
  func.func @transform_25(%arg0: i32, %arg1: i32) -> (i32, i32) {
    %c0_i32 = arith.constant 0 : i32
    %c0_i32_0 = arith.constant 0 : i32
    %c0_i32_1 = arith.constant 0 : i32
    return %c0_i32, %c0_i32_0 : i32, i32
  }
  func.func @transform_26(%arg0: i32, %arg1: i32) -> (i32, i32) {
    %c0_i32 = arith.constant 0 : i32
    %c0_i32_0 = arith.constant 0 : i32
    %c0_i32_1 = arith.constant 0 : i32
    return %c0_i32, %c0_i32_0 : i32, i32
  }
  func.func @transform_27(%arg0: i32, %arg1: i32) -> (i32, i32) {
    %c0_i32 = arith.constant 0 : i32
    %c0_i32_0 = arith.constant 0 : i32
    return %arg0, %c0_i32 : i32, i32
  }
}

</mosaic_0001>

<llo_original>
// kernel: tpu_custom_call.1
$region0: #{tpu_custom_call.1}
  #allocation0 [shape = 'u32[]', space=smem, size = 0x4, offset = 0x4, fixed_abs, tag = 'smem constant byte address 0x4 - core index']
  #allocation1 [shape = 'u32[144,128]{1,0:T(1,128)}', space=vmem, size = 0x12000, scoped, tag = 'internal scratch']
  #allocation2 [shape = 'f32[16,32]{1,0:T(8,128)}', space=vmem, size = 0x2000, scoped, tag = 'scratch operand']
  #allocation3 [shape = 'f32[16,32]{1,0:T(8,128)}', space=vmem, size = 0x2000, scoped, tag = 'scratch operand']
  %s0 = inlined_call_operand.vmem [shape: f32[16,16], index: 0, kind: input, shape index: {}]
  %s1 = inlined_call_operand.vmem [shape: f32[16,12], index: 1, kind: input, shape index: {}]
  %s2 = inlined_call_operand.vmem [shape: bf16[16,32], index: 2, kind: input, shape index: {}]
  %s3 = inlined_call_operand.vmem [shape: f32[1,32], index: 3, kind: input, shape index: {}]
  %s4 = inlined_call_operand.vmem [shape: bf16[12,32], index: 4, kind: input, shape index: {}]
  %s5 = inlined_call_operand.vmem [shape: f32[1,32], index: 5, kind: input, shape index: {}]
  %s6 = inlined_call_operand.vmem [shape: bf16[32,32], index: 6, kind: input, shape index: {}]
  %s7 = inlined_call_operand.vmem [shape: bf16[32,32], index: 7, kind: input, shape index: {}]
  %s8 = inlined_call_operand.vmem [shape: f32[1,32], index: 8, kind: input, shape index: {}]
  %s9 = inlined_call_operand.vmem [shape: bf16[2,32,32], index: 9, kind: input, shape index: {}]
  %s10 = inlined_call_operand.vmem [shape: f32[2,1,32], index: 10, kind: input, shape index: {}]
  %s11 = inlined_call_operand.vmem [shape: bf16[2,32,32], index: 11, kind: input, shape index: {}]
  %s12 = inlined_call_operand.vmem [shape: f32[2,1,32], index: 12, kind: input, shape index: {}]
  %s13 = inlined_call_operand.vmem [shape: bf16[2,32,32], index: 13, kind: input, shape index: {}]
  %s14 = inlined_call_operand.vmem [shape: f32[2,1,32], index: 14, kind: input, shape index: {}]
  %s15 = inlined_call_operand.vmem [shape: bf16[2,32,32], index: 15, kind: input, shape index: {}]
  %s16 = inlined_call_operand.vmem [shape: f32[2,1,32], index: 16, kind: input, shape index: {}]
  %s17 = inlined_call_operand.vmem [shape: f32[2,1,32], index: 17, kind: input, shape index: {}]
  %s18 = inlined_call_operand.vmem [shape: f32[2,1,32], index: 18, kind: input, shape index: {}]
  %s19 = inlined_call_operand.vmem [shape: bf16[2,32,2048], index: 19, kind: input, shape index: {}]
  %s20 = inlined_call_operand.vmem [shape: f32[2,1,2048], index: 20, kind: input, shape index: {}]
  %s21 = inlined_call_operand.vmem [shape: bf16[2,2048,32], index: 21, kind: input, shape index: {}]
  %s22 = inlined_call_operand.vmem [shape: f32[2,1,32], index: 22, kind: input, shape index: {}]
  %s23 = inlined_call_operand.vmem [shape: f32[2,1,32], index: 23, kind: input, shape index: {}]
  %s24 = inlined_call_operand.vmem [shape: f32[2,1,32], index: 24, kind: input, shape index: {}]
  %s25 = inlined_call_operand.vmem [shape: bf16[32,128], index: 25, kind: input, shape index: {}]
  %s26 = inlined_call_operand.vmem [shape: f32[1,128], index: 26, kind: input, shape index: {}]
  %s27 = inlined_call_operand.hbm [shape: f32[16,128], index: 27, kind: output, shape index: {}]
  %s28 = sld [smem:[#allocation0]]
  $region149: #{tpu_custom_call.1} parent=0
    _
  %s30 = ssub.s32 1, %s28
  %s31 = scalar_select 0, %s30, %s28
  $region1: #{tpu_custom_call.1} parent=0
    #allocation4 [shape = 'u8[8192]{0}', space=vmem, size = 0x2000, scoped, tag = 'output window, operand 0, single buffered']
    #allocation5 [shape = 's32[2]{0}', space=sflag, size = 0x8, scoped, tag = 'scoped memory for tpu_custom_call.1']
    %32 = vsyncpa [#allocation5], 0
    loop: start=0, step=1, limit=4
    $region2: #{tpu_custom_call.1} parent=1 // loop_pre_header
      _
    $region3: #{tpu_custom_call.1} parent=1 // loop_header
      %s34 = sphi 0, %s38
      %p35 = scmp.ge.s32.totalorder %s34, 4
      %s41 = sphi 0, %s53
      %s42 = sphi 0, %s49
      %s43 = sphi 0, %s41
      %s44 = sphi 0, %s42
      %s45 = sphi 0, %s43
      %s46 = sphi 0, %s44
      %s56 = sphi 0, %s58
      %s59 = sphi 0, %s56
      %s60 = sphi 0, %s59
      %s76 = sphi 0, %s60
      %s82 = sphi 0, %s84
      %s85 = sphi 0, %s82
      %s86 = sphi 0, %s85
      %s102 = sphi 0, %s86
      %s106 = sphi 0, %s106
      %s108 = sphi 0, %s106
      %s109 = sphi 0, %s108
      %s123 = sphi 0, %s109
      %s127 = sphi 0, %s127
      %s129 = sphi 0, %s127
      %s130 = sphi 0, %s129
      %s144 = sphi 0, %s130
      %s148 = sphi 0, %s148
      %s150 = sphi 0, %s148
      %s151 = sphi 0, %s150
      %s165 = sphi 0, %s151
      %s169 = sphi 0, %s169
      %s171 = sphi 0, %s169
      %s172 = sphi 0, %s171
      %s186 = sphi 0, %s172
      %s190 = sphi 0, %s190
      %s192 = sphi 0, %s190
      %s193 = sphi 0, %s192
      %s207 = sphi 0, %s193
      %s211 = sphi 0, %s211
      %s213 = sphi 0, %s211
      %s214 = sphi 0, %s213
      %s228 = sphi 0, %s214
      %s232 = sphi 0, %s232
      %s234 = sphi 0, %s232
      %s235 = sphi 0, %s234
      %s249 = sphi 0, %s235
      %s255 = sphi 0, %s257
      %s258 = sphi 0, %s255
      %s259 = sphi 0, %s258
      %s275 = sphi 0, %s259
      %s281 = sphi 0, %s283
      %s284 = sphi 0, %s281
      %s285 = sphi 0, %s284
      %s301 = sphi 0, %s285
      %s307 = sphi 0, %s309
      %s310 = sphi 0, %s307
      %s311 = sphi 0, %s310
      %s327 = sphi 0, %s311
      %s333 = sphi 0, %s335
      %s336 = sphi 0, %s333
      %s337 = sphi 0, %s336
      %s353 = sphi 0, %s337
      %s359 = sphi 0, %s361
      %s362 = sphi 0, %s359
      %s363 = sphi 0, %s362
      %s379 = sphi 0, %s363
      %s385 = sphi 0, %s387
      %s388 = sphi 0, %s385
      %s389 = sphi 0, %s388
      %s405 = sphi 0, %s389
      %s411 = sphi 0, %s413
      %s414 = sphi 0, %s411
      %s415 = sphi 0, %s414
      %s431 = sphi 0, %s415
      %s437 = sphi 0, %s439
      %s440 = sphi 0, %s437
      %s441 = sphi 0, %s440
      %s457 = sphi 0, %s441
      %s463 = sphi 0, %s465
      %s466 = sphi 0, %s463
      %s467 = sphi 0, %s466
      %s483 = sphi 0, %s467
      %s489 = sphi 0, %s491
      %s492 = sphi 0, %s489
      %s493 = sphi 0, %s492
      %s509 = sphi 0, %s493
      %s515 = sphi 0, %s517
      %s518 = sphi 0, %s515
      %s519 = sphi 0, %s518
      %s535 = sphi 0, %s519
      %s541 = sphi 0, %s543
      %s544 = sphi 0, %s541
      %s545 = sphi 0, %s544
      %s561 = sphi 0, %s545
      %s567 = sphi 0, %s569
      %s570 = sphi 0, %s567
      %s571 = sphi 0, %s570
      %s587 = sphi 0, %s571
      %s593 = sphi 0, %s595
      %s596 = sphi 0, %s593
      %s597 = sphi 0, %s596
      %s613 = sphi 0, %s597
      %s619 = sphi 0, %s621
      %s622 = sphi 0, %s619
      %s623 = sphi 0, %s622
      %s639 = sphi 0, %s623
      %s645 = sphi 0, %s647
      %s648 = sphi 0, %s645
      %s649 = sphi 0, %s648
      %s665 = sphi 0, %s649
      %s669 = sphi 0, %s669
      %s671 = sphi 0, %s669
      %s672 = sphi 0, %s671
      %s686 = sphi 0, %s672
      %s690 = sphi 0, %s690
      %s692 = sphi 0, %s690
      %s693 = sphi 0, %s692
      %s707 = sphi 0, %s693
      %s713 = sphi 0, %s715
      %s716 = sphi 0, %s713
      %s717 = sphi 0, %s716
      %s733 = sphi 0, %s717
    $region4: #{tpu_custom_call.1} parent=1 // loop_header_branch
      %37 = sbr.rel (%p35) target = $region8
    $region5: #{tpu_custom_call.1} parent=1 // loop_body
      %s39 = ssub.s32 %s34, 1
      %s40 = ssub.s32 %s34, 2
      %s47 = sadd.s32 1, %s42
      %p48 = scmp.ge.s32.totalorder %s47, 2
      %s49 = scalar_select %p48, 0, %s47
      %s50 = sadd.s32 1, %s41
      %s51 = scalar_select %p48, %s50, %s41
      %p52 = scmp.ge.s32.totalorder %s51, 1
      %s53 = scalar_select %p52, 0, %s51
      %s54 = ssub.s32 %s41, %s53
      %p55 = scmp.eq.s32.totalorder %s54, 0
      %s57 = sadd.s32 %s56, 1
      %s58 = scalar_select %p55, %s56, %s57
      %p61 = pneg %p55
      %p62 = scmp.eq.s32.totalorder %s34, 1
      %p63 = por %p61, %p62
      %p64 = scmp.ne.s32.totalorder %s56, %s59
      %p65 = scmp.eq.s32.totalorder %s34, 0
      %p66 = por %p64, %p65
      %p67 = scmp.ne.s32.totalorder %s56, %s59
      %p68 = scmp.eq.s32.totalorder %s39, 1
      %p69 = por %p67, %p68
      %p70 = scmp.ne.s32.totalorder %s59, %s60
      %p71 = scmp.eq.s32.totalorder %s39, 0
      %p72 = por %p70, %p71
      %p73 = scmp.ne.s32.totalorder %s59, %s60
      %p74 = scmp.eq.s32.totalorder %s40, 1
      %p75 = por %p73, %p74
      %p77 = scmp.ne.s32.totalorder %s60, %s76
      %p78 = scmp.eq.s32.totalorder %s40, 0
      %p79 = por %p77, %p78
      %s80 = ssub.s32 %s41, %s53
      %p81 = scmp.eq.s32.totalorder %s80, 0
      %s83 = sadd.s32 %s82, 1
      %s84 = scalar_select %p81, %s82, %s83
      %p87 = pneg %p81
      %p88 = scmp.eq.s32.totalorder %s34, 1
      %p89 = por %p87, %p88
      %p90 = scmp.ne.s32.totalorder %s82, %s85
      %p91 = scmp.eq.s32.totalorder %s34, 0
      %p92 = por %p90, %p91
      %p93 = scmp.ne.s32.totalorder %s82, %s85
      %p94 = scmp.eq.s32.totalorder %s39, 1
      %p95 = por %p93, %p94
      %p96 = scmp.ne.s32.totalorder %s85, %s86
      %p97 = scmp.eq.s32.totalorder %s39, 0
      %p98 = por %p96, %p97
      %p99 = scmp.ne.s32.totalorder %s85, %s86
      %p100 = scmp.eq.s32.totalorder %s40, 1
      %p101 = por %p99, %p100
      %p103 = scmp.ne.s32.totalorder %s86, %s102
      %p104 = scmp.eq.s32.totalorder %s40, 0
      %p105 = por %p103, %p104
      %s107 = sadd.s32 %s106, 1
      %p110 = scmp.eq.s32.totalorder %s34, 1
      %p111 = scmp.ne.s32.totalorder %s106, %s108
      %p112 = scmp.eq.s32.totalorder %s34, 0
      %p113 = por %p111, %p112
      %p114 = scmp.ne.s32.totalorder %s106, %s108
      %p115 = scmp.eq.s32.totalorder %s39, 1
      %p116 = por %p114, %p115
      %p117 = scmp.ne.s32.totalorder %s108, %s109
      %p118 = scmp.eq.s32.totalorder %s39, 0
      %p119 = por %p117, %p118
      %p120 = scmp.ne.s32.totalorder %s108, %s109
      %p121 = scmp.eq.s32.totalorder %s40, 1
      %p122 = por %p120, %p121
      %p124 = scmp.ne.s32.totalorder %s109, %s123
      %p125 = scmp.eq.s32.totalorder %s40, 0
      %p126 = por %p124, %p125
      %s128 = sadd.s32 %s127, 1
      %p131 = scmp.eq.s32.totalorder %s34, 1
      %p132 = scmp.ne.s32.totalorder %s127, %s129
      %p133 = scmp.eq.s32.totalorder %s34, 0
      %p134 = por %p132, %p133
      %p135 = scmp.ne.s32.totalorder %s127, %s129
      %p136 = scmp.eq.s32.totalorder %s39, 1
      %p137 = por %p135, %p136
      %p138 = scmp.ne.s32.totalorder %s129, %s130
      %p139 = scmp.eq.s32.totalorder %s39, 0
      %p140 = por %p138, %p139
      %p141 = scmp.ne.s32.totalorder %s129, %s130
      %p142 = scmp.eq.s32.totalorder %s40, 1
      %p143 = por %p141, %p142
      %p145 = scmp.ne.s32.totalorder %s130, %s144
      %p146 = scmp.eq.s32.totalorder %s40, 0
      %p147 = por %p145, %p146
      %s149 = sadd.s32 %s148, 1
      %p152 = scmp.eq.s32.totalorder %s34, 1
      %p153 = scmp.ne.s32.totalorder %s148, %s150
      %p154 = scmp.eq.s32.totalorder %s34, 0
      %p155 = por %p153, %p154
      %p156 = scmp.ne.s32.totalorder %s148, %s150
      %p157 = scmp.eq.s32.totalorder %s39, 1
      %p158 = por %p156, %p157
      %p159 = scmp.ne.s32.totalorder %s150, %s151
      %p160 = scmp.eq.s32.totalorder %s39, 0
      %p161 = por %p159, %p160
      %p162 = scmp.ne.s32.totalorder %s150, %s151
      %p163 = scmp.eq.s32.totalorder %s40, 1
      %p164 = por %p162, %p163
      %p166 = scmp.ne.s32.totalorder %s151, %s165
      %p167 = scmp.eq.s32.totalorder %s40, 0
      %p168 = por %p166, %p167
      %s170 = sadd.s32 %s169, 1
      %p173 = scmp.eq.s32.totalorder %s34, 1
      %p174 = scmp.ne.s32.totalorder %s169, %s171
      %p175 = scmp.eq.s32.totalorder %s34, 0
      %p176 = por %p174, %p175
      %p177 = scmp.ne.s32.totalorder %s169, %s171
      %p178 = scmp.eq.s32.totalorder %s39, 1
      %p179 = por %p177, %p178
      %p180 = scmp.ne.s32.totalorder %s171, %s172
      %p181 = scmp.eq.s32.totalorder %s39, 0
      %p182 = por %p180, %p181
      %p183 = scmp.ne.s32.totalorder %s171, %s172
      %p184 = scmp.eq.s32.totalorder %s40, 1
      %p185 = por %p183, %p184
      %p187 = scmp.ne.s32.totalorder %s172, %s186
      %p188 = scmp.eq.s32.totalorder %s40, 0
      %p189 = por %p187, %p188
      %s191 = sadd.s32 %s190, 1
      %p194 = scmp.eq.s32.totalorder %s34, 1
      %p195 = scmp.ne.s32.totalorder %s190, %s192
      %p196 = scmp.eq.s32.totalorder %s34, 0
      %p197 = por %p195, %p196
      %p198 = scmp.ne.s32.totalorder %s190, %s192
      %p199 = scmp.eq.s32.totalorder %s39, 1
      %p200 = por %p198, %p199
      %p201 = scmp.ne.s32.totalorder %s192, %s193
      %p202 = scmp.eq.s32.totalorder %s39, 0
      %p203 = por %p201, %p202
      %p204 = scmp.ne.s32.totalorder %s192, %s193
      %p205 = scmp.eq.s32.totalorder %s40, 1
      %p206 = por %p204, %p205
      %p208 = scmp.ne.s32.totalorder %s193, %s207
      %p209 = scmp.eq.s32.totalorder %s40, 0
      %p210 = por %p208, %p209
      %s212 = sadd.s32 %s211, 1
      %p215 = scmp.eq.s32.totalorder %s34, 1
      %p216 = scmp.ne.s32.totalorder %s211, %s213
      %p217 = scmp.eq.s32.totalorder %s34, 0
      %p218 = por %p216, %p217
      %p219 = scmp.ne.s32.totalorder %s211, %s213
      %p220 = scmp.eq.s32.totalorder %s39, 1
      %p221 = por %p219, %p220
      %p222 = scmp.ne.s32.totalorder %s213, %s214
      %p223 = scmp.eq.s32.totalorder %s39, 0
      %p224 = por %p222, %p223
      %p225 = scmp.ne.s32.totalorder %s213, %s214
      %p226 = scmp.eq.s32.totalorder %s40, 1
      %p227 = por %p225, %p226
      %p229 = scmp.ne.s32.totalorder %s214, %s228
      %p230 = scmp.eq.s32.totalorder %s40, 0
      %p231 = por %p229, %p230
      %s233 = sadd.s32 %s232, 1
      %p236 = scmp.eq.s32.totalorder %s34, 1
      %p237 = scmp.ne.s32.totalorder %s232, %s234
      %p238 = scmp.eq.s32.totalorder %s34, 0
      %p239 = por %p237, %p238
      %p240 = scmp.ne.s32.totalorder %s232, %s234
      %p241 = scmp.eq.s32.totalorder %s39, 1
      %p242 = por %p240, %p241
      %p243 = scmp.ne.s32.totalorder %s234, %s235
      %p244 = scmp.eq.s32.totalorder %s39, 0
      %p245 = por %p243, %p244
      %p246 = scmp.ne.s32.totalorder %s234, %s235
      %p247 = scmp.eq.s32.totalorder %s40, 1
      %p248 = por %p246, %p247
      %p250 = scmp.ne.s32.totalorder %s235, %s249
      %p251 = scmp.eq.s32.totalorder %s40, 0
      %p252 = por %p250, %p251
      %s253 = ssub.s32 %s42, %s49
      %p254 = scmp.eq.s32.totalorder %s253, 0
      %s256 = sadd.s32 %s255, 1
      %s257 = scalar_select %p254, %s255, %s256
      %p260 = pneg %p254
      %p261 = scmp.eq.s32.totalorder %s34, 1
      %p262 = por %p260, %p261
      %p263 = scmp.ne.s32.totalorder %s255, %s258
      %p264 = scmp.eq.s32.totalorder %s34, 0
      %p265 = por %p263, %p264
      %p266 = scmp.ne.s32.totalorder %s255, %s258
      %p267 = scmp.eq.s32.totalorder %s39, 1
      %p268 = por %p266, %p267
      %p269 = scmp.ne.s32.totalorder %s258, %s259
      %p270 = scmp.eq.s32.totalorder %s39, 0
      %p271 = por %p269, %p270
      %p272 = scmp.ne.s32.totalorder %s258, %s259
      %p273 = scmp.eq.s32.totalorder %s40, 1
      %p274 = por %p272, %p273
      %p276 = scmp.ne.s32.totalorder %s259, %s275
      %p277 = scmp.eq.s32.totalorder %s40, 0
      %p278 = por %p276, %p277
      %s279 = ssub.s32 %s42, %s49
      %p280 = scmp.eq.s32.totalorder %s279, 0
      %s282 = sadd.s32 %s281, 1
      %s283 = scalar_select %p280, %s281, %s282
      %p286 = pneg %p280
      %p287 = scmp.eq.s32.totalorder %s34, 1
      %p288 = por %p286, %p287
      %p289 = scmp.ne.s32.totalorder %s281, %s284
      %p290 = scmp.eq.s32.totalorder %s34, 0
      %p291 = por %p289, %p290
      %p292 = scmp.ne.s32.totalorder %s281, %s284
      %p293 = scmp.eq.s32.totalorder %s39, 1
      %p294 = por %p292, %p293
      %p295 = scmp.ne.s32.totalorder %s284, %s285
      %p296 = scmp.eq.s32.totalorder %s39, 0
      %p297 = por %p295, %p296
      %p298 = scmp.ne.s32.totalorder %s284, %s285
      %p299 = scmp.eq.s32.totalorder %s40, 1
      %p300 = por %p298, %p299
      %p302 = scmp.ne.s32.totalorder %s285, %s301
      %p303 = scmp.eq.s32.totalorder %s40, 0
      %p304 = por %p302, %p303
      %s305 = ssub.s32 %s42, %s49
      %p306 = scmp.eq.s32.totalorder %s305, 0
      %s308 = sadd.s32 %s307, 1
      %s309 = scalar_select %p306, %s307, %s308
      %p312 = pneg %p306
      %p313 = scmp.eq.s32.totalorder %s34, 1
      %p314 = por %p312, %p313
      %p315 = scmp.ne.s32.totalorder %s307, %s310
      %p316 = scmp.eq.s32.totalorder %s34, 0
      %p317 = por %p315, %p316
      %p318 = scmp.ne.s32.totalorder %s307, %s310
      %p319 = scmp.eq.s32.totalorder %s39, 1
      %p320 = por %p318, %p319
      %p321 = scmp.ne.s32.totalorder %s310, %s311
      %p322 = scmp.eq.s32.totalorder %s39, 0
      %p323 = por %p321, %p322
      %p324 = scmp.ne.s32.totalorder %s310, %s311
      %p325 = scmp.eq.s32.totalorder %s40, 1
      %p326 = por %p324, %p325
      %p328 = scmp.ne.s32.totalorder %s311, %s327
      %p329 = scmp.eq.s32.totalorder %s40, 0
      %p330 = por %p328, %p329
      %s331 = ssub.s32 %s42, %s49
      %p332 = scmp.eq.s32.totalorder %s331, 0
      %s334 = sadd.s32 %s333, 1
      %s335 = scalar_select %p332, %s333, %s334
      %p338 = pneg %p332
      %p339 = scmp.eq.s32.totalorder %s34, 1
      %p340 = por %p338, %p339
      %p341 = scmp.ne.s32.totalorder %s333, %s336
      %p342 = scmp.eq.s32.totalorder %s34, 0
      %p343 = por %p341, %p342
      %p344 = scmp.ne.s32.totalorder %s333, %s336
      %p345 = scmp.eq.s32.totalorder %s39, 1
      %p346 = por %p344, %p345
      %p347 = scmp.ne.s32.totalorder %s336, %s337
      %p348 = scmp.eq.s32.totalorder %s39, 0
      %p349 = por %p347, %p348
      %p350 = scmp.ne.s32.totalorder %s336, %s337
      %p351 = scmp.eq.s32.totalorder %s40, 1
      %p352 = por %p350, %p351
      %p354 = scmp.ne.s32.totalorder %s337, %s353
      %p355 = scmp.eq.s32.totalorder %s40, 0
      %p356 = por %p354, %p355
      %s357 = ssub.s32 %s42, %s49
      %p358 = scmp.eq.s32.totalorder %s357, 0
      %s360 = sadd.s32 %s359, 1
      %s361 = scalar_select %p358, %s359, %s360
      %p364 = pneg %p358
      %p365 = scmp.eq.s32.totalorder %s34, 1
      %p366 = por %p364, %p365
      %p367 = scmp.ne.s32.totalorder %s359, %s362
      %p368 = scmp.eq.s32.totalorder %s34, 0
      %p369 = por %p367, %p368
      %p370 = scmp.ne.s32.totalorder %s359, %s362
      %p371 = scmp.eq.s32.totalorder %s39, 1
      %p372 = por %p370, %p371
      %p373 = scmp.ne.s32.totalorder %s362, %s363
      %p374 = scmp.eq.s32.totalorder %s39, 0
      %p375 = por %p373, %p374
      %p376 = scmp.ne.s32.totalorder %s362, %s363
      %p377 = scmp.eq.s32.totalorder %s40, 1
      %p378 = por %p376, %p377
      %p380 = scmp.ne.s32.totalorder %s363, %s379
      %p381 = scmp.eq.s32.totalorder %s40, 0
      %p382 = por %p380, %p381
      %s383 = ssub.s32 %s42, %s49
      %p384 = scmp.eq.s32.totalorder %s383, 0
      %s386 = sadd.s32 %s385, 1
      %s387 = scalar_select %p384, %s385, %s386
      %p390 = pneg %p384
      %p391 = scmp.eq.s32.totalorder %s34, 1
      %p392 = por %p390, %p391
      %p393 = scmp.ne.s32.totalorder %s385, %s388
      %p394 = scmp.eq.s32.totalorder %s34, 0
      %p395 = por %p393, %p394
      %p396 = scmp.ne.s32.totalorder %s385, %s388
      %p397 = scmp.eq.s32.totalorder %s39, 1
      %p398 = por %p396, %p397
      %p399 = scmp.ne.s32.totalorder %s388, %s389
      %p400 = scmp.eq.s32.totalorder %s39, 0
      %p401 = por %p399, %p400
      %p402 = scmp.ne.s32.totalorder %s388, %s389
      %p403 = scmp.eq.s32.totalorder %s40, 1
      %p404 = por %p402, %p403
      %p406 = scmp.ne.s32.totalorder %s389, %s405
      %p407 = scmp.eq.s32.totalorder %s40, 0
      %p408 = por %p406, %p407
      %s409 = ssub.s32 %s42, %s49
      %p410 = scmp.eq.s32.totalorder %s409, 0
      %s412 = sadd.s32 %s411, 1
      %s413 = scalar_select %p410, %s411, %s412
      %p416 = pneg %p410
      %p417 = scmp.eq.s32.totalorder %s34, 1
      %p418 = por %p416, %p417
      %p419 = scmp.ne.s32.totalorder %s411, %s414
      %p420 = scmp.eq.s32.totalorder %s34, 0
      %p421 = por %p419, %p420
      %p422 = scmp.ne.s32.totalorder %s411, %s414
      %p423 = scmp.eq.s32.totalorder %s39, 1
      %p424 = por %p422, %p423
      %p425 = scmp.ne.s32.totalorder %s414, %s415
      %p426 = scmp.eq.s32.totalorder %s39, 0
      %p427 = por %p425, %p426
      %p428 = scmp.ne.s32.totalorder %s414, %s415
      %p429 = scmp.eq.s32.totalorder %s40, 1
      %p430 = por %p428, %p429
      %p432 = scmp.ne.s32.totalorder %s415, %s431
      %p433 = scmp.eq.s32.totalorder %s40, 0
      %p434 = por %p432, %p433
      %s435 = ssub.s32 %s42, %s49
      %p436 = scmp.eq.s32.totalorder %s435, 0
      %s438 = sadd.s32 %s437, 1
      %s439 = scalar_select %p436, %s437, %s438
      %p442 = pneg %p436
      %p443 = scmp.eq.s32.totalorder %s34, 1
      %p444 = por %p442, %p443
      %p445 = scmp.ne.s32.totalorder %s437, %s440
      %p446 = scmp.eq.s32.totalorder %s34, 0
      %p447 = por %p445, %p446
      %p448 = scmp.ne.s32.totalorder %s437, %s440
      %p449 = scmp.eq.s32.totalorder %s39, 1
      %p450 = por %p448, %p449
      %p451 = scmp.ne.s32.totalorder %s440, %s441
      %p452 = scmp.eq.s32.totalorder %s39, 0
      %p453 = por %p451, %p452
      %p454 = scmp.ne.s32.totalorder %s440, %s441
      %p455 = scmp.eq.s32.totalorder %s40, 1
      %p456 = por %p454, %p455
      %p458 = scmp.ne.s32.totalorder %s441, %s457
      %p459 = scmp.eq.s32.totalorder %s40, 0
      %p460 = por %p458, %p459
      %s461 = ssub.s32 %s42, %s49
      %p462 = scmp.eq.s32.totalorder %s461, 0
      %s464 = sadd.s32 %s463, 1
      %s465 = scalar_select %p462, %s463, %s464
      %p468 = pneg %p462
      %p469 = scmp.eq.s32.totalorder %s34, 1
      %p470 = por %p468, %p469
      %p471 = scmp.ne.s32.totalorder %s463, %s466
      %p472 = scmp.eq.s32.totalorder %s34, 0
      %p473 = por %p471, %p472
      %p474 = scmp.ne.s32.totalorder %s463, %s466
      %p475 = scmp.eq.s32.totalorder %s39, 1
      %p476 = por %p474, %p475
      %p477 = scmp.ne.s32.totalorder %s466, %s467
      %p478 = scmp.eq.s32.totalorder %s39, 0
      %p479 = por %p477, %p478
      %p480 = scmp.ne.s32.totalorder %s466, %s467
      %p481 = scmp.eq.s32.totalorder %s40, 1
      %p482 = por %p480, %p481
      %p484 = scmp.ne.s32.totalorder %s467, %s483
      %p485 = scmp.eq.s32.totalorder %s40, 0
      %p486 = por %p484, %p485
      %s487 = ssub.s32 %s42, %s49
      %p488 = scmp.eq.s32.totalorder %s487, 0
      %s490 = sadd.s32 %s489, 1
      %s491 = scalar_select %p488, %s489, %s490
      %p494 = pneg %p488
      %p495 = scmp.eq.s32.totalorder %s34, 1
      %p496 = por %p494, %p495
      %p497 = scmp.ne.s32.totalorder %s489, %s492
      %p498 = scmp.eq.s32.totalorder %s34, 0
      %p499 = por %p497, %p498
      %p500 = scmp.ne.s32.totalorder %s489, %s492
      %p501 = scmp.eq.s32.totalorder %s39, 1
      %p502 = por %p500, %p501
      %p503 = scmp.ne.s32.totalorder %s492, %s493
      %p504 = scmp.eq.s32.totalorder %s39, 0
      %p505 = por %p503, %p504
      %p506 = scmp.ne.s32.totalorder %s492, %s493
      %p507 = scmp.eq.s32.totalorder %s40, 1
      %p508 = por %p506, %p507
      %p510 = scmp.ne.s32.totalorder %s493, %s509
      %p511 = scmp.eq.s32.totalorder %s40, 0
      %p512 = por %p510, %p511
      %s513 = ssub.s32 %s42, %s49
      %p514 = scmp.eq.s32.totalorder %s513, 0
      %s516 = sadd.s32 %s515, 1
      %s517 = scalar_select %p514, %s515, %s516
      %p520 = pneg %p514
      %p521 = scmp.eq.s32.totalorder %s34, 1
      %p522 = por %p520, %p521
      %p523 = scmp.ne.s32.totalorder %s515, %s518
      %p524 = scmp.eq.s32.totalorder %s34, 0
      %p525 = por %p523, %p524
      %p526 = scmp.ne.s32.totalorder %s515, %s518
      %p527 = scmp.eq.s32.totalorder %s39, 1
      %p528 = por %p526, %p527
      %p529 = scmp.ne.s32.totalorder %s518, %s519
      %p530 = scmp.eq.s32.totalorder %s39, 0
      %p531 = por %p529, %p530
      %p532 = scmp.ne.s32.totalorder %s518, %s519
      %p533 = scmp.eq.s32.totalorder %s40, 1
      %p534 = por %p532, %p533
      %p536 = scmp.ne.s32.totalorder %s519, %s535
      %p537 = scmp.eq.s32.totalorder %s40, 0
      %p538 = por %p536, %p537
      %s539 = ssub.s32 %s42, %s49
      %p540 = scmp.eq.s32.totalorder %s539, 0
      %s542 = sadd.s32 %s541, 1
      %s543 = scalar_select %p540, %s541, %s542
      %p546 = pneg %p540
      %p547 = scmp.eq.s32.totalorder %s34, 1
      %p548 = por %p546, %p547
      %p549 = scmp.ne.s32.totalorder %s541, %s544
      %p550 = scmp.eq.s32.totalorder %s34, 0
      %p551 = por %p549, %p550
      %p552 = scmp.ne.s32.totalorder %s541, %s544
      %p553 = scmp.eq.s32.totalorder %s39, 1
      %p554 = por %p552, %p553
      %p555 = scmp.ne.s32.totalorder %s544, %s545
      %p556 = scmp.eq.s32.totalorder %s39, 0
      %p557 = por %p555, %p556
      %p558 = scmp.ne.s32.totalorder %s544, %s545
      %p559 = scmp.eq.s32.totalorder %s40, 1
      %p560 = por %p558, %p559
      %p562 = scmp.ne.s32.totalorder %s545, %s561
      %p563 = scmp.eq.s32.totalorder %s40, 0
      %p564 = por %p562, %p563
      %s565 = ssub.s32 %s42, %s49
      %p566 = scmp.eq.s32.totalorder %s565, 0
      %s568 = sadd.s32 %s567, 1
      %s569 = scalar_select %p566, %s567, %s568
      %p572 = pneg %p566
      %p573 = scmp.eq.s32.totalorder %s34, 1
      %p574 = por %p572, %p573
      %p575 = scmp.ne.s32.totalorder %s567, %s570
      %p576 = scmp.eq.s32.totalorder %s34, 0
      %p577 = por %p575, %p576
      %p578 = scmp.ne.s32.totalorder %s567, %s570
      %p579 = scmp.eq.s32.totalorder %s39, 1
      %p580 = por %p578, %p579
      %p581 = scmp.ne.s32.totalorder %s570, %s571
      %p582 = scmp.eq.s32.totalorder %s39, 0
      %p583 = por %p581, %p582
      %p584 = scmp.ne.s32.totalorder %s570, %s571
      %p585 = scmp.eq.s32.totalorder %s40, 1
      %p586 = por %p584, %p585
      %p588 = scmp.ne.s32.totalorder %s571, %s587
      %p589 = scmp.eq.s32.totalorder %s40, 0
      %p590 = por %p588, %p589
      %s591 = ssub.s32 %s42, %s49
      %p592 = scmp.eq.s32.totalorder %s591, 0
      %s594 = sadd.s32 %s593, 1
      %s595 = scalar_select %p592, %s593, %s594
      %p598 = pneg %p592
      %p599 = scmp.eq.s32.totalorder %s34, 1
      %p600 = por %p598, %p599
      %p601 = scmp.ne.s32.totalorder %s593, %s596
      %p602 = scmp.eq.s32.totalorder %s34, 0
      %p603 = por %p601, %p602
      %p604 = scmp.ne.s32.totalorder %s593, %s596
      %p605 = scmp.eq.s32.totalorder %s39, 1
      %p606 = por %p604, %p605
      %p607 = scmp.ne.s32.totalorder %s596, %s597
      %p608 = scmp.eq.s32.totalorder %s39, 0
      %p609 = por %p607, %p608
      %p610 = scmp.ne.s32.totalorder %s596, %s597
      %p611 = scmp.eq.s32.totalorder %s40, 1
      %p612 = por %p610, %p611
      %p614 = scmp.ne.s32.totalorder %s597, %s613
      %p615 = scmp.eq.s32.totalorder %s40, 0
      %p616 = por %p614, %p615
      %s617 = ssub.s32 %s42, %s49
      %p618 = scmp.eq.s32.totalorder %s617, 0
      %s620 = sadd.s32 %s619, 1
      %s621 = scalar_select %p618, %s619, %s620
      %p624 = pneg %p618
      %p625 = scmp.eq.s32.totalorder %s34, 1
      %p626 = por %p624, %p625
      %p627 = scmp.ne.s32.totalorder %s619, %s622
      %p628 = scmp.eq.s32.totalorder %s34, 0
      %p629 = por %p627, %p628
      %p630 = scmp.ne.s32.totalorder %s619, %s622
      %p631 = scmp.eq.s32.totalorder %s39, 1
      %p632 = por %p630, %p631
      %p633 = scmp.ne.s32.totalorder %s622, %s623
      %p634 = scmp.eq.s32.totalorder %s39, 0
      %p635 = por %p633, %p634
      %p636 = scmp.ne.s32.totalorder %s622, %s623
      %p637 = scmp.eq.s32.totalorder %s40, 1
      %p638 = por %p636, %p637
      %p640 = scmp.ne.s32.totalorder %s623, %s639
      %p641 = scmp.eq.s32.totalorder %s40, 0
      %p642 = por %p640, %p641
      %s643 = ssub.s32 %s42, %s49
      %p644 = scmp.eq.s32.totalorder %s643, 0
      %s646 = sadd.s32 %s645, 1
      %s647 = scalar_select %p644, %s645, %s646
      %p650 = pneg %p644
      %p651 = scmp.eq.s32.totalorder %s34, 1
      %p652 = por %p650, %p651
      %p653 = scmp.ne.s32.totalorder %s645, %s648
      %p654 = scmp.eq.s32.totalorder %s34, 0
      %p655 = por %p653, %p654
      %p656 = scmp.ne.s32.totalorder %s645, %s648
      %p657 = scmp.eq.s32.totalorder %s39, 1
      %p658 = por %p656, %p657
      %p659 = scmp.ne.s32.totalorder %s648, %s649
      %p660 = scmp.eq.s32.totalorder %s39, 0
      %p661 = por %p659, %p660
      %p662 = scmp.ne.s32.totalorder %s648, %s649
      %p663 = scmp.eq.s32.totalorder %s40, 1
      %p664 = por %p662, %p663
      %p666 = scmp.ne.s32.totalorder %s649, %s665
      %p667 = scmp.eq.s32.totalorder %s40, 0
      %p668 = por %p666, %p667
      %s670 = sadd.s32 %s669, 1
      %p673 = scmp.eq.s32.totalorder %s34, 1
      %p674 = scmp.ne.s32.totalorder %s669, %s671
      %p675 = scmp.eq.s32.totalorder %s34, 0
      %p676 = por %p674, %p675
      %p677 = scmp.ne.s32.totalorder %s669, %s671
      %p678 = scmp.eq.s32.totalorder %s39, 1
      %p679 = por %p677, %p678
      %p680 = scmp.ne.s32.totalorder %s671, %s672
      %p681 = scmp.eq.s32.totalorder %s39, 0
      %p682 = por %p680, %p681
      %p683 = scmp.ne.s32.totalorder %s671, %s672
      %p684 = scmp.eq.s32.totalorder %s40, 1
      %p685 = por %p683, %p684
      %p687 = scmp.ne.s32.totalorder %s672, %s686
      %p688 = scmp.eq.s32.totalorder %s40, 0
      %p689 = por %p687, %p688
      %s691 = sadd.s32 %s690, 1
      %p694 = scmp.eq.s32.totalorder %s34, 1
      %p695 = scmp.ne.s32.totalorder %s690, %s692
      %p696 = scmp.eq.s32.totalorder %s34, 0
      %p697 = por %p695, %p696
      %p698 = scmp.ne.s32.totalorder %s690, %s692
      %p699 = scmp.eq.s32.totalorder %s39, 1
      %p700 = por %p698, %p699
      %p701 = scmp.ne.s32.totalorder %s692, %s693
      %p702 = scmp.eq.s32.totalorder %s39, 0
      %p703 = por %p701, %p702
      %p704 = scmp.ne.s32.totalorder %s692, %s693
      %p705 = scmp.eq.s32.totalorder %s40, 1
      %p706 = por %p704, %p705
      %p708 = scmp.ne.s32.totalorder %s693, %s707
      %p709 = scmp.eq.s32.totalorder %s40, 0
      %p710 = por %p708, %p709
      %s711 = ssub.s32 %s41, %s53
      %p712 = scmp.eq.s32.totalorder %s711, 0
      %s714 = sadd.s32 %s713, 1
      %s715 = scalar_select %p712, %s713, %s714
      %p718 = pneg %p712
      %p719 = scmp.eq.s32.totalorder %s34, 1
      %p720 = por %p718, %p719
      %p721 = scmp.ne.s32.totalorder %s713, %s716
      %p722 = scmp.eq.s32.totalorder %s34, 0
      %p723 = por %p721, %p722
      %p724 = scmp.ne.s32.totalorder %s713, %s716
      %p725 = scmp.eq.s32.totalorder %s39, 1
      %p726 = por %p724, %p725
      %p727 = scmp.ne.s32.totalorder %s716, %s717
      %p728 = scmp.eq.s32.totalorder %s39, 0
      %p729 = por %p727, %p728
      %p730 = scmp.ne.s32.totalorder %s716, %s717
      %p731 = scmp.eq.s32.totalorder %s40, 1
      %p732 = por %p730, %p731
      %p734 = scmp.ne.s32.totalorder %s717, %s733
      %p735 = scmp.eq.s32.totalorder %s40, 0
      %p736 = por %p734, %p735
      %p737 = scmp.le.s32.totalorder 1, %s34
      %p738 = scmp.lt.s32.totalorder %s34, 3
      %p739 = pnand %p737, %p738
      %p740 = pneg %p739
      // Predicated region
      $region9: #{tpu_custom_call.1} parent=5 // pred_check
        _
      $region10: #{tpu_custom_call.1} parent=5 // pred_check_branch
        %742 = sbr.rel (%p739) target = $region12
      $region11: #{tpu_custom_call.1} parent=5 // pred_region
        %s743 = ssub.s32 %s34, 1
        // Predicated region
        $region13: #{tpu_custom_call.1} parent=11 // pred_check
          %p744 = pneg %p72
        $region14: #{tpu_custom_call.1} parent=11 // pred_check_branch
          %746 = sbr.rel (%p744) target = $region16
        $region15: #{tpu_custom_call.1} parent=11 // pred_region
          %s747 = smul.u32 2, %s43
          %p748 = scmp.lt.s32.totalorder %s747, 1
          %s749 = scalar_select %p748, %s747, 1
          %s750 = smul.addr %s749, 8
          %s751 = scalar_lea.vmem %s0, %s750
          %s752 = smul.u32 2, %s43
        $region16: #{tpu_custom_call.1} parent=11 // pred_fallthru
          _
        // Predicated region
        $region17: #{tpu_custom_call.1} parent=11 // pred_check
          %p753 = pneg %p98
        $region18: #{tpu_custom_call.1} parent=11 // pred_check_branch
          %755 = sbr.rel (%p753) target = $region20
        $region19: #{tpu_custom_call.1} parent=11 // pred_region
          %s756 = smul.u32 2, %s43
          %p757 = scmp.lt.s32.totalorder %s756, 1
          %s758 = scalar_select %p757, %s756, 1
          %s759 = smul.addr %s758, 8
          %s760 = scalar_lea.vmem %s1, %s759
          %s761 = smul.u32 2, %s43
        $region20: #{tpu_custom_call.1} parent=11 // pred_fallthru
          _
        // Predicated region
        $region21: #{tpu_custom_call.1} parent=11 // pred_check
          %p762 = pneg %p119
        $region22: #{tpu_custom_call.1} parent=11 // pred_check_branch
          %764 = sbr.rel (%p762) target = $region24
        $region23: #{tpu_custom_call.1} parent=11 // pred_region
          _
        $region24: #{tpu_custom_call.1} parent=11 // pred_fallthru
          _
        // Predicated region
        $region25: #{tpu_custom_call.1} parent=11 // pred_check
          %p765 = pneg %p140
        $region26: #{tpu_custom_call.1} parent=11 // pred_check_branch
          %767 = sbr.rel (%p765) target = $region28
        $region27: #{tpu_custom_call.1} parent=11 // pred_region
          _
        $region28: #{tpu_custom_call.1} parent=11 // pred_fallthru
          _
        // Predicated region
        $region29: #{tpu_custom_call.1} parent=11 // pred_check
          %p768 = pneg %p161
        $region30: #{tpu_custom_call.1} parent=11 // pred_check_branch
          %770 = sbr.rel (%p768) target = $region32
        $region31: #{tpu_custom_call.1} parent=11 // pred_region
          _
        $region32: #{tpu_custom_call.1} parent=11 // pred_fallthru
          _
        // Predicated region
        $region33: #{tpu_custom_call.1} parent=11 // pred_check
          %p771 = pneg %p182
        $region34: #{tpu_custom_call.1} parent=11 // pred_check_branch
          %773 = sbr.rel (%p771) target = $region36
        $region35: #{tpu_custom_call.1} parent=11 // pred_region
          _
        $region36: #{tpu_custom_call.1} parent=11 // pred_fallthru
          _
        // Predicated region
        $region37: #{tpu_custom_call.1} parent=11 // pred_check
          %p774 = pneg %p203
        $region38: #{tpu_custom_call.1} parent=11 // pred_check_branch
          %776 = sbr.rel (%p774) target = $region40
        $region39: #{tpu_custom_call.1} parent=11 // pred_region
          _
        $region40: #{tpu_custom_call.1} parent=11 // pred_fallthru
          _
        // Predicated region
        $region41: #{tpu_custom_call.1} parent=11 // pred_check
          %p777 = pneg %p224
        $region42: #{tpu_custom_call.1} parent=11 // pred_check_branch
          %779 = sbr.rel (%p777) target = $region44
        $region43: #{tpu_custom_call.1} parent=11 // pred_region
          _
        $region44: #{tpu_custom_call.1} parent=11 // pred_fallthru
          _
        // Predicated region
        $region45: #{tpu_custom_call.1} parent=11 // pred_check
          %p780 = pneg %p245
        $region46: #{tpu_custom_call.1} parent=11 // pred_check_branch
          %782 = sbr.rel (%p780) target = $region48
        $region47: #{tpu_custom_call.1} parent=11 // pred_region
          _
        $region48: #{tpu_custom_call.1} parent=11 // pred_fallthru
          _
        // Predicated region
        $region49: #{tpu_custom_call.1} parent=11 // pred_check
          %p783 = pneg %p682
        $region50: #{tpu_custom_call.1} parent=11 // pred_check_branch
          %785 = sbr.rel (%p783) target = $region52
        $region51: #{tpu_custom_call.1} parent=11 // pred_region
          _
        $region52: #{tpu_custom_call.1} parent=11 // pred_fallthru
          _
        // Predicated region
        $region53: #{tpu_custom_call.1} parent=11 // pred_check
          %p786 = pneg %p703
        $region54: #{tpu_custom_call.1} parent=11 // pred_check_branch
          %788 = sbr.rel (%p786) target = $region56
        $region55: #{tpu_custom_call.1} parent=11 // pred_region
          _
        $region56: #{tpu_custom_call.1} parent=11 // pred_fallthru
          _
      $region12: #{tpu_custom_call.1} parent=5 // pred_fallthru
        _
      %p789 = scmp.lt.s32.totalorder %s34, 2
      // Predicated region
      $region57: #{tpu_custom_call.1} parent=5 // pred_check
        %p790 = pneg %p789
      $region58: #{tpu_custom_call.1} parent=5 // pred_check_branch
        %792 = sbr.rel (%p790) target = $region60
      $region59: #{tpu_custom_call.1} parent=5 // pred_region
        // Predicated region
        $region61: #{tpu_custom_call.1} parent=59 // pred_check
          %p793 = pneg %p265
        $region62: #{tpu_custom_call.1} parent=59 // pred_check_branch
          %795 = sbr.rel (%p793) target = $region64
        $region63: #{tpu_custom_call.1} parent=59 // pred_region
          %p796 = scmp.lt.s32.totalorder %s42, 1
          %s797 = scalar_select %p796, %s42, 1
          %s798 = smul.addr %s797, 4
          %s799 = smul.addr %s798, 4
          %s800 = scalar_lea.vmem %s9, %s799
        $region64: #{tpu_custom_call.1} parent=59 // pred_fallthru
          _
        // Predicated region
        $region65: #{tpu_custom_call.1} parent=59 // pred_check
          %p801 = pneg %p291
        $region66: #{tpu_custom_call.1} parent=59 // pred_check_branch
          %803 = sbr.rel (%p801) target = $region68
        $region67: #{tpu_custom_call.1} parent=59 // pred_region
          %p804 = scmp.lt.s32.totalorder %s42, 1
          %s805 = scalar_select %p804, %s42, 1
          %s806 = scalar_lea.vmem %s10, %s805
        $region68: #{tpu_custom_call.1} parent=59 // pred_fallthru
          _
        // Predicated region
        $region69: #{tpu_custom_call.1} parent=59 // pred_check
          %p807 = pneg %p317
        $region70: #{tpu_custom_call.1} parent=59 // pred_check_branch
          %809 = sbr.rel (%p807) target = $region72
        $region71: #{tpu_custom_call.1} parent=59 // pred_region
          %p810 = scmp.lt.s32.totalorder %s42, 1
          %s811 = scalar_select %p810, %s42, 1
          %s812 = smul.addr %s811, 4
          %s813 = smul.addr %s812, 4
          %s814 = scalar_lea.vmem %s11, %s813
        $region72: #{tpu_custom_call.1} parent=59 // pred_fallthru
          _
        // Predicated region
        $region73: #{tpu_custom_call.1} parent=59 // pred_check
          %p815 = pneg %p343
        $region74: #{tpu_custom_call.1} parent=59 // pred_check_branch
          %817 = sbr.rel (%p815) target = $region76
        $region75: #{tpu_custom_call.1} parent=59 // pred_region
          %p818 = scmp.lt.s32.totalorder %s42, 1
          %s819 = scalar_select %p818, %s42, 1
          %s820 = scalar_lea.vmem %s12, %s819
        $region76: #{tpu_custom_call.1} parent=59 // pred_fallthru
          _
        // Predicated region
        $region77: #{tpu_custom_call.1} parent=59 // pred_check
          %p821 = pneg %p369
        $region78: #{tpu_custom_call.1} parent=59 // pred_check_branch
          %823 = sbr.rel (%p821) target = $region80
        $region79: #{tpu_custom_call.1} parent=59 // pred_region
          %p824 = scmp.lt.s32.totalorder %s42, 1
          %s825 = scalar_select %p824, %s42, 1
          %s826 = smul.addr %s825, 4
          %s827 = smul.addr %s826, 4
          %s828 = scalar_lea.vmem %s13, %s827
        $region80: #{tpu_custom_call.1} parent=59 // pred_fallthru
          _
        // Predicated region
        $region81: #{tpu_custom_call.1} parent=59 // pred_check
          %p829 = pneg %p395
        $region82: #{tpu_custom_call.1} parent=59 // pred_check_branch
          %831 = sbr.rel (%p829) target = $region84
        $region83: #{tpu_custom_call.1} parent=59 // pred_region
          %p832 = scmp.lt.s32.totalorder %s42, 1
          %s833 = scalar_select %p832, %s42, 1
          %s834 = scalar_lea.vmem %s14, %s833
        $region84: #{tpu_custom_call.1} parent=59 // pred_fallthru
          _
        // Predicated region
        $region85: #{tpu_custom_call.1} parent=59 // pred_check
          %p835 = pneg %p421
        $region86: #{tpu_custom_call.1} parent=59 // pred_check_branch
          %837 = sbr.rel (%p835) target = $region88
        $region87: #{tpu_custom_call.1} parent=59 // pred_region
          %p838 = scmp.lt.s32.totalorder %s42, 1
          %s839 = scalar_select %p838, %s42, 1
          %s840 = smul.addr %s839, 4
          %s841 = smul.addr %s840, 4
          %s842 = scalar_lea.vmem %s15, %s841
        $region88: #{tpu_custom_call.1} parent=59 // pred_fallthru
          _
        // Predicated region
        $region89: #{tpu_custom_call.1} parent=59 // pred_check
          %p843 = pneg %p447
        $region90: #{tpu_custom_call.1} parent=59 // pred_check_branch
          %845 = sbr.rel (%p843) target = $region92
        $region91: #{tpu_custom_call.1} parent=59 // pred_region
          %p846 = scmp.lt.s32.totalorder %s42, 1
          %s847 = scalar_select %p846, %s42, 1
          %s848 = scalar_lea.vmem %s16, %s847
        $region92: #{tpu_custom_call.1} parent=59 // pred_fallthru
          _
        // Predicated region
        $region93: #{tpu_custom_call.1} parent=59 // pred_check
          %p849 = pneg %p473
        $region94: #{tpu_custom_call.1} parent=59 // pred_check_branch
          %851 = sbr.rel (%p849) target = $region96
        $region95: #{tpu_custom_call.1} parent=59 // pred_region
          %p852 = scmp.lt.s32.totalorder %s42, 1
          %s853 = scalar_select %p852, %s42, 1
          %s854 = scalar_lea.vmem %s17, %s853
        $region96: #{tpu_custom_call.1} parent=59 // pred_fallthru
          _
        // Predicated region
        $region97: #{tpu_custom_call.1} parent=59 // pred_check
          %p855 = pneg %p499
        $region98: #{tpu_custom_call.1} parent=59 // pred_check_branch
          %857 = sbr.rel (%p855) target = $region100
        $region99: #{tpu_custom_call.1} parent=59 // pred_region
          %p858 = scmp.lt.s32.totalorder %s42, 1
          %s859 = scalar_select %p858, %s42, 1
          %s860 = scalar_lea.vmem %s18, %s859
        $region100: #{tpu_custom_call.1} parent=59 // pred_fallthru
          _
        // Predicated region
        $region101: #{tpu_custom_call.1} parent=59 // pred_check
          %p861 = pneg %p525
        $region102: #{tpu_custom_call.1} parent=59 // pred_check_branch
          %863 = sbr.rel (%p861) target = $region104
        $region103: #{tpu_custom_call.1} parent=59 // pred_region
          %p864 = scmp.lt.s32.totalorder %s42, 1
          %s865 = scalar_select %p864, %s42, 1
          %s866 = smul.addr %s865, 64
          %s867 = smul.addr %s866, 4
          %s868 = scalar_lea.vmem %s19, %s867
        $region104: #{tpu_custom_call.1} parent=59 // pred_fallthru
          _
        // Predicated region
        $region105: #{tpu_custom_call.1} parent=59 // pred_check
          %p869 = pneg %p551
        $region106: #{tpu_custom_call.1} parent=59 // pred_check_branch
          %871 = sbr.rel (%p869) target = $region108
        $region107: #{tpu_custom_call.1} parent=59 // pred_region
          %p872 = scmp.lt.s32.totalorder %s42, 1
          %s873 = scalar_select %p872, %s42, 1
          %s874 = smul.addr %s873, 16
          %s875 = scalar_lea.vmem %s20, %s874
        $region108: #{tpu_custom_call.1} parent=59 // pred_fallthru
          _
        // Predicated region
        $region109: #{tpu_custom_call.1} parent=59 // pred_check
          %p876 = pneg %p577
        $region110: #{tpu_custom_call.1} parent=59 // pred_check_branch
          %878 = sbr.rel (%p876) target = $region112
        $region111: #{tpu_custom_call.1} parent=59 // pred_region
          %p879 = scmp.lt.s32.totalorder %s42, 1
          %s880 = scalar_select %p879, %s42, 1
          %s881 = smul.addr %s880, 256
          %s882 = smul.addr %s881, 4
          %s883 = scalar_lea.vmem %s21, %s882
        $region112: #{tpu_custom_call.1} parent=59 // pred_fallthru
          _
        // Predicated region
        $region113: #{tpu_custom_call.1} parent=59 // pred_check
          %p884 = pneg %p603
        $region114: #{tpu_custom_call.1} parent=59 // pred_check_branch
          %886 = sbr.rel (%p884) target = $region116
        $region115: #{tpu_custom_call.1} parent=59 // pred_region
          %p887 = scmp.lt.s32.totalorder %s42, 1
          %s888 = scalar_select %p887, %s42, 1
          %s889 = scalar_lea.vmem %s22, %s888
        $region116: #{tpu_custom_call.1} parent=59 // pred_fallthru
          _
        // Predicated region
        $region117: #{tpu_custom_call.1} parent=59 // pred_check
          %p890 = pneg %p629
        $region118: #{tpu_custom_call.1} parent=59 // pred_check_branch
          %892 = sbr.rel (%p890) target = $region120
        $region119: #{tpu_custom_call.1} parent=59 // pred_region
          %p893 = scmp.lt.s32.totalorder %s42, 1
          %s894 = scalar_select %p893, %s42, 1
          %s895 = scalar_lea.vmem %s23, %s894
        $region120: #{tpu_custom_call.1} parent=59 // pred_fallthru
          _
        // Predicated region
        $region121: #{tpu_custom_call.1} parent=59 // pred_check
          %p896 = pneg %p655
        $region122: #{tpu_custom_call.1} parent=59 // pred_check_branch
          %898 = sbr.rel (%p896) target = $region124
        $region123: #{tpu_custom_call.1} parent=59 // pred_region
          %p899 = scmp.lt.s32.totalorder %s42, 1
          %s900 = scalar_select %p899, %s42, 1
          %s901 = scalar_lea.vmem %s24, %s900
        $region124: #{tpu_custom_call.1} parent=59 // pred_fallthru
          _
      $region60: #{tpu_custom_call.1} parent=5 // pred_fallthru
        _
      %p902 = scmp.le.s32.totalorder 1, %s34
      %p903 = scmp.lt.s32.totalorder %s34, 3
      %p904 = pnand %p902, %p903
      %p905 = pneg %p904
      // Predicated region
      $region125: #{tpu_custom_call.1} parent=5 // pred_check
        _
      $region126: #{tpu_custom_call.1} parent=5 // pred_check_branch
        %907 = sbr.rel (%p904) target = $region128
      $region127: #{tpu_custom_call.1} parent=5 // pred_region
        %s908 = ssub.s32 %s34, 1
        %s909 = smul.u32 2, %s43
        %p910 = scmp.lt.s32.totalorder %s909, 1
        %s911 = scalar_select %p910, %s909, 1
        %s912 = smul.addr %s911, 8
        %s913 = scalar_lea.vmem %s0, %s912
        %p914 = pneg %p72
        %p915 = pneg %p69
        %s916 = smul.u32 2, %s43
        %p917 = scmp.lt.s32.totalorder %s916, 1
        %s918 = scalar_select %p917, %s916, 1
        %s919 = smul.addr %s918, 8
        %s920 = scalar_lea.vmem %s1, %s919
        %p921 = pneg %p98
        %p922 = pneg %p95
        %p923 = pneg %p119
        %p924 = pneg %p116
        %p925 = pneg %p140
        %p926 = pneg %p137
        %p927 = pneg %p161
        %p928 = pneg %p158
        %p929 = pneg %p182
        %p930 = pneg %p179
        %p931 = pneg %p203
        %p932 = pneg %p200
        %p933 = pneg %p224
        %p934 = pneg %p221
        %p935 = pneg %p245
        %p936 = pneg %p242
        %p937 = scmp.lt.s32.totalorder %s44, 1
        %s938 = scalar_select %p937, %s44, 1
        %s939 = smul.addr %s938, 4
        %s940 = smul.addr %s939, 4
        %s941 = scalar_lea.vmem %s9, %s940
        %p942 = pneg %p271
        %p943 = pneg %p268
        %p944 = scmp.lt.s32.totalorder %s44, 1
        %s945 = scalar_select %p944, %s44, 1
        %s946 = scalar_lea.vmem %s10, %s945
        %p947 = pneg %p297
        %p948 = pneg %p294
        %p949 = scmp.lt.s32.totalorder %s44, 1
        %s950 = scalar_select %p949, %s44, 1
        %s951 = smul.addr %s950, 4
        %s952 = smul.addr %s951, 4
        %s953 = scalar_lea.vmem %s11, %s952
        %p954 = pneg %p323
        %p955 = pneg %p320
        %p956 = scmp.lt.s32.totalorder %s44, 1
        %s957 = scalar_select %p956, %s44, 1
        %s958 = scalar_lea.vmem %s12, %s957
        %p959 = pneg %p349
        %p960 = pneg %p346
        %p961 = scmp.lt.s32.totalorder %s44, 1
        %s962 = scalar_select %p961, %s44, 1
        %s963 = smul.addr %s962, 4
        %s964 = smul.addr %s963, 4
        %s965 = scalar_lea.vmem %s13, %s964
        %p966 = pneg %p375
        %p967 = pneg %p372
        %p968 = scmp.lt.s32.totalorder %s44, 1
        %s969 = scalar_select %p968, %s44, 1
        %s970 = scalar_lea.vmem %s14, %s969
        %p971 = pneg %p401
        %p972 = pneg %p398
        %p973 = scmp.lt.s32.totalorder %s44, 1
        %s974 = scalar_select %p973, %s44, 1
        %s975 = smul.addr %s974, 4
        %s976 = smul.addr %s975, 4
        %s977 = scalar_lea.vmem %s15, %s976
        %p978 = pneg %p427
        %p979 = pneg %p424
        %p980 = scmp.lt.s32.totalorder %s44, 1
        %s981 = scalar_select %p980, %s44, 1
        %s982 = scalar_lea.vmem %s16, %s981
        %p983 = pneg %p453
        %p984 = pneg %p450
        %p985 = scmp.lt.s32.totalorder %s44, 1
        %s986 = scalar_select %p985, %s44, 1
        %s987 = scalar_lea.vmem %s17, %s986
        %p988 = pneg %p479
        %p989 = pneg %p476
        %p990 = scmp.lt.s32.totalorder %s44, 1
        %s991 = scalar_select %p990, %s44, 1
        %s992 = scalar_lea.vmem %s18, %s991
        %p993 = pneg %p505
        %p994 = pneg %p502
        %p995 = scmp.lt.s32.totalorder %s44, 1
        %s996 = scalar_select %p995, %s44, 1
        %s997 = smul.addr %s996, 64
        %s998 = smul.addr %s997, 4
        %s999 = scalar_lea.vmem %s19, %s998
        %p1000 = pneg %p531
        %p1001 = pneg %p528
        %p1002 = scmp.lt.s32.totalorder %s44, 1
        %s1003 = scalar_select %p1002, %s44, 1
        %s1004 = smul.addr %s1003, 16
        %s1005 = scalar_lea.vmem %s20, %s1004
        %p1006 = pneg %p557
        %p1007 = pneg %p554
        %p1008 = scmp.lt.s32.totalorder %s44, 1
        %s1009 = scalar_select %p1008, %s44, 1
        %s1010 = smul.addr %s1009, 256
        %s1011 = smul.addr %s1010, 4
        %s1012 = scalar_lea.vmem %s21, %s1011
        %p1013 = pneg %p583
        %p1014 = pneg %p580
        %p1015 = scmp.lt.s32.totalorder %s44, 1
        %s1016 = scalar_select %p1015, %s44, 1
        %s1017 = scalar_lea.vmem %s22, %s1016
        %p1018 = pneg %p609
        %p1019 = pneg %p606
        %p1020 = scmp.lt.s32.totalorder %s44, 1
        %s1021 = scalar_select %p1020, %s44, 1
        %s1022 = scalar_lea.vmem %s23, %s1021
        %p1023 = pneg %p635
        %p1024 = pneg %p632
        %p1025 = scmp.lt.s32.totalorder %s44, 1
        %s1026 = scalar_select %p1025, %s44, 1
        %s1027 = scalar_lea.vmem %s24, %s1026
        %p1028 = pneg %p661
        %p1029 = pneg %p658
        %p1030 = pneg %p682
        %p1031 = pneg %p679
        %p1032 = pneg %p703
        %p1033 = pneg %p700
        %p1034 = pneg %p729
        %p1035 = pneg %p726
        %s1036 = smul.u32 2, %s43
        %p1037 = scmp.lt.s32.totalorder %s1036, 1
        %s1038 = scalar_select %p1037, %s1036, 1
        %s1039 = smul.addr %s1038, 8
        %s1040 = scalar_lea.vmem %s0, %s1039
        %s1041 = smul.u32 2, %s43
        %s1042 = smul.u32 2, %s43
        %p1043 = scmp.lt.s32.totalorder %s1042, 1
        %s1044 = scalar_select %p1043, %s1042, 1
        %s1045 = smul.addr %s1044, 8
        %s1046 = scalar_lea.vmem %s1, %s1045
        %s1047 = smul.u32 2, %s43
        %p1048 = scmp.lt.s32.totalorder %s44, 1
        %s1049 = scalar_select %p1048, %s44, 1
        %s1050 = smul.addr %s1049, 4
        %s1051 = smul.addr %s1050, 4
        %s1052 = scalar_lea.vmem %s9, %s1051
        %p1053 = scmp.lt.s32.totalorder %s44, 1
        %s1054 = scalar_select %p1053, %s44, 1
        %s1055 = scalar_lea.vmem %s10, %s1054
        %p1056 = scmp.lt.s32.totalorder %s44, 1
        %s1057 = scalar_select %p1056, %s44, 1
        %s1058 = smul.addr %s1057, 4
        %s1059 = smul.addr %s1058, 4
        %s1060 = scalar_lea.vmem %s11, %s1059
        %p1061 = scmp.lt.s32.totalorder %s44, 1
        %s1062 = scalar_select %p1061, %s44, 1
        %s1063 = scalar_lea.vmem %s12, %s1062
        %p1064 = scmp.lt.s32.totalorder %s44, 1
        %s1065 = scalar_select %p1064, %s44, 1
        %s1066 = smul.addr %s1065, 4
        %s1067 = smul.addr %s1066, 4
        %s1068 = scalar_lea.vmem %s13, %s1067
        %p1069 = scmp.lt.s32.totalorder %s44, 1
        %s1070 = scalar_select %p1069, %s44, 1
        %s1071 = scalar_lea.vmem %s14, %s1070
        %p1072 = scmp.lt.s32.totalorder %s44, 1
        %s1073 = scalar_select %p1072, %s44, 1
        %s1074 = smul.addr %s1073, 4
        %s1075 = smul.addr %s1074, 4
        %s1076 = scalar_lea.vmem %s15, %s1075
        %p1077 = scmp.lt.s32.totalorder %s44, 1
        %s1078 = scalar_select %p1077, %s44, 1
        %s1079 = scalar_lea.vmem %s16, %s1078
        %p1080 = scmp.lt.s32.totalorder %s44, 1
        %s1081 = scalar_select %p1080, %s44, 1
        %s1082 = scalar_lea.vmem %s17, %s1081
        %p1083 = scmp.lt.s32.totalorder %s44, 1
        %s1084 = scalar_select %p1083, %s44, 1
        %s1085 = scalar_lea.vmem %s18, %s1084
        %p1086 = scmp.lt.s32.totalorder %s44, 1
        %s1087 = scalar_select %p1086, %s44, 1
        %s1088 = smul.addr %s1087, 64
        %s1089 = smul.addr %s1088, 4
        %s1090 = scalar_lea.vmem %s19, %s1089
        %p1091 = scmp.lt.s32.totalorder %s44, 1
        %s1092 = scalar_select %p1091, %s44, 1
        %s1093 = smul.addr %s1092, 16
        %s1094 = scalar_lea.vmem %s20, %s1093
        %p1095 = scmp.lt.s32.totalorder %s44, 1
        %s1096 = scalar_select %p1095, %s44, 1
        %s1097 = smul.addr %s1096, 256
        %s1098 = smul.addr %s1097, 4
        %s1099 = scalar_lea.vmem %s21, %s1098
        %p1100 = scmp.lt.s32.totalorder %s44, 1
        %s1101 = scalar_select %p1100, %s44, 1
        %s1102 = scalar_lea.vmem %s22, %s1101
        %p1103 = scmp.lt.s32.totalorder %s44, 1
        %s1104 = scalar_select %p1103, %s44, 1
        %s1105 = scalar_lea.vmem %s23, %s1104
        %p1106 = scmp.lt.s32.totalorder %s44, 1
        %s1107 = scalar_select %p1106, %s44, 1
        %s1108 = scalar_lea.vmem %s24, %s1107
        %s1109 = smul.u32 2, %s43
        %p1111 = scmp.eq.s32.totalorder %s44, 0
        // Predicated region
        $region129: #{tpu_custom_call.1} parent=127 // pred_check
          %p1112 = pneg %p1111
        $region130: #{tpu_custom_call.1} parent=127 // pred_check_branch
          %1114 = sbr.rel (%p1112) target = $region132
        $region131: #{tpu_custom_call.1} parent=127 // pred_region
          %v1115 = vld [vmem:[%s1040] sm:$0xff]
          %v1116 = vld [vmem:[%s1040 + $0x8] sm:$0xff]
          %v1117 = vpack.c.bf16 %v1116, %v1115
          %v1118 = vld [vmem:[%s2] sm:$0xf]
          %v1119 = vld [vmem:[%s2 + $0x4] sm:$0xf]
          %v1120 = vld [vmem:[%s3] sm:$0x1]
          %v1122 = vlaneseq
          %v1123 = vshrl.u32 %v1122, 7
          %v1124 = vsub.s32 0, %v1123
          %v1125 = vrot.slane %v1120, %v1124
          %v1129 = vunpack.c.l.b16 %v1118
          %v1130 = vunpack.c.l.b16 %v1119
          %v1131 = vpack.c.b16 %v1130, %v1129
          %vm1133 = vcmask 130048
          %v1135 = vsel %vm1133, %v1117, 0
          %1137 = vmatprep.subr.bf16.mxu0 0
          %1138 = vmatpush1.bf16.msra.mxu0 %v1131
          %1139 = vmatprep.subr.bf16.mxu0 0
          %1140 = vmatpush1.bf16.msra.mxu0 0
          %1141 = vmatprep.subr.bf16.mxu0 0
          %1142 = vmatpush1.bf16.msra.mxu0 0
          %1143 = vmatprep.subr.bf16.mxu0 0
          %1144 = vmatpush1.bf16.msra.mxu0 0
          %1145 = vmatprep.subr.bf16.mxu0 0
          %1146 = vmatpush1.bf16.msra.mxu0 0
          %1147 = vmatprep.subr.bf16.mxu0 0
          %1148 = vmatpush1.bf16.msra.mxu0 0
          %1149 = vmatprep.subr.bf16.mxu0 0
          %1150 = vmatpush1.bf16.msra.mxu0 0
          %1151 = vmatprep.subr.bf16.mxu0 0
          %1152 = vmatpush1.bf16.msra.mxu0 0
          %1153 = vmatprep.subr.bf16.mxu0 0
          %1154 = vmatpush1.bf16.msra.mxu0 0
          %1155 = vmatprep.subr.bf16.mxu0 0
          %1156 = vmatpush1.bf16.msra.mxu0 0
          %1157 = vmatprep.subr.bf16.mxu0 0
          %1158 = vmatpush1.bf16.msra.mxu0 0
          %1159 = vmatprep.subr.bf16.mxu0 0
          %1160 = vmatpush1.bf16.msra.mxu0 0
          %1161 = vmatprep.subr.bf16.mxu0 0
          %1162 = vmatpush1.bf16.msra.mxu0 0
          %1163 = vmatprep.subr.bf16.mxu0 0
          %1164 = vmatpush1.bf16.msra.mxu0 0
          %1165 = vmatprep.subr.bf16.mxu0 0
          %1166 = vmatpush1.bf16.msra.mxu0 0
          %1167 = vmatprep.subr.bf16.mxu0 0
          %1168 = vmatpush1.bf16.msra.mxu0 0
          %1169 = vmatprep.mubr.bf16.mxu0 0
          %1170 = vmatmul.mubr.bf16.gmra.mrb[0].mxu0 %v1135
          %v1171 = vpop.f32.mrb[0].mxu0
          %v1172 = vadd.f32 %v1125, %v1171
          %v1173 = vpop.f32.mrb[0].mxu0
          %v1174 = vpop.f32.mrb[0].mxu0
          %v1175 = vadd.f32 %v1125, %v1174
          %v1176 = vpop.f32.mrb[0].mxu0
          %1177 = vdwg.mxu0
          %v1178 = vmax.f32 %v1172, 0.0
          %v1179 = vmax.f32 %v1175, 0.0
          %v1180 = vld [vmem:[%s1046] sm:$0xff]
          %v1181 = vld [vmem:[%s1046 + $0x8] sm:$0xff]
          %v1182 = vpack.c.bf16 %v1181, %v1180
          %v1183 = vld [vmem:[%s4] sm:$0xf]
          %v1184 = vld [vmem:[%s4 + $0x4] sm:$0x3]
          %v1185 = vld [vmem:[%s5] sm:$0x1]
          %v1187 = vlaneseq
          %v1188 = vshrl.u32 %v1187, 7
          %v1189 = vsub.s32 0, %v1188
          %v1190 = vrot.slane %v1185, %v1189
          %v1194 = vunpack.c.l.b16 %v1183
          %v1195 = vunpack.c.l.b16 %v1184
          %v1196 = vpack.c.b16 %v1195, %v1194
          %vm1197 = vcmask 97280
          %v1199 = vsel %vm1197, %v1182, 0
          %vm1201 = vcmask 1045504
          %v1203 = vsel %vm1201, %v1196, 0
          %1205 = vmatprep.subr.bf16.mxu0 0
          %1206 = vmatpush1.bf16.msra.mxu0 %v1203
          %1207 = vmatprep.subr.bf16.mxu0 0
          %1208 = vmatpush1.bf16.msra.mxu0 0
          %1209 = vmatprep.subr.bf16.mxu0 0
          %1210 = vmatpush1.bf16.msra.mxu0 0
          %1211 = vmatprep.subr.bf16.mxu0 0
          %1212 = vmatpush1.bf16.msra.mxu0 0
          %1213 = vmatprep.subr.bf16.mxu0 0
          %1214 = vmatpush1.bf16.msra.mxu0 0
          %1215 = vmatprep.subr.bf16.mxu0 0
          %1216 = vmatpush1.bf16.msra.mxu0 0
          %1217 = vmatprep.subr.bf16.mxu0 0
          %1218 = vmatpush1.bf16.msra.mxu0 0
          %1219 = vmatprep.subr.bf16.mxu0 0
          %1220 = vmatpush1.bf16.msra.mxu0 0
          %1221 = vmatprep.subr.bf16.mxu0 0
          %1222 = vmatpush1.bf16.msra.mxu0 0
          %1223 = vmatprep.subr.bf16.mxu0 0
          %1224 = vmatpush1.bf16.msra.mxu0 0
          %1225 = vmatprep.subr.bf16.mxu0 0
          %1226 = vmatpush1.bf16.msra.mxu0 0
          %1227 = vmatprep.subr.bf16.mxu0 0
          %1228 = vmatpush1.bf16.msra.mxu0 0
          %1229 = vmatprep.subr.bf16.mxu0 0
          %1230 = vmatpush1.bf16.msra.mxu0 0
          %1231 = vmatprep.subr.bf16.mxu0 0
          %1232 = vmatpush1.bf16.msra.mxu0 0
          %1233 = vmatprep.subr.bf16.mxu0 0
          %1234 = vmatpush1.bf16.msra.mxu0 0
          %1235 = vmatprep.subr.bf16.mxu0 0
          %1236 = vmatpush1.bf16.msra.mxu0 0
          %1237 = vmatprep.mubr.bf16.mxu0 0
          %1238 = vmatmul.mubr.bf16.gmra.mrb[0].mxu0 %v1199
          %v1239 = vpop.f32.mrb[0].mxu0
          %v1240 = vadd.f32 %v1190, %v1239
          %v1241 = vpop.f32.mrb[0].mxu0
          %v1242 = vpop.f32.mrb[0].mxu0
          %v1243 = vadd.f32 %v1190, %v1242
          %v1244 = vpop.f32.mrb[0].mxu0
          %1245 = vdwg.mxu0
          %v1246 = vmax.f32 %v1240, 0.0
          %v1247 = vmax.f32 %v1243, 0.0
          %v1248 = vpack.c.bf16 %v1179, %v1178
          %v1249 = vld [vmem:[%s6] sm:$0xf]
          %v1250 = vld [vmem:[%s6 + $0x4] sm:$0xf]
          %v1251 = vld [vmem:[%s6 + $0x8] sm:$0xf]
          %v1252 = vld [vmem:[%s6 + $0xc] sm:$0xf]
          %v1253 = vpack.c.bf16 %v1247, %v1246
          %v1254 = vld [vmem:[%s7] sm:$0xf]
          %v1255 = vld [vmem:[%s7 + $0x4] sm:$0xf]
          %v1256 = vld [vmem:[%s7 + $0x8] sm:$0xf]
          %v1257 = vld [vmem:[%s7 + $0xc] sm:$0xf]
          %v1262 = vunpack.c.l.b16 %v1254
          %v1263 = vunpack.c.l.b16 %v1255
          %v1264 = vunpack.c.l.b16 %v1256
          %v1265 = vunpack.c.l.b16 %v1257
          %v1266 = vpack.c.b16 %v1263, %v1262
          %v1267 = vpack.c.b16 %v1265, %v1264
          %vm1270 = vcmask 261120
          %v1272 = vsel %vm1270, %v1253, 0
          %1274 = vmatprep.subr.bf16.mxu0 0
          %1275 = vmatpush1.bf16.msra.mxu0 %v1266
          %1276 = vmatprep.subr.bf16.mxu0 0
          %1277 = vmatpush1.bf16.msra.mxu0 %v1267
          %1278 = vmatprep.subr.bf16.mxu0 0
          %1279 = vmatpush1.bf16.msra.mxu0 0
          %1280 = vmatprep.subr.bf16.mxu0 0
          %1281 = vmatpush1.bf16.msra.mxu0 0
          %1282 = vmatprep.subr.bf16.mxu0 0
          %1283 = vmatpush1.bf16.msra.mxu0 0
          %1284 = vmatprep.subr.bf16.mxu0 0
          %1285 = vmatpush1.bf16.msra.mxu0 0
          %1286 = vmatprep.subr.bf16.mxu0 0
          %1287 = vmatpush1.bf16.msra.mxu0 0
          %1288 = vmatprep.subr.bf16.mxu0 0
          %1289 = vmatpush1.bf16.msra.mxu0 0
          %1290 = vmatprep.subr.bf16.mxu0 0
          %1291 = vmatpush1.bf16.msra.mxu0 0
          %1292 = vmatprep.subr.bf16.mxu0 0
          %1293 = vmatpush1.bf16.msra.mxu0 0
          %1294 = vmatprep.subr.bf16.mxu0 0
          %1295 = vmatpush1.bf16.msra.mxu0 0
          %1296 = vmatprep.subr.bf16.mxu0 0
          %1297 = vmatpush1.bf16.msra.mxu0 0
          %1298 = vmatprep.subr.bf16.mxu0 0
          %1299 = vmatpush1.bf16.msra.mxu0 0
          %1300 = vmatprep.subr.bf16.mxu0 0
          %1301 = vmatpush1.bf16.msra.mxu0 0
          %1302 = vmatprep.subr.bf16.mxu0 0
          %1303 = vmatpush1.bf16.msra.mxu0 0
          %1304 = vmatprep.subr.bf16.mxu0 0
          %1305 = vmatpush1.bf16.msra.mxu0 0
          %1306 = vmatprep.mubr.bf16.mxu0 0
          %1307 = vmatmul.mubr.bf16.gmra.mrb[0].mxu0 %v1272
          %v1308 = vpop.f32.mrb[0].mxu0
          %v1309 = vadd.f32 0.0, %v1308
          %v1310 = vpop.f32.mrb[0].mxu0
          %v1311 = vpop.f32.mrb[0].mxu0
          %v1312 = vadd.f32 0.0, %v1311
          %v1313 = vpop.f32.mrb[0].mxu0
          %1314 = vdwg.mxu0
          %v1319 = vunpack.c.l.b16 %v1249
          %v1320 = vunpack.c.l.b16 %v1250
          %v1321 = vunpack.c.l.b16 %v1251
          %v1322 = vunpack.c.l.b16 %v1252
          %v1323 = vpack.c.b16 %v1320, %v1319
          %v1324 = vpack.c.b16 %v1322, %v1321
          %v1328 = vsel %vm1270, %v1248, 0
          %1330 = vmatprep.subr.bf16.mxu0 0
          %1331 = vmatpush1.bf16.msra.mxu0 %v1323
          %1332 = vmatprep.subr.bf16.mxu0 0
          %1333 = vmatpush1.bf16.msra.mxu0 %v1324
          %1334 = vmatprep.subr.bf16.mxu0 0
          %1335 = vmatpush1.bf16.msra.mxu0 0
          %1336 = vmatprep.subr.bf16.mxu0 0
          %1337 = vmatpush1.bf16.msra.mxu0 0
          %1338 = vmatprep.subr.bf16.mxu0 0
          %1339 = vmatpush1.bf16.msra.mxu0 0
          %1340 = vmatprep.subr.bf16.mxu0 0
          %1341 = vmatpush1.bf16.msra.mxu0 0
          %1342 = vmatprep.subr.bf16.mxu0 0
          %1343 = vmatpush1.bf16.msra.mxu0 0
          %1344 = vmatprep.subr.bf16.mxu0 0
          %1345 = vmatpush1.bf16.msra.mxu0 0
          %1346 = vmatprep.subr.bf16.mxu0 0
          %1347 = vmatpush1.bf16.msra.mxu0 0
          %1348 = vmatprep.subr.bf16.mxu0 0
          %1349 = vmatpush1.bf16.msra.mxu0 0
          %1350 = vmatprep.subr.bf16.mxu0 0
          %1351 = vmatpush1.bf16.msra.mxu0 0
          %1352 = vmatprep.subr.bf16.mxu0 0
          %1353 = vmatpush1.bf16.msra.mxu0 0
          %1354 = vmatprep.subr.bf16.mxu0 0
          %1355 = vmatpush1.bf16.msra.mxu0 0
          %1356 = vmatprep.subr.bf16.mxu0 0
          %1357 = vmatpush1.bf16.msra.mxu0 0
          %1358 = vmatprep.subr.bf16.mxu0 0
          %1359 = vmatpush1.bf16.msra.mxu0 0
          %1360 = vmatprep.subr.bf16.mxu0 0
          %1361 = vmatpush1.bf16.msra.mxu0 0
          %1362 = vmatprep.mubr.bf16.mxu0 0
          %1363 = vmatmul.mubr.bf16.gmra.mrb[0].mxu0 %v1328
          %v1364 = vpop.f32.mrb[0].mxu0
          %v1365 = vadd.f32 %v1309, %v1364
          %v1366 = vpop.f32.mrb[0].mxu0
          %v1367 = vpop.f32.mrb[0].mxu0
          %v1368 = vadd.f32 %v1312, %v1367
          %v1369 = vpop.f32.mrb[0].mxu0
          %1370 = vdwg.mxu0
          %v1371 = vld [vmem:[%s8] sm:$0x1]
          %v1373 = vlaneseq
          %v1374 = vshrl.u32 %v1373, 7
          %v1375 = vsub.s32 0, %v1374
          %v1376 = vrot.slane %v1371, %v1375
          %v1378 = vadd.f32 %v1365, %v1376
          %v1379 = vadd.f32 %v1368, %v1376
          %v1380 = vmax.f32 %v1378, 0.0
          %v1381 = vmax.f32 %v1379, 0.0
          %1382 = vst.msk [vmem:[#allocation2] sm:$0xff] %vm1270, %v1380
          %1383 = vst.msk [vmem:[#allocation2 + $0x8] sm:$0xff] %vm1270, %v1381
        $region132: #{tpu_custom_call.1} parent=127 // pred_fallthru
          _
        %v1384 = vld [vmem:[#allocation2] sm:$0xff]
        %v1385 = vld [vmem:[#allocation2 + $0x8] sm:$0xff]
        %v1386 = vpack.c.bf16 %v1385, %v1384
        %v1387 = vld [vmem:[%s1052] sm:$0xf]
        %v1388 = vld [vmem:[%s1052 + $0x4] sm:$0xf]
        %v1389 = vld [vmem:[%s1052 + $0x8] sm:$0xf]
        %v1390 = vld [vmem:[%s1052 + $0xc] sm:$0xf]
        %v1391 = vld [vmem:[%s1055] sm:$0x1]
        %v1393 = vlaneseq
        %v1394 = vshrl.u32 %v1393, 7
        %v1395 = vsub.s32 0, %v1394
        %v1396 = vrot.slane %v1391, %v1395
        %v1402 = vunpack.c.l.b16 %v1387
        %v1403 = vunpack.c.l.b16 %v1388
        %v1404 = vunpack.c.l.b16 %v1389
        %v1405 = vunpack.c.l.b16 %v1390
        %v1406 = vpack.c.b16 %v1403, %v1402
        %v1407 = vpack.c.b16 %v1405, %v1404
        %vm1410 = vcmask 261120
        %v1412 = vsel %vm1410, %v1386, 0
        %1414 = vmatprep.subr.bf16.mxu0 0
        %1415 = vmatpush1.bf16.msra.mxu0 %v1406
        %1416 = vmatprep.subr.bf16.mxu0 0
        %1417 = vmatpush1.bf16.msra.mxu0 %v1407
        %1418 = vmatprep.subr.bf16.mxu0 0
        %1419 = vmatpush1.bf16.msra.mxu0 0
        %1420 = vmatprep.subr.bf16.mxu0 0
        %1421 = vmatpush1.bf16.msra.mxu0 0
        %1422 = vmatprep.subr.bf16.mxu0 0
        %1423 = vmatpush1.bf16.msra.mxu0 0
        %1424 = vmatprep.subr.bf16.mxu0 0
        %1425 = vmatpush1.bf16.msra.mxu0 0
        %1426 = vmatprep.subr.bf16.mxu0 0
        %1427 = vmatpush1.bf16.msra.mxu0 0
        %1428 = vmatprep.subr.bf16.mxu0 0
        %1429 = vmatpush1.bf16.msra.mxu0 0
        %1430 = vmatprep.subr.bf16.mxu0 0
        %1431 = vmatpush1.bf16.msra.mxu0 0
        %1432 = vmatprep.subr.bf16.mxu0 0
        %1433 = vmatpush1.bf16.msra.mxu0 0
        %1434 = vmatprep.subr.bf16.mxu0 0
        %1435 = vmatpush1.bf16.msra.mxu0 0
        %1436 = vmatprep.subr.bf16.mxu0 0
        %1437 = vmatpush1.bf16.msra.mxu0 0
        %1438 = vmatprep.subr.bf16.mxu0 0
        %1439 = vmatpush1.bf16.msra.mxu0 0
        %1440 = vmatprep.subr.bf16.mxu0 0
        %1441 = vmatpush1.bf16.msra.mxu0 0
        %1442 = vmatprep.subr.bf16.mxu0 0
        %1443 = vmatpush1.bf16.msra.mxu0 0
        %1444 = vmatprep.subr.bf16.mxu0 0
        %1445 = vmatpush1.bf16.msra.mxu0 0
        %1446 = vmatprep.mubr.bf16.mxu0 0
        %1447 = vmatmul.mubr.bf16.gmra.mrb[0].mxu0 %v1412
        %v1448 = vpop.f32.mrb[0].mxu0
        %v1449 = vadd.f32 %v1396, %v1448
        %v1450 = vpop.f32.mrb[0].mxu0
        %v1451 = vpop.f32.mrb[0].mxu0
        %v1452 = vadd.f32 %v1396, %v1451
        %v1453 = vpop.f32.mrb[0].mxu0
        %1454 = vdwg.mxu0
        %v1455 = vmul.f32 %v1449, 0.35355338
        %v1456 = vmul.f32 %v1452, 0.35355338
        %v1457 = vld [vmem:[%s1060] sm:$0xf]
        %v1458 = vld [vmem:[%s1060 + $0x4] sm:$0xf]
        %v1459 = vld [vmem:[%s1060 + $0x8] sm:$0xf]
        %v1460 = vld [vmem:[%s1060 + $0xc] sm:$0xf]
        %v1461 = vld [vmem:[%s1063] sm:$0x1]
        %v1463 = vlaneseq
        %v1464 = vshrl.u32 %v1463, 7
        %v1465 = vsub.s32 0, %v1464
        %v1466 = vrot.slane %v1461, %v1465
        %v1472 = vunpack.c.l.b16 %v1457
        %v1473 = vunpack.c.l.b16 %v1458
        %v1474 = vunpack.c.l.b16 %v1459
        %v1475 = vunpack.c.l.b16 %v1460
        %v1476 = vpack.c.b16 %v1473, %v1472
        %v1477 = vpack.c.b16 %v1475, %v1474
        %1480 = vmatprep.subr.bf16.mxu0 0
        %1481 = vmatpush1.bf16.msra.mxu0 %v1476
        %1482 = vmatprep.subr.bf16.mxu0 0
        %1483 = vmatpush1.bf16.msra.mxu0 %v1477
        %1484 = vmatprep.subr.bf16.mxu0 0
        %1485 = vmatpush1.bf16.msra.mxu0 0
        %1486 = vmatprep.subr.bf16.mxu0 0
        %1487 = vmatpush1.bf16.msra.mxu0 0
        %1488 = vmatprep.subr.bf16.mxu0 0
        %1489 = vmatpush1.bf16.msra.mxu0 0
        %1490 = vmatprep.subr.bf16.mxu0 0
        %1491 = vmatpush1.bf16.msra.mxu0 0
        %1492 = vmatprep.subr.bf16.mxu0 0
        %1493 = vmatpush1.bf16.msra.mxu0 0
        %1494 = vmatprep.subr.bf16.mxu0 0
        %1495 = vmatpush1.bf16.msra.mxu0 0
        %1496 = vmatprep.subr.bf16.mxu0 0
        %1497 = vmatpush1.bf16.msra.mxu0 0
        %1498 = vmatprep.subr.bf16.mxu0 0
        %1499 = vmatpush1.bf16.msra.mxu0 0
        %1500 = vmatprep.subr.bf16.mxu0 0
        %1501 = vmatpush1.bf16.msra.mxu0 0
        %1502 = vmatprep.subr.bf16.mxu0 0
        %1503 = vmatpush1.bf16.msra.mxu0 0
        %1504 = vmatprep.subr.bf16.mxu0 0
        %1505 = vmatpush1.bf16.msra.mxu0 0
        %1506 = vmatprep.subr.bf16.mxu0 0
        %1507 = vmatpush1.bf16.msra.mxu0 0
        %1508 = vmatprep.subr.bf16.mxu0 0
        %1509 = vmatpush1.bf16.msra.mxu0 0
        %1510 = vmatprep.subr.bf16.mxu0 0
        %1511 = vmatpush1.bf16.msra.mxu0 0
        %1512 = vmatprep.mubr.bf16.mxu0 0
        %1513 = vmatmul.mubr.bf16.gmra.mrb[0].mxu0 %v1412
        %v1514 = vpop.f32.mrb[0].mxu0
        %v1515 = vadd.f32 %v1466, %v1514
        %v1516 = vpop.f32.mrb[0].mxu0
        %v1517 = vpop.f32.mrb[0].mxu0
        %v1518 = vadd.f32 %v1466, %v1517
        %v1519 = vpop.f32.mrb[0].mxu0
        %1520 = vdwg.mxu0
        %v1521 = vld [vmem:[%s1068] sm:$0xf]
        %v1522 = vld [vmem:[%s1068 + $0x4] sm:$0xf]
        %v1523 = vld [vmem:[%s1068 + $0x8] sm:$0xf]
        %v1524 = vld [vmem:[%s1068 + $0xc] sm:$0xf]
        %v1525 = vld [vmem:[%s1071] sm:$0x1]
        %v1527 = vlaneseq
        %v1528 = vshrl.u32 %v1527, 7
        %v1529 = vsub.s32 0, %v1528
        %v1530 = vrot.slane %v1525, %v1529
        %v1536 = vunpack.c.l.b16 %v1521
        %v1537 = vunpack.c.l.b16 %v1522
        %v1538 = vunpack.c.l.b16 %v1523
        %v1539 = vunpack.c.l.b16 %v1524
        %v1540 = vpack.c.b16 %v1537, %v1536
        %v1541 = vpack.c.b16 %v1539, %v1538
        %1544 = vmatprep.subr.bf16.mxu0 0
        %1545 = vmatpush1.bf16.msra.mxu0 %v1540
        %1546 = vmatprep.subr.bf16.mxu0 0
        %1547 = vmatpush1.bf16.msra.mxu0 %v1541
        %1548 = vmatprep.subr.bf16.mxu0 0
        %1549 = vmatpush1.bf16.msra.mxu0 0
        %1550 = vmatprep.subr.bf16.mxu0 0
        %1551 = vmatpush1.bf16.msra.mxu0 0
        %1552 = vmatprep.subr.bf16.mxu0 0
        %1553 = vmatpush1.bf16.msra.mxu0 0
        %1554 = vmatprep.subr.bf16.mxu0 0
        %1555 = vmatpush1.bf16.msra.mxu0 0
        %1556 = vmatprep.subr.bf16.mxu0 0
        %1557 = vmatpush1.bf16.msra.mxu0 0
        %1558 = vmatprep.subr.bf16.mxu0 0
        %1559 = vmatpush1.bf16.msra.mxu0 0
        %1560 = vmatprep.subr.bf16.mxu0 0
        %1561 = vmatpush1.bf16.msra.mxu0 0
        %1562 = vmatprep.subr.bf16.mxu0 0
        %1563 = vmatpush1.bf16.msra.mxu0 0
        %1564 = vmatprep.subr.bf16.mxu0 0
        %1565 = vmatpush1.bf16.msra.mxu0 0
        %1566 = vmatprep.subr.bf16.mxu0 0
        %1567 = vmatpush1.bf16.msra.mxu0 0
        %1568 = vmatprep.subr.bf16.mxu0 0
        %1569 = vmatpush1.bf16.msra.mxu0 0
        %1570 = vmatprep.subr.bf16.mxu0 0
        %1571 = vmatpush1.bf16.msra.mxu0 0
        %1572 = vmatprep.subr.bf16.mxu0 0
        %1573 = vmatpush1.bf16.msra.mxu0 0
        %1574 = vmatprep.subr.bf16.mxu0 0
        %1575 = vmatpush1.bf16.msra.mxu0 0
        %1576 = vmatprep.mubr.bf16.mxu0 0
        %1577 = vmatmul.mubr.bf16.gmra.mrb[0].mxu0 %v1412
        %v1578 = vpop.f32.mrb[0].mxu0
        %v1579 = vadd.f32 %v1530, %v1578
        %v1580 = vpop.f32.mrb[0].mxu0
        %v1581 = vpop.f32.mrb[0].mxu0
        %v1582 = vadd.f32 %v1530, %v1581
        %v1583 = vpop.f32.mrb[0].mxu0
        %1584 = vdwg.mxu0
        %vm1585 = vcmask 64512
        %v1587 = vsel %vm1585, %v1455, 0
        %v1590 = vsel %vm1585, %v1515, 0
        %1592 = vmatprep.subr.mxu0 0.0
        %1593 = vmatpush1.xpose.msra.mxu0 %v1590
        %1594 = vmatprep.subr.mxu0 0.0
        %1595 = vmatpush1.xpose.msra.mxu0 0.0
        %1596 = vmatprep.subr.mxu0 0.0
        %1597 = vmatpush1.xpose.msra.mxu0 0.0
        %1598 = vmatprep.subr.mxu0 0.0
        %1599 = vmatpush1.xpose.msra.mxu0 0.0
        %1600 = vmatprep.subr.mxu0 0.0
        %1601 = vmatpush1.xpose.msra.mxu0 0.0
        %1602 = vmatprep.subr.mxu0 0.0
        %1603 = vmatpush1.xpose.msra.mxu0 0.0
        %1604 = vmatprep.subr.mxu0 0.0
        %1605 = vmatpush1.xpose.msra.mxu0 0.0
        %1606 = vmatprep.subr.mxu0 0.0
        %1607 = vmatpush1.xpose.msra.mxu0 0.0
        %1608 = vmatprep.subr.mxu0 0.0
        %1609 = vmatpush1.xpose.msra.mxu0 0.0
        %1610 = vmatprep.subr.mxu0 0.0
        %1611 = vmatpush1.xpose.msra.mxu0 0.0
        %1612 = vmatprep.subr.mxu0 0.0
        %1613 = vmatpush1.xpose.msra.mxu0 0.0
        %1614 = vmatprep.subr.mxu0 0.0
        %1615 = vmatpush1.xpose.msra.mxu0 0.0
        %1616 = vmatprep.subr.mxu0 0.0
        %1617 = vmatpush1.xpose.msra.mxu0 0.0
        %1618 = vmatprep.subr.mxu0 0.0
        %1619 = vmatpush1.xpose.msra.mxu0 0.0
        %1620 = vmatprep.subr.mxu0 0.0
        %1621 = vmatpush1.xpose.msra.mxu0 0.0
        %1622 = vmatprep.subr.mxu0 0.0
        %1623 = vmatpush1.xpose.msra.mxu0 0.0
        %1624 = vmatprep.subr.mxu0 0.0
        %1625 = vmatpush1.xpose.msra.mxu0 0.0
        %1626 = vmatprep.subr.mxu0 0.0
        %1627 = vmatpush1.xpose.msra.mxu0 0.0
        %1628 = vmatprep.subr.mxu0 0.0
        %1629 = vmatpush1.xpose.msra.mxu0 0.0
        %1630 = vmatprep.subr.mxu0 0.0
        %1631 = vmatpush1.xpose.msra.mxu0 0.0
        %1632 = vmatprep.subr.mxu0 0.0
        %1633 = vmatpush1.xpose.msra.mxu0 0.0
        %1634 = vmatprep.subr.mxu0 0.0
        %1635 = vmatpush1.xpose.msra.mxu0 0.0
        %1636 = vmatprep.subr.mxu0 0.0
        %1637 = vmatpush1.xpose.msra.mxu0 0.0
        %1638 = vmatprep.subr.mxu0 0.0
        %1639 = vmatpush1.xpose.msra.mxu0 0.0
        %1640 = vmatprep.subr.mxu0 0.0
        %1641 = vmatpush1.xpose.msra.mxu0 0.0
        %1642 = vmatprep.subr.mxu0 0.0
        %1643 = vmatpush1.xpose.msra.mxu0 0.0
        %1644 = vmatprep.subr.mxu0 0.0
        %1645 = vmatpush1.xpose.msra.mxu0 0.0
        %1646 = vmatprep.subr.mxu0 0.0
        %1647 = vmatpush1.xpose.msra.mxu0 0.0
        %1648 = vmatprep.subr.mxu0 0.0
        %1649 = vmatpush1.xpose.msra.mxu0 0.0
        %1650 = vmatprep.subr.mxu0 0.0
        %1651 = vmatpush1.xpose.msra.mxu0 0.0
        %1652 = vmatprep.subr.mxu0 0.0
        %1653 = vmatpush1.xpose.msra.mxu0 0.0
        %1654 = vmatprep.subr.mxu0 0.0
        %1655 = vmatpush1.xpose.msra.mxu0 0.0
        %1656 = vmatprep.mubr.f32.mxu0 0.0
        %1657 = vmatmul.mubr.f32.gmra.mrb[0].mxu0 %v1587
        %v1658 = vpop.f32.mrb[0].mxu0
        %v1659 = vadd.f32 0.0, %v1658
        %v1660 = vpop.f32.mrb[0].mxu0
        %1661 = vdwg.mxu0
        %vm1662 = vcmask 9216
        %v1663 = vsel %vm1662, %v1659, -inf
        %1664 = vmax.xlane.f32.xlu0 %v1663
        %v1665 = vpop.xlane.xlu0 %1664
        %v1666 = vsub.f32 %v1659, %v1665
        %v1667 = vmul.f32 %v1666, 1.442695
        %v1668 = vpow.pop %v1667
        %v1669 = vsel %vm1662, %v1668, 0.0
        %1670 = vadd.xlane.f32.xlu0 %v1669
        %v1671 = vpop.xlane.xlu0 %1670
        %v1672 = vrcp.pop %v1671
        %v1673 = vmul.f32 %v1668, %v1672
        %vm1674 = vcmask 15360
        %v1676 = vsel %vm1674, %v1673, 0
        %vm1678 = vcmask 1041408
        %v1680 = vsel %vm1678, %v1579, 0
        %1682 = vmatprep.subr.mxu0 0.0
        %1683 = vmatpush1.msra.mxu0 %v1680
        %1684 = vmatprep.subr.mxu0 0.0
        %1685 = vmatpush1.msra.mxu0 0.0
        %1686 = vmatprep.subr.mxu0 0.0
        %1687 = vmatpush1.msra.mxu0 0.0
        %1688 = vmatprep.subr.mxu0 0.0
        %1689 = vmatpush1.msra.mxu0 0.0
        %1690 = vmatprep.subr.mxu0 0.0
        %1691 = vmatpush1.msra.mxu0 0.0
        %1692 = vmatprep.subr.mxu0 0.0
        %1693 = vmatpush1.msra.mxu0 0.0
        %1694 = vmatprep.subr.mxu0 0.0
        %1695 = vmatpush1.msra.mxu0 0.0
        %1696 = vmatprep.subr.mxu0 0.0
        %1697 = vmatpush1.msra.mxu0 0.0
        %1698 = vmatprep.subr.mxu0 0.0
        %1699 = vmatpush1.msra.mxu0 0.0
        %1700 = vmatprep.subr.mxu0 0.0
        %1701 = vmatpush1.msra.mxu0 0.0
        %1702 = vmatprep.subr.mxu0 0.0
        %1703 = vmatpush1.msra.mxu0 0.0
        %1704 = vmatprep.subr.mxu0 0.0
        %1705 = vmatpush1.msra.mxu0 0.0
        %1706 = vmatprep.subr.mxu0 0.0
        %1707 = vmatpush1.msra.mxu0 0.0
        %1708 = vmatprep.subr.mxu0 0.0
        %1709 = vmatpush1.msra.mxu0 0.0
        %1710 = vmatprep.subr.mxu0 0.0
        %1711 = vmatpush1.msra.mxu0 0.0
        %1712 = vmatprep.subr.mxu0 0.0
        %1713 = vmatpush1.msra.mxu0 0.0
        %1714 = vmatprep.subr.mxu0 0.0
        %1715 = vmatpush1.msra.mxu0 0.0
        %1716 = vmatprep.subr.mxu0 0.0
        %1717 = vmatpush1.msra.mxu0 0.0
        %1718 = vmatprep.subr.mxu0 0.0
        %1719 = vmatpush1.msra.mxu0 0.0
        %1720 = vmatprep.subr.mxu0 0.0
        %1721 = vmatpush1.msra.mxu0 0.0
        %1722 = vmatprep.subr.mxu0 0.0
        %1723 = vmatpush1.msra.mxu0 0.0
        %1724 = vmatprep.subr.mxu0 0.0
        %1725 = vmatpush1.msra.mxu0 0.0
        %1726 = vmatprep.subr.mxu0 0.0
        %1727 = vmatpush1.msra.mxu0 0.0
        %1728 = vmatprep.subr.mxu0 0.0
        %1729 = vmatpush1.msra.mxu0 0.0
        %1730 = vmatprep.subr.mxu0 0.0
        %1731 = vmatpush1.msra.mxu0 0.0
        %1732 = vmatprep.subr.mxu0 0.0
        %1733 = vmatpush1.msra.mxu0 0.0
        %1734 = vmatprep.subr.mxu0 0.0
        %1735 = vmatpush1.msra.mxu0 0.0
        %1736 = vmatprep.subr.mxu0 0.0
        %1737 = vmatpush1.msra.mxu0 0.0
        %1738 = vmatprep.subr.mxu0 0.0
        %1739 = vmatpush1.msra.mxu0 0.0
        %1740 = vmatprep.subr.mxu0 0.0
        %1741 = vmatpush1.msra.mxu0 0.0
        %1742 = vmatprep.subr.mxu0 0.0
        %1743 = vmatpush1.msra.mxu0 0.0
        %1744 = vmatprep.subr.mxu0 0.0
        %1745 = vmatpush1.msra.mxu0 0.0
        %1746 = vmatprep.mubr.f32.mxu0 0.0
        %1747 = vmatmul.mubr.f32.gmra.mrb[0].mxu0 %v1676
        %v1748 = vpop.f32.mrb[0].mxu0
        %v1749 = vadd.f32 0.0, %v1748
        %v1750 = vpop.f32.mrb[0].mxu0
        %1751 = vdwg.mxu0
        %vm1752 = vcmask 58368
        %1753 = vst.msk [vmem:[#allocation3] sm:$0x3] %vm1752, %v1749
        %1754 = vrot.lane.b32.xlu0 %v1455, 120
        %v1755 = vpop.permute.xlu0 %1754
        %1756 = vrot.lane.b32.xlu0 %v1515, 120
        %v1757 = vpop.permute.xlu0 %1756
        %v1758 = vsel %vm1585, %v1755, 0
        %v1760 = vsel %vm1585, %v1757, 0
        %1762 = vmatprep.subr.mxu0 0.0
        %1763 = vmatpush1.xpose.msra.mxu0 %v1760
        %1764 = vmatprep.subr.mxu0 0.0
        %1765 = vmatpush1.xpose.msra.mxu0 0.0
        %1766 = vmatprep.subr.mxu0 0.0
        %1767 = vmatpush1.xpose.msra.mxu0 0.0
        %1768 = vmatprep.subr.mxu0 0.0
        %1769 = vmatpush1.xpose.msra.mxu0 0.0
        %1770 = vmatprep.subr.mxu0 0.0
        %1771 = vmatpush1.xpose.msra.mxu0 0.0
        %1772 = vmatprep.subr.mxu0 0.0
        %1773 = vmatpush1.xpose.msra.mxu0 0.0
        %1774 = vmatprep.subr.mxu0 0.0
        %1775 = vmatpush1.xpose.msra.mxu0 0.0
        %1776 = vmatprep.subr.mxu0 0.0
        %1777 = vmatpush1.xpose.msra.mxu0 0.0
        %1778 = vmatprep.subr.mxu0 0.0
        %1779 = vmatpush1.xpose.msra.mxu0 0.0
        %1780 = vmatprep.subr.mxu0 0.0
        %1781 = vmatpush1.xpose.msra.mxu0 0.0
        %1782 = vmatprep.subr.mxu0 0.0
        %1783 = vmatpush1.xpose.msra.mxu0 0.0
        %1784 = vmatprep.subr.mxu0 0.0
        %1785 = vmatpush1.xpose.msra.mxu0 0.0
        %1786 = vmatprep.subr.mxu0 0.0
        %1787 = vmatpush1.xpose.msra.mxu0 0.0
        %1788 = vmatprep.subr.mxu0 0.0
        %1789 = vmatpush1.xpose.msra.mxu0 0.0
        %1790 = vmatprep.subr.mxu0 0.0
        %1791 = vmatpush1.xpose.msra.mxu0 0.0
        %1792 = vmatprep.subr.mxu0 0.0
        %1793 = vmatpush1.xpose.msra.mxu0 0.0
        %1794 = vmatprep.subr.mxu0 0.0
        %1795 = vmatpush1.xpose.msra.mxu0 0.0
        %1796 = vmatprep.subr.mxu0 0.0
        %1797 = vmatpush1.xpose.msra.mxu0 0.0
        %1798 = vmatprep.subr.mxu0 0.0
        %1799 = vmatpush1.xpose.msra.mxu0 0.0
        %1800 = vmatprep.subr.mxu0 0.0
        %1801 = vmatpush1.xpose.msra.mxu0 0.0
        %1802 = vmatprep.subr.mxu0 0.0
        %1803 = vmatpush1.xpose.msra.mxu0 0.0
        %1804 = vmatprep.subr.mxu0 0.0
        %1805 = vmatpush1.xpose.msra.mxu0 0.0
        %1806 = vmatprep.subr.mxu0 0.0
        %1807 = vmatpush1.xpose.msra.mxu0 0.0
        %1808 = vmatprep.subr.mxu0 0.0
        %1809 = vmatpush1.xpose.msra.mxu0 0.0
        %1810 = vmatprep.subr.mxu0 0.0
        %1811 = vmatpush1.xpose.msra.mxu0 0.0
        %1812 = vmatprep.subr.mxu0 0.0
        %1813 = vmatpush1.xpose.msra.mxu0 0.0
        %1814 = vmatprep.subr.mxu0 0.0
        %1815 = vmatpush1.xpose.msra.mxu0 0.0
        %1816 = vmatprep.subr.mxu0 0.0
        %1817 = vmatpush1.xpose.msra.mxu0 0.0
        %1818 = vmatprep.subr.mxu0 0.0
        %1819 = vmatpush1.xpose.msra.mxu0 0.0
        %1820 = vmatprep.subr.mxu0 0.0
        %1821 = vmatpush1.xpose.msra.mxu0 0.0
        %1822 = vmatprep.subr.mxu0 0.0
        %1823 = vmatpush1.xpose.msra.mxu0 0.0
        %1824 = vmatprep.subr.mxu0 0.0
        %1825 = vmatpush1.xpose.msra.mxu0 0.0
        %1826 = vmatprep.mubr.f32.mxu0 0.0
        %1827 = vmatmul.mubr.f32.gmra.mrb[0].mxu0 %v1758
        %v1828 = vpop.f32.mrb[0].mxu0
        %v1829 = vadd.f32 0.0, %v1828
        %v1830 = vpop.f32.mrb[0].mxu0
        %1831 = vdwg.mxu0
        %v1832 = vsel %vm1662, %v1829, -inf
        %1833 = vmax.xlane.f32.xlu0 %v1832
        %v1834 = vpop.xlane.xlu0 %1833
        %v1835 = vsub.f32 %v1829, %v1834
        %v1836 = vmul.f32 %v1835, 1.442695
        %v1837 = vpow.pop %v1836
        %v1838 = vsel %vm1662, %v1837, 0.0
        %1839 = vadd.xlane.f32.xlu0 %v1838
        %v1840 = vpop.xlane.xlu0 %1839
        %v1841 = vrcp.pop %v1840
        %v1842 = vmul.f32 %v1837, %v1841
        %1843 = vrot.lane.b32.xlu0 %v1579, 120
        %v1844 = vpop.permute.xlu0 %1843
        %v1846 = vsel %vm1674, %v1842, 0
        %v1848 = vsel %vm1678, %v1844, 0
        %1850 = vmatprep.subr.mxu0 0.0
        %1851 = vmatpush1.msra.mxu0 %v1848
        %1852 = vmatprep.subr.mxu0 0.0
        %1853 = vmatpush1.msra.mxu0 0.0
        %1854 = vmatprep.subr.mxu0 0.0
        %1855 = vmatpush1.msra.mxu0 0.0
        %1856 = vmatprep.subr.mxu0 0.0
        %1857 = vmatpush1.msra.mxu0 0.0
        %1858 = vmatprep.subr.mxu0 0.0
        %1859 = vmatpush1.msra.mxu0 0.0
        %1860 = vmatprep.subr.mxu0 0.0
        %1861 = vmatpush1.msra.mxu0 0.0
        %1862 = vmatprep.subr.mxu0 0.0
        %1863 = vmatpush1.msra.mxu0 0.0
        %1864 = vmatprep.subr.mxu0 0.0
        %1865 = vmatpush1.msra.mxu0 0.0
        %1866 = vmatprep.subr.mxu0 0.0
        %1867 = vmatpush1.msra.mxu0 0.0
        %1868 = vmatprep.subr.mxu0 0.0
        %1869 = vmatpush1.msra.mxu0 0.0
        %1870 = vmatprep.subr.mxu0 0.0
        %1871 = vmatpush1.msra.mxu0 0.0
        %1872 = vmatprep.subr.mxu0 0.0
        %1873 = vmatpush1.msra.mxu0 0.0
        %1874 = vmatprep.subr.mxu0 0.0
        %1875 = vmatpush1.msra.mxu0 0.0
        %1876 = vmatprep.subr.mxu0 0.0
        %1877 = vmatpush1.msra.mxu0 0.0
        %1878 = vmatprep.subr.mxu0 0.0
        %1879 = vmatpush1.msra.mxu0 0.0
        %1880 = vmatprep.subr.mxu0 0.0
        %1881 = vmatpush1.msra.mxu0 0.0
        %1882 = vmatprep.subr.mxu0 0.0
        %1883 = vmatpush1.msra.mxu0 0.0
        %1884 = vmatprep.subr.mxu0 0.0
        %1885 = vmatpush1.msra.mxu0 0.0
        %1886 = vmatprep.subr.mxu0 0.0
        %1887 = vmatpush1.msra.mxu0 0.0
        %1888 = vmatprep.subr.mxu0 0.0
        %1889 = vmatpush1.msra.mxu0 0.0
        %1890 = vmatprep.subr.mxu0 0.0
        %1891 = vmatpush1.msra.mxu0 0.0
        %1892 = vmatprep.subr.mxu0 0.0
        %1893 = vmatpush1.msra.mxu0 0.0
        %1894 = vmatprep.subr.mxu0 0.0
        %1895 = vmatpush1.msra.mxu0 0.0
        %1896 = vmatprep.subr.mxu0 0.0
        %1897 = vmatpush1.msra.mxu0 0.0
        %1898 = vmatprep.subr.mxu0 0.0
        %1899 = vmatpush1.msra.mxu0 0.0
        %1900 = vmatprep.subr.mxu0 0.0
        %1901 = vmatpush1.msra.mxu0 0.0
        %1902 = vmatprep.subr.mxu0 0.0
        %1903 = vmatpush1.msra.mxu0 0.0
        %1904 = vmatprep.subr.mxu0 0.0
        %1905 = vmatpush1.msra.mxu0 0.0
        %1906 = vmatprep.subr.mxu0 0.0
        %1907 = vmatpush1.msra.mxu0 0.0
        %1908 = vmatprep.subr.mxu0 0.0
        %1909 = vmatpush1.msra.mxu0 0.0
        %1910 = vmatprep.subr.mxu0 0.0
        %1911 = vmatpush1.msra.mxu0 0.0
        %1912 = vmatprep.subr.mxu0 0.0
        %1913 = vmatpush1.msra.mxu0 0.0
        %1914 = vmatprep.mubr.f32.mxu0 0.0
        %1915 = vmatmul.mubr.f32.gmra.mrb[0].mxu0 %v1846
        %v1916 = vpop.f32.mrb[0].mxu0
        %v1917 = vadd.f32 0.0, %v1916
        %v1918 = vpop.f32.mrb[0].mxu0
        %1919 = vdwg.mxu0
        %1921 = vrot.lane.b32.xlu0 %v1917, 8
        %v1922 = vpop.permute.xlu0 %1921
        %vm1924 = vcmask 123968
        %1925 = vst.msk [vmem:[#allocation3] sm:$0x3] %vm1924, %v1922
        %1926 = vrot.lane.b32.xlu0 %v1455, 112
        %v1927 = vpop.permute.xlu0 %1926
        %1928 = vrot.lane.b32.xlu0 %v1515, 112
        %v1929 = vpop.permute.xlu0 %1928
        %v1930 = vsel %vm1585, %v1927, 0
        %v1932 = vsel %vm1585, %v1929, 0
        %1934 = vmatprep.subr.mxu0 0.0
        %1935 = vmatpush1.xpose.msra.mxu0 %v1932
        %1936 = vmatprep.subr.mxu0 0.0
        %1937 = vmatpush1.xpose.msra.mxu0 0.0
        %1938 = vmatprep.subr.mxu0 0.0
        %1939 = vmatpush1.xpose.msra.mxu0 0.0
        %1940 = vmatprep.subr.mxu0 0.0
        %1941 = vmatpush1.xpose.msra.mxu0 0.0
        %1942 = vmatprep.subr.mxu0 0.0
        %1943 = vmatpush1.xpose.msra.mxu0 0.0
        %1944 = vmatprep.subr.mxu0 0.0
        %1945 = vmatpush1.xpose.msra.mxu0 0.0
        %1946 = vmatprep.subr.mxu0 0.0
        %1947 = vmatpush1.xpose.msra.mxu0 0.0
        %1948 = vmatprep.subr.mxu0 0.0
        %1949 = vmatpush1.xpose.msra.mxu0 0.0
        %1950 = vmatprep.subr.mxu0 0.0
        %1951 = vmatpush1.xpose.msra.mxu0 0.0
        %1952 = vmatprep.subr.mxu0 0.0
        %1953 = vmatpush1.xpose.msra.mxu0 0.0
        %1954 = vmatprep.subr.mxu0 0.0
        %1955 = vmatpush1.xpose.msra.mxu0 0.0
        %1956 = vmatprep.subr.mxu0 0.0
        %1957 = vmatpush1.xpose.msra.mxu0 0.0
        %1958 = vmatprep.subr.mxu0 0.0
        %1959 = vmatpush1.xpose.msra.mxu0 0.0
        %1960 = vmatprep.subr.mxu0 0.0
        %1961 = vmatpush1.xpose.msra.mxu0 0.0
        %1962 = vmatprep.subr.mxu0 0.0
        %1963 = vmatpush1.xpose.msra.mxu0 0.0
        %1964 = vmatprep.subr.mxu0 0.0
        %1965 = vmatpush1.xpose.msra.mxu0 0.0
        %1966 = vmatprep.subr.mxu0 0.0
        %1967 = vmatpush1.xpose.msra.mxu0 0.0
        %1968 = vmatprep.subr.mxu0 0.0
        %1969 = vmatpush1.xpose.msra.mxu0 0.0
        %1970 = vmatprep.subr.mxu0 0.0
        %1971 = vmatpush1.xpose.msra.mxu0 0.0
        %1972 = vmatprep.subr.mxu0 0.0
        %1973 = vmatpush1.xpose.msra.mxu0 0.0
        %1974 = vmatprep.subr.mxu0 0.0
        %1975 = vmatpush1.xpose.msra.mxu0 0.0
        %1976 = vmatprep.subr.mxu0 0.0
        %1977 = vmatpush1.xpose.msra.mxu0 0.0
        %1978 = vmatprep.subr.mxu0 0.0
        %1979 = vmatpush1.xpose.msra.mxu0 0.0
        %1980 = vmatprep.subr.mxu0 0.0
        %1981 = vmatpush1.xpose.msra.mxu0 0.0
        %1982 = vmatprep.subr.mxu0 0.0
        %1983 = vmatpush1.xpose.msra.mxu0 0.0
        %1984 = vmatprep.subr.mxu0 0.0
        %1985 = vmatpush1.xpose.msra.mxu0 0.0
        %1986 = vmatprep.subr.mxu0 0.0
        %1987 = vmatpush1.xpose.msra.mxu0 0.0
        %1988 = vmatprep.subr.mxu0 0.0
        %1989 = vmatpush1.xpose.msra.mxu0 0.0
        %1990 = vmatprep.subr.mxu0 0.0
        %1991 = vmatpush1.xpose.msra.mxu0 0.0
        %1992 = vmatprep.subr.mxu0 0.0
        %1993 = vmatpush1.xpose.msra.mxu0 0.0
        %1994 = vmatprep.subr.mxu0 0.0
        %1995 = vmatpush1.xpose.msra.mxu0 0.0
        %1996 = vmatprep.subr.mxu0 0.0
        %1997 = vmatpush1.xpose.msra.mxu0 0.0
        %1998 = vmatprep.mubr.f32.mxu0 0.0
        %1999 = vmatmul.mubr.f32.gmra.mrb[0].mxu0 %v1930
        %v2000 = vpop.f32.mrb[0].mxu0
        %v2001 = vadd.f32 0.0, %v2000
        %v2002 = vpop.f32.mrb[0].mxu0
        %2003 = vdwg.mxu0
        %v2004 = vsel %vm1662, %v2001, -inf
        %2005 = vmax.xlane.f32.xlu0 %v2004
        %v2006 = vpop.xlane.xlu0 %2005
        %v2007 = vsub.f32 %v2001, %v2006
        %v2008 = vmul.f32 %v2007, 1.442695
        %v2009 = vpow.pop %v2008
        %v2010 = vsel %vm1662, %v2009, 0.0
        %2011 = vadd.xlane.f32.xlu0 %v2010
        %v2012 = vpop.xlane.xlu0 %2011
        %v2013 = vrcp.pop %v2012
        %v2014 = vmul.f32 %v2009, %v2013
        %2015 = vrot.lane.b32.xlu0 %v1579, 112
        %v2016 = vpop.permute.xlu0 %2015
        %v2018 = vsel %vm1674, %v2014, 0
        %v2020 = vsel %vm1678, %v2016, 0
        %2022 = vmatprep.subr.mxu0 0.0
        %2023 = vmatpush1.msra.mxu0 %v2020
        %2024 = vmatprep.subr.mxu0 0.0
        %2025 = vmatpush1.msra.mxu0 0.0
        %2026 = vmatprep.subr.mxu0 0.0
        %2027 = vmatpush1.msra.mxu0 0.0
        %2028 = vmatprep.subr.mxu0 0.0
        %2029 = vmatpush1.msra.mxu0 0.0
        %2030 = vmatprep.subr.mxu0 0.0
        %2031 = vmatpush1.msra.mxu0 0.0
        %2032 = vmatprep.subr.mxu0 0.0
        %2033 = vmatpush1.msra.mxu0 0.0
        %2034 = vmatprep.subr.mxu0 0.0
        %2035 = vmatpush1.msra.mxu0 0.0
        %2036 = vmatprep.subr.mxu0 0.0
        %2037 = vmatpush1.msra.mxu0 0.0
        %2038 = vmatprep.subr.mxu0 0.0
        %2039 = vmatpush1.msra.mxu0 0.0
        %2040 = vmatprep.subr.mxu0 0.0
        %2041 = vmatpush1.msra.mxu0 0.0
        %2042 = vmatprep.subr.mxu0 0.0
        %2043 = vmatpush1.msra.mxu0 0.0
        %2044 = vmatprep.subr.mxu0 0.0
        %2045 = vmatpush1.msra.mxu0 0.0
        %2046 = vmatprep.subr.mxu0 0.0
        %2047 = vmatpush1.msra.mxu0 0.0
        %2048 = vmatprep.subr.mxu0 0.0
        %2049 = vmatpush1.msra.mxu0 0.0
        %2050 = vmatprep.subr.mxu0 0.0
        %2051 = vmatpush1.msra.mxu0 0.0
        %2052 = vmatprep.subr.mxu0 0.0
        %2053 = vmatpush1.msra.mxu0 0.0
        %2054 = vmatprep.subr.mxu0 0.0
        %2055 = vmatpush1.msra.mxu0 0.0
        %2056 = vmatprep.subr.mxu0 0.0
        %2057 = vmatpush1.msra.mxu0 0.0
        %2058 = vmatprep.subr.mxu0 0.0
        %2059 = vmatpush1.msra.mxu0 0.0
        %2060 = vmatprep.subr.mxu0 0.0
        %2061 = vmatpush1.msra.mxu0 0.0
        %2062 = vmatprep.subr.mxu0 0.0
        %2063 = vmatpush1.msra.mxu0 0.0
        %2064 = vmatprep.subr.mxu0 0.0
        %2065 = vmatpush1.msra.mxu0 0.0
        %2066 = vmatprep.subr.mxu0 0.0
        %2067 = vmatpush1.msra.mxu0 0.0
        %2068 = vmatprep.subr.mxu0 0.0
        %2069 = vmatpush1.msra.mxu0 0.0
        %2070 = vmatprep.subr.mxu0 0.0
        %2071 = vmatpush1.msra.mxu0 0.0
        %2072 = vmatprep.subr.mxu0 0.0
        %2073 = vmatpush1.msra.mxu0 0.0
        %2074 = vmatprep.subr.mxu0 0.0
        %2075 = vmatpush1.msra.mxu0 0.0
        %2076 = vmatprep.subr.mxu0 0.0
        %2077 = vmatpush1.msra.mxu0 0.0
        %2078 = vmatprep.subr.mxu0 0.0
        %2079 = vmatpush1.msra.mxu0 0.0
        %2080 = vmatprep.subr.mxu0 0.0
        %2081 = vmatpush1.msra.mxu0 0.0
        %2082 = vmatprep.subr.mxu0 0.0
        %2083 = vmatpush1.msra.mxu0 0.0
        %2084 = vmatprep.subr.mxu0 0.0
        %2085 = vmatpush1.msra.mxu0 0.0
        %2086 = vmatprep.mubr.f32.mxu0 0.0
        %2087 = vmatmul.mubr.f32.gmra.mrb[0].mxu0 %v2018
        %v2088 = vpop.f32.mrb[0].mxu0
        %v2089 = vadd.f32 0.0, %v2088
        %v2090 = vpop.f32.mrb[0].mxu0
        %2091 = vdwg.mxu0
        %2093 = vrot.lane.b32.xlu0 %v2089, 16
        %v2094 = vpop.permute.xlu0 %2093
        %vm2096 = vcmask 189568
        %2097 = vst.msk [vmem:[#allocation3] sm:$0x3] %vm2096, %v2094
        %2098 = vrot.lane.b32.xlu0 %v1455, 104
        %v2099 = vpop.permute.xlu0 %2098
        %2100 = vrot.lane.b32.xlu0 %v1515, 104
        %v2101 = vpop.permute.xlu0 %2100
        %v2102 = vsel %vm1585, %v2099, 0
        %v2104 = vsel %vm1585, %v2101, 0
        %2106 = vmatprep.subr.mxu0 0.0
        %2107 = vmatpush1.xpose.msra.mxu0 %v2104
        %2108 = vmatprep.subr.mxu0 0.0
        %2109 = vmatpush1.xpose.msra.mxu0 0.0
        %2110 = vmatprep.subr.mxu0 0.0
        %2111 = vmatpush1.xpose.msra.mxu0 0.0
        %2112 = vmatprep.subr.mxu0 0.0
        %2113 = vmatpush1.xpose.msra.mxu0 0.0
        %2114 = vmatprep.subr.mxu0 0.0
        %2115 = vmatpush1.xpose.msra.mxu0 0.0
        %2116 = vmatprep.subr.mxu0 0.0
        %2117 = vmatpush1.xpose.msra.mxu0 0.0
        %2118 = vmatprep.subr.mxu0 0.0
        %2119 = vmatpush1.xpose.msra.mxu0 0.0
        %2120 = vmatprep.subr.mxu0 0.0
        %2121 = vmatpush1.xpose.msra.mxu0 0.0
        %2122 = vmatprep.subr.mxu0 0.0
        %2123 = vmatpush1.xpose.msra.mxu0 0.0
        %2124 = vmatprep.subr.mxu0 0.0
        %2125 = vmatpush1.xpose.msra.mxu0 0.0
        %2126 = vmatprep.subr.mxu0 0.0
        %2127 = vmatpush1.xpose.msra.mxu0 0.0
        %2128 = vmatprep.subr.mxu0 0.0
        %2129 = vmatpush1.xpose.msra.mxu0 0.0
        %2130 = vmatprep.subr.mxu0 0.0
        %2131 = vmatpush1.xpose.msra.mxu0 0.0
        %2132 = vmatprep.subr.mxu0 0.0
        %2133 = vmatpush1.xpose.msra.mxu0 0.0
        %2134 = vmatprep.subr.mxu0 0.0
        %2135 = vmatpush1.xpose.msra.mxu0 0.0
        %2136 = vmatprep.subr.mxu0 0.0
        %2137 = vmatpush1.xpose.msra.mxu0 0.0
        %2138 = vmatprep.subr.mxu0 0.0
        %2139 = vmatpush1.xpose.msra.mxu0 0.0
        %2140 = vmatprep.subr.mxu0 0.0
        %2141 = vmatpush1.xpose.msra.mxu0 0.0
        %2142 = vmatprep.subr.mxu0 0.0
        %2143 = vmatpush1.xpose.msra.mxu0 0.0
        %2144 = vmatprep.subr.mxu0 0.0
        %2145 = vmatpush1.xpose.msra.mxu0 0.0
        %2146 = vmatprep.subr.mxu0 0.0
        %2147 = vmatpush1.xpose.msra.mxu0 0.0
        %2148 = vmatprep.subr.mxu0 0.0
        %2149 = vmatpush1.xpose.msra.mxu0 0.0
        %2150 = vmatprep.subr.mxu0 0.0
        %2151 = vmatpush1.xpose.msra.mxu0 0.0
        %2152 = vmatprep.subr.mxu0 0.0
        %2153 = vmatpush1.xpose.msra.mxu0 0.0
        %2154 = vmatprep.subr.mxu0 0.0
        %2155 = vmatpush1.xpose.msra.mxu0 0.0
        %2156 = vmatprep.subr.mxu0 0.0
        %2157 = vmatpush1.xpose.msra.mxu0 0.0
        %2158 = vmatprep.subr.mxu0 0.0
        %2159 = vmatpush1.xpose.msra.mxu0 0.0
        %2160 = vmatprep.subr.mxu0 0.0
        %2161 = vmatpush1.xpose.msra.mxu0 0.0
        %2162 = vmatprep.subr.mxu0 0.0
        %2163 = vmatpush1.xpose.msra.mxu0 0.0
        %2164 = vmatprep.subr.mxu0 0.0
        %2165 = vmatpush1.xpose.msra.mxu0 0.0
        %2166 = vmatprep.subr.mxu0 0.0
        %2167 = vmatpush1.xpose.msra.mxu0 0.0
        %2168 = vmatprep.subr.mxu0 0.0
        %2169 = vmatpush1.xpose.msra.mxu0 0.0
        %2170 = vmatprep.mubr.f32.mxu0 0.0
        %2171 = vmatmul.mubr.f32.gmra.mrb[0].mxu0 %v2102
        %v2172 = vpop.f32.mrb[0].mxu0
        %v2173 = vadd.f32 0.0, %v2172
        %v2174 = vpop.f32.mrb[0].mxu0
        %2175 = vdwg.mxu0
        %v2176 = vsel %vm1662, %v2173, -inf
        %2177 = vmax.xlane.f32.xlu0 %v2176
        %v2178 = vpop.xlane.xlu0 %2177
        %v2179 = vsub.f32 %v2173, %v2178
        %v2180 = vmul.f32 %v2179, 1.442695
        %v2181 = vpow.pop %v2180
        %v2182 = vsel %vm1662, %v2181, 0.0
        %2183 = vadd.xlane.f32.xlu0 %v2182
        %v2184 = vpop.xlane.xlu0 %2183
        %v2185 = vrcp.pop %v2184
        %v2186 = vmul.f32 %v2181, %v2185
        %2187 = vrot.lane.b32.xlu0 %v1579, 104
        %v2188 = vpop.permute.xlu0 %2187
        %v2190 = vsel %vm1674, %v2186, 0
        %v2192 = vsel %vm1678, %v2188, 0
        %2194 = vmatprep.subr.mxu0 0.0
        %2195 = vmatpush1.msra.mxu0 %v2192
        %2196 = vmatprep.subr.mxu0 0.0
        %2197 = vmatpush1.msra.mxu0 0.0
        %2198 = vmatprep.subr.mxu0 0.0
        %2199 = vmatpush1.msra.mxu0 0.0
        %2200 = vmatprep.subr.mxu0 0.0
        %2201 = vmatpush1.msra.mxu0 0.0
        %2202 = vmatprep.subr.mxu0 0.0
        %2203 = vmatpush1.msra.mxu0 0.0
        %2204 = vmatprep.subr.mxu0 0.0
        %2205 = vmatpush1.msra.mxu0 0.0
        %2206 = vmatprep.subr.mxu0 0.0
        %2207 = vmatpush1.msra.mxu0 0.0
        %2208 = vmatprep.subr.mxu0 0.0
        %2209 = vmatpush1.msra.mxu0 0.0
        %2210 = vmatprep.subr.mxu0 0.0
        %2211 = vmatpush1.msra.mxu0 0.0
        %2212 = vmatprep.subr.mxu0 0.0
        %2213 = vmatpush1.msra.mxu0 0.0
        %2214 = vmatprep.subr.mxu0 0.0
        %2215 = vmatpush1.msra.mxu0 0.0
        %2216 = vmatprep.subr.mxu0 0.0
        %2217 = vmatpush1.msra.mxu0 0.0
        %2218 = vmatprep.subr.mxu0 0.0
        %2219 = vmatpush1.msra.mxu0 0.0
        %2220 = vmatprep.subr.mxu0 0.0
        %2221 = vmatpush1.msra.mxu0 0.0
        %2222 = vmatprep.subr.mxu0 0.0
        %2223 = vmatpush1.msra.mxu0 0.0
        %2224 = vmatprep.subr.mxu0 0.0
        %2225 = vmatpush1.msra.mxu0 0.0
        %2226 = vmatprep.subr.mxu0 0.0
        %2227 = vmatpush1.msra.mxu0 0.0
        %2228 = vmatprep.subr.mxu0 0.0
        %2229 = vmatpush1.msra.mxu0 0.0
        %2230 = vmatprep.subr.mxu0 0.0
        %2231 = vmatpush1.msra.mxu0 0.0
        %2232 = vmatprep.subr.mxu0 0.0
        %2233 = vmatpush1.msra.mxu0 0.0
        %2234 = vmatprep.subr.mxu0 0.0
        %2235 = vmatpush1.msra.mxu0 0.0
        %2236 = vmatprep.subr.mxu0 0.0
        %2237 = vmatpush1.msra.mxu0 0.0
        %2238 = vmatprep.subr.mxu0 0.0
        %2239 = vmatpush1.msra.mxu0 0.0
        %2240 = vmatprep.subr.mxu0 0.0
        %2241 = vmatpush1.msra.mxu0 0.0
        %2242 = vmatprep.subr.mxu0 0.0
        %2243 = vmatpush1.msra.mxu0 0.0
        %2244 = vmatprep.subr.mxu0 0.0
        %2245 = vmatpush1.msra.mxu0 0.0
        %2246 = vmatprep.subr.mxu0 0.0
        %2247 = vmatpush1.msra.mxu0 0.0
        %2248 = vmatprep.subr.mxu0 0.0
        %2249 = vmatpush1.msra.mxu0 0.0
        %2250 = vmatprep.subr.mxu0 0.0
        %2251 = vmatpush1.msra.mxu0 0.0
        %2252 = vmatprep.subr.mxu0 0.0
        %2253 = vmatpush1.msra.mxu0 0.0
        %2254 = vmatprep.subr.mxu0 0.0
        %2255 = vmatpush1.msra.mxu0 0.0
        %2256 = vmatprep.subr.mxu0 0.0
        %2257 = vmatpush1.msra.mxu0 0.0
        %2258 = vmatprep.mubr.f32.mxu0 0.0
        %2259 = vmatmul.mubr.f32.gmra.mrb[0].mxu0 %v2190
        %v2260 = vpop.f32.mrb[0].mxu0
        %v2261 = vadd.f32 0.0, %v2260
        %v2262 = vpop.f32.mrb[0].mxu0
        %2263 = vdwg.mxu0
        %2265 = vrot.lane.b32.xlu0 %v2261, 24
        %v2266 = vpop.permute.xlu0 %2265
        %vm2268 = vcmask 255168
        %2269 = vst.msk [vmem:[#allocation3] sm:$0x3] %vm2268, %v2266
        %v2270 = vrot.slane %v1455, 2
        %v2271 = vrot.slane %v1515, 2
        %v2272 = vsel %vm1585, %v2270, 0
        %v2274 = vsel %vm1585, %v2271, 0
        %2276 = vmatprep.subr.mxu0 0.0
        %2277 = vmatpush1.xpose.msra.mxu0 %v2274
        %2278 = vmatprep.subr.mxu0 0.0
        %2279 = vmatpush1.xpose.msra.mxu0 0.0
        %2280 = vmatprep.subr.mxu0 0.0
        %2281 = vmatpush1.xpose.msra.mxu0 0.0
        %2282 = vmatprep.subr.mxu0 0.0
        %2283 = vmatpush1.xpose.msra.mxu0 0.0
        %2284 = vmatprep.subr.mxu0 0.0
        %2285 = vmatpush1.xpose.msra.mxu0 0.0
        %2286 = vmatprep.subr.mxu0 0.0
        %2287 = vmatpush1.xpose.msra.mxu0 0.0
        %2288 = vmatprep.subr.mxu0 0.0
        %2289 = vmatpush1.xpose.msra.mxu0 0.0
        %2290 = vmatprep.subr.mxu0 0.0
        %2291 = vmatpush1.xpose.msra.mxu0 0.0
        %2292 = vmatprep.subr.mxu0 0.0
        %2293 = vmatpush1.xpose.msra.mxu0 0.0
        %2294 = vmatprep.subr.mxu0 0.0
        %2295 = vmatpush1.xpose.msra.mxu0 0.0
        %2296 = vmatprep.subr.mxu0 0.0
        %2297 = vmatpush1.xpose.msra.mxu0 0.0
        %2298 = vmatprep.subr.mxu0 0.0
        %2299 = vmatpush1.xpose.msra.mxu0 0.0
        %2300 = vmatprep.subr.mxu0 0.0
        %2301 = vmatpush1.xpose.msra.mxu0 0.0
        %2302 = vmatprep.subr.mxu0 0.0
        %2303 = vmatpush1.xpose.msra.mxu0 0.0
        %2304 = vmatprep.subr.mxu0 0.0
        %2305 = vmatpush1.xpose.msra.mxu0 0.0
        %2306 = vmatprep.subr.mxu0 0.0
        %2307 = vmatpush1.xpose.msra.mxu0 0.0
        %2308 = vmatprep.subr.mxu0 0.0
        %2309 = vmatpush1.xpose.msra.mxu0 0.0
        %2310 = vmatprep.subr.mxu0 0.0
        %2311 = vmatpush1.xpose.msra.mxu0 0.0
        %2312 = vmatprep.subr.mxu0 0.0
        %2313 = vmatpush1.xpose.msra.mxu0 0.0
        %2314 = vmatprep.subr.mxu0 0.0
        %2315 = vmatpush1.xpose.msra.mxu0 0.0
        %2316 = vmatprep.subr.mxu0 0.0
        %2317 = vmatpush1.xpose.msra.mxu0 0.0
        %2318 = vmatprep.subr.mxu0 0.0
        %2319 = vmatpush1.xpose.msra.mxu0 0.0
        %2320 = vmatprep.subr.mxu0 0.0
        %2321 = vmatpush1.xpose.msra.mxu0 0.0
        %2322 = vmatprep.subr.mxu0 0.0
        %2323 = vmatpush1.xpose.msra.mxu0 0.0
        %2324 = vmatprep.subr.mxu0 0.0
        %2325 = vmatpush1.xpose.msra.mxu0 0.0
        %2326 = vmatprep.subr.mxu0 0.0
        %2327 = vmatpush1.xpose.msra.mxu0 0.0
        %2328 = vmatprep.subr.mxu0 0.0
        %2329 = vmatpush1.xpose.msra.mxu0 0.0
        %2330 = vmatprep.subr.mxu0 0.0
        %2331 = vmatpush1.xpose.msra.mxu0 0.0
        %2332 = vmatprep.subr.mxu0 0.0
        %2333 = vmatpush1.xpose.msra.mxu0 0.0
        %2334 = vmatprep.subr.mxu0 0.0
        %2335 = vmatpush1.xpose.msra.mxu0 0.0
        %2336 = vmatprep.subr.mxu0 0.0
        %2337 = vmatpush1.xpose.msra.mxu0 0.0
        %2338 = vmatprep.subr.mxu0 0.0
        %2339 = vmatpush1.xpose.msra.mxu0 0.0
        %2340 = vmatprep.mubr.f32.mxu0 0.0
        %2341 = vmatmul.mubr.f32.gmra.mrb[0].mxu0 %v2272
        %v2342 = vpop.f32.mrb[0].mxu0
        %v2343 = vadd.f32 0.0, %v2342
        %v2344 = vpop.f32.mrb[0].mxu0
        %2345 = vdwg.mxu0
        %v2346 = vsel %vm1662, %v2343, -inf
        %2347 = vmax.xlane.f32.xlu0 %v2346
        %v2348 = vpop.xlane.xlu0 %2347
        %v2349 = vsub.f32 %v2343, %v2348
        %v2350 = vmul.f32 %v2349, 1.442695
        %v2351 = vpow.pop %v2350
        %v2352 = vsel %vm1662, %v2351, 0.0
        %2353 = vadd.xlane.f32.xlu0 %v2352
        %v2354 = vpop.xlane.xlu0 %2353
        %v2355 = vrcp.pop %v2354
        %v2356 = vmul.f32 %v2351, %v2355
        %v2357 = vrot.slane %v1579, 2
        %v2359 = vsel %vm1674, %v2356, 0
        %v2361 = vsel %vm1678, %v2357, 0
        %2363 = vmatprep.subr.mxu0 0.0
        %2364 = vmatpush1.msra.mxu0 %v2361
        %2365 = vmatprep.subr.mxu0 0.0
        %2366 = vmatpush1.msra.mxu0 0.0
        %2367 = vmatprep.subr.mxu0 0.0
        %2368 = vmatpush1.msra.mxu0 0.0
        %2369 = vmatprep.subr.mxu0 0.0
        %2370 = vmatpush1.msra.mxu0 0.0
        %2371 = vmatprep.subr.mxu0 0.0
        %2372 = vmatpush1.msra.mxu0 0.0
        %2373 = vmatprep.subr.mxu0 0.0
        %2374 = vmatpush1.msra.mxu0 0.0
        %2375 = vmatprep.subr.mxu0 0.0
        %2376 = vmatpush1.msra.mxu0 0.0
        %2377 = vmatprep.subr.mxu0 0.0
        %2378 = vmatpush1.msra.mxu0 0.0
        %2379 = vmatprep.subr.mxu0 0.0
        %2380 = vmatpush1.msra.mxu0 0.0
        %2381 = vmatprep.subr.mxu0 0.0
        %2382 = vmatpush1.msra.mxu0 0.0
        %2383 = vmatprep.subr.mxu0 0.0
        %2384 = vmatpush1.msra.mxu0 0.0
        %2385 = vmatprep.subr.mxu0 0.0
        %2386 = vmatpush1.msra.mxu0 0.0
        %2387 = vmatprep.subr.mxu0 0.0
        %2388 = vmatpush1.msra.mxu0 0.0
        %2389 = vmatprep.subr.mxu0 0.0
        %2390 = vmatpush1.msra.mxu0 0.0
        %2391 = vmatprep.subr.mxu0 0.0
        %2392 = vmatpush1.msra.mxu0 0.0
        %2393 = vmatprep.subr.mxu0 0.0
        %2394 = vmatpush1.msra.mxu0 0.0
        %2395 = vmatprep.subr.mxu0 0.0
        %2396 = vmatpush1.msra.mxu0 0.0
        %2397 = vmatprep.subr.mxu0 0.0
        %2398 = vmatpush1.msra.mxu0 0.0
        %2399 = vmatprep.subr.mxu0 0.0
        %2400 = vmatpush1.msra.mxu0 0.0
        %2401 = vmatprep.subr.mxu0 0.0
        %2402 = vmatpush1.msra.mxu0 0.0
        %2403 = vmatprep.subr.mxu0 0.0
        %2404 = vmatpush1.msra.mxu0 0.0
        %2405 = vmatprep.subr.mxu0 0.0
        %2406 = vmatpush1.msra.mxu0 0.0
        %2407 = vmatprep.subr.mxu0 0.0
        %2408 = vmatpush1.msra.mxu0 0.0
        %2409 = vmatprep.subr.mxu0 0.0
        %2410 = vmatpush1.msra.mxu0 0.0
        %2411 = vmatprep.subr.mxu0 0.0
        %2412 = vmatpush1.msra.mxu0 0.0
        %2413 = vmatprep.subr.mxu0 0.0
        %2414 = vmatpush1.msra.mxu0 0.0
        %2415 = vmatprep.subr.mxu0 0.0
        %2416 = vmatpush1.msra.mxu0 0.0
        %2417 = vmatprep.subr.mxu0 0.0
        %2418 = vmatpush1.msra.mxu0 0.0
        %2419 = vmatprep.subr.mxu0 0.0
        %2420 = vmatpush1.msra.mxu0 0.0
        %2421 = vmatprep.subr.mxu0 0.0
        %2422 = vmatpush1.msra.mxu0 0.0
        %2423 = vmatprep.subr.mxu0 0.0
        %2424 = vmatpush1.msra.mxu0 0.0
        %2425 = vmatprep.subr.mxu0 0.0
        %2426 = vmatpush1.msra.mxu0 0.0
        %2427 = vmatprep.mubr.f32.mxu0 0.0
        %2428 = vmatmul.mubr.f32.gmra.mrb[0].mxu0 %v2359
        %v2429 = vpop.f32.mrb[0].mxu0
        %v2430 = vadd.f32 0.0, %v2429
        %v2431 = vpop.f32.mrb[0].mxu0
        %2432 = vdwg.mxu0
        %2433 = vst.msk [vmem:[#allocation3 + $0x2] sm:$0x3] %vm1752, %v2430
        %2434 = vrot.lane.b32.xlu0 %v2270, 120
        %v2435 = vpop.permute.xlu0 %2434
        %2436 = vrot.lane.b32.xlu0 %v2271, 120
        %v2437 = vpop.permute.xlu0 %2436
        %v2438 = vsel %vm1585, %v2435, 0
        %v2440 = vsel %vm1585, %v2437, 0
        %2442 = vmatprep.subr.mxu0 0.0
        %2443 = vmatpush1.xpose.msra.mxu0 %v2440
        %2444 = vmatprep.subr.mxu0 0.0
        %2445 = vmatpush1.xpose.msra.mxu0 0.0
        %2446 = vmatprep.subr.mxu0 0.0
        %2447 = vmatpush1.xpose.msra.mxu0 0.0
        %2448 = vmatprep.subr.mxu0 0.0
        %2449 = vmatpush1.xpose.msra.mxu0 0.0
        %2450 = vmatprep.subr.mxu0 0.0
        %2451 = vmatpush1.xpose.msra.mxu0 0.0
        %2452 = vmatprep.subr.mxu0 0.0
        %2453 = vmatpush1.xpose.msra.mxu0 0.0
        %2454 = vmatprep.subr.mxu0 0.0
        %2455 = vmatpush1.xpose.msra.mxu0 0.0
        %2456 = vmatprep.subr.mxu0 0.0
        %2457 = vmatpush1.xpose.msra.mxu0 0.0
        %2458 = vmatprep.subr.mxu0 0.0
        %2459 = vmatpush1.xpose.msra.mxu0 0.0
        %2460 = vmatprep.subr.mxu0 0.0
        %2461 = vmatpush1.xpose.msra.mxu0 0.0
        %2462 = vmatprep.subr.mxu0 0.0
        %2463 = vmatpush1.xpose.msra.mxu0 0.0
        %2464 = vmatprep.subr.mxu0 0.0
        %2465 = vmatpush1.xpose.msra.mxu0 0.0
        %2466 = vmatprep.subr.mxu0 0.0
        %2467 = vmatpush1.xpose.msra.mxu0 0.0
        %2468 = vmatprep.subr.mxu0 0.0
        %2469 = vmatpush1.xpose.msra.mxu0 0.0
        %2470 = vmatprep.subr.mxu0 0.0
        %2471 = vmatpush1.xpose.msra.mxu0 0.0
        %2472 = vmatprep.subr.mxu0 0.0
        %2473 = vmatpush1.xpose.msra.mxu0 0.0
        %2474 = vmatprep.subr.mxu0 0.0
        %2475 = vmatpush1.xpose.msra.mxu0 0.0
        %2476 = vmatprep.subr.mxu0 0.0
        %2477 = vmatpush1.xpose.msra.mxu0 0.0
        %2478 = vmatprep.subr.mxu0 0.0
        %2479 = vmatpush1.xpose.msra.mxu0 0.0
        %2480 = vmatprep.subr.mxu0 0.0
        %2481 = vmatpush1.xpose.msra.mxu0 0.0
        %2482 = vmatprep.subr.mxu0 0.0
        %2483 = vmatpush1.xpose.msra.mxu0 0.0
        %2484 = vmatprep.subr.mxu0 0.0
        %2485 = vmatpush1.xpose.msra.mxu0 0.0
        %2486 = vmatprep.subr.mxu0 0.0
        %2487 = vmatpush1.xpose.msra.mxu0 0.0
        %2488 = vmatprep.subr.mxu0 0.0
        %2489 = vmatpush1.xpose.msra.mxu0 0.0
        %2490 = vmatprep.subr.mxu0 0.0
        %2491 = vmatpush1.xpose.msra.mxu0 0.0
        %2492 = vmatprep.subr.mxu0 0.0
        %2493 = vmatpush1.xpose.msra.mxu0 0.0
        %2494 = vmatprep.subr.mxu0 0.0
        %2495 = vmatpush1.xpose.msra.mxu0 0.0
        %2496 = vmatprep.subr.mxu0 0.0
        %2497 = vmatpush1.xpose.msra.mxu0 0.0
        %2498 = vmatprep.subr.mxu0 0.0
        %2499 = vmatpush1.xpose.msra.mxu0 0.0
        %2500 = vmatprep.subr.mxu0 0.0
        %2501 = vmatpush1.xpose.msra.mxu0 0.0
        %2502 = vmatprep.subr.mxu0 0.0
        %2503 = vmatpush1.xpose.msra.mxu0 0.0
        %2504 = vmatprep.subr.mxu0 0.0
        %2505 = vmatpush1.xpose.msra.mxu0 0.0
        %2506 = vmatprep.mubr.f32.mxu0 0.0
        %2507 = vmatmul.mubr.f32.gmra.mrb[0].mxu0 %v2438
        %v2508 = vpop.f32.mrb[0].mxu0
        %v2509 = vadd.f32 0.0, %v2508
        %v2510 = vpop.f32.mrb[0].mxu0
        %2511 = vdwg.mxu0
        %v2512 = vsel %vm1662, %v2509, -inf
        %2513 = vmax.xlane.f32.xlu0 %v2512
        %v2514 = vpop.xlane.xlu0 %2513
        %v2515 = vsub.f32 %v2509, %v2514
        %v2516 = vmul.f32 %v2515, 1.442695
        %v2517 = vpow.pop %v2516
        %v2518 = vsel %vm1662, %v2517, 0.0
        %2519 = vadd.xlane.f32.xlu0 %v2518
        %v2520 = vpop.xlane.xlu0 %2519
        %v2521 = vrcp.pop %v2520
        %v2522 = vmul.f32 %v2517, %v2521
        %2523 = vrot.lane.b32.xlu0 %v2357, 120
        %v2524 = vpop.permute.xlu0 %2523
        %v2526 = vsel %vm1674, %v2522, 0
        %v2528 = vsel %vm1678, %v2524, 0
        %2530 = vmatprep.subr.mxu0 0.0
        %2531 = vmatpush1.msra.mxu0 %v2528
        %2532 = vmatprep.subr.mxu0 0.0
        %2533 = vmatpush1.msra.mxu0 0.0
        %2534 = vmatprep.subr.mxu0 0.0
        %2535 = vmatpush1.msra.mxu0 0.0
        %2536 = vmatprep.subr.mxu0 0.0
        %2537 = vmatpush1.msra.mxu0 0.0
        %2538 = vmatprep.subr.mxu0 0.0
        %2539 = vmatpush1.msra.mxu0 0.0
        %2540 = vmatprep.subr.mxu0 0.0
        %2541 = vmatpush1.msra.mxu0 0.0
        %2542 = vmatprep.subr.mxu0 0.0
        %2543 = vmatpush1.msra.mxu0 0.0
        %2544 = vmatprep.subr.mxu0 0.0
        %2545 = vmatpush1.msra.mxu0 0.0
        %2546 = vmatprep.subr.mxu0 0.0
        %2547 = vmatpush1.msra.mxu0 0.0
        %2548 = vmatprep.subr.mxu0 0.0
        %2549 = vmatpush1.msra.mxu0 0.0
        %2550 = vmatprep.subr.mxu0 0.0
        %2551 = vmatpush1.msra.mxu0 0.0
        %2552 = vmatprep.subr.mxu0 0.0
        %2553 = vmatpush1.msra.mxu0 0.0
        %2554 = vmatprep.subr.mxu0 0.0
        %2555 = vmatpush1.msra.mxu0 0.0
        %2556 = vmatprep.subr.mxu0 0.0
        %2557 = vmatpush1.msra.mxu0 0.0
        %2558 = vmatprep.subr.mxu0 0.0
        %2559 = vmatpush1.msra.mxu0 0.0
        %2560 = vmatprep.subr.mxu0 0.0
        %2561 = vmatpush1.msra.mxu0 0.0
        %2562 = vmatprep.subr.mxu0 0.0
        %2563 = vmatpush1.msra.mxu0 0.0
        %2564 = vmatprep.subr.mxu0 0.0
        %2565 = vmatpush1.msra.mxu0 0.0
        %2566 = vmatprep.subr.mxu0 0.0
        %2567 = vmatpush1.msra.mxu0 0.0
        %2568 = vmatprep.subr.mxu0 0.0
        %2569 = vmatpush1.msra.mxu0 0.0
        %2570 = vmatprep.subr.mxu0 0.0
        %2571 = vmatpush1.msra.mxu0 0.0
        %2572 = vmatprep.subr.mxu0 0.0
        %2573 = vmatpush1.msra.mxu0 0.0
        %2574 = vmatprep.subr.mxu0 0.0
        %2575 = vmatpush1.msra.mxu0 0.0
        %2576 = vmatprep.subr.mxu0 0.0
        %2577 = vmatpush1.msra.mxu0 0.0
        %2578 = vmatprep.subr.mxu0 0.0
        %2579 = vmatpush1.msra.mxu0 0.0
        %2580 = vmatprep.subr.mxu0 0.0
        %2581 = vmatpush1.msra.mxu0 0.0
        %2582 = vmatprep.subr.mxu0 0.0
        %2583 = vmatpush1.msra.mxu0 0.0
        %2584 = vmatprep.subr.mxu0 0.0
        %2585 = vmatpush1.msra.mxu0 0.0
        %2586 = vmatprep.subr.mxu0 0.0
        %2587 = vmatpush1.msra.mxu0 0.0
        %2588 = vmatprep.subr.mxu0 0.0
        %2589 = vmatpush1.msra.mxu0 0.0
        %2590 = vmatprep.subr.mxu0 0.0
        %2591 = vmatpush1.msra.mxu0 0.0
        %2592 = vmatprep.subr.mxu0 0.0
        %2593 = vmatpush1.msra.mxu0 0.0
        %2594 = vmatprep.mubr.f32.mxu0 0.0
        %2595 = vmatmul.mubr.f32.gmra.mrb[0].mxu0 %v2526
        %v2596 = vpop.f32.mrb[0].mxu0
        %v2597 = vadd.f32 0.0, %v2596
        %v2598 = vpop.f32.mrb[0].mxu0
        %2599 = vdwg.mxu0
        %2601 = vrot.lane.b32.xlu0 %v2597, 8
        %v2602 = vpop.permute.xlu0 %2601
        %2604 = vst.msk [vmem:[#allocation3 + $0x2] sm:$0x3] %vm1924, %v2602
        %2605 = vrot.lane.b32.xlu0 %v2270, 112
        %v2606 = vpop.permute.xlu0 %2605
        %2607 = vrot.lane.b32.xlu0 %v2271, 112
        %v2608 = vpop.permute.xlu0 %2607
        %v2609 = vsel %vm1585, %v2606, 0
        %v2611 = vsel %vm1585, %v2608, 0
        %2613 = vmatprep.subr.mxu0 0.0
        %2614 = vmatpush1.xpose.msra.mxu0 %v2611
        %2615 = vmatprep.subr.mxu0 0.0
        %2616 = vmatpush1.xpose.msra.mxu0 0.0
        %2617 = vmatprep.subr.mxu0 0.0
        %2618 = vmatpush1.xpose.msra.mxu0 0.0
        %2619 = vmatprep.subr.mxu0 0.0
        %2620 = vmatpush1.xpose.msra.mxu0 0.0
        %2621 = vmatprep.subr.mxu0 0.0
        %2622 = vmatpush1.xpose.msra.mxu0 0.0
        %2623 = vmatprep.subr.mxu0 0.0
        %2624 = vmatpush1.xpose.msra.mxu0 0.0
        %2625 = vmatprep.subr.mxu0 0.0
        %2626 = vmatpush1.xpose.msra.mxu0 0.0
        %2627 = vmatprep.subr.mxu0 0.0
        %2628 = vmatpush1.xpose.msra.mxu0 0.0
        %2629 = vmatprep.subr.mxu0 0.0
        %2630 = vmatpush1.xpose.msra.mxu0 0.0
        %2631 = vmatprep.subr.mxu0 0.0
        %2632 = vmatpush1.xpose.msra.mxu0 0.0
        %2633 = vmatprep.subr.mxu0 0.0
        %2634 = vmatpush1.xpose.msra.mxu0 0.0
        %2635 = vmatprep.subr.mxu0 0.0
        %2636 = vmatpush1.xpose.msra.mxu0 0.0
        %2637 = vmatprep.subr.mxu0 0.0
        %2638 = vmatpush1.xpose.msra.mxu0 0.0
        %2639 = vmatprep.subr.mxu0 0.0
        %2640 = vmatpush1.xpose.msra.mxu0 0.0
        %2641 = vmatprep.subr.mxu0 0.0
        %2642 = vmatpush1.xpose.msra.mxu0 0.0
        %2643 = vmatprep.subr.mxu0 0.0
        %2644 = vmatpush1.xpose.msra.mxu0 0.0
        %2645 = vmatprep.subr.mxu0 0.0
        %2646 = vmatpush1.xpose.msra.mxu0 0.0
        %2647 = vmatprep.subr.mxu0 0.0
        %2648 = vmatpush1.xpose.msra.mxu0 0.0
        %2649 = vmatprep.subr.mxu0 0.0
        %2650 = vmatpush1.xpose.msra.mxu0 0.0
        %2651 = vmatprep.subr.mxu0 0.0
        %2652 = vmatpush1.xpose.msra.mxu0 0.0
        %2653 = vmatprep.subr.mxu0 0.0
        %2654 = vmatpush1.xpose.msra.mxu0 0.0
        %2655 = vmatprep.subr.mxu0 0.0
        %2656 = vmatpush1.xpose.msra.mxu0 0.0
        %2657 = vmatprep.subr.mxu0 0.0
        %2658 = vmatpush1.xpose.msra.mxu0 0.0
        %2659 = vmatprep.subr.mxu0 0.0
        %2660 = vmatpush1.xpose.msra.mxu0 0.0
        %2661 = vmatprep.subr.mxu0 0.0
        %2662 = vmatpush1.xpose.msra.mxu0 0.0
        %2663 = vmatprep.subr.mxu0 0.0
        %2664 = vmatpush1.xpose.msra.mxu0 0.0
        %2665 = vmatprep.subr.mxu0 0.0
        %2666 = vmatpush1.xpose.msra.mxu0 0.0
        %2667 = vmatprep.subr.mxu0 0.0
        %2668 = vmatpush1.xpose.msra.mxu0 0.0
        %2669 = vmatprep.subr.mxu0 0.0
        %2670 = vmatpush1.xpose.msra.mxu0 0.0
        %2671 = vmatprep.subr.mxu0 0.0
        %2672 = vmatpush1.xpose.msra.mxu0 0.0
        %2673 = vmatprep.subr.mxu0 0.0
        %2674 = vmatpush1.xpose.msra.mxu0 0.0
        %2675 = vmatprep.subr.mxu0 0.0
        %2676 = vmatpush1.xpose.msra.mxu0 0.0
        %2677 = vmatprep.mubr.f32.mxu0 0.0
        %2678 = vmatmul.mubr.f32.gmra.mrb[0].mxu0 %v2609
        %v2679 = vpop.f32.mrb[0].mxu0
        %v2680 = vadd.f32 0.0, %v2679
        %v2681 = vpop.f32.mrb[0].mxu0
        %2682 = vdwg.mxu0
        %v2683 = vsel %vm1662, %v2680, -inf
        %2684 = vmax.xlane.f32.xlu0 %v2683
        %v2685 = vpop.xlane.xlu0 %2684
        %v2686 = vsub.f32 %v2680, %v2685
        %v2687 = vmul.f32 %v2686, 1.442695
        %v2688 = vpow.pop %v2687
        %v2689 = vsel %vm1662, %v2688, 0.0
        %2690 = vadd.xlane.f32.xlu0 %v2689
        %v2691 = vpop.xlane.xlu0 %2690
        %v2692 = vrcp.pop %v2691
        %v2693 = vmul.f32 %v2688, %v2692
        %2694 = vrot.lane.b32.xlu0 %v2357, 112
        %v2695 = vpop.permute.xlu0 %2694
        %v2697 = vsel %vm1674, %v2693, 0
        %v2699 = vsel %vm1678, %v2695, 0
        %2701 = vmatprep.subr.mxu0 0.0
        %2702 = vmatpush1.msra.mxu0 %v2699
        %2703 = vmatprep.subr.mxu0 0.0
        %2704 = vmatpush1.msra.mxu0 0.0
        %2705 = vmatprep.subr.mxu0 0.0
        %2706 = vmatpush1.msra.mxu0 0.0
        %2707 = vmatprep.subr.mxu0 0.0
        %2708 = vmatpush1.msra.mxu0 0.0
        %2709 = vmatprep.subr.mxu0 0.0
        %2710 = vmatpush1.msra.mxu0 0.0
        %2711 = vmatprep.subr.mxu0 0.0
        %2712 = vmatpush1.msra.mxu0 0.0
        %2713 = vmatprep.subr.mxu0 0.0
        %2714 = vmatpush1.msra.mxu0 0.0
        %2715 = vmatprep.subr.mxu0 0.0
        %2716 = vmatpush1.msra.mxu0 0.0
        %2717 = vmatprep.subr.mxu0 0.0
        %2718 = vmatpush1.msra.mxu0 0.0
        %2719 = vmatprep.subr.mxu0 0.0
        %2720 = vmatpush1.msra.mxu0 0.0
        %2721 = vmatprep.subr.mxu0 0.0
        %2722 = vmatpush1.msra.mxu0 0.0
        %2723 = vmatprep.subr.mxu0 0.0
        %2724 = vmatpush1.msra.mxu0 0.0
        %2725 = vmatprep.subr.mxu0 0.0
        %2726 = vmatpush1.msra.mxu0 0.0
        %2727 = vmatprep.subr.mxu0 0.0
        %2728 = vmatpush1.msra.mxu0 0.0
        %2729 = vmatprep.subr.mxu0 0.0
        %2730 = vmatpush1.msra.mxu0 0.0
        %2731 = vmatprep.subr.mxu0 0.0
        %2732 = vmatpush1.msra.mxu0 0.0
        %2733 = vmatprep.subr.mxu0 0.0
        %2734 = vmatpush1.msra.mxu0 0.0
        %2735 = vmatprep.subr.mxu0 0.0
        %2736 = vmatpush1.msra.mxu0 0.0
        %2737 = vmatprep.subr.mxu0 0.0
        %2738 = vmatpush1.msra.mxu0 0.0
        %2739 = vmatprep.subr.mxu0 0.0
        %2740 = vmatpush1.msra.mxu0 0.0
        %2741 = vmatprep.subr.mxu0 0.0
        %2742 = vmatpush1.msra.mxu0 0.0
        %2743 = vmatprep.subr.mxu0 0.0
        %2744 = vmatpush1.msra.mxu0 0.0
        %2745 = vmatprep.subr.mxu0 0.0
        %2746 = vmatpush1.msra.mxu0 0.0
        %2747 = vmatprep.subr.mxu0 0.0
        %2748 = vmatpush1.msra.mxu0 0.0
        %2749 = vmatprep.subr.mxu0 0.0
        %2750 = vmatpush1.msra.mxu0 0.0
        %2751 = vmatprep.subr.mxu0 0.0
        %2752 = vmatpush1.msra.mxu0 0.0
        %2753 = vmatprep.subr.mxu0 0.0
        %2754 = vmatpush1.msra.mxu0 0.0
        %2755 = vmatprep.subr.mxu0 0.0
        %2756 = vmatpush1.msra.mxu0 0.0
        %2757 = vmatprep.subr.mxu0 0.0
        %2758 = vmatpush1.msra.mxu0 0.0
        %2759 = vmatprep.subr.mxu0 0.0
        %2760 = vmatpush1.msra.mxu0 0.0
        %2761 = vmatprep.subr.mxu0 0.0
        %2762 = vmatpush1.msra.mxu0 0.0
        %2763 = vmatprep.subr.mxu0 0.0
        %2764 = vmatpush1.msra.mxu0 0.0
        %2765 = vmatprep.mubr.f32.mxu0 0.0
        %2766 = vmatmul.mubr.f32.gmra.mrb[0].mxu0 %v2697
        %v2767 = vpop.f32.mrb[0].mxu0
        %v2768 = vadd.f32 0.0, %v2767
        %v2769 = vpop.f32.mrb[0].mxu0
        %2770 = vdwg.mxu0
        %2772 = vrot.lane.b32.xlu0 %v2768, 16
        %v2773 = vpop.permute.xlu0 %2772
        %2775 = vst.msk [vmem:[#allocation3 + $0x2] sm:$0x3] %vm2096, %v2773
        %2776 = vrot.lane.b32.xlu0 %v2270, 104
        %v2777 = vpop.permute.xlu0 %2776
        %2778 = vrot.lane.b32.xlu0 %v2271, 104
        %v2779 = vpop.permute.xlu0 %2778
        %v2780 = vsel %vm1585, %v2777, 0
        %v2782 = vsel %vm1585, %v2779, 0
        %2784 = vmatprep.subr.mxu0 0.0
        %2785 = vmatpush1.xpose.msra.mxu0 %v2782
        %2786 = vmatprep.subr.mxu0 0.0
        %2787 = vmatpush1.xpose.msra.mxu0 0.0
        %2788 = vmatprep.subr.mxu0 0.0
        %2789 = vmatpush1.xpose.msra.mxu0 0.0
        %2790 = vmatprep.subr.mxu0 0.0
        %2791 = vmatpush1.xpose.msra.mxu0 0.0
        %2792 = vmatprep.subr.mxu0 0.0
        %2793 = vmatpush1.xpose.msra.mxu0 0.0
        %2794 = vmatprep.subr.mxu0 0.0
        %2795 = vmatpush1.xpose.msra.mxu0 0.0
        %2796 = vmatprep.subr.mxu0 0.0
        %2797 = vmatpush1.xpose.msra.mxu0 0.0
        %2798 = vmatprep.subr.mxu0 0.0
        %2799 = vmatpush1.xpose.msra.mxu0 0.0
        %2800 = vmatprep.subr.mxu0 0.0
        %2801 = vmatpush1.xpose.msra.mxu0 0.0
        %2802 = vmatprep.subr.mxu0 0.0
        %2803 = vmatpush1.xpose.msra.mxu0 0.0
        %2804 = vmatprep.subr.mxu0 0.0
        %2805 = vmatpush1.xpose.msra.mxu0 0.0
        %2806 = vmatprep.subr.mxu0 0.0
        %2807 = vmatpush1.xpose.msra.mxu0 0.0
        %2808 = vmatprep.subr.mxu0 0.0
        %2809 = vmatpush1.xpose.msra.mxu0 0.0
        %2810 = vmatprep.subr.mxu0 0.0
        %2811 = vmatpush1.xpose.msra.mxu0 0.0
        %2812 = vmatprep.subr.mxu0 0.0
        %2813 = vmatpush1.xpose.msra.mxu0 0.0
        %2814 = vmatprep.subr.mxu0 0.0
        %2815 = vmatpush1.xpose.msra.mxu0 0.0
        %2816 = vmatprep.subr.mxu0 0.0
        %2817 = vmatpush1.xpose.msra.mxu0 0.0
        %2818 = vmatprep.subr.mxu0 0.0
        %2819 = vmatpush1.xpose.msra.mxu0 0.0
        %2820 = vmatprep.subr.mxu0 0.0
        %2821 = vmatpush1.xpose.msra.mxu0 0.0
        %2822 = vmatprep.subr.mxu0 0.0
        %2823 = vmatpush1.xpose.msra.mxu0 0.0
        %2824 = vmatprep.subr.mxu0 0.0
        %2825 = vmatpush1.xpose.msra.mxu0 0.0
        %2826 = vmatprep.subr.mxu0 0.0
        %2827 = vmatpush1.xpose.msra.mxu0 0.0
        %2828 = vmatprep.subr.mxu0 0.0
        %2829 = vmatpush1.xpose.msra.mxu0 0.0
        %2830 = vmatprep.subr.mxu0 0.0
        %2831 = vmatpush1.xpose.msra.mxu0 0.0
        %2832 = vmatprep.subr.mxu0 0.0
        %2833 = vmatpush1.xpose.msra.mxu0 0.0
        %2834 = vmatprep.subr.mxu0 0.0
        %2835 = vmatpush1.xpose.msra.mxu0 0.0
        %2836 = vmatprep.subr.mxu0 0.0
        %2837 = vmatpush1.xpose.msra.mxu0 0.0
        %2838 = vmatprep.subr.mxu0 0.0
        %2839 = vmatpush1.xpose.msra.mxu0 0.0
        %2840 = vmatprep.subr.mxu0 0.0
        %2841 = vmatpush1.xpose.msra.mxu0 0.0
        %2842 = vmatprep.subr.mxu0 0.0
        %2843 = vmatpush1.xpose.msra.mxu0 0.0
        %2844 = vmatprep.subr.mxu0 0.0
        %2845 = vmatpush1.xpose.msra.mxu0 0.0
        %2846 = vmatprep.subr.mxu0 0.0
        %2847 = vmatpush1.xpose.msra.mxu0 0.0
        %2848 = vmatprep.mubr.f32.mxu0 0.0
        %2849 = vmatmul.mubr.f32.gmra.mrb[0].mxu0 %v2780
        %v2850 = vpop.f32.mrb[0].mxu0
        %v2851 = vadd.f32 0.0, %v2850
        %v2852 = vpop.f32.mrb[0].mxu0
        %2853 = vdwg.mxu0
        %v2854 = vsel %vm1662, %v2851, -inf
        %2855 = vmax.xlane.f32.xlu0 %v2854
        %v2856 = vpop.xlane.xlu0 %2855
        %v2857 = vsub.f32 %v2851, %v2856
        %v2858 = vmul.f32 %v2857, 1.442695
        %v2859 = vpow.pop %v2858
        %v2860 = vsel %vm1662, %v2859, 0.0
        %2861 = vadd.xlane.f32.xlu0 %v2860
        %v2862 = vpop.xlane.xlu0 %2861
        %v2863 = vrcp.pop %v2862
        %v2864 = vmul.f32 %v2859, %v2863
        %2865 = vrot.lane.b32.xlu0 %v2357, 104
        %v2866 = vpop.permute.xlu0 %2865
        %v2868 = vsel %vm1674, %v2864, 0
        %v2870 = vsel %vm1678, %v2866, 0
        %2872 = vmatprep.subr.mxu0 0.0
        %2873 = vmatpush1.msra.mxu0 %v2870
        %2874 = vmatprep.subr.mxu0 0.0
        %2875 = vmatpush1.msra.mxu0 0.0
        %2876 = vmatprep.subr.mxu0 0.0
        %2877 = vmatpush1.msra.mxu0 0.0
        %2878 = vmatprep.subr.mxu0 0.0
        %2879 = vmatpush1.msra.mxu0 0.0
        %2880 = vmatprep.subr.mxu0 0.0
        %2881 = vmatpush1.msra.mxu0 0.0
        %2882 = vmatprep.subr.mxu0 0.0
        %2883 = vmatpush1.msra.mxu0 0.0
        %2884 = vmatprep.subr.mxu0 0.0
        %2885 = vmatpush1.msra.mxu0 0.0
        %2886 = vmatprep.subr.mxu0 0.0
        %2887 = vmatpush1.msra.mxu0 0.0
        %2888 = vmatprep.subr.mxu0 0.0
        %2889 = vmatpush1.msra.mxu0 0.0
        %2890 = vmatprep.subr.mxu0 0.0
        %2891 = vmatpush1.msra.mxu0 0.0
        %2892 = vmatprep.subr.mxu0 0.0
        %2893 = vmatpush1.msra.mxu0 0.0
        %2894 = vmatprep.subr.mxu0 0.0
        %2895 = vmatpush1.msra.mxu0 0.0
        %2896 = vmatprep.subr.mxu0 0.0
        %2897 = vmatpush1.msra.mxu0 0.0
        %2898 = vmatprep.subr.mxu0 0.0
        %2899 = vmatpush1.msra.mxu0 0.0
        %2900 = vmatprep.subr.mxu0 0.0
        %2901 = vmatpush1.msra.mxu0 0.0
        %2902 = vmatprep.subr.mxu0 0.0
        %2903 = vmatpush1.msra.mxu0 0.0
        %2904 = vmatprep.subr.mxu0 0.0
        %2905 = vmatpush1.msra.mxu0 0.0
        %2906 = vmatprep.subr.mxu0 0.0
        %2907 = vmatpush1.msra.mxu0 0.0
        %2908 = vmatprep.subr.mxu0 0.0
        %2909 = vmatpush1.msra.mxu0 0.0
        %2910 = vmatprep.subr.mxu0 0.0
        %2911 = vmatpush1.msra.mxu0 0.0
        %2912 = vmatprep.subr.mxu0 0.0
        %2913 = vmatpush1.msra.mxu0 0.0
        %2914 = vmatprep.subr.mxu0 0.0
        %2915 = vmatpush1.msra.mxu0 0.0
        %2916 = vmatprep.subr.mxu0 0.0
        %2917 = vmatpush1.msra.mxu0 0.0
        %2918 = vmatprep.subr.mxu0 0.0
        %2919 = vmatpush1.msra.mxu0 0.0
        %2920 = vmatprep.subr.mxu0 0.0
        %2921 = vmatpush1.msra.mxu0 0.0
        %2922 = vmatprep.subr.mxu0 0.0
        %2923 = vmatpush1.msra.mxu0 0.0
        %2924 = vmatprep.subr.mxu0 0.0
        %2925 = vmatpush1.msra.mxu0 0.0
        %2926 = vmatprep.subr.mxu0 0.0
        %2927 = vmatpush1.msra.mxu0 0.0
        %2928 = vmatprep.subr.mxu0 0.0
        %2929 = vmatpush1.msra.mxu0 0.0
        %2930 = vmatprep.subr.mxu0 0.0
        %2931 = vmatpush1.msra.mxu0 0.0
        %2932 = vmatprep.subr.mxu0 0.0
        %2933 = vmatpush1.msra.mxu0 0.0
        %2934 = vmatprep.subr.mxu0 0.0
        %2935 = vmatpush1.msra.mxu0 0.0
        %2936 = vmatprep.mubr.f32.mxu0 0.0
        %2937 = vmatmul.mubr.f32.gmra.mrb[0].mxu0 %v2868
        %v2938 = vpop.f32.mrb[0].mxu0
        %v2939 = vadd.f32 0.0, %v2938
        %v2940 = vpop.f32.mrb[0].mxu0
        %2941 = vdwg.mxu0
        %2943 = vrot.lane.b32.xlu0 %v2939, 24
        %v2944 = vpop.permute.xlu0 %2943
        %2946 = vst.msk [vmem:[#allocation3 + $0x2] sm:$0x3] %vm2268, %v2944
        %v2947 = vrot.slane %v1455, 4
        %v2948 = vrot.slane %v1515, 4
        %v2949 = vsel %vm1585, %v2947, 0
        %v2951 = vsel %vm1585, %v2948, 0
        %2953 = vmatprep.subr.mxu0 0.0
        %2954 = vmatpush1.xpose.msra.mxu0 %v2951
        %2955 = vmatprep.subr.mxu0 0.0
        %2956 = vmatpush1.xpose.msra.mxu0 0.0
        %2957 = vmatprep.subr.mxu0 0.0
        %2958 = vmatpush1.xpose.msra.mxu0 0.0
        %2959 = vmatprep.subr.mxu0 0.0
        %2960 = vmatpush1.xpose.msra.mxu0 0.0
        %2961 = vmatprep.subr.mxu0 0.0
        %2962 = vmatpush1.xpose.msra.mxu0 0.0
        %2963 = vmatprep.subr.mxu0 0.0
        %2964 = vmatpush1.xpose.msra.mxu0 0.0
        %2965 = vmatprep.subr.mxu0 0.0
        %2966 = vmatpush1.xpose.msra.mxu0 0.0
        %2967 = vmatprep.subr.mxu0 0.0
        %2968 = vmatpush1.xpose.msra.mxu0 0.0
        %2969 = vmatprep.subr.mxu0 0.0
        %2970 = vmatpush1.xpose.msra.mxu0 0.0
        %2971 = vmatprep.subr.mxu0 0.0
        %2972 = vmatpush1.xpose.msra.mxu0 0.0
        %2973 = vmatprep.subr.mxu0 0.0
        %2974 = vmatpush1.xpose.msra.mxu0 0.0
        %2975 = vmatprep.subr.mxu0 0.0
        %2976 = vmatpush1.xpose.msra.mxu0 0.0
        %2977 = vmatprep.subr.mxu0 0.0
        %2978 = vmatpush1.xpose.msra.mxu0 0.0
        %2979 = vmatprep.subr.mxu0 0.0
        %2980 = vmatpush1.xpose.msra.mxu0 0.0
        %2981 = vmatprep.subr.mxu0 0.0
        %2982 = vmatpush1.xpose.msra.mxu0 0.0
        %2983 = vmatprep.subr.mxu0 0.0
        %2984 = vmatpush1.xpose.msra.mxu0 0.0
        %2985 = vmatprep.subr.mxu0 0.0
        %2986 = vmatpush1.xpose.msra.mxu0 0.0
        %2987 = vmatprep.subr.mxu0 0.0
        %2988 = vmatpush1.xpose.msra.mxu0 0.0
        %2989 = vmatprep.subr.mxu0 0.0
        %2990 = vmatpush1.xpose.msra.mxu0 0.0
        %2991 = vmatprep.subr.mxu0 0.0
        %2992 = vmatpush1.xpose.msra.mxu0 0.0
        %2993 = vmatprep.subr.mxu0 0.0
        %2994 = vmatpush1.xpose.msra.mxu0 0.0
        %2995 = vmatprep.subr.mxu0 0.0
        %2996 = vmatpush1.xpose.msra.mxu0 0.0
        %2997 = vmatprep.subr.mxu0 0.0
        %2998 = vmatpush1.xpose.msra.mxu0 0.0
        %2999 = vmatprep.subr.mxu0 0.0
        %3000 = vmatpush1.xpose.msra.mxu0 0.0
        %3001 = vmatprep.subr.mxu0 0.0
        %3002 = vmatpush1.xpose.msra.mxu0 0.0
        %3003 = vmatprep.subr.mxu0 0.0
        %3004 = vmatpush1.xpose.msra.mxu0 0.0
        %3005 = vmatprep.subr.mxu0 0.0
        %3006 = vmatpush1.xpose.msra.mxu0 0.0
        %3007 = vmatprep.subr.mxu0 0.0
        %3008 = vmatpush1.xpose.msra.mxu0 0.0
        %3009 = vmatprep.subr.mxu0 0.0
        %3010 = vmatpush1.xpose.msra.mxu0 0.0
        %3011 = vmatprep.subr.mxu0 0.0
        %3012 = vmatpush1.xpose.msra.mxu0 0.0
        %3013 = vmatprep.subr.mxu0 0.0
        %3014 = vmatpush1.xpose.msra.mxu0 0.0
        %3015 = vmatprep.subr.mxu0 0.0
        %3016 = vmatpush1.xpose.msra.mxu0 0.0
        %3017 = vmatprep.mubr.f32.mxu0 0.0
        %3018 = vmatmul.mubr.f32.gmra.mrb[0].mxu0 %v2949
        %v3019 = vpop.f32.mrb[0].mxu0
        %v3020 = vadd.f32 0.0, %v3019
        %v3021 = vpop.f32.mrb[0].mxu0
        %3022 = vdwg.mxu0
        %v3023 = vsel %vm1662, %v3020, -inf
        %3024 = vmax.xlane.f32.xlu0 %v3023
        %v3025 = vpop.xlane.xlu0 %3024
        %v3026 = vsub.f32 %v3020, %v3025
        %v3027 = vmul.f32 %v3026, 1.442695
        %v3028 = vpow.pop %v3027
        %v3029 = vsel %vm1662, %v3028, 0.0
        %3030 = vadd.xlane.f32.xlu0 %v3029
        %v3031 = vpop.xlane.xlu0 %3030
        %v3032 = vrcp.pop %v3031
        %v3033 = vmul.f32 %v3028, %v3032
        %v3034 = vrot.slane %v1579, 4
        %v3036 = vsel %vm1674, %v3033, 0
        %v3038 = vsel %vm1678, %v3034, 0
        %3040 = vmatprep.subr.mxu0 0.0
        %3041 = vmatpush1.msra.mxu0 %v3038
        %3042 = vmatprep.subr.mxu0 0.0
        %3043 = vmatpush1.msra.mxu0 0.0
        %3044 = vmatprep.subr.mxu0 0.0
        %3045 = vmatpush1.msra.mxu0 0.0
        %3046 = vmatprep.subr.mxu0 0.0
        %3047 = vmatpush1.msra.mxu0 0.0
        %3048 = vmatprep.subr.mxu0 0.0
        %3049 = vmatpush1.msra.mxu0 0.0
        %3050 = vmatprep.subr.mxu0 0.0
        %3051 = vmatpush1.msra.mxu0 0.0
        %3052 = vmatprep.subr.mxu0 0.0
        %3053 = vmatpush1.msra.mxu0 0.0
        %3054 = vmatprep.subr.mxu0 0.0
        %3055 = vmatpush1.msra.mxu0 0.0
        %3056 = vmatprep.subr.mxu0 0.0
        %3057 = vmatpush1.msra.mxu0 0.0
        %3058 = vmatprep.subr.mxu0 0.0
        %3059 = vmatpush1.msra.mxu0 0.0
        %3060 = vmatprep.subr.mxu0 0.0
        %3061 = vmatpush1.msra.mxu0 0.0
        %3062 = vmatprep.subr.mxu0 0.0
        %3063 = vmatpush1.msra.mxu0 0.0
        %3064 = vmatprep.subr.mxu0 0.0
        %3065 = vmatpush1.msra.mxu0 0.0
        %3066 = vmatprep.subr.mxu0 0.0
        %3067 = vmatpush1.msra.mxu0 0.0
        %3068 = vmatprep.subr.mxu0 0.0
        %3069 = vmatpush1.msra.mxu0 0.0
        %3070 = vmatprep.subr.mxu0 0.0
        %3071 = vmatpush1.msra.mxu0 0.0
        %3072 = vmatprep.subr.mxu0 0.0
        %3073 = vmatpush1.msra.mxu0 0.0
        %3074 = vmatprep.subr.mxu0 0.0
        %3075 = vmatpush1.msra.mxu0 0.0
        %3076 = vmatprep.subr.mxu0 0.0
        %3077 = vmatpush1.msra.mxu0 0.0
        %3078 = vmatprep.subr.mxu0 0.0
        %3079 = vmatpush1.msra.mxu0 0.0
        %3080 = vmatprep.subr.mxu0 0.0
        %3081 = vmatpush1.msra.mxu0 0.0
        %3082 = vmatprep.subr.mxu0 0.0
        %3083 = vmatpush1.msra.mxu0 0.0
        %3084 = vmatprep.subr.mxu0 0.0
        %3085 = vmatpush1.msra.mxu0 0.0
        %3086 = vmatprep.subr.mxu0 0.0
        %3087 = vmatpush1.msra.mxu0 0.0
        %3088 = vmatprep.subr.mxu0 0.0
        %3089 = vmatpush1.msra.mxu0 0.0
        %3090 = vmatprep.subr.mxu0 0.0
        %3091 = vmatpush1.msra.mxu0 0.0
        %3092 = vmatprep.subr.mxu0 0.0
        %3093 = vmatpush1.msra.mxu0 0.0
        %3094 = vmatprep.subr.mxu0 0.0
        %3095 = vmatpush1.msra.mxu0 0.0
        %3096 = vmatprep.subr.mxu0 0.0
        %3097 = vmatpush1.msra.mxu0 0.0
        %3098 = vmatprep.subr.mxu0 0.0
        %3099 = vmatpush1.msra.mxu0 0.0
        %3100 = vmatprep.subr.mxu0 0.0
        %3101 = vmatpush1.msra.mxu0 0.0
        %3102 = vmatprep.subr.mxu0 0.0
        %3103 = vmatpush1.msra.mxu0 0.0
        %3104 = vmatprep.mubr.f32.mxu0 0.0
        %3105 = vmatmul.mubr.f32.gmra.mrb[0].mxu0 %v3036
        %v3106 = vpop.f32.mrb[0].mxu0
        %v3107 = vadd.f32 0.0, %v3106
        %v3108 = vpop.f32.mrb[0].mxu0
        %3109 = vdwg.mxu0
        %3110 = vst.msk [vmem:[#allocation3 + $0x4] sm:$0x3] %vm1752, %v3107
        %3111 = vrot.lane.b32.xlu0 %v2947, 120
        %v3112 = vpop.permute.xlu0 %3111
        %3113 = vrot.lane.b32.xlu0 %v2948, 120
        %v3114 = vpop.permute.xlu0 %3113
        %v3115 = vsel %vm1585, %v3112, 0
        %v3117 = vsel %vm1585, %v3114, 0
        %3119 = vmatprep.subr.mxu0 0.0
        %3120 = vmatpush1.xpose.msra.mxu0 %v3117
        %3121 = vmatprep.subr.mxu0 0.0
        %3122 = vmatpush1.xpose.msra.mxu0 0.0
        %3123 = vmatprep.subr.mxu0 0.0
        %3124 = vmatpush1.xpose.msra.mxu0 0.0
        %3125 = vmatprep.subr.mxu0 0.0
        %3126 = vmatpush1.xpose.msra.mxu0 0.0
        %3127 = vmatprep.subr.mxu0 0.0
        %3128 = vmatpush1.xpose.msra.mxu0 0.0
        %3129 = vmatprep.subr.mxu0 0.0
        %3130 = vmatpush1.xpose.msra.mxu0 0.0
        %3131 = vmatprep.subr.mxu0 0.0
        %3132 = vmatpush1.xpose.msra.mxu0 0.0
        %3133 = vmatprep.subr.mxu0 0.0
        %3134 = vmatpush1.xpose.msra.mxu0 0.0
        %3135 = vmatprep.subr.mxu0 0.0
        %3136 = vmatpush1.xpose.msra.mxu0 0.0
        %3137 = vmatprep.subr.mxu0 0.0
        %3138 = vmatpush1.xpose.msra.mxu0 0.0
        %3139 = vmatprep.subr.mxu0 0.0
        %3140 = vmatpush1.xpose.msra.mxu0 0.0
        %3141 = vmatprep.subr.mxu0 0.0
        %3142 = vmatpush1.xpose.msra.mxu0 0.0
        %3143 = vmatprep.subr.mxu0 0.0
        %3144 = vmatpush1.xpose.msra.mxu0 0.0
        %3145 = vmatprep.subr.mxu0 0.0
        %3146 = vmatpush1.xpose.msra.mxu0 0.0
        %3147 = vmatprep.subr.mxu0 0.0
        %3148 = vmatpush1.xpose.msra.mxu0 0.0
        %3149 = vmatprep.subr.mxu0 0.0
        %3150 = vmatpush1.xpose.msra.mxu0 0.0
        %3151 = vmatprep.subr.mxu0 0.0
        %3152 = vmatpush1.xpose.msra.mxu0 0.0
        %3153 = vmatprep.subr.mxu0 0.0
        %3154 = vmatpush1.xpose.msra.mxu0 0.0
        %3155 = vmatprep.subr.mxu0 0.0
        %3156 = vmatpush1.xpose.msra.mxu0 0.0
        %3157 = vmatprep.subr.mxu0 0.0
        %3158 = vmatpush1.xpose.msra.mxu0 0.0
        %3159 = vmatprep.subr.mxu0 0.0
        %3160 = vmatpush1.xpose.msra.mxu0 0.0
        %3161 = vmatprep.subr.mxu0 0.0
        %3162 = vmatpush1.xpose.msra.mxu0 0.0
        %3163 = vmatprep.subr.mxu0 0.0
        %3164 = vmatpush1.xpose.msra.mxu0 0.0
        %3165 = vmatprep.subr.mxu0 0.0
        %3166 = vmatpush1.xpose.msra.mxu0 0.0
        %3167 = vmatprep.subr.mxu0 0.0
        %3168 = vmatpush1.xpose.msra.mxu0 0.0
        %3169 = vmatprep.subr.mxu0 0.0
        %3170 = vmatpush1.xpose.msra.mxu0 0.0
        %3171 = vmatprep.subr.mxu0 0.0
        %3172 = vmatpush1.xpose.msra.mxu0 0.0
        %3173 = vmatprep.subr.mxu0 0.0
        %3174 = vmatpush1.xpose.msra.mxu0 0.0
        %3175 = vmatprep.subr.mxu0 0.0
        %3176 = vmatpush1.xpose.msra.mxu0 0.0
        %3177 = vmatprep.subr.mxu0 0.0
        %3178 = vmatpush1.xpose.msra.mxu0 0.0
        %3179 = vmatprep.subr.mxu0 0.0
        %3180 = vmatpush1.xpose.msra.mxu0 0.0
        %3181 = vmatprep.subr.mxu0 0.0
        %3182 = vmatpush1.xpose.msra.mxu0 0.0
        %3183 = vmatprep.mubr.f32.mxu0 0.0
        %3184 = vmatmul.mubr.f32.gmra.mrb[0].mxu0 %v3115
        %v3185 = vpop.f32.mrb[0].mxu0
        %v3186 = vadd.f32 0.0, %v3185
        %v3187 = vpop.f32.mrb[0].mxu0
        %3188 = vdwg.mxu0
        %v3189 = vsel %vm1662, %v3186, -inf
        %3190 = vmax.xlane.f32.xlu0 %v3189
        %v3191 = vpop.xlane.xlu0 %3190
        %v3192 = vsub.f32 %v3186, %v3191
        %v3193 = vmul.f32 %v3192, 1.442695
        %v3194 = vpow.pop %v3193
        %v3195 = vsel %vm1662, %v3194, 0.0
        %3196 = vadd.xlane.f32.xlu0 %v3195
        %v3197 = vpop.xlane.xlu0 %3196
        %v3198 = vrcp.pop %v3197
        %v3199 = vmul.f32 %v3194, %v3198
        %3200 = vrot.lane.b32.xlu0 %v3034, 120
        %v3201 = vpop.permute.xlu0 %3200
        %v3203 = vsel %vm1674, %v3199, 0
        %v3205 = vsel %vm1678, %v3201, 0
        %3207 = vmatprep.subr.mxu0 0.0
        %3208 = vmatpush1.msra.mxu0 %v3205
        %3209 = vmatprep.subr.mxu0 0.0
        %3210 = vmatpush1.msra.mxu0 0.0
        %3211 = vmatprep.subr.mxu0 0.0
        %3212 = vmatpush1.msra.mxu0 0.0
        %3213 = vmatprep.subr.mxu0 0.0
        %3214 = vmatpush1.msra.mxu0 0.0
        %3215 = vmatprep.subr.mxu0 0.0
        %3216 = vmatpush1.msra.mxu0 0.0
        %3217 = vmatprep.subr.mxu0 0.0
        %3218 = vmatpush1.msra.mxu0 0.0
        %3219 = vmatprep.subr.mxu0 0.0
        %3220 = vmatpush1.msra.mxu0 0.0
        %3221 = vmatprep.subr.mxu0 0.0
        %3222 = vmatpush1.msra.mxu0 0.0
        %3223 = vmatprep.subr.mxu0 0.0
        %3224 = vmatpush1.msra.mxu0 0.0
        %3225 = vmatprep.subr.mxu0 0.0
        %3226 = vmatpush1.msra.mxu0 0.0
        %3227 = vmatprep.subr.mxu0 0.0
        %3228 = vmatpush1.msra.mxu0 0.0
        %3229 = vmatprep.subr.mxu0 0.0
        %3230 = vmatpush1.msra.mxu0 0.0
        %3231 = vmatprep.subr.mxu0 0.0
        %3232 = vmatpush1.msra.mxu0 0.0
        %3233 = vmatprep.subr.mxu0 0.0
        %3234 = vmatpush1.msra.mxu0 0.0
        %3235 = vmatprep.subr.mxu0 0.0
        %3236 = vmatpush1.msra.mxu0 0.0
        %3237 = vmatprep.subr.mxu0 0.0
        %3238 = vmatpush1.msra.mxu0 0.0
        %3239 = vmatprep.subr.mxu0 0.0
        %3240 = vmatpush1.msra.mxu0 0.0
        %3241 = vmatprep.subr.mxu0 0.0
        %3242 = vmatpush1.msra.mxu0 0.0
        %3243 = vmatprep.subr.mxu0 0.0
        %3244 = vmatpush1.msra.mxu0 0.0
        %3245 = vmatprep.subr.mxu0 0.0
        %3246 = vmatpush1.msra.mxu0 0.0
        %3247 = vmatprep.subr.mxu0 0.0
        %3248 = vmatpush1.msra.mxu0 0.0
        %3249 = vmatprep.subr.mxu0 0.0
        %3250 = vmatpush1.msra.mxu0 0.0
        %3251 = vmatprep.subr.mxu0 0.0
        %3252 = vmatpush1.msra.mxu0 0.0
        %3253 = vmatprep.subr.mxu0 0.0
        %3254 = vmatpush1.msra.mxu0 0.0
        %3255 = vmatprep.subr.mxu0 0.0
        %3256 = vmatpush1.msra.mxu0 0.0
        %3257 = vmatprep.subr.mxu0 0.0
        %3258 = vmatpush1.msra.mxu0 0.0
        %3259 = vmatprep.subr.mxu0 0.0
        %3260 = vmatpush1.msra.mxu0 0.0
        %3261 = vmatprep.subr.mxu0 0.0
        %3262 = vmatpush1.msra.mxu0 0.0
        %3263 = vmatprep.subr.mxu0 0.0
        %3264 = vmatpush1.msra.mxu0 0.0
        %3265 = vmatprep.subr.mxu0 0.0
        %3266 = vmatpush1.msra.mxu0 0.0
        %3267 = vmatprep.subr.mxu0 0.0
        %3268 = vmatpush1.msra.mxu0 0.0
        %3269 = vmatprep.subr.mxu0 0.0
        %3270 = vmatpush1.msra.mxu0 0.0
        %3271 = vmatprep.mubr.f32.mxu0 0.0
        %3272 = vmatmul.mubr.f32.gmra.mrb[0].mxu0 %v3203
        %v3273 = vpop.f32.mrb[0].mxu0
        %v3274 = vadd.f32 0.0, %v3273
        %v3275 = vpop.f32.mrb[0].mxu0
        %3276 = vdwg.mxu0
        %3278 = vrot.lane.b32.xlu0 %v3274, 8
        %v3279 = vpop.permute.xlu0 %3278
        %3281 = vst.msk [vmem:[#allocation3 + $0x4] sm:$0x3] %vm1924, %v3279
        %3282 = vrot.lane.b32.xlu0 %v2947, 112
        %v3283 = vpop.permute.xlu0 %3282
        %3284 = vrot.lane.b32.xlu0 %v2948, 112
        %v3285 = vpop.permute.xlu0 %3284
        %v3286 = vsel %vm1585, %v3283, 0
        %v3288 = vsel %vm1585, %v3285, 0
        %3290 = vmatprep.subr.mxu0 0.0
        %3291 = vmatpush1.xpose.msra.mxu0 %v3288
        %3292 = vmatprep.subr.mxu0 0.0
        %3293 = vmatpush1.xpose.msra.mxu0 0.0
        %3294 = vmatprep.subr.mxu0 0.0
        %3295 = vmatpush1.xpose.msra.mxu0 0.0
        %3296 = vmatprep.subr.mxu0 0.0
        %3297 = vmatpush1.xpose.msra.mxu0 0.0
        %3298 = vmatprep.subr.mxu0 0.0
        %3299 = vmatpush1.xpose.msra.mxu0 0.0
        %3300 = vmatprep.subr.mxu0 0.0
        %3301 = vmatpush1.xpose.msra.mxu0 0.0
        %3302 = vmatprep.subr.mxu0 0.0
        %3303 = vmatpush1.xpose.msra.mxu0 0.0
        %3304 = vmatprep.subr.mxu0 0.0
        %3305 = vmatpush1.xpose.msra.mxu0 0.0
        %3306 = vmatprep.subr.mxu0 0.0
        %3307 = vmatpush1.xpose.msra.mxu0 0.0
        %3308 = vmatprep.subr.mxu0 0.0
        %3309 = vmatpush1.xpose.msra.mxu0 0.0
        %3310 = vmatprep.subr.mxu0 0.0
        %3311 = vmatpush1.xpose.msra.mxu0 0.0
        %3312 = vmatprep.subr.mxu0 0.0
        %3313 = vmatpush1.xpose.msra.mxu0 0.0
        %3314 = vmatprep.subr.mxu0 0.0
        %3315 = vmatpush1.xpose.msra.mxu0 0.0
        %3316 = vmatprep.subr.mxu0 0.0
        %3317 = vmatpush1.xpose.msra.mxu0 0.0
        %3318 = vmatprep.subr.mxu0 0.0
        %3319 = vmatpush1.xpose.msra.mxu0 0.0
        %3320 = vmatprep.subr.mxu0 0.0
        %3321 = vmatpush1.xpose.msra.mxu0 0.0
        %3322 = vmatprep.subr.mxu0 0.0
        %3323 = vmatpush1.xpose.msra.mxu0 0.0
        %3324 = vmatprep.subr.mxu0 0.0
        %3325 = vmatpush1.xpose.msra.mxu0 0.0
        %3326 = vmatprep.subr.mxu0 0.0
        %3327 = vmatpush1.xpose.msra.mxu0 0.0
        %3328 = vmatprep.subr.mxu0 0.0
        %3329 = vmatpush1.xpose.msra.mxu0 0.0
        %3330 = vmatprep.subr.mxu0 0.0
        %3331 = vmatpush1.xpose.msra.mxu0 0.0
        %3332 = vmatprep.subr.mxu0 0.0
        %3333 = vmatpush1.xpose.msra.mxu0 0.0
        %3334 = vmatprep.subr.mxu0 0.0
        %3335 = vmatpush1.xpose.msra.mxu0 0.0
        %3336 = vmatprep.subr.mxu0 0.0
        %3337 = vmatpush1.xpose.msra.mxu0 0.0
        %3338 = vmatprep.subr.mxu0 0.0
        %3339 = vmatpush1.xpose.msra.mxu0 0.0
        %3340 = vmatprep.subr.mxu0 0.0
        %3341 = vmatpush1.xpose.msra.mxu0 0.0
        %3342 = vmatprep.subr.mxu0 0.0
        %3343 = vmatpush1.xpose.msra.mxu0 0.0
        %3344 = vmatprep.subr.mxu0 0.0
        %3345 = vmatpush1.xpose.msra.mxu0 0.0
        %3346 = vmatprep.subr.mxu0 0.0
        %3347 = vmatpush1.xpose.msra.mxu0 0.0
        %3348 = vmatprep.subr.mxu0 0.0
        %3349 = vmatpush1.xpose.msra.mxu0 0.0
        %3350 = vmatprep.subr.mxu0 0.0
        %3351 = vmatpush1.xpose.msra.mxu0 0.0
        %3352 = vmatprep.subr.mxu0 0.0
        %3353 = vmatpush1.xpose.msra.mxu0 0.0
        %3354 = vmatprep.mubr.f32.mxu0 0.0
        %3355 = vmatmul.mubr.f32.gmra.mrb[0].mxu0 %v3286
        %v3356 = vpop.f32.mrb[0].mxu0
        %v3357 = vadd.f32 0.0, %v3356
        %v3358 = vpop.f32.mrb[0].mxu0
        %3359 = vdwg.mxu0
        %v3360 = vsel %vm1662, %v3357, -inf
        %3361 = vmax.xlane.f32.xlu0 %v3360
        %v3362 = vpop.xlane.xlu0 %3361
        %v3363 = vsub.f32 %v3357, %v3362
        %v3364 = vmul.f32 %v3363, 1.442695
        %v3365 = vpow.pop %v3364
        %v3366 = vsel %vm1662, %v3365, 0.0
        %3367 = vadd.xlane.f32.xlu0 %v3366
        %v3368 = vpop.xlane.xlu0 %3367
        %v3369 = vrcp.pop %v3368
        %v3370 = vmul.f32 %v3365, %v3369
        %3371 = vrot.lane.b32.xlu0 %v3034, 112
        %v3372 = vpop.permute.xlu0 %3371
        %v3374 = vsel %vm1674, %v3370, 0
        %v3376 = vsel %vm1678, %v3372, 0
        %3378 = vmatprep.subr.mxu0 0.0
        %3379 = vmatpush1.msra.mxu0 %v3376
        %3380 = vmatprep.subr.mxu0 0.0
        %3381 = vmatpush1.msra.mxu0 0.0
        %3382 = vmatprep.subr.mxu0 0.0
        %3383 = vmatpush1.msra.mxu0 0.0
        %3384 = vmatprep.subr.mxu0 0.0
        %3385 = vmatpush1.msra.mxu0 0.0
        %3386 = vmatprep.subr.mxu0 0.0
        %3387 = vmatpush1.msra.mxu0 0.0
        %3388 = vmatprep.subr.mxu0 0.0
        %3389 = vmatpush1.msra.mxu0 0.0
        %3390 = vmatprep.subr.mxu0 0.0
        %3391 = vmatpush1.msra.mxu0 0.0
        %3392 = vmatprep.subr.mxu0 0.0
        %3393 = vmatpush1.msra.mxu0 0.0
        %3394 = vmatprep.subr.mxu0 0.0
        %3395 = vmatpush1.msra.mxu0 0.0
        %3396 = vmatprep.subr.mxu0 0.0
        %3397 = vmatpush1.msra.mxu0 0.0
        %3398 = vmatprep.subr.mxu0 0.0
        %3399 = vmatpush1.msra.mxu0 0.0
        %3400 = vmatprep.subr.mxu0 0.0
        %3401 = vmatpush1.msra.mxu0 0.0
        %3402 = vmatprep.subr.mxu0 0.0
        %3403 = vmatpush1.msra.mxu0 0.0
        %3404 = vmatprep.subr.mxu0 0.0
        %3405 = vmatpush1.msra.mxu0 0.0
        %3406 = vmatprep.subr.mxu0 0.0
        %3407 = vmatpush1.msra.mxu0 0.0
        %3408 = vmatprep.subr.mxu0 0.0
        %3409 = vmatpush1.msra.mxu0 0.0
        %3410 = vmatprep.subr.mxu0 0.0
        %3411 = vmatpush1.msra.mxu0 0.0
        %3412 = vmatprep.subr.mxu0 0.0
        %3413 = vmatpush1.msra.mxu0 0.0
        %3414 = vmatprep.subr.mxu0 0.0
        %3415 = vmatpush1.msra.mxu0 0.0
        %3416 = vmatprep.subr.mxu0 0.0
        %3417 = vmatpush1.msra.mxu0 0.0
        %3418 = vmatprep.subr.mxu0 0.0
        %3419 = vmatpush1.msra.mxu0 0.0
        %3420 = vmatprep.subr.mxu0 0.0
        %3421 = vmatpush1.msra.mxu0 0.0
        %3422 = vmatprep.subr.mxu0 0.0
        %3423 = vmatpush1.msra.mxu0 0.0
        %3424 = vmatprep.subr.mxu0 0.0
        %3425 = vmatpush1.msra.mxu0 0.0
        %3426 = vmatprep.subr.mxu0 0.0
        %3427 = vmatpush1.msra.mxu0 0.0
        %3428 = vmatprep.subr.mxu0 0.0
        %3429 = vmatpush1.msra.mxu0 0.0
        %3430 = vmatprep.subr.mxu0 0.0
        %3431 = vmatpush1.msra.mxu0 0.0
        %3432 = vmatprep.subr.mxu0 0.0
        %3433 = vmatpush1.msra.mxu0 0.0
        %3434 = vmatprep.subr.mxu0 0.0
        %3435 = vmatpush1.msra.mxu0 0.0
        %3436 = vmatprep.subr.mxu0 0.0
        %3437 = vmatpush1.msra.mxu0 0.0
        %3438 = vmatprep.subr.mxu0 0.0
        %3439 = vmatpush1.msra.mxu0 0.0
        %3440 = vmatprep.subr.mxu0 0.0
        %3441 = vmatpush1.msra.mxu0 0.0
        %3442 = vmatprep.mubr.f32.mxu0 0.0
        %3443 = vmatmul.mubr.f32.gmra.mrb[0].mxu0 %v3374
        %v3444 = vpop.f32.mrb[0].mxu0
        %v3445 = vadd.f32 0.0, %v3444
        %v3446 = vpop.f32.mrb[0].mxu0
        %3447 = vdwg.mxu0
        %3449 = vrot.lane.b32.xlu0 %v3445, 16
        %v3450 = vpop.permute.xlu0 %3449
        %3452 = vst.msk [vmem:[#allocation3 + $0x4] sm:$0x3] %vm2096, %v3450
        %3453 = vrot.lane.b32.xlu0 %v2947, 104
        %v3454 = vpop.permute.xlu0 %3453
        %3455 = vrot.lane.b32.xlu0 %v2948, 104
        %v3456 = vpop.permute.xlu0 %3455
        %v3457 = vsel %vm1585, %v3454, 0
        %v3459 = vsel %vm1585, %v3456, 0
        %3461 = vmatprep.subr.mxu0 0.0
        %3462 = vmatpush1.xpose.msra.mxu0 %v3459
        %3463 = vmatprep.subr.mxu0 0.0
        %3464 = vmatpush1.xpose.msra.mxu0 0.0
        %3465 = vmatprep.subr.mxu0 0.0
        %3466 = vmatpush1.xpose.msra.mxu0 0.0
        %3467 = vmatprep.subr.mxu0 0.0
        %3468 = vmatpush1.xpose.msra.mxu0 0.0
        %3469 = vmatprep.subr.mxu0 0.0
        %3470 = vmatpush1.xpose.msra.mxu0 0.0
        %3471 = vmatprep.subr.mxu0 0.0
        %3472 = vmatpush1.xpose.msra.mxu0 0.0
        %3473 = vmatprep.subr.mxu0 0.0
        %3474 = vmatpush1.xpose.msra.mxu0 0.0
        %3475 = vmatprep.subr.mxu0 0.0
        %3476 = vmatpush1.xpose.msra.mxu0 0.0
        %3477 = vmatprep.subr.mxu0 0.0
        %3478 = vmatpush1.xpose.msra.mxu0 0.0
        %3479 = vmatprep.subr.mxu0 0.0
        %3480 = vmatpush1.xpose.msra.mxu0 0.0
        %3481 = vmatprep.subr.mxu0 0.0
        %3482 = vmatpush1.xpose.msra.mxu0 0.0
        %3483 = vmatprep.subr.mxu0 0.0
        %3484 = vmatpush1.xpose.msra.mxu0 0.0
        %3485 = vmatprep.subr.mxu0 0.0
        %3486 = vmatpush1.xpose.msra.mxu0 0.0
        %3487 = vmatprep.subr.mxu0 0.0
        %3488 = vmatpush1.xpose.msra.mxu0 0.0
        %3489 = vmatprep.subr.mxu0 0.0
        %3490 = vmatpush1.xpose.msra.mxu0 0.0
        %3491 = vmatprep.subr.mxu0 0.0
        %3492 = vmatpush1.xpose.msra.mxu0 0.0
        %3493 = vmatprep.subr.mxu0 0.0
        %3494 = vmatpush1.xpose.msra.mxu0 0.0
        %3495 = vmatprep.subr.mxu0 0.0
        %3496 = vmatpush1.xpose.msra.mxu0 0.0
        %3497 = vmatprep.subr.mxu0 0.0
        %3498 = vmatpush1.xpose.msra.mxu0 0.0
        %3499 = vmatprep.subr.mxu0 0.0
        %3500 = vmatpush1.xpose.msra.mxu0 0.0
        %3501 = vmatprep.subr.mxu0 0.0
        %3502 = vmatpush1.xpose.msra.mxu0 0.0
        %3503 = vmatprep.subr.mxu0 0.0
        %3504 = vmatpush1.xpose.msra.mxu0 0.0
        %3505 = vmatprep.subr.mxu0 0.0
        %3506 = vmatpush1.xpose.msra.mxu0 0.0
        %3507 = vmatprep.subr.mxu0 0.0
        %3508 = vmatpush1.xpose.msra.mxu0 0.0
        %3509 = vmatprep.subr.mxu0 0.0
        %3510 = vmatpush1.xpose.msra.mxu0 0.0
        %3511 = vmatprep.subr.mxu0 0.0
        %3512 = vmatpush1.xpose.msra.mxu0 0.0
        %3513 = vmatprep.subr.mxu0 0.0
        %3514 = vmatpush1.xpose.msra.mxu0 0.0
        %3515 = vmatprep.subr.mxu0 0.0
        %3516 = vmatpush1.xpose.msra.mxu0 0.0
        %3517 = vmatprep.subr.mxu0 0.0
        %3518 = vmatpush1.xpose.msra.mxu0 0.0
        %3519 = vmatprep.subr.mxu0 0.0
        %3520 = vmatpush1.xpose.msra.mxu0 0.0
        %3521 = vmatprep.subr.mxu0 0.0
        %3522 = vmatpush1.xpose.msra.mxu0 0.0
        %3523 = vmatprep.subr.mxu0 0.0
        %3524 = vmatpush1.xpose.msra.mxu0 0.0
        %3525 = vmatprep.mubr.f32.mxu0 0.0
        %3526 = vmatmul.mubr.f32.gmra.mrb[0].mxu0 %v3457
        %v3527 = vpop.f32.mrb[0].mxu0
        %v3528 = vadd.f32 0.0, %v3527
        %v3529 = vpop.f32.mrb[0].mxu0
        %3530 = vdwg.mxu0
        %v3531 = vsel %vm1662, %v3528, -inf
        %3532 = vmax.xlane.f32.xlu0 %v3531
        %v3533 = vpop.xlane.xlu0 %3532
        %v3534 = vsub.f32 %v3528, %v3533
        %v3535 = vmul.f32 %v3534, 1.442695
        %v3536 = vpow.pop %v3535
        %v3537 = vsel %vm1662, %v3536, 0.0
        %3538 = vadd.xlane.f32.xlu0 %v3537
        %v3539 = vpop.xlane.xlu0 %3538
        %v3540 = vrcp.pop %v3539
        %v3541 = vmul.f32 %v3536, %v3540
        %3542 = vrot.lane.b32.xlu0 %v3034, 104
        %v3543 = vpop.permute.xlu0 %3542
        %v3545 = vsel %vm1674, %v3541, 0
        %v3547 = vsel %vm1678, %v3543, 0
        %3549 = vmatprep.subr.mxu0 0.0
        %3550 = vmatpush1.msra.mxu0 %v3547
        %3551 = vmatprep.subr.mxu0 0.0
        %3552 = vmatpush1.msra.mxu0 0.0
        %3553 = vmatprep.subr.mxu0 0.0
        %3554 = vmatpush1.msra.mxu0 0.0
        %3555 = vmatprep.subr.mxu0 0.0
        %3556 = vmatpush1.msra.mxu0 0.0
        %3557 = vmatprep.subr.mxu0 0.0
        %3558 = vmatpush1.msra.mxu0 0.0
        %3559 = vmatprep.subr.mxu0 0.0
        %3560 = vmatpush1.msra.mxu0 0.0
        %3561 = vmatprep.subr.mxu0 0.0
        %3562 = vmatpush1.msra.mxu0 0.0
        %3563 = vmatprep.subr.mxu0 0.0
        %3564 = vmatpush1.msra.mxu0 0.0
        %3565 = vmatprep.subr.mxu0 0.0
        %3566 = vmatpush1.msra.mxu0 0.0
        %3567 = vmatprep.subr.mxu0 0.0
        %3568 = vmatpush1.msra.mxu0 0.0
        %3569 = vmatprep.subr.mxu0 0.0
        %3570 = vmatpush1.msra.mxu0 0.0
        %3571 = vmatprep.subr.mxu0 0.0
        %3572 = vmatpush1.msra.mxu0 0.0
        %3573 = vmatprep.subr.mxu0 0.0
        %3574 = vmatpush1.msra.mxu0 0.0
        %3575 = vmatprep.subr.mxu0 0.0
        %3576 = vmatpush1.msra.mxu0 0.0
        %3577 = vmatprep.subr.mxu0 0.0
        %3578 = vmatpush1.msra.mxu0 0.0
        %3579 = vmatprep.subr.mxu0 0.0
        %3580 = vmatpush1.msra.mxu0 0.0
        %3581 = vmatprep.subr.mxu0 0.0
        %3582 = vmatpush1.msra.mxu0 0.0
        %3583 = vmatprep.subr.mxu0 0.0
        %3584 = vmatpush1.msra.mxu0 0.0
        %3585 = vmatprep.subr.mxu0 0.0
        %3586 = vmatpush1.msra.mxu0 0.0
        %3587 = vmatprep.subr.mxu0 0.0
        %3588 = vmatpush1.msra.mxu0 0.0
        %3589 = vmatprep.subr.mxu0 0.0
        %3590 = vmatpush1.msra.mxu0 0.0
        %3591 = vmatprep.subr.mxu0 0.0
        %3592 = vmatpush1.msra.mxu0 0.0
        %3593 = vmatprep.subr.mxu0 0.0
        %3594 = vmatpush1.msra.mxu0 0.0
        %3595 = vmatprep.subr.mxu0 0.0
        %3596 = vmatpush1.msra.mxu0 0.0
        %3597 = vmatprep.subr.mxu0 0.0
        %3598 = vmatpush1.msra.mxu0 0.0
        %3599 = vmatprep.subr.mxu0 0.0
        %3600 = vmatpush1.msra.mxu0 0.0
        %3601 = vmatprep.subr.mxu0 0.0
        %3602 = vmatpush1.msra.mxu0 0.0
        %3603 = vmatprep.subr.mxu0 0.0
        %3604 = vmatpush1.msra.mxu0 0.0
        %3605 = vmatprep.subr.mxu0 0.0
        %3606 = vmatpush1.msra.mxu0 0.0
        %3607 = vmatprep.subr.mxu0 0.0
        %3608 = vmatpush1.msra.mxu0 0.0
        %3609 = vmatprep.subr.mxu0 0.0
        %3610 = vmatpush1.msra.mxu0 0.0
        %3611 = vmatprep.subr.mxu0 0.0
        %3612 = vmatpush1.msra.mxu0 0.0
        %3613 = vmatprep.mubr.f32.mxu0 0.0
        %3614 = vmatmul.mubr.f32.gmra.mrb[0].mxu0 %v3545
        %v3615 = vpop.f32.mrb[0].mxu0
        %v3616 = vadd.f32 0.0, %v3615
        %v3617 = vpop.f32.mrb[0].mxu0
        %3618 = vdwg.mxu0
        %3620 = vrot.lane.b32.xlu0 %v3616, 24
        %v3621 = vpop.permute.xlu0 %3620
        %3623 = vst.msk [vmem:[#allocation3 + $0x4] sm:$0x3] %vm2268, %v3621
        %v3624 = vrot.slane %v1455, 6
        %v3625 = vrot.slane %v1515, 6
        %v3626 = vsel %vm1585, %v3624, 0
        %v3628 = vsel %vm1585, %v3625, 0
        %3630 = vmatprep.subr.mxu0 0.0
        %3631 = vmatpush1.xpose.msra.mxu0 %v3628
        %3632 = vmatprep.subr.mxu0 0.0
        %3633 = vmatpush1.xpose.msra.mxu0 0.0
        %3634 = vmatprep.subr.mxu0 0.0
        %3635 = vmatpush1.xpose.msra.mxu0 0.0
        %3636 = vmatprep.subr.mxu0 0.0
        %3637 = vmatpush1.xpose.msra.mxu0 0.0
        %3638 = vmatprep.subr.mxu0 0.0
        %3639 = vmatpush1.xpose.msra.mxu0 0.0
        %3640 = vmatprep.subr.mxu0 0.0
        %3641 = vmatpush1.xpose.msra.mxu0 0.0
        %3642 = vmatprep.subr.mxu0 0.0
        %3643 = vmatpush1.xpose.msra.mxu0 0.0
        %3644 = vmatprep.subr.mxu0 0.0
        %3645 = vmatpush1.xpose.msra.mxu0 0.0
        %3646 = vmatprep.subr.mxu0 0.0
        %3647 = vmatpush1.xpose.msra.mxu0 0.0
        %3648 = vmatprep.subr.mxu0 0.0
        %3649 = vmatpush1.xpose.msra.mxu0 0.0
        %3650 = vmatprep.subr.mxu0 0.0
        %3651 = vmatpush1.xpose.msra.mxu0 0.0
        %3652 = vmatprep.subr.mxu0 0.0
        %3653 = vmatpush1.xpose.msra.mxu0 0.0
        %3654 = vmatprep.subr.mxu0 0.0
        %3655 = vmatpush1.xpose.msra.mxu0 0.0
        %3656 = vmatprep.subr.mxu0 0.0
        %3657 = vmatpush1.xpose.msra.mxu0 0.0
        %3658 = vmatprep.subr.mxu0 0.0
        %3659 = vmatpush1.xpose.msra.mxu0 0.0
        %3660 = vmatprep.subr.mxu0 0.0
        %3661 = vmatpush1.xpose.msra.mxu0 0.0
        %3662 = vmatprep.subr.mxu0 0.0
        %3663 = vmatpush1.xpose.msra.mxu0 0.0
        %3664 = vmatprep.subr.mxu0 0.0
        %3665 = vmatpush1.xpose.msra.mxu0 0.0
        %3666 = vmatprep.subr.mxu0 0.0
        %3667 = vmatpush1.xpose.msra.mxu0 0.0
        %3668 = vmatprep.subr.mxu0 0.0
        %3669 = vmatpush1.xpose.msra.mxu0 0.0
        %3670 = vmatprep.subr.mxu0 0.0
        %3671 = vmatpush1.xpose.msra.mxu0 0.0
        %3672 = vmatprep.subr.mxu0 0.0
        %3673 = vmatpush1.xpose.msra.mxu0 0.0
        %3674 = vmatprep.subr.mxu0 0.0
        %3675 = vmatpush1.xpose.msra.mxu0 0.0
        %3676 = vmatprep.subr.mxu0 0.0
        %3677 = vmatpush1.xpose.msra.mxu0 0.0
        %3678 = vmatprep.subr.mxu0 0.0
        %3679 = vmatpush1.xpose.msra.mxu0 0.0
        %3680 = vmatprep.subr.mxu0 0.0
        %3681 = vmatpush1.xpose.msra.mxu0 0.0
        %3682 = vmatprep.subr.mxu0 0.0
        %3683 = vmatpush1.xpose.msra.mxu0 0.0
        %3684 = vmatprep.subr.mxu0 0.0
        %3685 = vmatpush1.xpose.msra.mxu0 0.0
        %3686 = vmatprep.subr.mxu0 0.0
        %3687 = vmatpush1.xpose.msra.mxu0 0.0
        %3688 = vmatprep.subr.mxu0 0.0
        %3689 = vmatpush1.xpose.msra.mxu0 0.0
        %3690 = vmatprep.subr.mxu0 0.0
        %3691 = vmatpush1.xpose.msra.mxu0 0.0
        %3692 = vmatprep.subr.mxu0 0.0
        %3693 = vmatpush1.xpose.msra.mxu0 0.0
        %3694 = vmatprep.mubr.f32.mxu0 0.0
        %3695 = vmatmul.mubr.f32.gmra.mrb[0].mxu0 %v3626
        %v3696 = vpop.f32.mrb[0].mxu0
        %v3697 = vadd.f32 0.0, %v3696
        %v3698 = vpop.f32.mrb[0].mxu0
        %3699 = vdwg.mxu0
        %v3700 = vsel %vm1662, %v3697, -inf
        %3701 = vmax.xlane.f32.xlu0 %v3700
        %v3702 = vpop.xlane.xlu0 %3701
        %v3703 = vsub.f32 %v3697, %v3702
        %v3704 = vmul.f32 %v3703, 1.442695
        %v3705 = vpow.pop %v3704
        %v3706 = vsel %vm1662, %v3705, 0.0
        %3707 = vadd.xlane.f32.xlu0 %v3706
        %v3708 = vpop.xlane.xlu0 %3707
        %v3709 = vrcp.pop %v3708
        %v3710 = vmul.f32 %v3705, %v3709
        %v3711 = vrot.slane %v1579, 6
        %v3713 = vsel %vm1674, %v3710, 0
        %v3715 = vsel %vm1678, %v3711, 0
        %3717 = vmatprep.subr.mxu0 0.0
        %3718 = vmatpush1.msra.mxu0 %v3715
        %3719 = vmatprep.subr.mxu0 0.0
        %3720 = vmatpush1.msra.mxu0 0.0
        %3721 = vmatprep.subr.mxu0 0.0
        %3722 = vmatpush1.msra.mxu0 0.0
        %3723 = vmatprep.subr.mxu0 0.0
        %3724 = vmatpush1.msra.mxu0 0.0
        %3725 = vmatprep.subr.mxu0 0.0
        %3726 = vmatpush1.msra.mxu0 0.0
        %3727 = vmatprep.subr.mxu0 0.0
        %3728 = vmatpush1.msra.mxu0 0.0
        %3729 = vmatprep.subr.mxu0 0.0
        %3730 = vmatpush1.msra.mxu0 0.0
        %3731 = vmatprep.subr.mxu0 0.0
        %3732 = vmatpush1.msra.mxu0 0.0
        %3733 = vmatprep.subr.mxu0 0.0
        %3734 = vmatpush1.msra.mxu0 0.0
        %3735 = vmatprep.subr.mxu0 0.0
        %3736 = vmatpush1.msra.mxu0 0.0
        %3737 = vmatprep.subr.mxu0 0.0
        %3738 = vmatpush1.msra.mxu0 0.0
        %3739 = vmatprep.subr.mxu0 0.0
        %3740 = vmatpush1.msra.mxu0 0.0
        %3741 = vmatprep.subr.mxu0 0.0
        %3742 = vmatpush1.msra.mxu0 0.0
        %3743 = vmatprep.subr.mxu0 0.0
        %3744 = vmatpush1.msra.mxu0 0.0
        %3745 = vmatprep.subr.mxu0 0.0
        %3746 = vmatpush1.msra.mxu0 0.0
        %3747 = vmatprep.subr.mxu0 0.0
        %3748 = vmatpush1.msra.mxu0 0.0
        %3749 = vmatprep.subr.mxu0 0.0
        %3750 = vmatpush1.msra.mxu0 0.0
        %3751 = vmatprep.subr.mxu0 0.0
        %3752 = vmatpush1.msra.mxu0 0.0
        %3753 = vmatprep.subr.mxu0 0.0
        %3754 = vmatpush1.msra.mxu0 0.0
        %3755 = vmatprep.subr.mxu0 0.0
        %3756 = vmatpush1.msra.mxu0 0.0
        %3757 = vmatprep.subr.mxu0 0.0
        %3758 = vmatpush1.msra.mxu0 0.0
        %3759 = vmatprep.subr.mxu0 0.0
        %3760 = vmatpush1.msra.mxu0 0.0
        %3761 = vmatprep.subr.mxu0 0.0
        %3762 = vmatpush1.msra.mxu0 0.0
        %3763 = vmatprep.subr.mxu0 0.0
        %3764 = vmatpush1.msra.mxu0 0.0
        %3765 = vmatprep.subr.mxu0 0.0
        %3766 = vmatpush1.msra.mxu0 0.0
        %3767 = vmatprep.subr.mxu0 0.0
        %3768 = vmatpush1.msra.mxu0 0.0
        %3769 = vmatprep.subr.mxu0 0.0
        %3770 = vmatpush1.msra.mxu0 0.0
        %3771 = vmatprep.subr.mxu0 0.0
        %3772 = vmatpush1.msra.mxu0 0.0
        %3773 = vmatprep.subr.mxu0 0.0
        %3774 = vmatpush1.msra.mxu0 0.0
        %3775 = vmatprep.subr.mxu0 0.0
        %3776 = vmatpush1.msra.mxu0 0.0
        %3777 = vmatprep.subr.mxu0 0.0
        %3778 = vmatpush1.msra.mxu0 0.0
        %3779 = vmatprep.subr.mxu0 0.0
        %3780 = vmatpush1.msra.mxu0 0.0
        %3781 = vmatprep.mubr.f32.mxu0 0.0
        %3782 = vmatmul.mubr.f32.gmra.mrb[0].mxu0 %v3713
        %v3783 = vpop.f32.mrb[0].mxu0
        %v3784 = vadd.f32 0.0, %v3783
        %v3785 = vpop.f32.mrb[0].mxu0
        %3786 = vdwg.mxu0
        %3787 = vst.msk [vmem:[#allocation3 + $0x6] sm:$0x3] %vm1752, %v3784
        %3788 = vrot.lane.b32.xlu0 %v3624, 120
        %v3789 = vpop.permute.xlu0 %3788
        %3790 = vrot.lane.b32.xlu0 %v3625, 120
        %v3791 = vpop.permute.xlu0 %3790
        %v3792 = vsel %vm1585, %v3789, 0
        %v3794 = vsel %vm1585, %v3791, 0
        %3796 = vmatprep.subr.mxu0 0.0
        %3797 = vmatpush1.xpose.msra.mxu0 %v3794
        %3798 = vmatprep.subr.mxu0 0.0
        %3799 = vmatpush1.xpose.msra.mxu0 0.0
        %3800 = vmatprep.subr.mxu0 0.0
        %3801 = vmatpush1.xpose.msra.mxu0 0.0
        %3802 = vmatprep.subr.mxu0 0.0
        %3803 = vmatpush1.xpose.msra.mxu0 0.0
        %3804 = vmatprep.subr.mxu0 0.0
        %3805 = vmatpush1.xpose.msra.mxu0 0.0
        %3806 = vmatprep.subr.mxu0 0.0
        %3807 = vmatpush1.xpose.msra.mxu0 0.0
        %3808 = vmatprep.subr.mxu0 0.0
        %3809 = vmatpush1.xpose.msra.mxu0 0.0
        %3810 = vmatprep.subr.mxu0 0.0
        %3811 = vmatpush1.xpose.msra.mxu0 0.0
        %3812 = vmatprep.subr.mxu0 0.0
        %3813 = vmatpush1.xpose.msra.mxu0 0.0
        %3814 = vmatprep.subr.mxu0 0.0
        %3815 = vmatpush1.xpose.msra.mxu0 0.0
        %3816 = vmatprep.subr.mxu0 0.0
        %3817 = vmatpush1.xpose.msra.mxu0 0.0
        %3818 = vmatprep.subr.mxu0 0.0
        %3819 = vmatpush1.xpose.msra.mxu0 0.0
        %3820 = vmatprep.subr.mxu0 0.0
        %3821 = vmatpush1.xpose.msra.mxu0 0.0
        %3822 = vmatprep.subr.mxu0 0.0
        %3823 = vmatpush1.xpose.msra.mxu0 0.0
        %3824 = vmatprep.subr.mxu0 0.0
        %3825 = vmatpush1.xpose.msra.mxu0 0.0
        %3826 = vmatprep.subr.mxu0 0.0
        %3827 = vmatpush1.xpose.msra.mxu0 0.0
        %3828 = vmatprep.subr.mxu0 0.0
        %3829 = vmatpush1.xpose.msra.mxu0 0.0
        %3830 = vmatprep.subr.mxu0 0.0
        %3831 = vmatpush1.xpose.msra.mxu0 0.0
        %3832 = vmatprep.subr.mxu0 0.0
        %3833 = vmatpush1.xpose.msra.mxu0 0.0
        %3834 = vmatprep.subr.mxu0 0.0
        %3835 = vmatpush1.xpose.msra.mxu0 0.0
        %3836 = vmatprep.subr.mxu0 0.0
        %3837 = vmatpush1.xpose.msra.mxu0 0.0
        %3838 = vmatprep.subr.mxu0 0.0
        %3839 = vmatpush1.xpose.msra.mxu0 0.0
        %3840 = vmatprep.subr.mxu0 0.0
        %3841 = vmatpush1.xpose.msra.mxu0 0.0
        %3842 = vmatprep.subr.mxu0 0.0
        %3843 = vmatpush1.xpose.msra.mxu0 0.0
        %3844 = vmatprep.subr.mxu0 0.0
        %3845 = vmatpush1.xpose.msra.mxu0 0.0
        %3846 = vmatprep.subr.mxu0 0.0
        %3847 = vmatpush1.xpose.msra.mxu0 0.0
        %3848 = vmatprep.subr.mxu0 0.0
        %3849 = vmatpush1.xpose.msra.mxu0 0.0
        %3850 = vmatprep.subr.mxu0 0.0
        %3851 = vmatpush1.xpose.msra.mxu0 0.0
        %3852 = vmatprep.subr.mxu0 0.0
        %3853 = vmatpush1.xpose.msra.mxu0 0.0
        %3854 = vmatprep.subr.mxu0 0.0
        %3855 = vmatpush1.xpose.msra.mxu0 0.0
        %3856 = vmatprep.subr.mxu0 0.0
        %3857 = vmatpush1.xpose.msra.mxu0 0.0
        %3858 = vmatprep.subr.mxu0 0.0
        %3859 = vmatpush1.xpose.msra.mxu0 0.0
        %3860 = vmatprep.mubr.f32.mxu0 0.0
        %3861 = vmatmul.mubr.f32.gmra.mrb[0].mxu0 %v3792
        %v3862 = vpop.f32.mrb[0].mxu0
        %v3863 = vadd.f32 0.0, %v3862
        %v3864 = vpop.f32.mrb[0].mxu0
        %3865 = vdwg.mxu0
        %v3866 = vsel %vm1662, %v3863, -inf
        %3867 = vmax.xlane.f32.xlu0 %v3866
        %v3868 = vpop.xlane.xlu0 %3867
        %v3869 = vsub.f32 %v3863, %v3868
        %v3870 = vmul.f32 %v3869, 1.442695
        %v3871 = vpow.pop %v3870
        %v3872 = vsel %vm1662, %v3871, 0.0
        %3873 = vadd.xlane.f32.xlu0 %v3872
        %v3874 = vpop.xlane.xlu0 %3873
        %v3875 = vrcp.pop %v3874
        %v3876 = vmul.f32 %v3871, %v3875
        %3877 = vrot.lane.b32.xlu0 %v3711, 120
        %v3878 = vpop.permute.xlu0 %3877
        %v3880 = vsel %vm1674, %v3876, 0
        %v3882 = vsel %vm1678, %v3878, 0
        %3884 = vmatprep.subr.mxu0 0.0
        %3885 = vmatpush1.msra.mxu0 %v3882
        %3886 = vmatprep.subr.mxu0 0.0
        %3887 = vmatpush1.msra.mxu0 0.0
        %3888 = vmatprep.subr.mxu0 0.0
        %3889 = vmatpush1.msra.mxu0 0.0
        %3890 = vmatprep.subr.mxu0 0.0
        %3891 = vmatpush1.msra.mxu0 0.0
        %3892 = vmatprep.subr.mxu0 0.0
        %3893 = vmatpush1.msra.mxu0 0.0
        %3894 = vmatprep.subr.mxu0 0.0
        %3895 = vmatpush1.msra.mxu0 0.0
        %3896 = vmatprep.subr.mxu0 0.0
        %3897 = vmatpush1.msra.mxu0 0.0
        %3898 = vmatprep.subr.mxu0 0.0
        %3899 = vmatpush1.msra.mxu0 0.0
        %3900 = vmatprep.subr.mxu0 0.0
        %3901 = vmatpush1.msra.mxu0 0.0
        %3902 = vmatprep.subr.mxu0 0.0
        %3903 = vmatpush1.msra.mxu0 0.0
        %3904 = vmatprep.subr.mxu0 0.0
        %3905 = vmatpush1.msra.mxu0 0.0
        %3906 = vmatprep.subr.mxu0 0.0
        %3907 = vmatpush1.msra.mxu0 0.0
        %3908 = vmatprep.subr.mxu0 0.0
        %3909 = vmatpush1.msra.mxu0 0.0
        %3910 = vmatprep.subr.mxu0 0.0
        %3911 = vmatpush1.msra.mxu0 0.0
        %3912 = vmatprep.subr.mxu0 0.0
        %3913 = vmatpush1.msra.mxu0 0.0
        %3914 = vmatprep.subr.mxu0 0.0
        %3915 = vmatpush1.msra.mxu0 0.0
        %3916 = vmatprep.subr.mxu0 0.0
        %3917 = vmatpush1.msra.mxu0 0.0
        %3918 = vmatprep.subr.mxu0 0.0
        %3919 = vmatpush1.msra.mxu0 0.0
        %3920 = vmatprep.subr.mxu0 0.0
        %3921 = vmatpush1.msra.mxu0 0.0
        %3922 = vmatprep.subr.mxu0 0.0
        %3923 = vmatpush1.msra.mxu0 0.0
        %3924 = vmatprep.subr.mxu0 0.0
        %3925 = vmatpush1.msra.mxu0 0.0
        %3926 = vmatprep.subr.mxu0 0.0
        %3927 = vmatpush1.msra.mxu0 0.0
        %3928 = vmatprep.subr.mxu0 0.0
        %3929 = vmatpush1.msra.mxu0 0.0
        %3930 = vmatprep.subr.mxu0 0.0
        %3931 = vmatpush1.msra.mxu0 0.0
        %3932 = vmatprep.subr.mxu0 0.0
        %3933 = vmatpush1.msra.mxu0 0.0
        %3934 = vmatprep.subr.mxu0 0.0
        %3935 = vmatpush1.msra.mxu0 0.0
        %3936 = vmatprep.subr.mxu0 0.0
        %3937 = vmatpush1.msra.mxu0 0.0
        %3938 = vmatprep.subr.mxu0 0.0
        %3939 = vmatpush1.msra.mxu0 0.0
        %3940 = vmatprep.subr.mxu0 0.0
        %3941 = vmatpush1.msra.mxu0 0.0
        %3942 = vmatprep.subr.mxu0 0.0
        %3943 = vmatpush1.msra.mxu0 0.0
        %3944 = vmatprep.subr.mxu0 0.0
        %3945 = vmatpush1.msra.mxu0 0.0
        %3946 = vmatprep.subr.mxu0 0.0
        %3947 = vmatpush1.msra.mxu0 0.0
        %3948 = vmatprep.mubr.f32.mxu0 0.0
        %3949 = vmatmul.mubr.f32.gmra.mrb[0].mxu0 %v3880
        %v3950 = vpop.f32.mrb[0].mxu0
        %v3951 = vadd.f32 0.0, %v3950
        %v3952 = vpop.f32.mrb[0].mxu0
        %3953 = vdwg.mxu0
        %3955 = vrot.lane.b32.xlu0 %v3951, 8
        %v3956 = vpop.permute.xlu0 %3955
        %3958 = vst.msk [vmem:[#allocation3 + $0x6] sm:$0x3] %vm1924, %v3956
        %3959 = vrot.lane.b32.xlu0 %v3624, 112
        %v3960 = vpop.permute.xlu0 %3959
        %3961 = vrot.lane.b32.xlu0 %v3625, 112
        %v3962 = vpop.permute.xlu0 %3961
        %v3963 = vsel %vm1585, %v3960, 0
        %v3965 = vsel %vm1585, %v3962, 0
        %3967 = vmatprep.subr.mxu0 0.0
        %3968 = vmatpush1.xpose.msra.mxu0 %v3965
        %3969 = vmatprep.subr.mxu0 0.0
        %3970 = vmatpush1.xpose.msra.mxu0 0.0
        %3971 = vmatprep.subr.mxu0 0.0
        %3972 = vmatpush1.xpose.msra.mxu0 0.0
        %3973 = vmatprep.subr.mxu0 0.0
        %3974 = vmatpush1.xpose.msra.mxu0 0.0
        %3975 = vmatprep.subr.mxu0 0.0
        %3976 = vmatpush1.xpose.msra.mxu0 0.0
        %3977 = vmatprep.subr.mxu0 0.0
        %3978 = vmatpush1.xpose.msra.mxu0 0.0
        %3979 = vmatprep.subr.mxu0 0.0
        %3980 = vmatpush1.xpose.msra.mxu0 0.0
        %3981 = vmatprep.subr.mxu0 0.0
        %3982 = vmatpush1.xpose.msra.mxu0 0.0
        %3983 = vmatprep.subr.mxu0 0.0
        %3984 = vmatpush1.xpose.msra.mxu0 0.0
        %3985 = vmatprep.subr.mxu0 0.0
        %3986 = vmatpush1.xpose.msra.mxu0 0.0
        %3987 = vmatprep.subr.mxu0 0.0
        %3988 = vmatpush1.xpose.msra.mxu0 0.0
        %3989 = vmatprep.subr.mxu0 0.0
        %3990 = vmatpush1.xpose.msra.mxu0 0.0
        %3991 = vmatprep.subr.mxu0 0.0
        %3992 = vmatpush1.xpose.msra.mxu0 0.0
        %3993 = vmatprep.subr.mxu0 0.0
        %3994 = vmatpush1.xpose.msra.mxu0 0.0
        %3995 = vmatprep.subr.mxu0 0.0
        %3996 = vmatpush1.xpose.msra.mxu0 0.0
        %3997 = vmatprep.subr.mxu0 0.0
        %3998 = vmatpush1.xpose.msra.mxu0 0.0
        %3999 = vmatprep.subr.mxu0 0.0
        %4000 = vmatpush1.xpose.msra.mxu0 0.0
        %4001 = vmatprep.subr.mxu0 0.0
        %4002 = vmatpush1.xpose.msra.mxu0 0.0
        %4003 = vmatprep.subr.mxu0 0.0
        %4004 = vmatpush1.xpose.msra.mxu0 0.0
        %4005 = vmatprep.subr.mxu0 0.0
        %4006 = vmatpush1.xpose.msra.mxu0 0.0
        %4007 = vmatprep.subr.mxu0 0.0
        %4008 = vmatpush1.xpose.msra.mxu0 0.0
        %4009 = vmatprep.subr.mxu0 0.0
        %4010 = vmatpush1.xpose.msra.mxu0 0.0
        %4011 = vmatprep.subr.mxu0 0.0
        %4012 = vmatpush1.xpose.msra.mxu0 0.0
        %4013 = vmatprep.subr.mxu0 0.0
        %4014 = vmatpush1.xpose.msra.mxu0 0.0
        %4015 = vmatprep.subr.mxu0 0.0
        %4016 = vmatpush1.xpose.msra.mxu0 0.0
        %4017 = vmatprep.subr.mxu0 0.0
        %4018 = vmatpush1.xpose.msra.mxu0 0.0
        %4019 = vmatprep.subr.mxu0 0.0
        %4020 = vmatpush1.xpose.msra.mxu0 0.0
        %4021 = vmatprep.subr.mxu0 0.0
        %4022 = vmatpush1.xpose.msra.mxu0 0.0
        %4023 = vmatprep.subr.mxu0 0.0
        %4024 = vmatpush1.xpose.msra.mxu0 0.0
        %4025 = vmatprep.subr.mxu0 0.0
        %4026 = vmatpush1.xpose.msra.mxu0 0.0
        %4027 = vmatprep.subr.mxu0 0.0
        %4028 = vmatpush1.xpose.msra.mxu0 0.0
        %4029 = vmatprep.subr.mxu0 0.0
        %4030 = vmatpush1.xpose.msra.mxu0 0.0
        %4031 = vmatprep.mubr.f32.mxu0 0.0
        %4032 = vmatmul.mubr.f32.gmra.mrb[0].mxu0 %v3963
        %v4033 = vpop.f32.mrb[0].mxu0
        %v4034 = vadd.f32 0.0, %v4033
        %v4035 = vpop.f32.mrb[0].mxu0
        %4036 = vdwg.mxu0
        %v4037 = vsel %vm1662, %v4034, -inf
        %4038 = vmax.xlane.f32.xlu0 %v4037
        %v4039 = vpop.xlane.xlu0 %4038
        %v4040 = vsub.f32 %v4034, %v4039
        %v4041 = vmul.f32 %v4040, 1.442695
        %v4042 = vpow.pop %v4041
        %v4043 = vsel %vm1662, %v4042, 0.0
        %4044 = vadd.xlane.f32.xlu0 %v4043
        %v4045 = vpop.xlane.xlu0 %4044
        %v4046 = vrcp.pop %v4045
        %v4047 = vmul.f32 %v4042, %v4046
        %4048 = vrot.lane.b32.xlu0 %v3711, 112
        %v4049 = vpop.permute.xlu0 %4048
        %v4051 = vsel %vm1674, %v4047, 0
        %v4053 = vsel %vm1678, %v4049, 0
        %4055 = vmatprep.subr.mxu0 0.0
        %4056 = vmatpush1.msra.mxu0 %v4053
        %4057 = vmatprep.subr.mxu0 0.0
        %4058 = vmatpush1.msra.mxu0 0.0
        %4059 = vmatprep.subr.mxu0 0.0
        %4060 = vmatpush1.msra.mxu0 0.0
        %4061 = vmatprep.subr.mxu0 0.0
        %4062 = vmatpush1.msra.mxu0 0.0
        %4063 = vmatprep.subr.mxu0 0.0
        %4064 = vmatpush1.msra.mxu0 0.0
        %4065 = vmatprep.subr.mxu0 0.0
        %4066 = vmatpush1.msra.mxu0 0.0
        %4067 = vmatprep.subr.mxu0 0.0
        %4068 = vmatpush1.msra.mxu0 0.0
        %4069 = vmatprep.subr.mxu0 0.0
        %4070 = vmatpush1.msra.mxu0 0.0
        %4071 = vmatprep.subr.mxu0 0.0
        %4072 = vmatpush1.msra.mxu0 0.0
        %4073 = vmatprep.subr.mxu0 0.0
        %4074 = vmatpush1.msra.mxu0 0.0
        %4075 = vmatprep.subr.mxu0 0.0
        %4076 = vmatpush1.msra.mxu0 0.0
        %4077 = vmatprep.subr.mxu0 0.0
        %4078 = vmatpush1.msra.mxu0 0.0
        %4079 = vmatprep.subr.mxu0 0.0
        %4080 = vmatpush1.msra.mxu0 0.0
        %4081 = vmatprep.subr.mxu0 0.0
        %4082 = vmatpush1.msra.mxu0 0.0
        %4083 = vmatprep.subr.mxu0 0.0
        %4084 = vmatpush1.msra.mxu0 0.0
        %4085 = vmatprep.subr.mxu0 0.0
        %4086 = vmatpush1.msra.mxu0 0.0
        %4087 = vmatprep.subr.mxu0 0.0
        %4088 = vmatpush1.msra.mxu0 0.0
        %4089 = vmatprep.subr.mxu0 0.0
        %4090 = vmatpush1.msra.mxu0 0.0
        %4091 = vmatprep.subr.mxu0 0.0
        %4092 = vmatpush1.msra.mxu0 0.0
        %4093 = vmatprep.subr.mxu0 0.0
        %4094 = vmatpush1.msra.mxu0 0.0
        %4095 = vmatprep.subr.mxu0 0.0
        %4096 = vmatpush1.msra.mxu0 0.0
        %4097 = vmatprep.subr.mxu0 0.0
        %4098 = vmatpush1.msra.mxu0 0.0
        %4099 = vmatprep.subr.mxu0 0.0
        %4100 = vmatpush1.msra.mxu0 0.0
        %4101 = vmatprep.subr.mxu0 0.0
        %4102 = vmatpush1.msra.mxu0 0.0
        %4103 = vmatprep.subr.mxu0 0.0
        %4104 = vmatpush1.msra.mxu0 0.0
        %4105 = vmatprep.subr.mxu0 0.0
        %4106 = vmatpush1.msra.mxu0 0.0
        %4107 = vmatprep.subr.mxu0 0.0
        %4108 = vmatpush1.msra.mxu0 0.0
        %4109 = vmatprep.subr.mxu0 0.0
        %4110 = vmatpush1.msra.mxu0 0.0
        %4111 = vmatprep.subr.mxu0 0.0
        %4112 = vmatpush1.msra.mxu0 0.0
        %4113 = vmatprep.subr.mxu0 0.0
        %4114 = vmatpush1.msra.mxu0 0.0
        %4115 = vmatprep.subr.mxu0 0.0
        %4116 = vmatpush1.msra.mxu0 0.0
        %4117 = vmatprep.subr.mxu0 0.0
        %4118 = vmatpush1.msra.mxu0 0.0
        %4119 = vmatprep.mubr.f32.mxu0 0.0
        %4120 = vmatmul.mubr.f32.gmra.mrb[0].mxu0 %v4051
        %v4121 = vpop.f32.mrb[0].mxu0
        %v4122 = vadd.f32 0.0, %v4121
        %v4123 = vpop.f32.mrb[0].mxu0
        %4124 = vdwg.mxu0
        %4126 = vrot.lane.b32.xlu0 %v4122, 16
        %v4127 = vpop.permute.xlu0 %4126
        %4129 = vst.msk [vmem:[#allocation3 + $0x6] sm:$0x3] %vm2096, %v4127
        %4130 = vrot.lane.b32.xlu0 %v3624, 104
        %v4131 = vpop.permute.xlu0 %4130
        %4132 = vrot.lane.b32.xlu0 %v3625, 104
        %v4133 = vpop.permute.xlu0 %4132
        %v4134 = vsel %vm1585, %v4131, 0
        %v4136 = vsel %vm1585, %v4133, 0
        %4138 = vmatprep.subr.mxu0 0.0
        %4139 = vmatpush1.xpose.msra.mxu0 %v4136
        %4140 = vmatprep.subr.mxu0 0.0
        %4141 = vmatpush1.xpose.msra.mxu0 0.0
        %4142 = vmatprep.subr.mxu0 0.0
        %4143 = vmatpush1.xpose.msra.mxu0 0.0
        %4144 = vmatprep.subr.mxu0 0.0
        %4145 = vmatpush1.xpose.msra.mxu0 0.0
        %4146 = vmatprep.subr.mxu0 0.0
        %4147 = vmatpush1.xpose.msra.mxu0 0.0
        %4148 = vmatprep.subr.mxu0 0.0
        %4149 = vmatpush1.xpose.msra.mxu0 0.0
        %4150 = vmatprep.subr.mxu0 0.0
        %4151 = vmatpush1.xpose.msra.mxu0 0.0
        %4152 = vmatprep.subr.mxu0 0.0
        %4153 = vmatpush1.xpose.msra.mxu0 0.0
        %4154 = vmatprep.subr.mxu0 0.0
        %4155 = vmatpush1.xpose.msra.mxu0 0.0
        %4156 = vmatprep.subr.mxu0 0.0
        %4157 = vmatpush1.xpose.msra.mxu0 0.0
        %4158 = vmatprep.subr.mxu0 0.0
        %4159 = vmatpush1.xpose.msra.mxu0 0.0
        %4160 = vmatprep.subr.mxu0 0.0
        %4161 = vmatpush1.xpose.msra.mxu0 0.0
        %4162 = vmatprep.subr.mxu0 0.0
        %4163 = vmatpush1.xpose.msra.mxu0 0.0
        %4164 = vmatprep.subr.mxu0 0.0
        %4165 = vmatpush1.xpose.msra.mxu0 0.0
        %4166 = vmatprep.subr.mxu0 0.0
        %4167 = vmatpush1.xpose.msra.mxu0 0.0
        %4168 = vmatprep.subr.mxu0 0.0
        %4169 = vmatpush1.xpose.msra.mxu0 0.0
        %4170 = vmatprep.subr.mxu0 0.0
        %4171 = vmatpush1.xpose.msra.mxu0 0.0
        %4172 = vmatprep.subr.mxu0 0.0
        %4173 = vmatpush1.xpose.msra.mxu0 0.0
        %4174 = vmatprep.subr.mxu0 0.0
        %4175 = vmatpush1.xpose.msra.mxu0 0.0
        %4176 = vmatprep.subr.mxu0 0.0
        %4177 = vmatpush1.xpose.msra.mxu0 0.0
        %4178 = vmatprep.subr.mxu0 0.0
        %4179 = vmatpush1.xpose.msra.mxu0 0.0
        %4180 = vmatprep.subr.mxu0 0.0
        %4181 = vmatpush1.xpose.msra.mxu0 0.0
        %4182 = vmatprep.subr.mxu0 0.0
        %4183 = vmatpush1.xpose.msra.mxu0 0.0
        %4184 = vmatprep.subr.mxu0 0.0
        %4185 = vmatpush1.xpose.msra.mxu0 0.0
        %4186 = vmatprep.subr.mxu0 0.0
        %4187 = vmatpush1.xpose.msra.mxu0 0.0
        %4188 = vmatprep.subr.mxu0 0.0
        %4189 = vmatpush1.xpose.msra.mxu0 0.0
        %4190 = vmatprep.subr.mxu0 0.0
        %4191 = vmatpush1.xpose.msra.mxu0 0.0
        %4192 = vmatprep.subr.mxu0 0.0
        %4193 = vmatpush1.xpose.msra.mxu0 0.0
        %4194 = vmatprep.subr.mxu0 0.0
        %4195 = vmatpush1.xpose.msra.mxu0 0.0
        %4196 = vmatprep.subr.mxu0 0.0
        %4197 = vmatpush1.xpose.msra.mxu0 0.0
        %4198 = vmatprep.subr.mxu0 0.0
        %4199 = vmatpush1.xpose.msra.mxu0 0.0
        %4200 = vmatprep.subr.mxu0 0.0
        %4201 = vmatpush1.xpose.msra.mxu0 0.0
        %4202 = vmatprep.mubr.f32.mxu0 0.0
        %4203 = vmatmul.mubr.f32.gmra.mrb[0].mxu0 %v4134
        %v4204 = vpop.f32.mrb[0].mxu0
        %v4205 = vadd.f32 0.0, %v4204
        %v4206 = vpop.f32.mrb[0].mxu0
        %4207 = vdwg.mxu0
        %v4208 = vsel %vm1662, %v4205, -inf
        %4209 = vmax.xlane.f32.xlu0 %v4208
        %v4210 = vpop.xlane.xlu0 %4209
        %v4211 = vsub.f32 %v4205, %v4210
        %v4212 = vmul.f32 %v4211, 1.442695
        %v4213 = vpow.pop %v4212
        %v4214 = vsel %vm1662, %v4213, 0.0
        %4215 = vadd.xlane.f32.xlu0 %v4214
        %v4216 = vpop.xlane.xlu0 %4215
        %v4217 = vrcp.pop %v4216
        %v4218 = vmul.f32 %v4213, %v4217
        %4219 = vrot.lane.b32.xlu0 %v3711, 104
        %v4220 = vpop.permute.xlu0 %4219
        %v4222 = vsel %vm1674, %v4218, 0
        %v4224 = vsel %vm1678, %v4220, 0
        %4226 = vmatprep.subr.mxu0 0.0
        %4227 = vmatpush1.msra.mxu0 %v4224
        %4228 = vmatprep.subr.mxu0 0.0
        %4229 = vmatpush1.msra.mxu0 0.0
        %4230 = vmatprep.subr.mxu0 0.0
        %4231 = vmatpush1.msra.mxu0 0.0
        %4232 = vmatprep.subr.mxu0 0.0
        %4233 = vmatpush1.msra.mxu0 0.0
        %4234 = vmatprep.subr.mxu0 0.0
        %4235 = vmatpush1.msra.mxu0 0.0
        %4236 = vmatprep.subr.mxu0 0.0
        %4237 = vmatpush1.msra.mxu0 0.0
        %4238 = vmatprep.subr.mxu0 0.0
        %4239 = vmatpush1.msra.mxu0 0.0
        %4240 = vmatprep.subr.mxu0 0.0
        %4241 = vmatpush1.msra.mxu0 0.0
        %4242 = vmatprep.subr.mxu0 0.0
        %4243 = vmatpush1.msra.mxu0 0.0
        %4244 = vmatprep.subr.mxu0 0.0
        %4245 = vmatpush1.msra.mxu0 0.0
        %4246 = vmatprep.subr.mxu0 0.0
        %4247 = vmatpush1.msra.mxu0 0.0
        %4248 = vmatprep.subr.mxu0 0.0
        %4249 = vmatpush1.msra.mxu0 0.0
        %4250 = vmatprep.subr.mxu0 0.0
        %4251 = vmatpush1.msra.mxu0 0.0
        %4252 = vmatprep.subr.mxu0 0.0
        %4253 = vmatpush1.msra.mxu0 0.0
        %4254 = vmatprep.subr.mxu0 0.0
        %4255 = vmatpush1.msra.mxu0 0.0
        %4256 = vmatprep.subr.mxu0 0.0
        %4257 = vmatpush1.msra.mxu0 0.0
        %4258 = vmatprep.subr.mxu0 0.0
        %4259 = vmatpush1.msra.mxu0 0.0
        %4260 = vmatprep.subr.mxu0 0.0
        %4261 = vmatpush1.msra.mxu0 0.0
        %4262 = vmatprep.subr.mxu0 0.0
        %4263 = vmatpush1.msra.mxu0 0.0
        %4264 = vmatprep.subr.mxu0 0.0
        %4265 = vmatpush1.msra.mxu0 0.0
        %4266 = vmatprep.subr.mxu0 0.0
        %4267 = vmatpush1.msra.mxu0 0.0
        %4268 = vmatprep.subr.mxu0 0.0
        %4269 = vmatpush1.msra.mxu0 0.0
        %4270 = vmatprep.subr.mxu0 0.0
        %4271 = vmatpush1.msra.mxu0 0.0
        %4272 = vmatprep.subr.mxu0 0.0
        %4273 = vmatpush1.msra.mxu0 0.0
        %4274 = vmatprep.subr.mxu0 0.0
        %4275 = vmatpush1.msra.mxu0 0.0
        %4276 = vmatprep.subr.mxu0 0.0
        %4277 = vmatpush1.msra.mxu0 0.0
        %4278 = vmatprep.subr.mxu0 0.0
        %4279 = vmatpush1.msra.mxu0 0.0
        %4280 = vmatprep.subr.mxu0 0.0
        %4281 = vmatpush1.msra.mxu0 0.0
        %4282 = vmatprep.subr.mxu0 0.0
        %4283 = vmatpush1.msra.mxu0 0.0
        %4284 = vmatprep.subr.mxu0 0.0
        %4285 = vmatpush1.msra.mxu0 0.0
        %4286 = vmatprep.subr.mxu0 0.0
        %4287 = vmatpush1.msra.mxu0 0.0
        %4288 = vmatprep.subr.mxu0 0.0
        %4289 = vmatpush1.msra.mxu0 0.0
        %4290 = vmatprep.mubr.f32.mxu0 0.0
        %4291 = vmatmul.mubr.f32.gmra.mrb[0].mxu0 %v4222
        %v4292 = vpop.f32.mrb[0].mxu0
        %v4293 = vadd.f32 0.0, %v4292
        %v4294 = vpop.f32.mrb[0].mxu0
        %4295 = vdwg.mxu0
        %4297 = vrot.lane.b32.xlu0 %v4293, 24
        %v4298 = vpop.permute.xlu0 %4297
        %4300 = vst.msk [vmem:[#allocation3 + $0x6] sm:$0x3] %vm2268, %v4298
        %v4302 = vsel %vm1585, %v1456, 0
        %v4305 = vsel %vm1585, %v1518, 0
        %4307 = vmatprep.subr.mxu0 0.0
        %4308 = vmatpush1.xpose.msra.mxu0 %v4305
        %4309 = vmatprep.subr.mxu0 0.0
        %4310 = vmatpush1.xpose.msra.mxu0 0.0
        %4311 = vmatprep.subr.mxu0 0.0
        %4312 = vmatpush1.xpose.msra.mxu0 0.0
        %4313 = vmatprep.subr.mxu0 0.0
        %4314 = vmatpush1.xpose.msra.mxu0 0.0
        %4315 = vmatprep.subr.mxu0 0.0
        %4316 = vmatpush1.xpose.msra.mxu0 0.0
        %4317 = vmatprep.subr.mxu0 0.0
        %4318 = vmatpush1.xpose.msra.mxu0 0.0
        %4319 = vmatprep.subr.mxu0 0.0
        %4320 = vmatpush1.xpose.msra.mxu0 0.0
        %4321 = vmatprep.subr.mxu0 0.0
        %4322 = vmatpush1.xpose.msra.mxu0 0.0
        %4323 = vmatprep.subr.mxu0 0.0
        %4324 = vmatpush1.xpose.msra.mxu0 0.0
        %4325 = vmatprep.subr.mxu0 0.0
        %4326 = vmatpush1.xpose.msra.mxu0 0.0
        %4327 = vmatprep.subr.mxu0 0.0
        %4328 = vmatpush1.xpose.msra.mxu0 0.0
        %4329 = vmatprep.subr.mxu0 0.0
        %4330 = vmatpush1.xpose.msra.mxu0 0.0
        %4331 = vmatprep.subr.mxu0 0.0
        %4332 = vmatpush1.xpose.msra.mxu0 0.0
        %4333 = vmatprep.subr.mxu0 0.0
        %4334 = vmatpush1.xpose.msra.mxu0 0.0
        %4335 = vmatprep.subr.mxu0 0.0
        %4336 = vmatpush1.xpose.msra.mxu0 0.0
        %4337 = vmatprep.subr.mxu0 0.0
        %4338 = vmatpush1.xpose.msra.mxu0 0.0
        %4339 = vmatprep.subr.mxu0 0.0
        %4340 = vmatpush1.xpose.msra.mxu0 0.0
        %4341 = vmatprep.subr.mxu0 0.0
        %4342 = vmatpush1.xpose.msra.mxu0 0.0
        %4343 = vmatprep.subr.mxu0 0.0
        %4344 = vmatpush1.xpose.msra.mxu0 0.0
        %4345 = vmatprep.subr.mxu0 0.0
        %4346 = vmatpush1.xpose.msra.mxu0 0.0
        %4347 = vmatprep.subr.mxu0 0.0
        %4348 = vmatpush1.xpose.msra.mxu0 0.0
        %4349 = vmatprep.subr.mxu0 0.0
        %4350 = vmatpush1.xpose.msra.mxu0 0.0
        %4351 = vmatprep.subr.mxu0 0.0
        %4352 = vmatpush1.xpose.msra.mxu0 0.0
        %4353 = vmatprep.subr.mxu0 0.0
        %4354 = vmatpush1.xpose.msra.mxu0 0.0
        %4355 = vmatprep.subr.mxu0 0.0
        %4356 = vmatpush1.xpose.msra.mxu0 0.0
        %4357 = vmatprep.subr.mxu0 0.0
        %4358 = vmatpush1.xpose.msra.mxu0 0.0
        %4359 = vmatprep.subr.mxu0 0.0
        %4360 = vmatpush1.xpose.msra.mxu0 0.0
        %4361 = vmatprep.subr.mxu0 0.0
        %4362 = vmatpush1.xpose.msra.mxu0 0.0
        %4363 = vmatprep.subr.mxu0 0.0
        %4364 = vmatpush1.xpose.msra.mxu0 0.0
        %4365 = vmatprep.subr.mxu0 0.0
        %4366 = vmatpush1.xpose.msra.mxu0 0.0
        %4367 = vmatprep.subr.mxu0 0.0
        %4368 = vmatpush1.xpose.msra.mxu0 0.0
        %4369 = vmatprep.subr.mxu0 0.0
        %4370 = vmatpush1.xpose.msra.mxu0 0.0
        %4371 = vmatprep.mubr.f32.mxu0 0.0
        %4372 = vmatmul.mubr.f32.gmra.mrb[0].mxu0 %v4302
        %v4373 = vpop.f32.mrb[0].mxu0
        %v4374 = vadd.f32 0.0, %v4373
        %v4375 = vpop.f32.mrb[0].mxu0
        %4376 = vdwg.mxu0
        %v4377 = vsel %vm1662, %v4374, -inf
        %4378 = vmax.xlane.f32.xlu0 %v4377
        %v4379 = vpop.xlane.xlu0 %4378
        %v4380 = vsub.f32 %v4374, %v4379
        %v4381 = vmul.f32 %v4380, 1.442695
        %v4382 = vpow.pop %v4381
        %v4383 = vsel %vm1662, %v4382, 0.0
        %4384 = vadd.xlane.f32.xlu0 %v4383
        %v4385 = vpop.xlane.xlu0 %4384
        %v4386 = vrcp.pop %v4385
        %v4387 = vmul.f32 %v4382, %v4386
        %v4389 = vsel %vm1674, %v4387, 0
        %v4392 = vsel %vm1678, %v1582, 0
        %4394 = vmatprep.subr.mxu0 0.0
        %4395 = vmatpush1.msra.mxu0 %v4392
        %4396 = vmatprep.subr.mxu0 0.0
        %4397 = vmatpush1.msra.mxu0 0.0
        %4398 = vmatprep.subr.mxu0 0.0
        %4399 = vmatpush1.msra.mxu0 0.0
        %4400 = vmatprep.subr.mxu0 0.0
        %4401 = vmatpush1.msra.mxu0 0.0
        %4402 = vmatprep.subr.mxu0 0.0
        %4403 = vmatpush1.msra.mxu0 0.0
        %4404 = vmatprep.subr.mxu0 0.0
        %4405 = vmatpush1.msra.mxu0 0.0
        %4406 = vmatprep.subr.mxu0 0.0
        %4407 = vmatpush1.msra.mxu0 0.0
        %4408 = vmatprep.subr.mxu0 0.0
        %4409 = vmatpush1.msra.mxu0 0.0
        %4410 = vmatprep.subr.mxu0 0.0
        %4411 = vmatpush1.msra.mxu0 0.0
        %4412 = vmatprep.subr.mxu0 0.0
        %4413 = vmatpush1.msra.mxu0 0.0
        %4414 = vmatprep.subr.mxu0 0.0
        %4415 = vmatpush1.msra.mxu0 0.0
        %4416 = vmatprep.subr.mxu0 0.0
        %4417 = vmatpush1.msra.mxu0 0.0
        %4418 = vmatprep.subr.mxu0 0.0
        %4419 = vmatpush1.msra.mxu0 0.0
        %4420 = vmatprep.subr.mxu0 0.0
        %4421 = vmatpush1.msra.mxu0 0.0
        %4422 = vmatprep.subr.mxu0 0.0
        %4423 = vmatpush1.msra.mxu0 0.0
        %4424 = vmatprep.subr.mxu0 0.0
        %4425 = vmatpush1.msra.mxu0 0.0
        %4426 = vmatprep.subr.mxu0 0.0
        %4427 = vmatpush1.msra.mxu0 0.0
        %4428 = vmatprep.subr.mxu0 0.0
        %4429 = vmatpush1.msra.mxu0 0.0
        %4430 = vmatprep.subr.mxu0 0.0
        %4431 = vmatpush1.msra.mxu0 0.0
        %4432 = vmatprep.subr.mxu0 0.0
        %4433 = vmatpush1.msra.mxu0 0.0
        %4434 = vmatprep.subr.mxu0 0.0
        %4435 = vmatpush1.msra.mxu0 0.0
        %4436 = vmatprep.subr.mxu0 0.0
        %4437 = vmatpush1.msra.mxu0 0.0
        %4438 = vmatprep.subr.mxu0 0.0
        %4439 = vmatpush1.msra.mxu0 0.0
        %4440 = vmatprep.subr.mxu0 0.0
        %4441 = vmatpush1.msra.mxu0 0.0
        %4442 = vmatprep.subr.mxu0 0.0
        %4443 = vmatpush1.msra.mxu0 0.0
        %4444 = vmatprep.subr.mxu0 0.0
        %4445 = vmatpush1.msra.mxu0 0.0
        %4446 = vmatprep.subr.mxu0 0.0
        %4447 = vmatpush1.msra.mxu0 0.0
        %4448 = vmatprep.subr.mxu0 0.0
        %4449 = vmatpush1.msra.mxu0 0.0
        %4450 = vmatprep.subr.mxu0 0.0
        %4451 = vmatpush1.msra.mxu0 0.0
        %4452 = vmatprep.subr.mxu0 0.0
        %4453 = vmatpush1.msra.mxu0 0.0
        %4454 = vmatprep.subr.mxu0 0.0
        %4455 = vmatpush1.msra.mxu0 0.0
        %4456 = vmatprep.subr.mxu0 0.0
        %4457 = vmatpush1.msra.mxu0 0.0
        %4458 = vmatprep.mubr.f32.mxu0 0.0
        %4459 = vmatmul.mubr.f32.gmra.mrb[0].mxu0 %v4389
        %v4460 = vpop.f32.mrb[0].mxu0
        %v4461 = vadd.f32 0.0, %v4460
        %v4462 = vpop.f32.mrb[0].mxu0
        %4463 = vdwg.mxu0
        %4464 = vst.msk [vmem:[#allocation3 + $0x8] sm:$0x3] %vm1752, %v4461
        %4465 = vrot.lane.b32.xlu0 %v1456, 120
        %v4466 = vpop.permute.xlu0 %4465
        %4467 = vrot.lane.b32.xlu0 %v1518, 120
        %v4468 = vpop.permute.xlu0 %4467
        %v4469 = vsel %vm1585, %v4466, 0
        %v4471 = vsel %vm1585, %v4468, 0
        %4473 = vmatprep.subr.mxu0 0.0
        %4474 = vmatpush1.xpose.msra.mxu0 %v4471
        %4475 = vmatprep.subr.mxu0 0.0
        %4476 = vmatpush1.xpose.msra.mxu0 0.0
        %4477 = vmatprep.subr.mxu0 0.0
        %4478 = vmatpush1.xpose.msra.mxu0 0.0
        %4479 = vmatprep.subr.mxu0 0.0
        %4480 = vmatpush1.xpose.msra.mxu0 0.0
        %4481 = vmatprep.subr.mxu0 0.0
        %4482 = vmatpush1.xpose.msra.mxu0 0.0
        %4483 = vmatprep.subr.mxu0 0.0
        %4484 = vmatpush1.xpose.msra.mxu0 0.0
        %4485 = vmatprep.subr.mxu0 0.0
        %4486 = vmatpush1.xpose.msra.mxu0 0.0
        %4487 = vmatprep.subr.mxu0 0.0
        %4488 = vmatpush1.xpose.msra.mxu0 0.0
        %4489 = vmatprep.subr.mxu0 0.0
        %4490 = vmatpush1.xpose.msra.mxu0 0.0
        %4491 = vmatprep.subr.mxu0 0.0
        %4492 = vmatpush1.xpose.msra.mxu0 0.0
        %4493 = vmatprep.subr.mxu0 0.0
        %4494 = vmatpush1.xpose.msra.mxu0 0.0
        %4495 = vmatprep.subr.mxu0 0.0
        %4496 = vmatpush1.xpose.msra.mxu0 0.0
        %4497 = vmatprep.subr.mxu0 0.0
        %4498 = vmatpush1.xpose.msra.mxu0 0.0
        %4499 = vmatprep.subr.mxu0 0.0
        %4500 = vmatpush1.xpose.msra.mxu0 0.0
        %4501 = vmatprep.subr.mxu0 0.0
        %4502 = vmatpush1.xpose.msra.mxu0 0.0
        %4503 = vmatprep.subr.mxu0 0.0
        %4504 = vmatpush1.xpose.msra.mxu0 0.0
        %4505 = vmatprep.subr.mxu0 0.0
        %4506 = vmatpush1.xpose.msra.mxu0 0.0
        %4507 = vmatprep.subr.mxu0 0.0
        %4508 = vmatpush1.xpose.msra.mxu0 0.0
        %4509 = vmatprep.subr.mxu0 0.0
        %4510 = vmatpush1.xpose.msra.mxu0 0.0
        %4511 = vmatprep.subr.mxu0 0.0
        %4512 = vmatpush1.xpose.msra.mxu0 0.0
        %4513 = vmatprep.subr.mxu0 0.0
        %4514 = vmatpush1.xpose.msra.mxu0 0.0
        %4515 = vmatprep.subr.mxu0 0.0
        %4516 = vmatpush1.xpose.msra.mxu0 0.0
        %4517 = vmatprep.subr.mxu0 0.0
        %4518 = vmatpush1.xpose.msra.mxu0 0.0
        %4519 = vmatprep.subr.mxu0 0.0
        %4520 = vmatpush1.xpose.msra.mxu0 0.0
        %4521 = vmatprep.subr.mxu0 0.0
        %4522 = vmatpush1.xpose.msra.mxu0 0.0
        %4523 = vmatprep.subr.mxu0 0.0
        %4524 = vmatpush1.xpose.msra.mxu0 0.0
        %4525 = vmatprep.subr.mxu0 0.0
        %4526 = vmatpush1.xpose.msra.mxu0 0.0
        %4527 = vmatprep.subr.mxu0 0.0
        %4528 = vmatpush1.xpose.msra.mxu0 0.0
        %4529 = vmatprep.subr.mxu0 0.0
        %4530 = vmatpush1.xpose.msra.mxu0 0.0
        %4531 = vmatprep.subr.mxu0 0.0
        %4532 = vmatpush1.xpose.msra.mxu0 0.0
        %4533 = vmatprep.subr.mxu0 0.0
        %4534 = vmatpush1.xpose.msra.mxu0 0.0
        %4535 = vmatprep.subr.mxu0 0.0
        %4536 = vmatpush1.xpose.msra.mxu0 0.0
        %4537 = vmatprep.mubr.f32.mxu0 0.0
        %4538 = vmatmul.mubr.f32.gmra.mrb[0].mxu0 %v4469
        %v4539 = vpop.f32.mrb[0].mxu0
        %v4540 = vadd.f32 0.0, %v4539
        %v4541 = vpop.f32.mrb[0].mxu0
        %4542 = vdwg.mxu0
        %v4543 = vsel %vm1662, %v4540, -inf
        %4544 = vmax.xlane.f32.xlu0 %v4543
        %v4545 = vpop.xlane.xlu0 %4544
        %v4546 = vsub.f32 %v4540, %v4545
        %v4547 = vmul.f32 %v4546, 1.442695
        %v4548 = vpow.pop %v4547
        %v4549 = vsel %vm1662, %v4548, 0.0
        %4550 = vadd.xlane.f32.xlu0 %v4549
        %v4551 = vpop.xlane.xlu0 %4550
        %v4552 = vrcp.pop %v4551
        %v4553 = vmul.f32 %v4548, %v4552
        %4554 = vrot.lane.b32.xlu0 %v1582, 120
        %v4555 = vpop.permute.xlu0 %4554
        %v4557 = vsel %vm1674, %v4553, 0
        %v4559 = vsel %vm1678, %v4555, 0
        %4561 = vmatprep.subr.mxu0 0.0
        %4562 = vmatpush1.msra.mxu0 %v4559
        %4563 = vmatprep.subr.mxu0 0.0
        %4564 = vmatpush1.msra.mxu0 0.0
        %4565 = vmatprep.subr.mxu0 0.0
        %4566 = vmatpush1.msra.mxu0 0.0
        %4567 = vmatprep.subr.mxu0 0.0
        %4568 = vmatpush1.msra.mxu0 0.0
        %4569 = vmatprep.subr.mxu0 0.0
        %4570 = vmatpush1.msra.mxu0 0.0
        %4571 = vmatprep.subr.mxu0 0.0
        %4572 = vmatpush1.msra.mxu0 0.0
        %4573 = vmatprep.subr.mxu0 0.0
        %4574 = vmatpush1.msra.mxu0 0.0
        %4575 = vmatprep.subr.mxu0 0.0
        %4576 = vmatpush1.msra.mxu0 0.0
        %4577 = vmatprep.subr.mxu0 0.0
        %4578 = vmatpush1.msra.mxu0 0.0
        %4579 = vmatprep.subr.mxu0 0.0
        %4580 = vmatpush1.msra.mxu0 0.0
        %4581 = vmatprep.subr.mxu0 0.0
        %4582 = vmatpush1.msra.mxu0 0.0
        %4583 = vmatprep.subr.mxu0 0.0
        %4584 = vmatpush1.msra.mxu0 0.0
        %4585 = vmatprep.subr.mxu0 0.0
        %4586 = vmatpush1.msra.mxu0 0.0
        %4587 = vmatprep.subr.mxu0 0.0
        %4588 = vmatpush1.msra.mxu0 0.0
        %4589 = vmatprep.subr.mxu0 0.0
        %4590 = vmatpush1.msra.mxu0 0.0
        %4591 = vmatprep.subr.mxu0 0.0
        %4592 = vmatpush1.msra.mxu0 0.0
        %4593 = vmatprep.subr.mxu0 0.0
        %4594 = vmatpush1.msra.mxu0 0.0
        %4595 = vmatprep.subr.mxu0 0.0
        %4596 = vmatpush1.msra.mxu0 0.0
        %4597 = vmatprep.subr.mxu0 0.0
        %4598 = vmatpush1.msra.mxu0 0.0
        %4599 = vmatprep.subr.mxu0 0.0
        %4600 = vmatpush1.msra.mxu0 0.0
        %4601 = vmatprep.subr.mxu0 0.0
        %4602 = vmatpush1.msra.mxu0 0.0
        %4603 = vmatprep.subr.mxu0 0.0
        %4604 = vmatpush1.msra.mxu0 0.0
        %4605 = vmatprep.subr.mxu0 0.0
        %4606 = vmatpush1.msra.mxu0 0.0
        %4607 = vmatprep.subr.mxu0 0.0
        %4608 = vmatpush1.msra.mxu0 0.0
        %4609 = vmatprep.subr.mxu0 0.0
        %4610 = vmatpush1.msra.mxu0 0.0
        %4611 = vmatprep.subr.mxu0 0.0
        %4612 = vmatpush1.msra.mxu0 0.0
        %4613 = vmatprep.subr.mxu0 0.0
        %4614 = vmatpush1.msra.mxu0 0.0
        %4615 = vmatprep.subr.mxu0 0.0
        %4616 = vmatpush1.msra.mxu0 0.0
        %4617 = vmatprep.subr.mxu0 0.0
        %4618 = vmatpush1.msra.mxu0 0.0
        %4619 = vmatprep.subr.mxu0 0.0
        %4620 = vmatpush1.msra.mxu0 0.0
        %4621 = vmatprep.subr.mxu0 0.0
        %4622 = vmatpush1.msra.mxu0 0.0
        %4623 = vmatprep.subr.mxu0 0.0
        %4624 = vmatpush1.msra.mxu0 0.0
        %4625 = vmatprep.mubr.f32.mxu0 0.0
        %4626 = vmatmul.mubr.f32.gmra.mrb[0].mxu0 %v4557
        %v4627 = vpop.f32.mrb[0].mxu0
        %v4628 = vadd.f32 0.0, %v4627
        %v4629 = vpop.f32.mrb[0].mxu0
        %4630 = vdwg.mxu0
        %4632 = vrot.lane.b32.xlu0 %v4628, 8
        %v4633 = vpop.permute.xlu0 %4632
        %4635 = vst.msk [vmem:[#allocation3 + $0x8] sm:$0x3] %vm1924, %v4633
        %4636 = vrot.lane.b32.xlu0 %v1456, 112
        %v4637 = vpop.permute.xlu0 %4636
        %4638 = vrot.lane.b32.xlu0 %v1518, 112
        %v4639 = vpop.permute.xlu0 %4638
        %v4640 = vsel %vm1585, %v4637, 0
        %v4642 = vsel %vm1585, %v4639, 0
        %4644 = vmatprep.subr.mxu0 0.0
        %4645 = vmatpush1.xpose.msra.mxu0 %v4642
        %4646 = vmatprep.subr.mxu0 0.0
        %4647 = vmatpush1.xpose.msra.mxu0 0.0
        %4648 = vmatprep.subr.mxu0 0.0
        %4649 = vmatpush1.xpose.msra.mxu0 0.0
        %4650 = vmatprep.subr.mxu0 0.0
        %4651 = vmatpush1.xpose.msra.mxu0 0.0
        %4652 = vmatprep.subr.mxu0 0.0
        %4653 = vmatpush1.xpose.msra.mxu0 0.0
        %4654 = vmatprep.subr.mxu0 0.0
        %4655 = vmatpush1.xpose.msra.mxu0 0.0
        %4656 = vmatprep.subr.mxu0 0.0
        %4657 = vmatpush1.xpose.msra.mxu0 0.0
        %4658 = vmatprep.subr.mxu0 0.0
        %4659 = vmatpush1.xpose.msra.mxu0 0.0
        %4660 = vmatprep.subr.mxu0 0.0
        %4661 = vmatpush1.xpose.msra.mxu0 0.0
        %4662 = vmatprep.subr.mxu0 0.0
        %4663 = vmatpush1.xpose.msra.mxu0 0.0
        %4664 = vmatprep.subr.mxu0 0.0
        %4665 = vmatpush1.xpose.msra.mxu0 0.0
        %4666 = vmatprep.subr.mxu0 0.0
        %4667 = vmatpush1.xpose.msra.mxu0 0.0
        %4668 = vmatprep.subr.mxu0 0.0
        %4669 = vmatpush1.xpose.msra.mxu0 0.0
        %4670 = vmatprep.subr.mxu0 0.0
        %4671 = vmatpush1.xpose.msra.mxu0 0.0
        %4672 = vmatprep.subr.mxu0 0.0
        %4673 = vmatpush1.xpose.msra.mxu0 0.0
        %4674 = vmatprep.subr.mxu0 0.0
        %4675 = vmatpush1.xpose.msra.mxu0 0.0
        %4676 = vmatprep.subr.mxu0 0.0
        %4677 = vmatpush1.xpose.msra.mxu0 0.0
        %4678 = vmatprep.subr.mxu0 0.0
        %4679 = vmatpush1.xpose.msra.mxu0 0.0
        %4680 = vmatprep.subr.mxu0 0.0
        %4681 = vmatpush1.xpose.msra.mxu0 0.0
        %4682 = vmatprep.subr.mxu0 0.0
        %4683 = vmatpush1.xpose.msra.mxu0 0.0
        %4684 = vmatprep.subr.mxu0 0.0
        %4685 = vmatpush1.xpose.msra.mxu0 0.0
        %4686 = vmatprep.subr.mxu0 0.0
        %4687 = vmatpush1.xpose.msra.mxu0 0.0
        %4688 = vmatprep.subr.mxu0 0.0
        %4689 = vmatpush1.xpose.msra.mxu0 0.0
        %4690 = vmatprep.subr.mxu0 0.0
        %4691 = vmatpush1.xpose.msra.mxu0 0.0
        %4692 = vmatprep.subr.mxu0 0.0
        %4693 = vmatpush1.xpose.msra.mxu0 0.0
        %4694 = vmatprep.subr.mxu0 0.0
        %4695 = vmatpush1.xpose.msra.mxu0 0.0
        %4696 = vmatprep.subr.mxu0 0.0
        %4697 = vmatpush1.xpose.msra.mxu0 0.0
        %4698 = vmatprep.subr.mxu0 0.0
        %4699 = vmatpush1.xpose.msra.mxu0 0.0
        %4700 = vmatprep.subr.mxu0 0.0
        %4701 = vmatpush1.xpose.msra.mxu0 0.0
        %4702 = vmatprep.subr.mxu0 0.0
        %4703 = vmatpush1.xpose.msra.mxu0 0.0
        %4704 = vmatprep.subr.mxu0 0.0
        %4705 = vmatpush1.xpose.msra.mxu0 0.0
        %4706 = vmatprep.subr.mxu0 0.0
        %4707 = vmatpush1.xpose.msra.mxu0 0.0
        %4708 = vmatprep.mubr.f32.mxu0 0.0
        %4709 = vmatmul.mubr.f32.gmra.mrb[0].mxu0 %v4640
        %v4710 = vpop.f32.mrb[0].mxu0
        %v4711 = vadd.f32 0.0, %v4710
        %v4712 = vpop.f32.mrb[0].mxu0
        %4713 = vdwg.mxu0
        %v4714 = vsel %vm1662, %v4711, -inf
        %4715 = vmax.xlane.f32.xlu0 %v4714
        %v4716 = vpop.xlane.xlu0 %4715
        %v4717 = vsub.f32 %v4711, %v4716
        %v4718 = vmul.f32 %v4717, 1.442695
        %v4719 = vpow.pop %v4718
        %v4720 = vsel %vm1662, %v4719, 0.0
        %4721 = vadd.xlane.f32.xlu0 %v4720
        %v4722 = vpop.xlane.xlu0 %4721
        %v4723 = vrcp.pop %v4722
        %v4724 = vmul.f32 %v4719, %v4723
        %4725 = vrot.lane.b32.xlu0 %v1582, 112
        %v4726 = vpop.permute.xlu0 %4725
        %v4728 = vsel %vm1674, %v4724, 0
        %v4730 = vsel %vm1678, %v4726, 0
        %4732 = vmatprep.subr.mxu0 0.0
        %4733 = vmatpush1.msra.mxu0 %v4730
        %4734 = vmatprep.subr.mxu0 0.0
        %4735 = vmatpush1.msra.mxu0 0.0
        %4736 = vmatprep.subr.mxu0 0.0
        %4737 = vmatpush1.msra.mxu0 0.0
        %4738 = vmatprep.subr.mxu0 0.0
        %4739 = vmatpush1.msra.mxu0 0.0
        %4740 = vmatprep.subr.mxu0 0.0
        %4741 = vmatpush1.msra.mxu0 0.0
        %4742 = vmatprep.subr.mxu0 0.0
        %4743 = vmatpush1.msra.mxu0 0.0
        %4744 = vmatprep.subr.mxu0 0.0
        %4745 = vmatpush1.msra.mxu0 0.0
        %4746 = vmatprep.subr.mxu0 0.0
        %4747 = vmatpush1.msra.mxu0 0.0
        %4748 = vmatprep.subr.mxu0 0.0
        %4749 = vmatpush1.msra.mxu0 0.0
        %4750 = vmatprep.subr.mxu0 0.0
        %4751 = vmatpush1.msra.mxu0 0.0
        %4752 = vmatprep.subr.mxu0 0.0
        %4753 = vmatpush1.msra.mxu0 0.0
        %4754 = vmatprep.subr.mxu0 0.0
        %4755 = vmatpush1.msra.mxu0 0.0
        %4756 = vmatprep.subr.mxu0 0.0
        %4757 = vmatpush1.msra.mxu0 0.0
        %4758 = vmatprep.subr.mxu0 0.0
        %4759 = vmatpush1.msra.mxu0 0.0
        %4760 = vmatprep.subr.mxu0 0.0
        %4761 = vmatpush1.msra.mxu0 0.0
        %4762 = vmatprep.subr.mxu0 0.0
        %4763 = vmatpush1.msra.mxu0 0.0
        %4764 = vmatprep.subr.mxu0 0.0
        %4765 = vmatpush1.msra.mxu0 0.0
        %4766 = vmatprep.subr.mxu0 0.0
        %4767 = vmatpush1.msra.mxu0 0.0
        %4768 = vmatprep.subr.mxu0 0.0
        %4769 = vmatpush1.msra.mxu0 0.0
        %4770 = vmatprep.subr.mxu0 0.0
        %4771 = vmatpush1.msra.mxu0 0.0
        %4772 = vmatprep.subr.mxu0 0.0
        %4773 = vmatpush1.msra.mxu0 0.0
        %4774 = vmatprep.subr.mxu0 0.0
        %4775 = vmatpush1.msra.mxu0 0.0
        %4776 = vmatprep.subr.mxu0 0.0
        %4777 = vmatpush1.msra.mxu0 0.0
        %4778 = vmatprep.subr.mxu0 0.0
        %4779 = vmatpush1.msra.mxu0 0.0
        %4780 = vmatprep.subr.mxu0 0.0
        %4781 = vmatpush1.msra.mxu0 0.0
        %4782 = vmatprep.subr.mxu0 0.0
        %4783 = vmatpush1.msra.mxu0 0.0
        %4784 = vmatprep.subr.mxu0 0.0
        %4785 = vmatpush1.msra.mxu0 0.0
        %4786 = vmatprep.subr.mxu0 0.0
        %4787 = vmatpush1.msra.mxu0 0.0
        %4788 = vmatprep.subr.mxu0 0.0
        %4789 = vmatpush1.msra.mxu0 0.0
        %4790 = vmatprep.subr.mxu0 0.0
        %4791 = vmatpush1.msra.mxu0 0.0
        %4792 = vmatprep.subr.mxu0 0.0
        %4793 = vmatpush1.msra.mxu0 0.0
        %4794 = vmatprep.subr.mxu0 0.0
        %4795 = vmatpush1.msra.mxu0 0.0
        %4796 = vmatprep.mubr.f32.mxu0 0.0
        %4797 = vmatmul.mubr.f32.gmra.mrb[0].mxu0 %v4728
        %v4798 = vpop.f32.mrb[0].mxu0
        %v4799 = vadd.f32 0.0, %v4798
        %v4800 = vpop.f32.mrb[0].mxu0
        %4801 = vdwg.mxu0
        %4803 = vrot.lane.b32.xlu0 %v4799, 16
        %v4804 = vpop.permute.xlu0 %4803
        %4806 = vst.msk [vmem:[#allocation3 + $0x8] sm:$0x3] %vm2096, %v4804
        %4807 = vrot.lane.b32.xlu0 %v1456, 104
        %v4808 = vpop.permute.xlu0 %4807
        %4809 = vrot.lane.b32.xlu0 %v1518, 104
        %v4810 = vpop.permute.xlu0 %4809
        %v4811 = vsel %vm1585, %v4808, 0
        %v4813 = vsel %vm1585, %v4810, 0
        %4815 = vmatprep.subr.mxu0 0.0
        %4816 = vmatpush1.xpose.msra.mxu0 %v4813
        %4817 = vmatprep.subr.mxu0 0.0
        %4818 = vmatpush1.xpose.msra.mxu0 0.0
        %4819 = vmatprep.subr.mxu0 0.0
        %4820 = vmatpush1.xpose.msra.mxu0 0.0
        %4821 = vmatprep.subr.mxu0 0.0
        %4822 = vmatpush1.xpose.msra.mxu0 0.0
        %4823 = vmatprep.subr.mxu0 0.0
        %4824 = vmatpush1.xpose.msra.mxu0 0.0
        %4825 = vmatprep.subr.mxu0 0.0
        %4826 = vmatpush1.xpose.msra.mxu0 0.0
        %4827 = vmatprep.subr.mxu0 0.0
        %4828 = vmatpush1.xpose.msra.mxu0 0.0
        %4829 = vmatprep.subr.mxu0 0.0
        %4830 = vmatpush1.xpose.msra.mxu0 0.0
        %4831 = vmatprep.subr.mxu0 0.0
        %4832 = vmatpush1.xpose.msra.mxu0 0.0
        %4833 = vmatprep.subr.mxu0 0.0
        %4834 = vmatpush1.xpose.msra.mxu0 0.0
        %4835 = vmatprep.subr.mxu0 0.0
        %4836 = vmatpush1.xpose.msra.mxu0 0.0
        %4837 = vmatprep.subr.mxu0 0.0
        %4838 = vmatpush1.xpose.msra.mxu0 0.0
        %4839 = vmatprep.subr.mxu0 0.0
        %4840 = vmatpush1.xpose.msra.mxu0 0.0
        %4841 = vmatprep.subr.mxu0 0.0
        %4842 = vmatpush1.xpose.msra.mxu0 0.0
        %4843 = vmatprep.subr.mxu0 0.0
        %4844 = vmatpush1.xpose.msra.mxu0 0.0
        %4845 = vmatprep.subr.mxu0 0.0
        %4846 = vmatpush1.xpose.msra.mxu0 0.0
        %4847 = vmatprep.subr.mxu0 0.0
        %4848 = vmatpush1.xpose.msra.mxu0 0.0
        %4849 = vmatprep.subr.mxu0 0.0
        %4850 = vmatpush1.xpose.msra.mxu0 0.0
        %4851 = vmatprep.subr.mxu0 0.0
        %4852 = vmatpush1.xpose.msra.mxu0 0.0
        %4853 = vmatprep.subr.mxu0 0.0
        %4854 = vmatpush1.xpose.msra.mxu0 0.0
        %4855 = vmatprep.subr.mxu0 0.0
        %4856 = vmatpush1.xpose.msra.mxu0 0.0
        %4857 = vmatprep.subr.mxu0 0.0
        %4858 = vmatpush1.xpose.msra.mxu0 0.0
        %4859 = vmatprep.subr.mxu0 0.0
        %4860 = vmatpush1.xpose.msra.mxu0 0.0
        %4861 = vmatprep.subr.mxu0 0.0
        %4862 = vmatpush1.xpose.msra.mxu0 0.0
        %4863 = vmatprep.subr.mxu0 0.0
        %4864 = vmatpush1.xpose.msra.mxu0 0.0
        %4865 = vmatprep.subr.mxu0 0.0
        %4866 = vmatpush1.xpose.msra.mxu0 0.0
        %4867 = vmatprep.subr.mxu0 0.0
        %4868 = vmatpush1.xpose.msra.mxu0 0.0
        %4869 = vmatprep.subr.mxu0 0.0
        %4870 = vmatpush1.xpose.msra.mxu0 0.0
        %4871 = vmatprep.subr.mxu0 0.0
        %4872 = vmatpush1.xpose.msra.mxu0 0.0
        %4873 = vmatprep.subr.mxu0 0.0
        %4874 = vmatpush1.xpose.msra.mxu0 0.0
        %4875 = vmatprep.subr.mxu0 0.0
        %4876 = vmatpush1.xpose.msra.mxu0 0.0
        %4877 = vmatprep.subr.mxu0 0.0
        %4878 = vmatpush1.xpose.msra.mxu0 0.0
        %4879 = vmatprep.mubr.f32.mxu0 0.0
        %4880 = vmatmul.mubr.f32.gmra.mrb[0].mxu0 %v4811
        %v4881 = vpop.f32.mrb[0].mxu0
        %v4882 = vadd.f32 0.0, %v4881
        %v4883 = vpop.f32.mrb[0].mxu0
        %4884 = vdwg.mxu0
        %v4885 = vsel %vm1662, %v4882, -inf
        %4886 = vmax.xlane.f32.xlu0 %v4885
        %v4887 = vpop.xlane.xlu0 %4886
        %v4888 = vsub.f32 %v4882, %v4887
        %v4889 = vmul.f32 %v4888, 1.442695
        %v4890 = vpow.pop %v4889
        %v4891 = vsel %vm1662, %v4890, 0.0
        %4892 = vadd.xlane.f32.xlu0 %v4891
        %v4893 = vpop.xlane.xlu0 %4892
        %v4894 = vrcp.pop %v4893
        %v4895 = vmul.f32 %v4890, %v4894
        %4896 = vrot.lane.b32.xlu0 %v1582, 104
        %v4897 = vpop.permute.xlu0 %4896
        %v4899 = vsel %vm1674, %v4895, 0
        %v4901 = vsel %vm1678, %v4897, 0
        %4903 = vmatprep.subr.mxu0 0.0
        %4904 = vmatpush1.msra.mxu0 %v4901
        %4905 = vmatprep.subr.mxu0 0.0
        %4906 = vmatpush1.msra.mxu0 0.0
        %4907 = vmatprep.subr.mxu0 0.0
        %4908 = vmatpush1.msra.mxu0 0.0
        %4909 = vmatprep.subr.mxu0 0.0
        %4910 = vmatpush1.msra.mxu0 0.0
        %4911 = vmatprep.subr.mxu0 0.0
        %4912 = vmatpush1.msra.mxu0 0.0
        %4913 = vmatprep.subr.mxu0 0.0
        %4914 = vmatpush1.msra.mxu0 0.0
        %4915 = vmatprep.subr.mxu0 0.0
        %4916 = vmatpush1.msra.mxu0 0.0
        %4917 = vmatprep.subr.mxu0 0.0
        %4918 = vmatpush1.msra.mxu0 0.0
        %4919 = vmatprep.subr.mxu0 0.0
        %4920 = vmatpush1.msra.mxu0 0.0
        %4921 = vmatprep.subr.mxu0 0.0
        %4922 = vmatpush1.msra.mxu0 0.0
        %4923 = vmatprep.subr.mxu0 0.0
        %4924 = vmatpush1.msra.mxu0 0.0
        %4925 = vmatprep.subr.mxu0 0.0
        %4926 = vmatpush1.msra.mxu0 0.0
        %4927 = vmatprep.subr.mxu0 0.0
        %4928 = vmatpush1.msra.mxu0 0.0
        %4929 = vmatprep.subr.mxu0 0.0
        %4930 = vmatpush1.msra.mxu0 0.0
        %4931 = vmatprep.subr.mxu0 0.0
        %4932 = vmatpush1.msra.mxu0 0.0
        %4933 = vmatprep.subr.mxu0 0.0
        %4934 = vmatpush1.msra.mxu0 0.0
        %4935 = vmatprep.subr.mxu0 0.0
        %4936 = vmatpush1.msra.mxu0 0.0
        %4937 = vmatprep.subr.mxu0 0.0
        %4938 = vmatpush1.msra.mxu0 0.0
        %4939 = vmatprep.subr.mxu0 0.0
        %4940 = vmatpush1.msra.mxu0 0.0
        %4941 = vmatprep.subr.mxu0 0.0
        %4942 = vmatpush1.msra.mxu0 0.0
        %4943 = vmatprep.subr.mxu0 0.0
        %4944 = vmatpush1.msra.mxu0 0.0
        %4945 = vmatprep.subr.mxu0 0.0
        %4946 = vmatpush1.msra.mxu0 0.0
        %4947 = vmatprep.subr.mxu0 0.0
        %4948 = vmatpush1.msra.mxu0 0.0
        %4949 = vmatprep.subr.mxu0 0.0
        %4950 = vmatpush1.msra.mxu0 0.0
        %4951 = vmatprep.subr.mxu0 0.0
        %4952 = vmatpush1.msra.mxu0 0.0
        %4953 = vmatprep.subr.mxu0 0.0
        %4954 = vmatpush1.msra.mxu0 0.0
        %4955 = vmatprep.subr.mxu0 0.0
        %4956 = vmatpush1.msra.mxu0 0.0
        %4957 = vmatprep.subr.mxu0 0.0
        %4958 = vmatpush1.msra.mxu0 0.0
        %4959 = vmatprep.subr.mxu0 0.0
        %4960 = vmatpush1.msra.mxu0 0.0
        %4961 = vmatprep.subr.mxu0 0.0
        %4962 = vmatpush1.msra.mxu0 0.0
        %4963 = vmatprep.subr.mxu0 0.0
        %4964 = vmatpush1.msra.mxu0 0.0
        %4965 = vmatprep.subr.mxu0 0.0
        %4966 = vmatpush1.msra.mxu0 0.0
        %4967 = vmatprep.mubr.f32.mxu0 0.0
        %4968 = vmatmul.mubr.f32.gmra.mrb[0].mxu0 %v4899
        %v4969 = vpop.f32.mrb[0].mxu0
        %v4970 = vadd.f32 0.0, %v4969
        %v4971 = vpop.f32.mrb[0].mxu0
        %4972 = vdwg.mxu0
        %4974 = vrot.lane.b32.xlu0 %v4970, 24
        %v4975 = vpop.permute.xlu0 %4974
        %4977 = vst.msk [vmem:[#allocation3 + $0x8] sm:$0x3] %vm2268, %v4975
        %v4978 = vrot.slane %v1456, 2
        %v4979 = vrot.slane %v1518, 2
        %v4980 = vsel %vm1585, %v4978, 0
        %v4982 = vsel %vm1585, %v4979, 0
        %4984 = vmatprep.subr.mxu0 0.0
        %4985 = vmatpush1.xpose.msra.mxu0 %v4982
        %4986 = vmatprep.subr.mxu0 0.0
        %4987 = vmatpush1.xpose.msra.mxu0 0.0
        %4988 = vmatprep.subr.mxu0 0.0
        %4989 = vmatpush1.xpose.msra.mxu0 0.0
        %4990 = vmatprep.subr.mxu0 0.0
        %4991 = vmatpush1.xpose.msra.mxu0 0.0
        %4992 = vmatprep.subr.mxu0 0.0
        %4993 = vmatpush1.xpose.msra.mxu0 0.0
        %4994 = vmatprep.subr.mxu0 0.0
        %4995 = vmatpush1.xpose.msra.mxu0 0.0
        %4996 = vmatprep.subr.mxu0 0.0
        %4997 = vmatpush1.xpose.msra.mxu0 0.0
        %4998 = vmatprep.subr.mxu0 0.0
        %4999 = vmatpush1.xpose.msra.mxu0 0.0
        %5000 = vmatprep.subr.mxu0 0.0
        %5001 = vmatpush1.xpose.msra.mxu0 0.0
        %5002 = vmatprep.subr.mxu0 0.0
        %5003 = vmatpush1.xpose.msra.mxu0 0.0
        %5004 = vmatprep.subr.mxu0 0.0
        %5005 = vmatpush1.xpose.msra.mxu0 0.0
        %5006 = vmatprep.subr.mxu0 0.0
        %5007 = vmatpush1.xpose.msra.mxu0 0.0
        %5008 = vmatprep.subr.mxu0 0.0
        %5009 = vmatpush1.xpose.msra.mxu0 0.0
        %5010 = vmatprep.subr.mxu0 0.0
        %5011 = vmatpush1.xpose.msra.mxu0 0.0
        %5012 = vmatprep.subr.mxu0 0.0
        %5013 = vmatpush1.xpose.msra.mxu0 0.0
        %5014 = vmatprep.subr.mxu0 0.0
        %5015 = vmatpush1.xpose.msra.mxu0 0.0
        %5016 = vmatprep.subr.mxu0 0.0
        %5017 = vmatpush1.xpose.msra.mxu0 0.0
        %5018 = vmatprep.subr.mxu0 0.0
        %5019 = vmatpush1.xpose.msra.mxu0 0.0
        %5020 = vmatprep.subr.mxu0 0.0
        %5021 = vmatpush1.xpose.msra.mxu0 0.0
        %5022 = vmatprep.subr.mxu0 0.0
        %5023 = vmatpush1.xpose.msra.mxu0 0.0
        %5024 = vmatprep.subr.mxu0 0.0
        %5025 = vmatpush1.xpose.msra.mxu0 0.0
        %5026 = vmatprep.subr.mxu0 0.0
        %5027 = vmatpush1.xpose.msra.mxu0 0.0
        %5028 = vmatprep.subr.mxu0 0.0
        %5029 = vmatpush1.xpose.msra.mxu0 0.0
        %5030 = vmatprep.subr.mxu0 0.0
        %5031 = vmatpush1.xpose.msra.mxu0 0.0
        %5032 = vmatprep.subr.mxu0 0.0
        %5033 = vmatpush1.xpose.msra.mxu0 0.0
        %5034 = vmatprep.subr.mxu0 0.0
        %5035 = vmatpush1.xpose.msra.mxu0 0.0
        %5036 = vmatprep.subr.mxu0 0.0
        %5037 = vmatpush1.xpose.msra.mxu0 0.0
        %5038 = vmatprep.subr.mxu0 0.0
        %5039 = vmatpush1.xpose.msra.mxu0 0.0
        %5040 = vmatprep.subr.mxu0 0.0
        %5041 = vmatpush1.xpose.msra.mxu0 0.0
        %5042 = vmatprep.subr.mxu0 0.0
        %5043 = vmatpush1.xpose.msra.mxu0 0.0
        %5044 = vmatprep.subr.mxu0 0.0
        %5045 = vmatpush1.xpose.msra.mxu0 0.0
        %5046 = vmatprep.subr.mxu0 0.0
        %5047 = vmatpush1.xpose.msra.mxu0 0.0
        %5048 = vmatprep.mubr.f32.mxu0 0.0
        %5049 = vmatmul.mubr.f32.gmra.mrb[0].mxu0 %v4980
        %v5050 = vpop.f32.mrb[0].mxu0
        %v5051 = vadd.f32 0.0, %v5050
        %v5052 = vpop.f32.mrb[0].mxu0
        %5053 = vdwg.mxu0
        %v5054 = vsel %vm1662, %v5051, -inf
        %5055 = vmax.xlane.f32.xlu0 %v5054
        %v5056 = vpop.xlane.xlu0 %5055
        %v5057 = vsub.f32 %v5051, %v5056
        %v5058 = vmul.f32 %v5057, 1.442695
        %v5059 = vpow.pop %v5058
        %v5060 = vsel %vm1662, %v5059, 0.0
        %5061 = vadd.xlane.f32.xlu0 %v5060
        %v5062 = vpop.xlane.xlu0 %5061
        %v5063 = vrcp.pop %v5062
        %v5064 = vmul.f32 %v5059, %v5063
        %v5065 = vrot.slane %v1582, 2
        %v5067 = vsel %vm1674, %v5064, 0
        %v5069 = vsel %vm1678, %v5065, 0
        %5071 = vmatprep.subr.mxu0 0.0
        %5072 = vmatpush1.msra.mxu0 %v5069
        %5073 = vmatprep.subr.mxu0 0.0
        %5074 = vmatpush1.msra.mxu0 0.0
        %5075 = vmatprep.subr.mxu0 0.0
        %5076 = vmatpush1.msra.mxu0 0.0
        %5077 = vmatprep.subr.mxu0 0.0
        %5078 = vmatpush1.msra.mxu0 0.0
        %5079 = vmatprep.subr.mxu0 0.0
        %5080 = vmatpush1.msra.mxu0 0.0
        %5081 = vmatprep.subr.mxu0 0.0
        %5082 = vmatpush1.msra.mxu0 0.0
        %5083 = vmatprep.subr.mxu0 0.0
        %5084 = vmatpush1.msra.mxu0 0.0
        %5085 = vmatprep.subr.mxu0 0.0
        %5086 = vmatpush1.msra.mxu0 0.0
        %5087 = vmatprep.subr.mxu0 0.0
        %5088 = vmatpush1.msra.mxu0 0.0
        %5089 = vmatprep.subr.mxu0 0.0
        %5090 = vmatpush1.msra.mxu0 0.0
        %5091 = vmatprep.subr.mxu0 0.0
        %5092 = vmatpush1.msra.mxu0 0.0
        %5093 = vmatprep.subr.mxu0 0.0
        %5094 = vmatpush1.msra.mxu0 0.0
        %5095 = vmatprep.subr.mxu0 0.0
        %5096 = vmatpush1.msra.mxu0 0.0
        %5097 = vmatprep.subr.mxu0 0.0
        %5098 = vmatpush1.msra.mxu0 0.0
        %5099 = vmatprep.subr.mxu0 0.0
        %5100 = vmatpush1.msra.mxu0 0.0
        %5101 = vmatprep.subr.mxu0 0.0
        %5102 = vmatpush1.msra.mxu0 0.0
        %5103 = vmatprep.subr.mxu0 0.0
        %5104 = vmatpush1.msra.mxu0 0.0
        %5105 = vmatprep.subr.mxu0 0.0
        %5106 = vmatpush1.msra.mxu0 0.0
        %5107 = vmatprep.subr.mxu0 0.0
        %5108 = vmatpush1.msra.mxu0 0.0
        %5109 = vmatprep.subr.mxu0 0.0
        %5110 = vmatpush1.msra.mxu0 0.0
        %5111 = vmatprep.subr.mxu0 0.0
        %5112 = vmatpush1.msra.mxu0 0.0
        %5113 = vmatprep.subr.mxu0 0.0
        %5114 = vmatpush1.msra.mxu0 0.0
        %5115 = vmatprep.subr.mxu0 0.0
        %5116 = vmatpush1.msra.mxu0 0.0
        %5117 = vmatprep.subr.mxu0 0.0
        %5118 = vmatpush1.msra.mxu0 0.0
        %5119 = vmatprep.subr.mxu0 0.0
        %5120 = vmatpush1.msra.mxu0 0.0
        %5121 = vmatprep.subr.mxu0 0.0
        %5122 = vmatpush1.msra.mxu0 0.0
        %5123 = vmatprep.subr.mxu0 0.0
        %5124 = vmatpush1.msra.mxu0 0.0
        %5125 = vmatprep.subr.mxu0 0.0
        %5126 = vmatpush1.msra.mxu0 0.0
        %5127 = vmatprep.subr.mxu0 0.0
        %5128 = vmatpush1.msra.mxu0 0.0
        %5129 = vmatprep.subr.mxu0 0.0
        %5130 = vmatpush1.msra.mxu0 0.0
        %5131 = vmatprep.subr.mxu0 0.0
        %5132 = vmatpush1.msra.mxu0 0.0
        %5133 = vmatprep.subr.mxu0 0.0
        %5134 = vmatpush1.msra.mxu0 0.0
        %5135 = vmatprep.mubr.f32.mxu0 0.0
        %5136 = vmatmul.mubr.f32.gmra.mrb[0].mxu0 %v5067
        %v5137 = vpop.f32.mrb[0].mxu0
        %v5138 = vadd.f32 0.0, %v5137
        %v5139 = vpop.f32.mrb[0].mxu0
        %5140 = vdwg.mxu0
        %5141 = vst.msk [vmem:[#allocation3 + $0xa] sm:$0x3] %vm1752, %v5138
        %5142 = vrot.lane.b32.xlu0 %v4978, 120
        %v5143 = vpop.permute.xlu0 %5142
        %5144 = vrot.lane.b32.xlu0 %v4979, 120
        %v5145 = vpop.permute.xlu0 %5144
        %v5146 = vsel %vm1585, %v5143, 0
        %v5148 = vsel %vm1585, %v5145, 0
        %5150 = vmatprep.subr.mxu0 0.0
        %5151 = vmatpush1.xpose.msra.mxu0 %v5148
        %5152 = vmatprep.subr.mxu0 0.0
        %5153 = vmatpush1.xpose.msra.mxu0 0.0
        %5154 = vmatprep.subr.mxu0 0.0
        %5155 = vmatpush1.xpose.msra.mxu0 0.0
        %5156 = vmatprep.subr.mxu0 0.0
        %5157 = vmatpush1.xpose.msra.mxu0 0.0
        %5158 = vmatprep.subr.mxu0 0.0
        %5159 = vmatpush1.xpose.msra.mxu0 0.0
        %5160 = vmatprep.subr.mxu0 0.0
        %5161 = vmatpush1.xpose.msra.mxu0 0.0
        %5162 = vmatprep.subr.mxu0 0.0
        %5163 = vmatpush1.xpose.msra.mxu0 0.0
        %5164 = vmatprep.subr.mxu0 0.0
        %5165 = vmatpush1.xpose.msra.mxu0 0.0
        %5166 = vmatprep.subr.mxu0 0.0
        %5167 = vmatpush1.xpose.msra.mxu0 0.0
        %5168 = vmatprep.subr.mxu0 0.0
        %5169 = vmatpush1.xpose.msra.mxu0 0.0
        %5170 = vmatprep.subr.mxu0 0.0
        %5171 = vmatpush1.xpose.msra.mxu0 0.0
        %5172 = vmatprep.subr.mxu0 0.0
        %5173 = vmatpush1.xpose.msra.mxu0 0.0
        %5174 = vmatprep.subr.mxu0 0.0
        %5175 = vmatpush1.xpose.msra.mxu0 0.0
        %5176 = vmatprep.subr.mxu0 0.0
        %5177 = vmatpush1.xpose.msra.mxu0 0.0
        %5178 = vmatprep.subr.mxu0 0.0
        %5179 = vmatpush1.xpose.msra.mxu0 0.0
        %5180 = vmatprep.subr.mxu0 0.0
        %5181 = vmatpush1.xpose.msra.mxu0 0.0
        %5182 = vmatprep.subr.mxu0 0.0
        %5183 = vmatpush1.xpose.msra.mxu0 0.0
        %5184 = vmatprep.subr.mxu0 0.0
        %5185 = vmatpush1.xpose.msra.mxu0 0.0
        %5186 = vmatprep.subr.mxu0 0.0
        %5187 = vmatpush1.xpose.msra.mxu0 0.0
        %5188 = vmatprep.subr.mxu0 0.0
        %5189 = vmatpush1.xpose.msra.mxu0 0.0
        %5190 = vmatprep.subr.mxu0 0.0
        %5191 = vmatpush1.xpose.msra.mxu0 0.0
        %5192 = vmatprep.subr.mxu0 0.0
        %5193 = vmatpush1.xpose.msra.mxu0 0.0
        %5194 = vmatprep.subr.mxu0 0.0
        %5195 = vmatpush1.xpose.msra.mxu0 0.0
        %5196 = vmatprep.subr.mxu0 0.0
        %5197 = vmatpush1.xpose.msra.mxu0 0.0
        %5198 = vmatprep.subr.mxu0 0.0
        %5199 = vmatpush1.xpose.msra.mxu0 0.0
        %5200 = vmatprep.subr.mxu0 0.0
        %5201 = vmatpush1.xpose.msra.mxu0 0.0
        %5202 = vmatprep.subr.mxu0 0.0
        %5203 = vmatpush1.xpose.msra.mxu0 0.0
        %5204 = vmatprep.subr.mxu0 0.0
        %5205 = vmatpush1.xpose.msra.mxu0 0.0
        %5206 = vmatprep.subr.mxu0 0.0
        %5207 = vmatpush1.xpose.msra.mxu0 0.0
        %5208 = vmatprep.subr.mxu0 0.0
        %5209 = vmatpush1.xpose.msra.mxu0 0.0
        %5210 = vmatprep.subr.mxu0 0.0
        %5211 = vmatpush1.xpose.msra.mxu0 0.0
        %5212 = vmatprep.subr.mxu0 0.0
        %5213 = vmatpush1.xpose.msra.mxu0 0.0
        %5214 = vmatprep.mubr.f32.mxu0 0.0
        %5215 = vmatmul.mubr.f32.gmra.mrb[0].mxu0 %v5146
        %v5216 = vpop.f32.mrb[0].mxu0
        %v5217 = vadd.f32 0.0, %v5216
        %v5218 = vpop.f32.mrb[0].mxu0
        %5219 = vdwg.mxu0
        %v5220 = vsel %vm1662, %v5217, -inf
        %5221 = vmax.xlane.f32.xlu0 %v5220
        %v5222 = vpop.xlane.xlu0 %5221
        %v5223 = vsub.f32 %v5217, %v5222
        %v5224 = vmul.f32 %v5223, 1.442695
        %v5225 = vpow.pop %v5224
        %v5226 = vsel %vm1662, %v5225, 0.0
        %5227 = vadd.xlane.f32.xlu0 %v5226
        %v5228 = vpop.xlane.xlu0 %5227
        %v5229 = vrcp.pop %v5228
        %v5230 = vmul.f32 %v5225, %v5229
        %5231 = vrot.lane.b32.xlu0 %v5065, 120
        %v5232 = vpop.permute.xlu0 %5231
        %v5234 = vsel %vm1674, %v5230, 0
        %v5236 = vsel %vm1678, %v5232, 0
        %5238 = vmatprep.subr.mxu0 0.0
        %5239 = vmatpush1.msra.mxu0 %v5236
        %5240 = vmatprep.subr.mxu0 0.0
        %5241 = vmatpush1.msra.mxu0 0.0
        %5242 = vmatprep.subr.mxu0 0.0
        %5243 = vmatpush1.msra.mxu0 0.0
        %5244 = vmatprep.subr.mxu0 0.0
        %5245 = vmatpush1.msra.mxu0 0.0
        %5246 = vmatprep.subr.mxu0 0.0
        %5247 = vmatpush1.msra.mxu0 0.0
        %5248 = vmatprep.subr.mxu0 0.0
        %5249 = vmatpush1.msra.mxu0 0.0
        %5250 = vmatprep.subr.mxu0 0.0
        %5251 = vmatpush1.msra.mxu0 0.0
        %5252 = vmatprep.subr.mxu0 0.0
        %5253 = vmatpush1.msra.mxu0 0.0
        %5254 = vmatprep.subr.mxu0 0.0
        %5255 = vmatpush1.msra.mxu0 0.0
        %5256 = vmatprep.subr.mxu0 0.0
        %5257 = vmatpush1.msra.mxu0 0.0
        %5258 = vmatprep.subr.mxu0 0.0
        %5259 = vmatpush1.msra.mxu0 0.0
        %5260 = vmatprep.subr.mxu0 0.0
        %5261 = vmatpush1.msra.mxu0 0.0
        %5262 = vmatprep.subr.mxu0 0.0
        %5263 = vmatpush1.msra.mxu0 0.0
        %5264 = vmatprep.subr.mxu0 0.0
        %5265 = vmatpush1.msra.mxu0 0.0
        %5266 = vmatprep.subr.mxu0 0.0
        %5267 = vmatpush1.msra.mxu0 0.0
        %5268 = vmatprep.subr.mxu0 0.0
        %5269 = vmatpush1.msra.mxu0 0.0
        %5270 = vmatprep.subr.mxu0 0.0
        %5271 = vmatpush1.msra.mxu0 0.0
        %5272 = vmatprep.subr.mxu0 0.0
        %5273 = vmatpush1.msra.mxu0 0.0
        %5274 = vmatprep.subr.mxu0 0.0
        %5275 = vmatpush1.msra.mxu0 0.0
        %5276 = vmatprep.subr.mxu0 0.0
        %5277 = vmatpush1.msra.mxu0 0.0
        %5278 = vmatprep.subr.mxu0 0.0
        %5279 = vmatpush1.msra.mxu0 0.0
        %5280 = vmatprep.subr.mxu0 0.0
        %5281 = vmatpush1.msra.mxu0 0.0
        %5282 = vmatprep.subr.mxu0 0.0
        %5283 = vmatpush1.msra.mxu0 0.0
        %5284 = vmatprep.subr.mxu0 0.0
        %5285 = vmatpush1.msra.mxu0 0.0
        %5286 = vmatprep.subr.mxu0 0.0
        %5287 = vmatpush1.msra.mxu0 0.0
        %5288 = vmatprep.subr.mxu0 0.0
        %5289 = vmatpush1.msra.mxu0 0.0
        %5290 = vmatprep.subr.mxu0 0.0
        %5291 = vmatpush1.msra.mxu0 0.0
        %5292 = vmatprep.subr.mxu0 0.0
        %5293 = vmatpush1.msra.mxu0 0.0
        %5294 = vmatprep.subr.mxu0 0.0
        %5295 = vmatpush1.msra.mxu0 0.0
        %5296 = vmatprep.subr.mxu0 0.0
        %5297 = vmatpush1.msra.mxu0 0.0
        %5298 = vmatprep.subr.mxu0 0.0
        %5299 = vmatpush1.msra.mxu0 0.0
        %5300 = vmatprep.subr.mxu0 0.0
        %5301 = vmatpush1.msra.mxu0 0.0
        %5302 = vmatprep.mubr.f32.mxu0 0.0
        %5303 = vmatmul.mubr.f32.gmra.mrb[0].mxu0 %v5234
        %v5304 = vpop.f32.mrb[0].mxu0
        %v5305 = vadd.f32 0.0, %v5304
        %v5306 = vpop.f32.mrb[0].mxu0
        %5307 = vdwg.mxu0
        %5309 = vrot.lane.b32.xlu0 %v5305, 8
        %v5310 = vpop.permute.xlu0 %5309
        %5312 = vst.msk [vmem:[#allocation3 + $0xa] sm:$0x3] %vm1924, %v5310
        %5313 = vrot.lane.b32.xlu0 %v4978, 112
        %v5314 = vpop.permute.xlu0 %5313
        %5315 = vrot.lane.b32.xlu0 %v4979, 112
        %v5316 = vpop.permute.xlu0 %5315
        %v5317 = vsel %vm1585, %v5314, 0
        %v5319 = vsel %vm1585, %v5316, 0
        %5321 = vmatprep.subr.mxu0 0.0
        %5322 = vmatpush1.xpose.msra.mxu0 %v5319
        %5323 = vmatprep.subr.mxu0 0.0
        %5324 = vmatpush1.xpose.msra.mxu0 0.0
        %5325 = vmatprep.subr.mxu0 0.0
        %5326 = vmatpush1.xpose.msra.mxu0 0.0
        %5327 = vmatprep.subr.mxu0 0.0
        %5328 = vmatpush1.xpose.msra.mxu0 0.0
        %5329 = vmatprep.subr.mxu0 0.0
        %5330 = vmatpush1.xpose.msra.mxu0 0.0
        %5331 = vmatprep.subr.mxu0 0.0
        %5332 = vmatpush1.xpose.msra.mxu0 0.0
        %5333 = vmatprep.subr.mxu0 0.0
        %5334 = vmatpush1.xpose.msra.mxu0 0.0
        %5335 = vmatprep.subr.mxu0 0.0
        %5336 = vmatpush1.xpose.msra.mxu0 0.0
        %5337 = vmatprep.subr.mxu0 0.0
        %5338 = vmatpush1.xpose.msra.mxu0 0.0
        %5339 = vmatprep.subr.mxu0 0.0
        %5340 = vmatpush1.xpose.msra.mxu0 0.0
        %5341 = vmatprep.subr.mxu0 0.0
        %5342 = vmatpush1.xpose.msra.mxu0 0.0
        %5343 = vmatprep.subr.mxu0 0.0
        %5344 = vmatpush1.xpose.msra.mxu0 0.0
        %5345 = vmatprep.subr.mxu0 0.0
        %5346 = vmatpush1.xpose.msra.mxu0 0.0
        %5347 = vmatprep.subr.mxu0 0.0
        %5348 = vmatpush1.xpose.msra.mxu0 0.0
        %5349 = vmatprep.subr.mxu0 0.0
        %5350 = vmatpush1.xpose.msra.mxu0 0.0
        %5351 = vmatprep.subr.mxu0 0.0
        %5352 = vmatpush1.xpose.msra.mxu0 0.0
        %5353 = vmatprep.subr.mxu0 0.0
        %5354 = vmatpush1.xpose.msra.mxu0 0.0
        %5355 = vmatprep.subr.mxu0 0.0
        %5356 = vmatpush1.xpose.msra.mxu0 0.0
        %5357 = vmatprep.subr.mxu0 0.0
        %5358 = vmatpush1.xpose.msra.mxu0 0.0
        %5359 = vmatprep.subr.mxu0 0.0
        %5360 = vmatpush1.xpose.msra.mxu0 0.0
        %5361 = vmatprep.subr.mxu0 0.0
        %5362 = vmatpush1.xpose.msra.mxu0 0.0
        %5363 = vmatprep.subr.mxu0 0.0
        %5364 = vmatpush1.xpose.msra.mxu0 0.0
        %5365 = vmatprep.subr.mxu0 0.0
        %5366 = vmatpush1.xpose.msra.mxu0 0.0
        %5367 = vmatprep.subr.mxu0 0.0
        %5368 = vmatpush1.xpose.msra.mxu0 0.0
        %5369 = vmatprep.subr.mxu0 0.0
        %5370 = vmatpush1.xpose.msra.mxu0 0.0
        %5371 = vmatprep.subr.mxu0 0.0
        %5372 = vmatpush1.xpose.msra.mxu0 0.0
        %5373 = vmatprep.subr.mxu0 0.0
        %5374 = vmatpush1.xpose.msra.mxu0 0.0
        %5375 = vmatprep.subr.mxu0 0.0
        %5376 = vmatpush1.xpose.msra.mxu0 0.0
        %5377 = vmatprep.subr.mxu0 0.0
        %5378 = vmatpush1.xpose.msra.mxu0 0.0
        %5379 = vmatprep.subr.mxu0 0.0
        %5380 = vmatpush1.xpose.msra.mxu0 0.0
        %5381 = vmatprep.subr.mxu0 0.0
        %5382 = vmatpush1.xpose.msra.mxu0 0.0
        %5383 = vmatprep.subr.mxu0 0.0
        %5384 = vmatpush1.xpose.msra.mxu0 0.0
        %5385 = vmatprep.mubr.f32.mxu0 0.0
        %5386 = vmatmul.mubr.f32.gmra.mrb[0].mxu0 %v5317
        %v5387 = vpop.f32.mrb[0].mxu0
        %v5388 = vadd.f32 0.0, %v5387
        %v5389 = vpop.f32.mrb[0].mxu0
        %5390 = vdwg.mxu0
        %v5391 = vsel %vm1662, %v5388, -inf
        %5392 = vmax.xlane.f32.xlu0 %v5391
        %v5393 = vpop.xlane.xlu0 %5392
        %v5394 = vsub.f32 %v5388, %v5393
        %v5395 = vmul.f32 %v5394, 1.442695
        %v5396 = vpow.pop %v5395
        %v5397 = vsel %vm1662, %v5396, 0.0
        %5398 = vadd.xlane.f32.xlu0 %v5397
        %v5399 = vpop.xlane.xlu0 %5398
        %v5400 = vrcp.pop %v5399
        %v5401 = vmul.f32 %v5396, %v5400
        %5402 = vrot.lane.b32.xlu0 %v5065, 112
        %v5403 = vpop.permute.xlu0 %5402
        %v5405 = vsel %vm1674, %v5401, 0
        %v5407 = vsel %vm1678, %v5403, 0
        %5409 = vmatprep.subr.mxu0 0.0
        %5410 = vmatpush1.msra.mxu0 %v5407
        %5411 = vmatprep.subr.mxu0 0.0
        %5412 = vmatpush1.msra.mxu0 0.0
        %5413 = vmatprep.subr.mxu0 0.0
        %5414 = vmatpush1.msra.mxu0 0.0
        %5415 = vmatprep.subr.mxu0 0.0
        %5416 = vmatpush1.msra.mxu0 0.0
        %5417 = vmatprep.subr.mxu0 0.0
        %5418 = vmatpush1.msra.mxu0 0.0
        %5419 = vmatprep.subr.mxu0 0.0
        %5420 = vmatpush1.msra.mxu0 0.0
        %5421 = vmatprep.subr.mxu0 0.0
        %5422 = vmatpush1.msra.mxu0 0.0
        %5423 = vmatprep.subr.mxu0 0.0
        %5424 = vmatpush1.msra.mxu0 0.0
        %5425 = vmatprep.subr.mxu0 0.0
        %5426 = vmatpush1.msra.mxu0 0.0
        %5427 = vmatprep.subr.mxu0 0.0
        %5428 = vmatpush1.msra.mxu0 0.0
        %5429 = vmatprep.subr.mxu0 0.0
        %5430 = vmatpush1.msra.mxu0 0.0
        %5431 = vmatprep.subr.mxu0 0.0
        %5432 = vmatpush1.msra.mxu0 0.0
        %5433 = vmatprep.subr.mxu0 0.0
        %5434 = vmatpush1.msra.mxu0 0.0
        %5435 = vmatprep.subr.mxu0 0.0
        %5436 = vmatpush1.msra.mxu0 0.0
        %5437 = vmatprep.subr.mxu0 0.0
        %5438 = vmatpush1.msra.mxu0 0.0
        %5439 = vmatprep.subr.mxu0 0.0
        %5440 = vmatpush1.msra.mxu0 0.0
        %5441 = vmatprep.subr.mxu0 0.0
        %5442 = vmatpush1.msra.mxu0 0.0
        %5443 = vmatprep.subr.mxu0 0.0
        %5444 = vmatpush1.msra.mxu0 0.0
        %5445 = vmatprep.subr.mxu0 0.0
        %5446 = vmatpush1.msra.mxu0 0.0
        %5447 = vmatprep.subr.mxu0 0.0
        %5448 = vmatpush1.msra.mxu0 0.0
        %5449 = vmatprep.subr.mxu0 0.0
        %5450 = vmatpush1.msra.mxu0 0.0
        %5451 = vmatprep.subr.mxu0 0.0
        %5452 = vmatpush1.msra.mxu0 0.0
        %5453 = vmatprep.subr.mxu0 0.0
        %5454 = vmatpush1.msra.mxu0 0.0
        %5455 = vmatprep.subr.mxu0 0.0
        %5456 = vmatpush1.msra.mxu0 0.0
        %5457 = vmatprep.subr.mxu0 0.0
        %5458 = vmatpush1.msra.mxu0 0.0
        %5459 = vmatprep.subr.mxu0 0.0
        %5460 = vmatpush1.msra.mxu0 0.0
        %5461 = vmatprep.subr.mxu0 0.0
        %5462 = vmatpush1.msra.mxu0 0.0
        %5463 = vmatprep.subr.mxu0 0.0
        %5464 = vmatpush1.msra.mxu0 0.0
        %5465 = vmatprep.subr.mxu0 0.0
        %5466 = vmatpush1.msra.mxu0 0.0
        %5467 = vmatprep.subr.mxu0 0.0
        %5468 = vmatpush1.msra.mxu0 0.0
        %5469 = vmatprep.subr.mxu0 0.0
        %5470 = vmatpush1.msra.mxu0 0.0
        %5471 = vmatprep.subr.mxu0 0.0
        %5472 = vmatpush1.msra.mxu0 0.0
        %5473 = vmatprep.mubr.f32.mxu0 0.0
        %5474 = vmatmul.mubr.f32.gmra.mrb[0].mxu0 %v5405
        %v5475 = vpop.f32.mrb[0].mxu0
        %v5476 = vadd.f32 0.0, %v5475
        %v5477 = vpop.f32.mrb[0].mxu0
        %5478 = vdwg.mxu0
        %5480 = vrot.lane.b32.xlu0 %v5476, 16
        %v5481 = vpop.permute.xlu0 %5480
        %5483 = vst.msk [vmem:[#allocation3 + $0xa] sm:$0x3] %vm2096, %v5481
        %5484 = vrot.lane.b32.xlu0 %v4978, 104
        %v5485 = vpop.permute.xlu0 %5484
        %5486 = vrot.lane.b32.xlu0 %v4979, 104
        %v5487 = vpop.permute.xlu0 %5486
        %v5488 = vsel %vm1585, %v5485, 0
        %v5490 = vsel %vm1585, %v5487, 0
        %5492 = vmatprep.subr.mxu0 0.0
        %5493 = vmatpush1.xpose.msra.mxu0 %v5490
        %5494 = vmatprep.subr.mxu0 0.0
        %5495 = vmatpush1.xpose.msra.mxu0 0.0
        %5496 = vmatprep.subr.mxu0 0.0
        %5497 = vmatpush1.xpose.msra.mxu0 0.0
        %5498 = vmatprep.subr.mxu0 0.0
        %5499 = vmatpush1.xpose.msra.mxu0 0.0
        %5500 = vmatprep.subr.mxu0 0.0
        %5501 = vmatpush1.xpose.msra.mxu0 0.0
        %5502 = vmatprep.subr.mxu0 0.0
        %5503 = vmatpush1.xpose.msra.mxu0 0.0
        %5504 = vmatprep.subr.mxu0 0.0
        %5505 = vmatpush1.xpose.msra.mxu0 0.0
        %5506 = vmatprep.subr.mxu0 0.0
        %5507 = vmatpush1.xpose.msra.mxu0 0.0
        %5508 = vmatprep.subr.mxu0 0.0
        %5509 = vmatpush1.xpose.msra.mxu0 0.0
        %5510 = vmatprep.subr.mxu0 0.0
        %5511 = vmatpush1.xpose.msra.mxu0 0.0
        %5512 = vmatprep.subr.mxu0 0.0
        %5513 = vmatpush1.xpose.msra.mxu0 0.0
        %5514 = vmatprep.subr.mxu0 0.0
        %5515 = vmatpush1.xpose.msra.mxu0 0.0
        %5516 = vmatprep.subr.mxu0 0.0
        %5517 = vmatpush1.xpose.msra.mxu0 0.0
        %5518 = vmatprep.subr.mxu0 0.0
        %5519 = vmatpush1.xpose.msra.mxu0 0.0
        %5520 = vmatprep.subr.mxu0 0.0
        %5521 = vmatpush1.xpose.msra.mxu0 0.0
        %5522 = vmatprep.subr.mxu0 0.0
        %5523 = vmatpush1.xpose.msra.mxu0 0.0
        %5524 = vmatprep.subr.mxu0 0.0
        %5525 = vmatpush1.xpose.msra.mxu0 0.0
        %5526 = vmatprep.subr.mxu0 0.0
        %5527 = vmatpush1.xpose.msra.mxu0 0.0
        %5528 = vmatprep.subr.mxu0 0.0
        %5529 = vmatpush1.xpose.msra.mxu0 0.0
        %5530 = vmatprep.subr.mxu0 0.0
        %5531 = vmatpush1.xpose.msra.mxu0 0.0
        %5532 = vmatprep.subr.mxu0 0.0
        %5533 = vmatpush1.xpose.msra.mxu0 0.0
        %5534 = vmatprep.subr.mxu0 0.0
        %5535 = vmatpush1.xpose.msra.mxu0 0.0
        %5536 = vmatprep.subr.mxu0 0.0
        %5537 = vmatpush1.xpose.msra.mxu0 0.0
        %5538 = vmatprep.subr.mxu0 0.0
        %5539 = vmatpush1.xpose.msra.mxu0 0.0
        %5540 = vmatprep.subr.mxu0 0.0
        %5541 = vmatpush1.xpose.msra.mxu0 0.0
        %5542 = vmatprep.subr.mxu0 0.0
        %5543 = vmatpush1.xpose.msra.mxu0 0.0
        %5544 = vmatprep.subr.mxu0 0.0
        %5545 = vmatpush1.xpose.msra.mxu0 0.0
        %5546 = vmatprep.subr.mxu0 0.0
        %5547 = vmatpush1.xpose.msra.mxu0 0.0
        %5548 = vmatprep.subr.mxu0 0.0
        %5549 = vmatpush1.xpose.msra.mxu0 0.0
        %5550 = vmatprep.subr.mxu0 0.0
        %5551 = vmatpush1.xpose.msra.mxu0 0.0
        %5552 = vmatprep.subr.mxu0 0.0
        %5553 = vmatpush1.xpose.msra.mxu0 0.0
        %5554 = vmatprep.subr.mxu0 0.0
        %5555 = vmatpush1.xpose.msra.mxu0 0.0
        %5556 = vmatprep.mubr.f32.mxu0 0.0
        %5557 = vmatmul.mubr.f32.gmra.mrb[0].mxu0 %v5488
        %v5558 = vpop.f32.mrb[0].mxu0
        %v5559 = vadd.f32 0.0, %v5558
        %v5560 = vpop.f32.mrb[0].mxu0
        %5561 = vdwg.mxu0
        %v5562 = vsel %vm1662, %v5559, -inf
        %5563 = vmax.xlane.f32.xlu0 %v5562
        %v5564 = vpop.xlane.xlu0 %5563
        %v5565 = vsub.f32 %v5559, %v5564
        %v5566 = vmul.f32 %v5565, 1.442695
        %v5567 = vpow.pop %v5566
        %v5568 = vsel %vm1662, %v5567, 0.0
        %5569 = vadd.xlane.f32.xlu0 %v5568
        %v5570 = vpop.xlane.xlu0 %5569
        %v5571 = vrcp.pop %v5570
        %v5572 = vmul.f32 %v5567, %v5571
        %5573 = vrot.lane.b32.xlu0 %v5065, 104
        %v5574 = vpop.permute.xlu0 %5573
        %v5576 = vsel %vm1674, %v5572, 0
        %v5578 = vsel %vm1678, %v5574, 0
        %5580 = vmatprep.subr.mxu0 0.0
        %5581 = vmatpush1.msra.mxu0 %v5578
        %5582 = vmatprep.subr.mxu0 0.0
        %5583 = vmatpush1.msra.mxu0 0.0
        %5584 = vmatprep.subr.mxu0 0.0
        %5585 = vmatpush1.msra.mxu0 0.0
        %5586 = vmatprep.subr.mxu0 0.0
        %5587 = vmatpush1.msra.mxu0 0.0
        %5588 = vmatprep.subr.mxu0 0.0
        %5589 = vmatpush1.msra.mxu0 0.0
        %5590 = vmatprep.subr.mxu0 0.0
        %5591 = vmatpush1.msra.mxu0 0.0
        %5592 = vmatprep.subr.mxu0 0.0
        %5593 = vmatpush1.msra.mxu0 0.0
        %5594 = vmatprep.subr.mxu0 0.0
        %5595 = vmatpush1.msra.mxu0 0.0
        %5596 = vmatprep.subr.mxu0 0.0
        %5597 = vmatpush1.msra.mxu0 0.0
        %5598 = vmatprep.subr.mxu0 0.0
        %5599 = vmatpush1.msra.mxu0 0.0
        %5600 = vmatprep.subr.mxu0 0.0
        %5601 = vmatpush1.msra.mxu0 0.0
        %5602 = vmatprep.subr.mxu0 0.0
        %5603 = vmatpush1.msra.mxu0 0.0
        %5604 = vmatprep.subr.mxu0 0.0
        %5605 = vmatpush1.msra.mxu0 0.0
        %5606 = vmatprep.subr.mxu0 0.0
        %5607 = vmatpush1.msra.mxu0 0.0
        %5608 = vmatprep.subr.mxu0 0.0
        %5609 = vmatpush1.msra.mxu0 0.0
        %5610 = vmatprep.subr.mxu0 0.0
        %5611 = vmatpush1.msra.mxu0 0.0
        %5612 = vmatprep.subr.mxu0 0.0
        %5613 = vmatpush1.msra.mxu0 0.0
        %5614 = vmatprep.subr.mxu0 0.0
        %5615 = vmatpush1.msra.mxu0 0.0
        %5616 = vmatprep.subr.mxu0 0.0
        %5617 = vmatpush1.msra.mxu0 0.0
        %5618 = vmatprep.subr.mxu0 0.0
        %5619 = vmatpush1.msra.mxu0 0.0
        %5620 = vmatprep.subr.mxu0 0.0
        %5621 = vmatpush1.msra.mxu0 0.0
        %5622 = vmatprep.subr.mxu0 0.0
        %5623 = vmatpush1.msra.mxu0 0.0
        %5624 = vmatprep.subr.mxu0 0.0
        %5625 = vmatpush1.msra.mxu0 0.0
        %5626 = vmatprep.subr.mxu0 0.0
        %5627 = vmatpush1.msra.mxu0 0.0
        %5628 = vmatprep.subr.mxu0 0.0
        %5629 = vmatpush1.msra.mxu0 0.0
        %5630 = vmatprep.subr.mxu0 0.0
        %5631 = vmatpush1.msra.mxu0 0.0
        %5632 = vmatprep.subr.mxu0 0.0
        %5633 = vmatpush1.msra.mxu0 0.0
        %5634 = vmatprep.subr.mxu0 0.0
        %5635 = vmatpush1.msra.mxu0 0.0
        %5636 = vmatprep.subr.mxu0 0.0
        %5637 = vmatpush1.msra.mxu0 0.0
        %5638 = vmatprep.subr.mxu0 0.0
        %5639 = vmatpush1.msra.mxu0 0.0
        %5640 = vmatprep.subr.mxu0 0.0
        %5641 = vmatpush1.msra.mxu0 0.0
        %5642 = vmatprep.subr.mxu0 0.0
        %5643 = vmatpush1.msra.mxu0 0.0
        %5644 = vmatprep.mubr.f32.mxu0 0.0
        %5645 = vmatmul.mubr.f32.gmra.mrb[0].mxu0 %v5576
        %v5646 = vpop.f32.mrb[0].mxu0
        %v5647 = vadd.f32 0.0, %v5646
        %v5648 = vpop.f32.mrb[0].mxu0
        %5649 = vdwg.mxu0
        %5651 = vrot.lane.b32.xlu0 %v5647, 24
        %v5652 = vpop.permute.xlu0 %5651
        %5654 = vst.msk [vmem:[#allocation3 + $0xa] sm:$0x3] %vm2268, %v5652
        %v5655 = vrot.slane %v1456, 4
        %v5656 = vrot.slane %v1518, 4
        %v5657 = vsel %vm1585, %v5655, 0
        %v5659 = vsel %vm1585, %v5656, 0
        %5661 = vmatprep.subr.mxu0 0.0
        %5662 = vmatpush1.xpose.msra.mxu0 %v5659
        %5663 = vmatprep.subr.mxu0 0.0
        %5664 = vmatpush1.xpose.msra.mxu0 0.0
        %5665 = vmatprep.subr.mxu0 0.0
        %5666 = vmatpush1.xpose.msra.mxu0 0.0
        %5667 = vmatprep.subr.mxu0 0.0
        %5668 = vmatpush1.xpose.msra.mxu0 0.0
        %5669 = vmatprep.subr.mxu0 0.0
        %5670 = vmatpush1.xpose.msra.mxu0 0.0
        %5671 = vmatprep.subr.mxu0 0.0
        %5672 = vmatpush1.xpose.msra.mxu0 0.0
        %5673 = vmatprep.subr.mxu0 0.0
        %5674 = vmatpush1.xpose.msra.mxu0 0.0
        %5675 = vmatprep.subr.mxu0 0.0
        %5676 = vmatpush1.xpose.msra.mxu0 0.0
        %5677 = vmatprep.subr.mxu0 0.0
        %5678 = vmatpush1.xpose.msra.mxu0 0.0
        %5679 = vmatprep.subr.mxu0 0.0
        %5680 = vmatpush1.xpose.msra.mxu0 0.0
        %5681 = vmatprep.subr.mxu0 0.0
        %5682 = vmatpush1.xpose.msra.mxu0 0.0
        %5683 = vmatprep.subr.mxu0 0.0
        %5684 = vmatpush1.xpose.msra.mxu0 0.0
        %5685 = vmatprep.subr.mxu0 0.0
        %5686 = vmatpush1.xpose.msra.mxu0 0.0
        %5687 = vmatprep.subr.mxu0 0.0
        %5688 = vmatpush1.xpose.msra.mxu0 0.0
        %5689 = vmatprep.subr.mxu0 0.0
        %5690 = vmatpush1.xpose.msra.mxu0 0.0
        %5691 = vmatprep.subr.mxu0 0.0
        %5692 = vmatpush1.xpose.msra.mxu0 0.0
        %5693 = vmatprep.subr.mxu0 0.0
        %5694 = vmatpush1.xpose.msra.mxu0 0.0
        %5695 = vmatprep.subr.mxu0 0.0
        %5696 = vmatpush1.xpose.msra.mxu0 0.0
        %5697 = vmatprep.subr.mxu0 0.0
        %5698 = vmatpush1.xpose.msra.mxu0 0.0
        %5699 = vmatprep.subr.mxu0 0.0
        %5700 = vmatpush1.xpose.msra.mxu0 0.0
        %5701 = vmatprep.subr.mxu0 0.0
        %5702 = vmatpush1.xpose.msra.mxu0 0.0
        %5703 = vmatprep.subr.mxu0 0.0
        %5704 = vmatpush1.xpose.msra.mxu0 0.0
        %5705 = vmatprep.subr.mxu0 0.0
        %5706 = vmatpush1.xpose.msra.mxu0 0.0
        %5707 = vmatprep.subr.mxu0 0.0
        %5708 = vmatpush1.xpose.msra.mxu0 0.0
        %5709 = vmatprep.subr.mxu0 0.0
        %5710 = vmatpush1.xpose.msra.mxu0 0.0
        %5711 = vmatprep.subr.mxu0 0.0
        %5712 = vmatpush1.xpose.msra.mxu0 0.0
        %5713 = vmatprep.subr.mxu0 0.0
        %5714 = vmatpush1.xpose.msra.mxu0 0.0
        %5715 = vmatprep.subr.mxu0 0.0
        %5716 = vmatpush1.xpose.msra.mxu0 0.0
        %5717 = vmatprep.subr.mxu0 0.0
        %5718 = vmatpush1.xpose.msra.mxu0 0.0
        %5719 = vmatprep.subr.mxu0 0.0
        %5720 = vmatpush1.xpose.msra.mxu0 0.0
        %5721 = vmatprep.subr.mxu0 0.0
        %5722 = vmatpush1.xpose.msra.mxu0 0.0
        %5723 = vmatprep.subr.mxu0 0.0
        %5724 = vmatpush1.xpose.msra.mxu0 0.0
        %5725 = vmatprep.mubr.f32.mxu0 0.0
        %5726 = vmatmul.mubr.f32.gmra.mrb[0].mxu0 %v5657
        %v5727 = vpop.f32.mrb[0].mxu0
        %v5728 = vadd.f32 0.0, %v5727
        %v5729 = vpop.f32.mrb[0].mxu0
        %5730 = vdwg.mxu0
        %v5731 = vsel %vm1662, %v5728, -inf
        %5732 = vmax.xlane.f32.xlu0 %v5731
        %v5733 = vpop.xlane.xlu0 %5732
        %v5734 = vsub.f32 %v5728, %v5733
        %v5735 = vmul.f32 %v5734, 1.442695
        %v5736 = vpow.pop %v5735
        %v5737 = vsel %vm1662, %v5736, 0.0
        %5738 = vadd.xlane.f32.xlu0 %v5737
        %v5739 = vpop.xlane.xlu0 %5738
        %v5740 = vrcp.pop %v5739
        %v5741 = vmul.f32 %v5736, %v5740
        %v5742 = vrot.slane %v1582, 4
        %v5744 = vsel %vm1674, %v5741, 0
        %v5746 = vsel %vm1678, %v5742, 0
        %5748 = vmatprep.subr.mxu0 0.0
        %5749 = vmatpush1.msra.mxu0 %v5746
        %5750 = vmatprep.subr.mxu0 0.0
        %5751 = vmatpush1.msra.mxu0 0.0
        %5752 = vmatprep.subr.mxu0 0.0
        %5753 = vmatpush1.msra.mxu0 0.0
        %5754 = vmatprep.subr.mxu0 0.0
        %5755 = vmatpush1.msra.mxu0 0.0
        %5756 = vmatprep.subr.mxu0 0.0
        %5757 = vmatpush1.msra.mxu0 0.0
        %5758 = vmatprep.subr.mxu0 0.0
        %5759 = vmatpush1.msra.mxu0 0.0
        %5760 = vmatprep.subr.mxu0 0.0
        %5761 = vmatpush1.msra.mxu0 0.0
        %5762 = vmatprep.subr.mxu0 0.0
        %5763 = vmatpush1.msra.mxu0 0.0
        %5764 = vmatprep.subr.mxu0 0.0
        %5765 = vmatpush1.msra.mxu0 0.0
        %5766 = vmatprep.subr.mxu0 0.0
        %5767 = vmatpush1.msra.mxu0 0.0
        %5768 = vmatprep.subr.mxu0 0.0
        %5769 = vmatpush1.msra.mxu0 0.0
        %5770 = vmatprep.subr.mxu0 0.0
        %5771 = vmatpush1.msra.mxu0 0.0
        %5772 = vmatprep.subr.mxu0 0.0
        %5773 = vmatpush1.msra.mxu0 0.0
        %5774 = vmatprep.subr.mxu0 0.0
        %5775 = vmatpush1.msra.mxu0 0.0
        %5776 = vmatprep.subr.mxu0 0.0
        %5777 = vmatpush1.msra.mxu0 0.0
        %5778 = vmatprep.subr.mxu0 0.0
        %5779 = vmatpush1.msra.mxu0 0.0
        %5780 = vmatprep.subr.mxu0 0.0
        %5781 = vmatpush1.msra.mxu0 0.0
        %5782 = vmatprep.subr.mxu0 0.0
        %5783 = vmatpush1.msra.mxu0 0.0
        %5784 = vmatprep.subr.mxu0 0.0
        %5785 = vmatpush1.msra.mxu0 0.0
        %5786 = vmatprep.subr.mxu0 0.0
        %5787 = vmatpush1.msra.mxu0 0.0
        %5788 = vmatprep.subr.mxu0 0.0
        %5789 = vmatpush1.msra.mxu0 0.0
        %5790 = vmatprep.subr.mxu0 0.0
        %5791 = vmatpush1.msra.mxu0 0.0
        %5792 = vmatprep.subr.mxu0 0.0
        %5793 = vmatpush1.msra.mxu0 0.0
        %5794 = vmatprep.subr.mxu0 0.0
        %5795 = vmatpush1.msra.mxu0 0.0
        %5796 = vmatprep.subr.mxu0 0.0
        %5797 = vmatpush1.msra.mxu0 0.0
        %5798 = vmatprep.subr.mxu0 0.0
        %5799 = vmatpush1.msra.mxu0 0.0
        %5800 = vmatprep.subr.mxu0 0.0
        %5801 = vmatpush1.msra.mxu0 0.0
        %5802 = vmatprep.subr.mxu0 0.0
        %5803 = vmatpush1.msra.mxu0 0.0
        %5804 = vmatprep.subr.mxu0 0.0
        %5805 = vmatpush1.msra.mxu0 0.0
        %5806 = vmatprep.subr.mxu0 0.0
        %5807 = vmatpush1.msra.mxu0 0.0
        %5808 = vmatprep.subr.mxu0 0.0
        %5809 = vmatpush1.msra.mxu0 0.0
        %5810 = vmatprep.subr.mxu0 0.0
        %5811 = vmatpush1.msra.mxu0 0.0
        %5812 = vmatprep.mubr.f32.mxu0 0.0
        %5813 = vmatmul.mubr.f32.gmra.mrb[0].mxu0 %v5744
        %v5814 = vpop.f32.mrb[0].mxu0
        %v5815 = vadd.f32 0.0, %v5814
        %v5816 = vpop.f32.mrb[0].mxu0
        %5817 = vdwg.mxu0
        %5818 = vst.msk [vmem:[#allocation3 + $0xc] sm:$0x3] %vm1752, %v5815
        %5819 = vrot.lane.b32.xlu0 %v5655, 120
        %v5820 = vpop.permute.xlu0 %5819
        %5821 = vrot.lane.b32.xlu0 %v5656, 120
        %v5822 = vpop.permute.xlu0 %5821
        %v5823 = vsel %vm1585, %v5820, 0
        %v5825 = vsel %vm1585, %v5822, 0
        %5827 = vmatprep.subr.mxu0 0.0
        %5828 = vmatpush1.xpose.msra.mxu0 %v5825
        %5829 = vmatprep.subr.mxu0 0.0
        %5830 = vmatpush1.xpose.msra.mxu0 0.0
        %5831 = vmatprep.subr.mxu0 0.0
        %5832 = vmatpush1.xpose.msra.mxu0 0.0
        %5833 = vmatprep.subr.mxu0 0.0
        %5834 = vmatpush1.xpose.msra.mxu0 0.0
        %5835 = vmatprep.subr.mxu0 0.0
        %5836 = vmatpush1.xpose.msra.mxu0 0.0
        %5837 = vmatprep.subr.mxu0 0.0
        %5838 = vmatpush1.xpose.msra.mxu0 0.0
        %5839 = vmatprep.subr.mxu0 0.0
        %5840 = vmatpush1.xpose.msra.mxu0 0.0
        %5841 = vmatprep.subr.mxu0 0.0
        %5842 = vmatpush1.xpose.msra.mxu0 0.0
        %5843 = vmatprep.subr.mxu0 0.0
        %5844 = vmatpush1.xpose.msra.mxu0 0.0
        %5845 = vmatprep.subr.mxu0 0.0
        %5846 = vmatpush1.xpose.msra.mxu0 0.0
        %5847 = vmatprep.subr.mxu0 0.0
        %5848 = vmatpush1.xpose.msra.mxu0 0.0
        %5849 = vmatprep.subr.mxu0 0.0
        %5850 = vmatpush1.xpose.msra.mxu0 0.0
        %5851 = vmatprep.subr.mxu0 0.0
        %5852 = vmatpush1.xpose.msra.mxu0 0.0
        %5853 = vmatprep.subr.mxu0 0.0
        %5854 = vmatpush1.xpose.msra.mxu0 0.0
        %5855 = vmatprep.subr.mxu0 0.0
        %5856 = vmatpush1.xpose.msra.mxu0 0.0
        %5857 = vmatprep.subr.mxu0 0.0
        %5858 = vmatpush1.xpose.msra.mxu0 0.0
        %5859 = vmatprep.subr.mxu0 0.0
        %5860 = vmatpush1.xpose.msra.mxu0 0.0
        %5861 = vmatprep.subr.mxu0 0.0
        %5862 = vmatpush1.xpose.msra.mxu0 0.0
        %5863 = vmatprep.subr.mxu0 0.0
        %5864 = vmatpush1.xpose.msra.mxu0 0.0
        %5865 = vmatprep.subr.mxu0 0.0
        %5866 = vmatpush1.xpose.msra.mxu0 0.0
        %5867 = vmatprep.subr.mxu0 0.0
        %5868 = vmatpush1.xpose.msra.mxu0 0.0
        %5869 = vmatprep.subr.mxu0 0.0
        %5870 = vmatpush1.xpose.msra.mxu0 0.0
        %5871 = vmatprep.subr.mxu0 0.0
        %5872 = vmatpush1.xpose.msra.mxu0 0.0
        %5873 = vmatprep.subr.mxu0 0.0
        %5874 = vmatpush1.xpose.msra.mxu0 0.0
        %5875 = vmatprep.subr.mxu0 0.0
        %5876 = vmatpush1.xpose.msra.mxu0 0.0
        %5877 = vmatprep.subr.mxu0 0.0
        %5878 = vmatpush1.xpose.msra.mxu0 0.0
        %5879 = vmatprep.subr.mxu0 0.0
        %5880 = vmatpush1.xpose.msra.mxu0 0.0
        %5881 = vmatprep.subr.mxu0 0.0
        %5882 = vmatpush1.xpose.msra.mxu0 0.0
        %5883 = vmatprep.subr.mxu0 0.0
        %5884 = vmatpush1.xpose.msra.mxu0 0.0
        %5885 = vmatprep.subr.mxu0 0.0
        %5886 = vmatpush1.xpose.msra.mxu0 0.0
        %5887 = vmatprep.subr.mxu0 0.0
        %5888 = vmatpush1.xpose.msra.mxu0 0.0
        %5889 = vmatprep.subr.mxu0 0.0
        %5890 = vmatpush1.xpose.msra.mxu0 0.0
        %5891 = vmatprep.mubr.f32.mxu0 0.0
        %5892 = vmatmul.mubr.f32.gmra.mrb[0].mxu0 %v5823
        %v5893 = vpop.f32.mrb[0].mxu0
        %v5894 = vadd.f32 0.0, %v5893
        %v5895 = vpop.f32.mrb[0].mxu0
        %5896 = vdwg.mxu0
        %v5897 = vsel %vm1662, %v5894, -inf
        %5898 = vmax.xlane.f32.xlu0 %v5897
        %v5899 = vpop.xlane.xlu0 %5898
        %v5900 = vsub.f32 %v5894, %v5899
        %v5901 = vmul.f32 %v5900, 1.442695
        %v5902 = vpow.pop %v5901
        %v5903 = vsel %vm1662, %v5902, 0.0
        %5904 = vadd.xlane.f32.xlu0 %v5903
        %v5905 = vpop.xlane.xlu0 %5904
        %v5906 = vrcp.pop %v5905
        %v5907 = vmul.f32 %v5902, %v5906
        %5908 = vrot.lane.b32.xlu0 %v5742, 120
        %v5909 = vpop.permute.xlu0 %5908
        %v5911 = vsel %vm1674, %v5907, 0
        %v5913 = vsel %vm1678, %v5909, 0
        %5915 = vmatprep.subr.mxu0 0.0
        %5916 = vmatpush1.msra.mxu0 %v5913
        %5917 = vmatprep.subr.mxu0 0.0
        %5918 = vmatpush1.msra.mxu0 0.0
        %5919 = vmatprep.subr.mxu0 0.0
        %5920 = vmatpush1.msra.mxu0 0.0
        %5921 = vmatprep.subr.mxu0 0.0
        %5922 = vmatpush1.msra.mxu0 0.0
        %5923 = vmatprep.subr.mxu0 0.0
        %5924 = vmatpush1.msra.mxu0 0.0
        %5925 = vmatprep.subr.mxu0 0.0
        %5926 = vmatpush1.msra.mxu0 0.0
        %5927 = vmatprep.subr.mxu0 0.0
        %5928 = vmatpush1.msra.mxu0 0.0
        %5929 = vmatprep.subr.mxu0 0.0
        %5930 = vmatpush1.msra.mxu0 0.0
        %5931 = vmatprep.subr.mxu0 0.0
        %5932 = vmatpush1.msra.mxu0 0.0
        %5933 = vmatprep.subr.mxu0 0.0
        %5934 = vmatpush1.msra.mxu0 0.0
        %5935 = vmatprep.subr.mxu0 0.0
        %5936 = vmatpush1.msra.mxu0 0.0
        %5937 = vmatprep.subr.mxu0 0.0
        %5938 = vmatpush1.msra.mxu0 0.0
        %5939 = vmatprep.subr.mxu0 0.0
        %5940 = vmatpush1.msra.mxu0 0.0
        %5941 = vmatprep.subr.mxu0 0.0
        %5942 = vmatpush1.msra.mxu0 0.0
        %5943 = vmatprep.subr.mxu0 0.0
        %5944 = vmatpush1.msra.mxu0 0.0
        %5945 = vmatprep.subr.mxu0 0.0
        %5946 = vmatpush1.msra.mxu0 0.0
        %5947 = vmatprep.subr.mxu0 0.0
        %5948 = vmatpush1.msra.mxu0 0.0
        %5949 = vmatprep.subr.mxu0 0.0
        %5950 = vmatpush1.msra.mxu0 0.0
        %5951 = vmatprep.subr.mxu0 0.0
        %5952 = vmatpush1.msra.mxu0 0.0
        %5953 = vmatprep.subr.mxu0 0.0
        %5954 = vmatpush1.msra.mxu0 0.0
        %5955 = vmatprep.subr.mxu0 0.0
        %5956 = vmatpush1.msra.mxu0 0.0
        %5957 = vmatprep.subr.mxu0 0.0
        %5958 = vmatpush1.msra.mxu0 0.0
        %5959 = vmatprep.subr.mxu0 0.0
        %5960 = vmatpush1.msra.mxu0 0.0
        %5961 = vmatprep.subr.mxu0 0.0
        %5962 = vmatpush1.msra.mxu0 0.0
        %5963 = vmatprep.subr.mxu0 0.0
        %5964 = vmatpush1.msra.mxu0 0.0
        %5965 = vmatprep.subr.mxu0 0.0
        %5966 = vmatpush1.msra.mxu0 0.0
        %5967 = vmatprep.subr.mxu0 0.0
        %5968 = vmatpush1.msra.mxu0 0.0
        %5969 = vmatprep.subr.mxu0 0.0
        %5970 = vmatpush1.msra.mxu0 0.0
        %5971 = vmatprep.subr.mxu0 0.0
        %5972 = vmatpush1.msra.mxu0 0.0
        %5973 = vmatprep.subr.mxu0 0.0
        %5974 = vmatpush1.msra.mxu0 0.0
        %5975 = vmatprep.subr.mxu0 0.0
        %5976 = vmatpush1.msra.mxu0 0.0
        %5977 = vmatprep.subr.mxu0 0.0
        %5978 = vmatpush1.msra.mxu0 0.0
        %5979 = vmatprep.mubr.f32.mxu0 0.0
        %5980 = vmatmul.mubr.f32.gmra.mrb[0].mxu0 %v5911
        %v5981 = vpop.f32.mrb[0].mxu0
        %v5982 = vadd.f32 0.0, %v5981
        %v5983 = vpop.f32.mrb[0].mxu0
        %5984 = vdwg.mxu0
        %5986 = vrot.lane.b32.xlu0 %v5982, 8
        %v5987 = vpop.permute.xlu0 %5986
        %5989 = vst.msk [vmem:[#allocation3 + $0xc] sm:$0x3] %vm1924, %v5987
        %5990 = vrot.lane.b32.xlu0 %v5655, 112
        %v5991 = vpop.permute.xlu0 %5990
        %5992 = vrot.lane.b32.xlu0 %v5656, 112
        %v5993 = vpop.permute.xlu0 %5992
        %v5994 = vsel %vm1585, %v5991, 0
        %v5996 = vsel %vm1585, %v5993, 0
        %5998 = vmatprep.subr.mxu0 0.0
        %5999 = vmatpush1.xpose.msra.mxu0 %v5996
        %6000 = vmatprep.subr.mxu0 0.0
        %6001 = vmatpush1.xpose.msra.mxu0 0.0
        %6002 = vmatprep.subr.mxu0 0.0
        %6003 = vmatpush1.xpose.msra.mxu0 0.0
        %6004 = vmatprep.subr.mxu0 0.0
        %6005 = vmatpush1.xpose.msra.mxu0 0.0
        %6006 = vmatprep.subr.mxu0 0.0
        %6007 = vmatpush1.xpose.msra.mxu0 0.0
        %6008 = vmatprep.subr.mxu0 0.0
        %6009 = vmatpush1.xpose.msra.mxu0 0.0
        %6010 = vmatprep.subr.mxu0 0.0
        %6011 = vmatpush1.xpose.msra.mxu0 0.0
        %6012 = vmatprep.subr.mxu0 0.0
        %6013 = vmatpush1.xpose.msra.mxu0 0.0
        %6014 = vmatprep.subr.mxu0 0.0
        %6015 = vmatpush1.xpose.msra.mxu0 0.0
        %6016 = vmatprep.subr.mxu0 0.0
        %6017 = vmatpush1.xpose.msra.mxu0 0.0
        %6018 = vmatprep.subr.mxu0 0.0
        %6019 = vmatpush1.xpose.msra.mxu0 0.0
        %6020 = vmatprep.subr.mxu0 0.0
        %6021 = vmatpush1.xpose.msra.mxu0 0.0
        %6022 = vmatprep.subr.mxu0 0.0
        %6023 = vmatpush1.xpose.msra.mxu0 0.0
        %6024 = vmatprep.subr.mxu0 0.0
        %6025 = vmatpush1.xpose.msra.mxu0 0.0
        %6026 = vmatprep.subr.mxu0 0.0
        %6027 = vmatpush1.xpose.msra.mxu0 0.0
        %6028 = vmatprep.subr.mxu0 0.0
        %6029 = vmatpush1.xpose.msra.mxu0 0.0
        %6030 = vmatprep.subr.mxu0 0.0
        %6031 = vmatpush1.xpose.msra.mxu0 0.0
        %6032 = vmatprep.subr.mxu0 0.0
        %6033 = vmatpush1.xpose.msra.mxu0 0.0
        %6034 = vmatprep.subr.mxu0 0.0
        %6035 = vmatpush1.xpose.msra.mxu0 0.0
        %6036 = vmatprep.subr.mxu0 0.0
        %6037 = vmatpush1.xpose.msra.mxu0 0.0
        %6038 = vmatprep.subr.mxu0 0.0
        %6039 = vmatpush1.xpose.msra.mxu0 0.0
        %6040 = vmatprep.subr.mxu0 0.0
        %6041 = vmatpush1.xpose.msra.mxu0 0.0
        %6042 = vmatprep.subr.mxu0 0.0
        %6043 = vmatpush1.xpose.msra.mxu0 0.0
        %6044 = vmatprep.subr.mxu0 0.0
        %6045 = vmatpush1.xpose.msra.mxu0 0.0
        %6046 = vmatprep.subr.mxu0 0.0
        %6047 = vmatpush1.xpose.msra.mxu0 0.0
        %6048 = vmatprep.subr.mxu0 0.0
        %6049 = vmatpush1.xpose.msra.mxu0 0.0
        %6050 = vmatprep.subr.mxu0 0.0
        %6051 = vmatpush1.xpose.msra.mxu0 0.0
        %6052 = vmatprep.subr.mxu0 0.0
        %6053 = vmatpush1.xpose.msra.mxu0 0.0
        %6054 = vmatprep.subr.mxu0 0.0
        %6055 = vmatpush1.xpose.msra.mxu0 0.0
        %6056 = vmatprep.subr.mxu0 0.0
        %6057 = vmatpush1.xpose.msra.mxu0 0.0
        %6058 = vmatprep.subr.mxu0 0.0
        %6059 = vmatpush1.xpose.msra.mxu0 0.0
        %6060 = vmatprep.subr.mxu0 0.0
        %6061 = vmatpush1.xpose.msra.mxu0 0.0
        %6062 = vmatprep.mubr.f32.mxu0 0.0
        %6063 = vmatmul.mubr.f32.gmra.mrb[0].mxu0 %v5994
        %v6064 = vpop.f32.mrb[0].mxu0
        %v6065 = vadd.f32 0.0, %v6064
        %v6066 = vpop.f32.mrb[0].mxu0
        %6067 = vdwg.mxu0
        %v6068 = vsel %vm1662, %v6065, -inf
        %6069 = vmax.xlane.f32.xlu0 %v6068
        %v6070 = vpop.xlane.xlu0 %6069
        %v6071 = vsub.f32 %v6065, %v6070
        %v6072 = vmul.f32 %v6071, 1.442695
        %v6073 = vpow.pop %v6072
        %v6074 = vsel %vm1662, %v6073, 0.0
        %6075 = vadd.xlane.f32.xlu0 %v6074
        %v6076 = vpop.xlane.xlu0 %6075
        %v6077 = vrcp.pop %v6076
        %v6078 = vmul.f32 %v6073, %v6077
        %6079 = vrot.lane.b32.xlu0 %v5742, 112
        %v6080 = vpop.permute.xlu0 %6079
        %v6082 = vsel %vm1674, %v6078, 0
        %v6084 = vsel %vm1678, %v6080, 0
        %6086 = vmatprep.subr.mxu0 0.0
        %6087 = vmatpush1.msra.mxu0 %v6084
        %6088 = vmatprep.subr.mxu0 0.0
        %6089 = vmatpush1.msra.mxu0 0.0
        %6090 = vmatprep.subr.mxu0 0.0
        %6091 = vmatpush1.msra.mxu0 0.0
        %6092 = vmatprep.subr.mxu0 0.0
        %6093 = vmatpush1.msra.mxu0 0.0
        %6094 = vmatprep.subr.mxu0 0.0
        %6095 = vmatpush1.msra.mxu0 0.0
        %6096 = vmatprep.subr.mxu0 0.0
        %6097 = vmatpush1.msra.mxu0 0.0
        %6098 = vmatprep.subr.mxu0 0.0
        %6099 = vmatpush1.msra.mxu0 0.0
        %6100 = vmatprep.subr.mxu0 0.0
        %6101 = vmatpush1.msra.mxu0 0.0
        %6102 = vmatprep.subr.mxu0 0.0
        %6103 = vmatpush1.msra.mxu0 0.0
        %6104 = vmatprep.subr.mxu0 0.0
        %6105 = vmatpush1.msra.mxu0 0.0
        %6106 = vmatprep.subr.mxu0 0.0
        %6107 = vmatpush1.msra.mxu0 0.0
        %6108 = vmatprep.subr.mxu0 0.0
        %6109 = vmatpush1.msra.mxu0 0.0
        %6110 = vmatprep.subr.mxu0 0.0
        %6111 = vmatpush1.msra.mxu0 0.0
        %6112 = vmatprep.subr.mxu0 0.0
        %6113 = vmatpush1.msra.mxu0 0.0
        %6114 = vmatprep.subr.mxu0 0.0
        %6115 = vmatpush1.msra.mxu0 0.0
        %6116 = vmatprep.subr.mxu0 0.0
        %6117 = vmatpush1.msra.mxu0 0.0
        %6118 = vmatprep.subr.mxu0 0.0
        %6119 = vmatpush1.msra.mxu0 0.0
        %6120 = vmatprep.subr.mxu0 0.0
        %6121 = vmatpush1.msra.mxu0 0.0
        %6122 = vmatprep.subr.mxu0 0.0
        %6123 = vmatpush1.msra.mxu0 0.0
        %6124 = vmatprep.subr.mxu0 0.0
        %6125 = vmatpush1.msra.mxu0 0.0
        %6126 = vmatprep.subr.mxu0 0.0
        %6127 = vmatpush1.msra.mxu0 0.0
        %6128 = vmatprep.subr.mxu0 0.0
        %6129 = vmatpush1.msra.mxu0 0.0
        %6130 = vmatprep.subr.mxu0 0.0
        %6131 = vmatpush1.msra.mxu0 0.0
        %6132 = vmatprep.subr.mxu0 0.0
        %6133 = vmatpush1.msra.mxu0 0.0
        %6134 = vmatprep.subr.mxu0 0.0
        %6135 = vmatpush1.msra.mxu0 0.0
        %6136 = vmatprep.subr.mxu0 0.0
        %6137 = vmatpush1.msra.mxu0 0.0
        %6138 = vmatprep.subr.mxu0 0.0
        %6139 = vmatpush1.msra.mxu0 0.0
        %6140 = vmatprep.subr.mxu0 0.0
        %6141 = vmatpush1.msra.mxu0 0.0
        %6142 = vmatprep.subr.mxu0 0.0
        %6143 = vmatpush1.msra.mxu0 0.0
        %6144 = vmatprep.subr.mxu0 0.0
        %6145 = vmatpush1.msra.mxu0 0.0
        %6146 = vmatprep.subr.mxu0 0.0
        %6147 = vmatpush1.msra.mxu0 0.0
        %6148 = vmatprep.subr.mxu0 0.0
        %6149 = vmatpush1.msra.mxu0 0.0
        %6150 = vmatprep.mubr.f32.mxu0 0.0
        %6151 = vmatmul.mubr.f32.gmra.mrb[0].mxu0 %v6082
        %v6152 = vpop.f32.mrb[0].mxu0
        %v6153 = vadd.f32 0.0, %v6152
        %v6154 = vpop.f32.mrb[0].mxu0
        %6155 = vdwg.mxu0
        %6157 = vrot.lane.b32.xlu0 %v6153, 16
        %v6158 = vpop.permute.xlu0 %6157
        %6160 = vst.msk [vmem:[#allocation3 + $0xc] sm:$0x3] %vm2096, %v6158
        %6161 = vrot.lane.b32.xlu0 %v5655, 104
        %v6162 = vpop.permute.xlu0 %6161
        %6163 = vrot.lane.b32.xlu0 %v5656, 104
        %v6164 = vpop.permute.xlu0 %6163
        %v6165 = vsel %vm1585, %v6162, 0
        %v6167 = vsel %vm1585, %v6164, 0
        %6169 = vmatprep.subr.mxu0 0.0
        %6170 = vmatpush1.xpose.msra.mxu0 %v6167
        %6171 = vmatprep.subr.mxu0 0.0
        %6172 = vmatpush1.xpose.msra.mxu0 0.0
        %6173 = vmatprep.subr.mxu0 0.0
        %6174 = vmatpush1.xpose.msra.mxu0 0.0
        %6175 = vmatprep.subr.mxu0 0.0
        %6176 = vmatpush1.xpose.msra.mxu0 0.0
        %6177 = vmatprep.subr.mxu0 0.0
        %6178 = vmatpush1.xpose.msra.mxu0 0.0
        %6179 = vmatprep.subr.mxu0 0.0
        %6180 = vmatpush1.xpose.msra.mxu0 0.0
        %6181 = vmatprep.subr.mxu0 0.0
        %6182 = vmatpush1.xpose.msra.mxu0 0.0
        %6183 = vmatprep.subr.mxu0 0.0
        %6184 = vmatpush1.xpose.msra.mxu0 0.0
        %6185 = vmatprep.subr.mxu0 0.0
        %6186 = vmatpush1.xpose.msra.mxu0 0.0
        %6187 = vmatprep.subr.mxu0 0.0
        %6188 = vmatpush1.xpose.msra.mxu0 0.0
        %6189 = vmatprep.subr.mxu0 0.0
        %6190 = vmatpush1.xpose.msra.mxu0 0.0
        %6191 = vmatprep.subr.mxu0 0.0
        %6192 = vmatpush1.xpose.msra.mxu0 0.0
        %6193 = vmatprep.subr.mxu0 0.0
        %6194 = vmatpush1.xpose.msra.mxu0 0.0
        %6195 = vmatprep.subr.mxu0 0.0
        %6196 = vmatpush1.xpose.msra.mxu0 0.0
        %6197 = vmatprep.subr.mxu0 0.0
        %6198 = vmatpush1.xpose.msra.mxu0 0.0
        %6199 = vmatprep.subr.mxu0 0.0
        %6200 = vmatpush1.xpose.msra.mxu0 0.0
        %6201 = vmatprep.subr.mxu0 0.0
        %6202 = vmatpush1.xpose.msra.mxu0 0.0
        %6203 = vmatprep.subr.mxu0 0.0
        %6204 = vmatpush1.xpose.msra.mxu0 0.0
        %6205 = vmatprep.subr.mxu0 0.0
        %6206 = vmatpush1.xpose.msra.mxu0 0.0
        %6207 = vmatprep.subr.mxu0 0.0
        %6208 = vmatpush1.xpose.msra.mxu0 0.0
        %6209 = vmatprep.subr.mxu0 0.0
        %6210 = vmatpush1.xpose.msra.mxu0 0.0
        %6211 = vmatprep.subr.mxu0 0.0
        %6212 = vmatpush1.xpose.msra.mxu0 0.0
        %6213 = vmatprep.subr.mxu0 0.0
        %6214 = vmatpush1.xpose.msra.mxu0 0.0
        %6215 = vmatprep.subr.mxu0 0.0
        %6216 = vmatpush1.xpose.msra.mxu0 0.0
        %6217 = vmatprep.subr.mxu0 0.0
        %6218 = vmatpush1.xpose.msra.mxu0 0.0
        %6219 = vmatprep.subr.mxu0 0.0
        %6220 = vmatpush1.xpose.msra.mxu0 0.0
        %6221 = vmatprep.subr.mxu0 0.0
        %6222 = vmatpush1.xpose.msra.mxu0 0.0
        %6223 = vmatprep.subr.mxu0 0.0
        %6224 = vmatpush1.xpose.msra.mxu0 0.0
        %6225 = vmatprep.subr.mxu0 0.0
        %6226 = vmatpush1.xpose.msra.mxu0 0.0
        %6227 = vmatprep.subr.mxu0 0.0
        %6228 = vmatpush1.xpose.msra.mxu0 0.0
        %6229 = vmatprep.subr.mxu0 0.0
        %6230 = vmatpush1.xpose.msra.mxu0 0.0
        %6231 = vmatprep.subr.mxu0 0.0
        %6232 = vmatpush1.xpose.msra.mxu0 0.0
        %6233 = vmatprep.mubr.f32.mxu0 0.0
        %6234 = vmatmul.mubr.f32.gmra.mrb[0].mxu0 %v6165
        %v6235 = vpop.f32.mrb[0].mxu0
        %v6236 = vadd.f32 0.0, %v6235
        %v6237 = vpop.f32.mrb[0].mxu0
        %6238 = vdwg.mxu0
        %v6239 = vsel %vm1662, %v6236, -inf
        %6240 = vmax.xlane.f32.xlu0 %v6239
        %v6241 = vpop.xlane.xlu0 %6240
        %v6242 = vsub.f32 %v6236, %v6241
        %v6243 = vmul.f32 %v6242, 1.442695
        %v6244 = vpow.pop %v6243
        %v6245 = vsel %vm1662, %v6244, 0.0
        %6246 = vadd.xlane.f32.xlu0 %v6245
        %v6247 = vpop.xlane.xlu0 %6246
        %v6248 = vrcp.pop %v6247
        %v6249 = vmul.f32 %v6244, %v6248
        %6250 = vrot.lane.b32.xlu0 %v5742, 104
        %v6251 = vpop.permute.xlu0 %6250
        %v6253 = vsel %vm1674, %v6249, 0
        %v6255 = vsel %vm1678, %v6251, 0
        %6257 = vmatprep.subr.mxu0 0.0
        %6258 = vmatpush1.msra.mxu0 %v6255
        %6259 = vmatprep.subr.mxu0 0.0
        %6260 = vmatpush1.msra.mxu0 0.0
        %6261 = vmatprep.subr.mxu0 0.0
        %6262 = vmatpush1.msra.mxu0 0.0
        %6263 = vmatprep.subr.mxu0 0.0
        %6264 = vmatpush1.msra.mxu0 0.0
        %6265 = vmatprep.subr.mxu0 0.0
        %6266 = vmatpush1.msra.mxu0 0.0
        %6267 = vmatprep.subr.mxu0 0.0
        %6268 = vmatpush1.msra.mxu0 0.0
        %6269 = vmatprep.subr.mxu0 0.0
        %6270 = vmatpush1.msra.mxu0 0.0
        %6271 = vmatprep.subr.mxu0 0.0
        %6272 = vmatpush1.msra.mxu0 0.0
        %6273 = vmatprep.subr.mxu0 0.0
        %6274 = vmatpush1.msra.mxu0 0.0
        %6275 = vmatprep.subr.mxu0 0.0
        %6276 = vmatpush1.msra.mxu0 0.0
        %6277 = vmatprep.subr.mxu0 0.0
        %6278 = vmatpush1.msra.mxu0 0.0
        %6279 = vmatprep.subr.mxu0 0.0
        %6280 = vmatpush1.msra.mxu0 0.0
        %6281 = vmatprep.subr.mxu0 0.0
        %6282 = vmatpush1.msra.mxu0 0.0
        %6283 = vmatprep.subr.mxu0 0.0
        %6284 = vmatpush1.msra.mxu0 0.0
        %6285 = vmatprep.subr.mxu0 0.0
        %6286 = vmatpush1.msra.mxu0 0.0
        %6287 = vmatprep.subr.mxu0 0.0
        %6288 = vmatpush1.msra.mxu0 0.0
        %6289 = vmatprep.subr.mxu0 0.0
        %6290 = vmatpush1.msra.mxu0 0.0
        %6291 = vmatprep.subr.mxu0 0.0
        %6292 = vmatpush1.msra.mxu0 0.0
        %6293 = vmatprep.subr.mxu0 0.0
        %6294 = vmatpush1.msra.mxu0 0.0
        %6295 = vmatprep.subr.mxu0 0.0
        %6296 = vmatpush1.msra.mxu0 0.0
        %6297 = vmatprep.subr.mxu0 0.0
        %6298 = vmatpush1.msra.mxu0 0.0
        %6299 = vmatprep.subr.mxu0 0.0
        %6300 = vmatpush1.msra.mxu0 0.0
        %6301 = vmatprep.subr.mxu0 0.0
        %6302 = vmatpush1.msra.mxu0 0.0
        %6303 = vmatprep.subr.mxu0 0.0
        %6304 = vmatpush1.msra.mxu0 0.0
        %6305 = vmatprep.subr.mxu0 0.0
        %6306 = vmatpush1.msra.mxu0 0.0
        %6307 = vmatprep.subr.mxu0 0.0
        %6308 = vmatpush1.msra.mxu0 0.0
        %6309 = vmatprep.subr.mxu0 0.0
        %6310 = vmatpush1.msra.mxu0 0.0
        %6311 = vmatprep.subr.mxu0 0.0
        %6312 = vmatpush1.msra.mxu0 0.0
        %6313 = vmatprep.subr.mxu0 0.0
        %6314 = vmatpush1.msra.mxu0 0.0
        %6315 = vmatprep.subr.mxu0 0.0
        %6316 = vmatpush1.msra.mxu0 0.0
        %6317 = vmatprep.subr.mxu0 0.0
        %6318 = vmatpush1.msra.mxu0 0.0
        %6319 = vmatprep.subr.mxu0 0.0
        %6320 = vmatpush1.msra.mxu0 0.0
        %6321 = vmatprep.mubr.f32.mxu0 0.0
        %6322 = vmatmul.mubr.f32.gmra.mrb[0].mxu0 %v6253
        %v6323 = vpop.f32.mrb[0].mxu0
        %v6324 = vadd.f32 0.0, %v6323
        %v6325 = vpop.f32.mrb[0].mxu0
        %6326 = vdwg.mxu0
        %6328 = vrot.lane.b32.xlu0 %v6324, 24
        %v6329 = vpop.permute.xlu0 %6328
        %6331 = vst.msk [vmem:[#allocation3 + $0xc] sm:$0x3] %vm2268, %v6329
        %v6332 = vrot.slane %v1456, 6
        %v6333 = vrot.slane %v1518, 6
        %v6334 = vsel %vm1585, %v6332, 0
        %v6336 = vsel %vm1585, %v6333, 0
        %6338 = vmatprep.subr.mxu0 0.0
        %6339 = vmatpush1.xpose.msra.mxu0 %v6336
        %6340 = vmatprep.subr.mxu0 0.0
        %6341 = vmatpush1.xpose.msra.mxu0 0.0
        %6342 = vmatprep.subr.mxu0 0.0
        %6343 = vmatpush1.xpose.msra.mxu0 0.0
        %6344 = vmatprep.subr.mxu0 0.0
        %6345 = vmatpush1.xpose.msra.mxu0 0.0
        %6346 = vmatprep.subr.mxu0 0.0
        %6347 = vmatpush1.xpose.msra.mxu0 0.0
        %6348 = vmatprep.subr.mxu0 0.0
        %6349 = vmatpush1.xpose.msra.mxu0 0.0
        %6350 = vmatprep.subr.mxu0 0.0
        %6351 = vmatpush1.xpose.msra.mxu0 0.0
        %6352 = vmatprep.subr.mxu0 0.0
        %6353 = vmatpush1.xpose.msra.mxu0 0.0
        %6354 = vmatprep.subr.mxu0 0.0
        %6355 = vmatpush1.xpose.msra.mxu0 0.0
        %6356 = vmatprep.subr.mxu0 0.0
        %6357 = vmatpush1.xpose.msra.mxu0 0.0
        %6358 = vmatprep.subr.mxu0 0.0
        %6359 = vmatpush1.xpose.msra.mxu0 0.0
        %6360 = vmatprep.subr.mxu0 0.0
        %6361 = vmatpush1.xpose.msra.mxu0 0.0
        %6362 = vmatprep.subr.mxu0 0.0
        %6363 = vmatpush1.xpose.msra.mxu0 0.0
        %6364 = vmatprep.subr.mxu0 0.0
        %6365 = vmatpush1.xpose.msra.mxu0 0.0
        %6366 = vmatprep.subr.mxu0 0.0
        %6367 = vmatpush1.xpose.msra.mxu0 0.0
        %6368 = vmatprep.subr.mxu0 0.0
        %6369 = vmatpush1.xpose.msra.mxu0 0.0
        %6370 = vmatprep.subr.mxu0 0.0
        %6371 = vmatpush1.xpose.msra.mxu0 0.0
        %6372 = vmatprep.subr.mxu0 0.0
        %6373 = vmatpush1.xpose.msra.mxu0 0.0
        %6374 = vmatprep.subr.mxu0 0.0
        %6375 = vmatpush1.xpose.msra.mxu0 0.0
        %6376 = vmatprep.subr.mxu0 0.0
        %6377 = vmatpush1.xpose.msra.mxu0 0.0
        %6378 = vmatprep.subr.mxu0 0.0
        %6379 = vmatpush1.xpose.msra.mxu0 0.0
        %6380 = vmatprep.subr.mxu0 0.0
        %6381 = vmatpush1.xpose.msra.mxu0 0.0
        %6382 = vmatprep.subr.mxu0 0.0
        %6383 = vmatpush1.xpose.msra.mxu0 0.0
        %6384 = vmatprep.subr.mxu0 0.0
        %6385 = vmatpush1.xpose.msra.mxu0 0.0
        %6386 = vmatprep.subr.mxu0 0.0
        %6387 = vmatpush1.xpose.msra.mxu0 0.0
        %6388 = vmatprep.subr.mxu0 0.0
        %6389 = vmatpush1.xpose.msra.mxu0 0.0
        %6390 = vmatprep.subr.mxu0 0.0
        %6391 = vmatpush1.xpose.msra.mxu0 0.0
        %6392 = vmatprep.subr.mxu0 0.0
        %6393 = vmatpush1.xpose.msra.mxu0 0.0
        %6394 = vmatprep.subr.mxu0 0.0
        %6395 = vmatpush1.xpose.msra.mxu0 0.0
        %6396 = vmatprep.subr.mxu0 0.0
        %6397 = vmatpush1.xpose.msra.mxu0 0.0
        %6398 = vmatprep.subr.mxu0 0.0
        %6399 = vmatpush1.xpose.msra.mxu0 0.0
        %6400 = vmatprep.subr.mxu0 0.0
        %6401 = vmatpush1.xpose.msra.mxu0 0.0
        %6402 = vmatprep.mubr.f32.mxu0 0.0
        %6403 = vmatmul.mubr.f32.gmra.mrb[0].mxu0 %v6334
        %v6404 = vpop.f32.mrb[0].mxu0
        %v6405 = vadd.f32 0.0, %v6404
        %v6406 = vpop.f32.mrb[0].mxu0
        %6407 = vdwg.mxu0
        %v6408 = vsel %vm1662, %v6405, -inf
        %6409 = vmax.xlane.f32.xlu0 %v6408
        %v6410 = vpop.xlane.xlu0 %6409
        %v6411 = vsub.f32 %v6405, %v6410
        %v6412 = vmul.f32 %v6411, 1.442695
        %v6413 = vpow.pop %v6412
        %v6414 = vsel %vm1662, %v6413, 0.0
        %6415 = vadd.xlane.f32.xlu0 %v6414
        %v6416 = vpop.xlane.xlu0 %6415
        %v6417 = vrcp.pop %v6416
        %v6418 = vmul.f32 %v6413, %v6417
        %v6419 = vrot.slane %v1582, 6
        %v6421 = vsel %vm1674, %v6418, 0
        %v6423 = vsel %vm1678, %v6419, 0
        %6425 = vmatprep.subr.mxu0 0.0
        %6426 = vmatpush1.msra.mxu0 %v6423
        %6427 = vmatprep.subr.mxu0 0.0
        %6428 = vmatpush1.msra.mxu0 0.0
        %6429 = vmatprep.subr.mxu0 0.0
        %6430 = vmatpush1.msra.mxu0 0.0
        %6431 = vmatprep.subr.mxu0 0.0
        %6432 = vmatpush1.msra.mxu0 0.0
        %6433 = vmatprep.subr.mxu0 0.0
        %6434 = vmatpush1.msra.mxu0 0.0
        %6435 = vmatprep.subr.mxu0 0.0
        %6436 = vmatpush1.msra.mxu0 0.0
        %6437 = vmatprep.subr.mxu0 0.0
        %6438 = vmatpush1.msra.mxu0 0.0
        %6439 = vmatprep.subr.mxu0 0.0
        %6440 = vmatpush1.msra.mxu0 0.0
        %6441 = vmatprep.subr.mxu0 0.0
        %6442 = vmatpush1.msra.mxu0 0.0
        %6443 = vmatprep.subr.mxu0 0.0
        %6444 = vmatpush1.msra.mxu0 0.0
        %6445 = vmatprep.subr.mxu0 0.0
        %6446 = vmatpush1.msra.mxu0 0.0
        %6447 = vmatprep.subr.mxu0 0.0
        %6448 = vmatpush1.msra.mxu0 0.0
        %6449 = vmatprep.subr.mxu0 0.0
        %6450 = vmatpush1.msra.mxu0 0.0
        %6451 = vmatprep.subr.mxu0 0.0
        %6452 = vmatpush1.msra.mxu0 0.0
        %6453 = vmatprep.subr.mxu0 0.0
        %6454 = vmatpush1.msra.mxu0 0.0
        %6455 = vmatprep.subr.mxu0 0.0
        %6456 = vmatpush1.msra.mxu0 0.0
        %6457 = vmatprep.subr.mxu0 0.0
        %6458 = vmatpush1.msra.mxu0 0.0
        %6459 = vmatprep.subr.mxu0 0.0
        %6460 = vmatpush1.msra.mxu0 0.0
        %6461 = vmatprep.subr.mxu0 0.0
        %6462 = vmatpush1.msra.mxu0 0.0
        %6463 = vmatprep.subr.mxu0 0.0
        %6464 = vmatpush1.msra.mxu0 0.0
        %6465 = vmatprep.subr.mxu0 0.0
        %6466 = vmatpush1.msra.mxu0 0.0
        %6467 = vmatprep.subr.mxu0 0.0
        %6468 = vmatpush1.msra.mxu0 0.0
        %6469 = vmatprep.subr.mxu0 0.0
        %6470 = vmatpush1.msra.mxu0 0.0
        %6471 = vmatprep.subr.mxu0 0.0
        %6472 = vmatpush1.msra.mxu0 0.0
        %6473 = vmatprep.subr.mxu0 0.0
        %6474 = vmatpush1.msra.mxu0 0.0
        %6475 = vmatprep.subr.mxu0 0.0
        %6476 = vmatpush1.msra.mxu0 0.0
        %6477 = vmatprep.subr.mxu0 0.0
        %6478 = vmatpush1.msra.mxu0 0.0
        %6479 = vmatprep.subr.mxu0 0.0
        %6480 = vmatpush1.msra.mxu0 0.0
        %6481 = vmatprep.subr.mxu0 0.0
        %6482 = vmatpush1.msra.mxu0 0.0
        %6483 = vmatprep.subr.mxu0 0.0
        %6484 = vmatpush1.msra.mxu0 0.0
        %6485 = vmatprep.subr.mxu0 0.0
        %6486 = vmatpush1.msra.mxu0 0.0
        %6487 = vmatprep.subr.mxu0 0.0
        %6488 = vmatpush1.msra.mxu0 0.0
        %6489 = vmatprep.mubr.f32.mxu0 0.0
        %6490 = vmatmul.mubr.f32.gmra.mrb[0].mxu0 %v6421
        %v6491 = vpop.f32.mrb[0].mxu0
        %v6492 = vadd.f32 0.0, %v6491
        %v6493 = vpop.f32.mrb[0].mxu0
        %6494 = vdwg.mxu0
        %6495 = vst.msk [vmem:[#allocation3 + $0xe] sm:$0x3] %vm1752, %v6492
        %6496 = vrot.lane.b32.xlu0 %v6332, 120
        %v6497 = vpop.permute.xlu0 %6496
        %6498 = vrot.lane.b32.xlu0 %v6333, 120
        %v6499 = vpop.permute.xlu0 %6498
        %v6500 = vsel %vm1585, %v6497, 0
        %v6502 = vsel %vm1585, %v6499, 0
        %6504 = vmatprep.subr.mxu0 0.0
        %6505 = vmatpush1.xpose.msra.mxu0 %v6502
        %6506 = vmatprep.subr.mxu0 0.0
        %6507 = vmatpush1.xpose.msra.mxu0 0.0
        %6508 = vmatprep.subr.mxu0 0.0
        %6509 = vmatpush1.xpose.msra.mxu0 0.0
        %6510 = vmatprep.subr.mxu0 0.0
        %6511 = vmatpush1.xpose.msra.mxu0 0.0
        %6512 = vmatprep.subr.mxu0 0.0
        %6513 = vmatpush1.xpose.msra.mxu0 0.0
        %6514 = vmatprep.subr.mxu0 0.0
        %6515 = vmatpush1.xpose.msra.mxu0 0.0
        %6516 = vmatprep.subr.mxu0 0.0
        %6517 = vmatpush1.xpose.msra.mxu0 0.0
        %6518 = vmatprep.subr.mxu0 0.0
        %6519 = vmatpush1.xpose.msra.mxu0 0.0
        %6520 = vmatprep.subr.mxu0 0.0
        %6521 = vmatpush1.xpose.msra.mxu0 0.0
        %6522 = vmatprep.subr.mxu0 0.0
        %6523 = vmatpush1.xpose.msra.mxu0 0.0
        %6524 = vmatprep.subr.mxu0 0.0
        %6525 = vmatpush1.xpose.msra.mxu0 0.0
        %6526 = vmatprep.subr.mxu0 0.0
        %6527 = vmatpush1.xpose.msra.mxu0 0.0
        %6528 = vmatprep.subr.mxu0 0.0
        %6529 = vmatpush1.xpose.msra.mxu0 0.0
        %6530 = vmatprep.subr.mxu0 0.0
        %6531 = vmatpush1.xpose.msra.mxu0 0.0
        %6532 = vmatprep.subr.mxu0 0.0
        %6533 = vmatpush1.xpose.msra.mxu0 0.0
        %6534 = vmatprep.subr.mxu0 0.0
        %6535 = vmatpush1.xpose.msra.mxu0 0.0
        %6536 = vmatprep.subr.mxu0 0.0
        %6537 = vmatpush1.xpose.msra.mxu0 0.0
        %6538 = vmatprep.subr.mxu0 0.0
        %6539 = vmatpush1.xpose.msra.mxu0 0.0
        %6540 = vmatprep.subr.mxu0 0.0
        %6541 = vmatpush1.xpose.msra.mxu0 0.0
        %6542 = vmatprep.subr.mxu0 0.0
        %6543 = vmatpush1.xpose.msra.mxu0 0.0
        %6544 = vmatprep.subr.mxu0 0.0
        %6545 = vmatpush1.xpose.msra.mxu0 0.0
        %6546 = vmatprep.subr.mxu0 0.0
        %6547 = vmatpush1.xpose.msra.mxu0 0.0
        %6548 = vmatprep.subr.mxu0 0.0
        %6549 = vmatpush1.xpose.msra.mxu0 0.0
        %6550 = vmatprep.subr.mxu0 0.0
        %6551 = vmatpush1.xpose.msra.mxu0 0.0
        %6552 = vmatprep.subr.mxu0 0.0
        %6553 = vmatpush1.xpose.msra.mxu0 0.0
        %6554 = vmatprep.subr.mxu0 0.0
        %6555 = vmatpush1.xpose.msra.mxu0 0.0
        %6556 = vmatprep.subr.mxu0 0.0
        %6557 = vmatpush1.xpose.msra.mxu0 0.0
        %6558 = vmatprep.subr.mxu0 0.0
        %6559 = vmatpush1.xpose.msra.mxu0 0.0
        %6560 = vmatprep.subr.mxu0 0.0
        %6561 = vmatpush1.xpose.msra.mxu0 0.0
        %6562 = vmatprep.subr.mxu0 0.0
        %6563 = vmatpush1.xpose.msra.mxu0 0.0
        %6564 = vmatprep.subr.mxu0 0.0
        %6565 = vmatpush1.xpose.msra.mxu0 0.0
        %6566 = vmatprep.subr.mxu0 0.0
        %6567 = vmatpush1.xpose.msra.mxu0 0.0
        %6568 = vmatprep.mubr.f32.mxu0 0.0
        %6569 = vmatmul.mubr.f32.gmra.mrb[0].mxu0 %v6500
        %v6570 = vpop.f32.mrb[0].mxu0
        %v6571 = vadd.f32 0.0, %v6570
        %v6572 = vpop.f32.mrb[0].mxu0
        %6573 = vdwg.mxu0
        %v6574 = vsel %vm1662, %v6571, -inf
        %6575 = vmax.xlane.f32.xlu0 %v6574
        %v6576 = vpop.xlane.xlu0 %6575
        %v6577 = vsub.f32 %v6571, %v6576
        %v6578 = vmul.f32 %v6577, 1.442695
        %v6579 = vpow.pop %v6578
        %v6580 = vsel %vm1662, %v6579, 0.0
        %6581 = vadd.xlane.f32.xlu0 %v6580
        %v6582 = vpop.xlane.xlu0 %6581
        %v6583 = vrcp.pop %v6582
        %v6584 = vmul.f32 %v6579, %v6583
        %6585 = vrot.lane.b32.xlu0 %v6419, 120
        %v6586 = vpop.permute.xlu0 %6585
        %v6588 = vsel %vm1674, %v6584, 0
        %v6590 = vsel %vm1678, %v6586, 0
        %6592 = vmatprep.subr.mxu0 0.0
        %6593 = vmatpush1.msra.mxu0 %v6590
        %6594 = vmatprep.subr.mxu0 0.0
        %6595 = vmatpush1.msra.mxu0 0.0
        %6596 = vmatprep.subr.mxu0 0.0
        %6597 = vmatpush1.msra.mxu0 0.0
        %6598 = vmatprep.subr.mxu0 0.0
        %6599 = vmatpush1.msra.mxu0 0.0
        %6600 = vmatprep.subr.mxu0 0.0
        %6601 = vmatpush1.msra.mxu0 0.0
        %6602 = vmatprep.subr.mxu0 0.0
        %6603 = vmatpush1.msra.mxu0 0.0
        %6604 = vmatprep.subr.mxu0 0.0
        %6605 = vmatpush1.msra.mxu0 0.0
        %6606 = vmatprep.subr.mxu0 0.0
        %6607 = vmatpush1.msra.mxu0 0.0
        %6608 = vmatprep.subr.mxu0 0.0
        %6609 = vmatpush1.msra.mxu0 0.0
        %6610 = vmatprep.subr.mxu0 0.0
        %6611 = vmatpush1.msra.mxu0 0.0
        %6612 = vmatprep.subr.mxu0 0.0
        %6613 = vmatpush1.msra.mxu0 0.0
        %6614 = vmatprep.subr.mxu0 0.0
        %6615 = vmatpush1.msra.mxu0 0.0
        %6616 = vmatprep.subr.mxu0 0.0
        %6617 = vmatpush1.msra.mxu0 0.0
        %6618 = vmatprep.subr.mxu0 0.0
        %6619 = vmatpush1.msra.mxu0 0.0
        %6620 = vmatprep.subr.mxu0 0.0
        %6621 = vmatpush1.msra.mxu0 0.0
        %6622 = vmatprep.subr.mxu0 0.0
        %6623 = vmatpush1.msra.mxu0 0.0
        %6624 = vmatprep.subr.mxu0 0.0
        %6625 = vmatpush1.msra.mxu0 0.0
        %6626 = vmatprep.subr.mxu0 0.0
        %6627 = vmatpush1.msra.mxu0 0.0
        %6628 = vmatprep.subr.mxu0 0.0
        %6629 = vmatpush1.msra.mxu0 0.0
        %6630 = vmatprep.subr.mxu0 0.0
        %6631 = vmatpush1.msra.mxu0 0.0
        %6632 = vmatprep.subr.mxu0 0.0
        %6633 = vmatpush1.msra.mxu0 0.0
        %6634 = vmatprep.subr.mxu0 0.0
        %6635 = vmatpush1.msra.mxu0 0.0
        %6636 = vmatprep.subr.mxu0 0.0
        %6637 = vmatpush1.msra.mxu0 0.0
        %6638 = vmatprep.subr.mxu0 0.0
        %6639 = vmatpush1.msra.mxu0 0.0
        %6640 = vmatprep.subr.mxu0 0.0
        %6641 = vmatpush1.msra.mxu0 0.0
        %6642 = vmatprep.subr.mxu0 0.0
        %6643 = vmatpush1.msra.mxu0 0.0
        %6644 = vmatprep.subr.mxu0 0.0
        %6645 = vmatpush1.msra.mxu0 0.0
        %6646 = vmatprep.subr.mxu0 0.0
        %6647 = vmatpush1.msra.mxu0 0.0
        %6648 = vmatprep.subr.mxu0 0.0
        %6649 = vmatpush1.msra.mxu0 0.0
        %6650 = vmatprep.subr.mxu0 0.0
        %6651 = vmatpush1.msra.mxu0 0.0
        %6652 = vmatprep.subr.mxu0 0.0
        %6653 = vmatpush1.msra.mxu0 0.0
        %6654 = vmatprep.subr.mxu0 0.0
        %6655 = vmatpush1.msra.mxu0 0.0
        %6656 = vmatprep.mubr.f32.mxu0 0.0
        %6657 = vmatmul.mubr.f32.gmra.mrb[0].mxu0 %v6588
        %v6658 = vpop.f32.mrb[0].mxu0
        %v6659 = vadd.f32 0.0, %v6658
        %v6660 = vpop.f32.mrb[0].mxu0
        %6661 = vdwg.mxu0
        %6663 = vrot.lane.b32.xlu0 %v6659, 8
        %v6664 = vpop.permute.xlu0 %6663
        %6666 = vst.msk [vmem:[#allocation3 + $0xe] sm:$0x3] %vm1924, %v6664
        %6667 = vrot.lane.b32.xlu0 %v6332, 112
        %v6668 = vpop.permute.xlu0 %6667
        %6669 = vrot.lane.b32.xlu0 %v6333, 112
        %v6670 = vpop.permute.xlu0 %6669
        %v6671 = vsel %vm1585, %v6668, 0
        %v6673 = vsel %vm1585, %v6670, 0
        %6675 = vmatprep.subr.mxu0 0.0
        %6676 = vmatpush1.xpose.msra.mxu0 %v6673
        %6677 = vmatprep.subr.mxu0 0.0
        %6678 = vmatpush1.xpose.msra.mxu0 0.0
        %6679 = vmatprep.subr.mxu0 0.0
        %6680 = vmatpush1.xpose.msra.mxu0 0.0
        %6681 = vmatprep.subr.mxu0 0.0
        %6682 = vmatpush1.xpose.msra.mxu0 0.0
        %6683 = vmatprep.subr.mxu0 0.0
        %6684 = vmatpush1.xpose.msra.mxu0 0.0
        %6685 = vmatprep.subr.mxu0 0.0
        %6686 = vmatpush1.xpose.msra.mxu0 0.0
        %6687 = vmatprep.subr.mxu0 0.0
        %6688 = vmatpush1.xpose.msra.mxu0 0.0
        %6689 = vmatprep.subr.mxu0 0.0
        %6690 = vmatpush1.xpose.msra.mxu0 0.0
        %6691 = vmatprep.subr.mxu0 0.0
        %6692 = vmatpush1.xpose.msra.mxu0 0.0
        %6693 = vmatprep.subr.mxu0 0.0
        %6694 = vmatpush1.xpose.msra.mxu0 0.0
        %6695 = vmatprep.subr.mxu0 0.0
        %6696 = vmatpush1.xpose.msra.mxu0 0.0
        %6697 = vmatprep.subr.mxu0 0.0
        %6698 = vmatpush1.xpose.msra.mxu0 0.0
        %6699 = vmatprep.subr.mxu0 0.0
        %6700 = vmatpush1.xpose.msra.mxu0 0.0
        %6701 = vmatprep.subr.mxu0 0.0
        %6702 = vmatpush1.xpose.msra.mxu0 0.0
        %6703 = vmatprep.subr.mxu0 0.0
        %6704 = vmatpush1.xpose.msra.mxu0 0.0
        %6705 = vmatprep.subr.mxu0 0.0
        %6706 = vmatpush1.xpose.msra.mxu0 0.0
        %6707 = vmatprep.subr.mxu0 0.0
        %6708 = vmatpush1.xpose.msra.mxu0 0.0
        %6709 = vmatprep.subr.mxu0 0.0
        %6710 = vmatpush1.xpose.msra.mxu0 0.0
        %6711 = vmatprep.subr.mxu0 0.0
        %6712 = vmatpush1.xpose.msra.mxu0 0.0
        %6713 = vmatprep.subr.mxu0 0.0
        %6714 = vmatpush1.xpose.msra.mxu0 0.0
        %6715 = vmatprep.subr.mxu0 0.0
        %6716 = vmatpush1.xpose.msra.mxu0 0.0
        %6717 = vmatprep.subr.mxu0 0.0
        %6718 = vmatpush1.xpose.msra.mxu0 0.0
        %6719 = vmatprep.subr.mxu0 0.0
        %6720 = vmatpush1.xpose.msra.mxu0 0.0
        %6721 = vmatprep.subr.mxu0 0.0
        %6722 = vmatpush1.xpose.msra.mxu0 0.0
        %6723 = vmatprep.subr.mxu0 0.0
        %6724 = vmatpush1.xpose.msra.mxu0 0.0
        %6725 = vmatprep.subr.mxu0 0.0
        %6726 = vmatpush1.xpose.msra.mxu0 0.0
        %6727 = vmatprep.subr.mxu0 0.0
        %6728 = vmatpush1.xpose.msra.mxu0 0.0
        %6729 = vmatprep.subr.mxu0 0.0
        %6730 = vmatpush1.xpose.msra.mxu0 0.0
        %6731 = vmatprep.subr.mxu0 0.0
        %6732 = vmatpush1.xpose.msra.mxu0 0.0
        %6733 = vmatprep.subr.mxu0 0.0
        %6734 = vmatpush1.xpose.msra.mxu0 0.0
        %6735 = vmatprep.subr.mxu0 0.0
        %6736 = vmatpush1.xpose.msra.mxu0 0.0
        %6737 = vmatprep.subr.mxu0 0.0
        %6738 = vmatpush1.xpose.msra.mxu0 0.0
        %6739 = vmatprep.mubr.f32.mxu0 0.0
        %6740 = vmatmul.mubr.f32.gmra.mrb[0].mxu0 %v6671
        %v6741 = vpop.f32.mrb[0].mxu0
        %v6742 = vadd.f32 0.0, %v6741
        %v6743 = vpop.f32.mrb[0].mxu0
        %6744 = vdwg.mxu0
        %v6745 = vsel %vm1662, %v6742, -inf
        %6746 = vmax.xlane.f32.xlu0 %v6745
        %v6747 = vpop.xlane.xlu0 %6746
        %v6748 = vsub.f32 %v6742, %v6747
        %v6749 = vmul.f32 %v6748, 1.442695
        %v6750 = vpow.pop %v6749
        %v6751 = vsel %vm1662, %v6750, 0.0
        %6752 = vadd.xlane.f32.xlu0 %v6751
        %v6753 = vpop.xlane.xlu0 %6752
        %v6754 = vrcp.pop %v6753
        %v6755 = vmul.f32 %v6750, %v6754
        %6756 = vrot.lane.b32.xlu0 %v6419, 112
        %v6757 = vpop.permute.xlu0 %6756
        %v6759 = vsel %vm1674, %v6755, 0
        %v6761 = vsel %vm1678, %v6757, 0
        %6763 = vmatprep.subr.mxu0 0.0
        %6764 = vmatpush1.msra.mxu0 %v6761
        %6765 = vmatprep.subr.mxu0 0.0
        %6766 = vmatpush1.msra.mxu0 0.0
        %6767 = vmatprep.subr.mxu0 0.0
        %6768 = vmatpush1.msra.mxu0 0.0
        %6769 = vmatprep.subr.mxu0 0.0
        %6770 = vmatpush1.msra.mxu0 0.0
        %6771 = vmatprep.subr.mxu0 0.0
        %6772 = vmatpush1.msra.mxu0 0.0
        %6773 = vmatprep.subr.mxu0 0.0
        %6774 = vmatpush1.msra.mxu0 0.0
        %6775 = vmatprep.subr.mxu0 0.0
        %6776 = vmatpush1.msra.mxu0 0.0
        %6777 = vmatprep.subr.mxu0 0.0
        %6778 = vmatpush1.msra.mxu0 0.0
        %6779 = vmatprep.subr.mxu0 0.0
        %6780 = vmatpush1.msra.mxu0 0.0
        %6781 = vmatprep.subr.mxu0 0.0
        %6782 = vmatpush1.msra.mxu0 0.0
        %6783 = vmatprep.subr.mxu0 0.0
        %6784 = vmatpush1.msra.mxu0 0.0
        %6785 = vmatprep.subr.mxu0 0.0
        %6786 = vmatpush1.msra.mxu0 0.0
        %6787 = vmatprep.subr.mxu0 0.0
        %6788 = vmatpush1.msra.mxu0 0.0
        %6789 = vmatprep.subr.mxu0 0.0
        %6790 = vmatpush1.msra.mxu0 0.0
        %6791 = vmatprep.subr.mxu0 0.0
        %6792 = vmatpush1.msra.mxu0 0.0
        %6793 = vmatprep.subr.mxu0 0.0
        %6794 = vmatpush1.msra.mxu0 0.0
        %6795 = vmatprep.subr.mxu0 0.0
        %6796 = vmatpush1.msra.mxu0 0.0
        %6797 = vmatprep.subr.mxu0 0.0
        %6798 = vmatpush1.msra.mxu0 0.0
        %6799 = vmatprep.subr.mxu0 0.0
        %6800 = vmatpush1.msra.mxu0 0.0
        %6801 = vmatprep.subr.mxu0 0.0
        %6802 = vmatpush1.msra.mxu0 0.0
        %6803 = vmatprep.subr.mxu0 0.0
        %6804 = vmatpush1.msra.mxu0 0.0
        %6805 = vmatprep.subr.mxu0 0.0
        %6806 = vmatpush1.msra.mxu0 0.0
        %6807 = vmatprep.subr.mxu0 0.0
        %6808 = vmatpush1.msra.mxu0 0.0
        %6809 = vmatprep.subr.mxu0 0.0
        %6810 = vmatpush1.msra.mxu0 0.0
        %6811 = vmatprep.subr.mxu0 0.0
        %6812 = vmatpush1.msra.mxu0 0.0
        %6813 = vmatprep.subr.mxu0 0.0
        %6814 = vmatpush1.msra.mxu0 0.0
        %6815 = vmatprep.subr.mxu0 0.0
        %6816 = vmatpush1.msra.mxu0 0.0
        %6817 = vmatprep.subr.mxu0 0.0
        %6818 = vmatpush1.msra.mxu0 0.0
        %6819 = vmatprep.subr.mxu0 0.0
        %6820 = vmatpush1.msra.mxu0 0.0
        %6821 = vmatprep.subr.mxu0 0.0
        %6822 = vmatpush1.msra.mxu0 0.0
        %6823 = vmatprep.subr.mxu0 0.0
        %6824 = vmatpush1.msra.mxu0 0.0
        %6825 = vmatprep.subr.mxu0 0.0
        %6826 = vmatpush1.msra.mxu0 0.0
        %6827 = vmatprep.mubr.f32.mxu0 0.0
        %6828 = vmatmul.mubr.f32.gmra.mrb[0].mxu0 %v6759
        %v6829 = vpop.f32.mrb[0].mxu0
        %v6830 = vadd.f32 0.0, %v6829
        %v6831 = vpop.f32.mrb[0].mxu0
        %6832 = vdwg.mxu0
        %6834 = vrot.lane.b32.xlu0 %v6830, 16
        %v6835 = vpop.permute.xlu0 %6834
        %6837 = vst.msk [vmem:[#allocation3 + $0xe] sm:$0x3] %vm2096, %v6835
        %6838 = vrot.lane.b32.xlu0 %v6332, 104
        %v6839 = vpop.permute.xlu0 %6838
        %6840 = vrot.lane.b32.xlu0 %v6333, 104
        %v6841 = vpop.permute.xlu0 %6840
        %v6842 = vsel %vm1585, %v6839, 0
        %v6844 = vsel %vm1585, %v6841, 0
        %6846 = vmatprep.subr.mxu0 0.0
        %6847 = vmatpush1.xpose.msra.mxu0 %v6844
        %6848 = vmatprep.subr.mxu0 0.0
        %6849 = vmatpush1.xpose.msra.mxu0 0.0
        %6850 = vmatprep.subr.mxu0 0.0
        %6851 = vmatpush1.xpose.msra.mxu0 0.0
        %6852 = vmatprep.subr.mxu0 0.0
        %6853 = vmatpush1.xpose.msra.mxu0 0.0
        %6854 = vmatprep.subr.mxu0 0.0
        %6855 = vmatpush1.xpose.msra.mxu0 0.0
        %6856 = vmatprep.subr.mxu0 0.0
        %6857 = vmatpush1.xpose.msra.mxu0 0.0
        %6858 = vmatprep.subr.mxu0 0.0
        %6859 = vmatpush1.xpose.msra.mxu0 0.0
        %6860 = vmatprep.subr.mxu0 0.0
        %6861 = vmatpush1.xpose.msra.mxu0 0.0
        %6862 = vmatprep.subr.mxu0 0.0
        %6863 = vmatpush1.xpose.msra.mxu0 0.0
        %6864 = vmatprep.subr.mxu0 0.0
        %6865 = vmatpush1.xpose.msra.mxu0 0.0
        %6866 = vmatprep.subr.mxu0 0.0
        %6867 = vmatpush1.xpose.msra.mxu0 0.0
        %6868 = vmatprep.subr.mxu0 0.0
        %6869 = vmatpush1.xpose.msra.mxu0 0.0
        %6870 = vmatprep.subr.mxu0 0.0
        %6871 = vmatpush1.xpose.msra.mxu0 0.0
        %6872 = vmatprep.subr.mxu0 0.0
        %6873 = vmatpush1.xpose.msra.mxu0 0.0
        %6874 = vmatprep.subr.mxu0 0.0
        %6875 = vmatpush1.xpose.msra.mxu0 0.0
        %6876 = vmatprep.subr.mxu0 0.0
        %6877 = vmatpush1.xpose.msra.mxu0 0.0
        %6878 = vmatprep.subr.mxu0 0.0
        %6879 = vmatpush1.xpose.msra.mxu0 0.0
        %6880 = vmatprep.subr.mxu0 0.0
        %6881 = vmatpush1.xpose.msra.mxu0 0.0
        %6882 = vmatprep.subr.mxu0 0.0
        %6883 = vmatpush1.xpose.msra.mxu0 0.0
        %6884 = vmatprep.subr.mxu0 0.0
        %6885 = vmatpush1.xpose.msra.mxu0 0.0
        %6886 = vmatprep.subr.mxu0 0.0
        %6887 = vmatpush1.xpose.msra.mxu0 0.0
        %6888 = vmatprep.subr.mxu0 0.0
        %6889 = vmatpush1.xpose.msra.mxu0 0.0
        %6890 = vmatprep.subr.mxu0 0.0
        %6891 = vmatpush1.xpose.msra.mxu0 0.0
        %6892 = vmatprep.subr.mxu0 0.0
        %6893 = vmatpush1.xpose.msra.mxu0 0.0
        %6894 = vmatprep.subr.mxu0 0.0
        %6895 = vmatpush1.xpose.msra.mxu0 0.0
        %6896 = vmatprep.subr.mxu0 0.0
        %6897 = vmatpush1.xpose.msra.mxu0 0.0
        %6898 = vmatprep.subr.mxu0 0.0
        %6899 = vmatpush1.xpose.msra.mxu0 0.0
        %6900 = vmatprep.subr.mxu0 0.0
        %6901 = vmatpush1.xpose.msra.mxu0 0.0
        %6902 = vmatprep.subr.mxu0 0.0
        %6903 = vmatpush1.xpose.msra.mxu0 0.0
        %6904 = vmatprep.subr.mxu0 0.0
        %6905 = vmatpush1.xpose.msra.mxu0 0.0
        %6906 = vmatprep.subr.mxu0 0.0
        %6907 = vmatpush1.xpose.msra.mxu0 0.0
        %6908 = vmatprep.subr.mxu0 0.0
        %6909 = vmatpush1.xpose.msra.mxu0 0.0
        %6910 = vmatprep.mubr.f32.mxu0 0.0
        %6911 = vmatmul.mubr.f32.gmra.mrb[0].mxu0 %v6842
        %v6912 = vpop.f32.mrb[0].mxu0
        %v6913 = vadd.f32 0.0, %v6912
        %v6914 = vpop.f32.mrb[0].mxu0
        %6915 = vdwg.mxu0
        %v6916 = vsel %vm1662, %v6913, -inf
        %6917 = vmax.xlane.f32.xlu0 %v6916
        %v6918 = vpop.xlane.xlu0 %6917
        %v6919 = vsub.f32 %v6913, %v6918
        %v6920 = vmul.f32 %v6919, 1.442695
        %v6921 = vpow.pop %v6920
        %v6922 = vsel %vm1662, %v6921, 0.0
        %6923 = vadd.xlane.f32.xlu0 %v6922
        %v6924 = vpop.xlane.xlu0 %6923
        %v6925 = vrcp.pop %v6924
        %v6926 = vmul.f32 %v6921, %v6925
        %6927 = vrot.lane.b32.xlu0 %v6419, 104
        %v6928 = vpop.permute.xlu0 %6927
        %v6930 = vsel %vm1674, %v6926, 0
        %v6932 = vsel %vm1678, %v6928, 0
        %6934 = vmatprep.subr.mxu0 0.0
        %6935 = vmatpush1.msra.mxu0 %v6932
        %6936 = vmatprep.subr.mxu0 0.0
        %6937 = vmatpush1.msra.mxu0 0.0
        %6938 = vmatprep.subr.mxu0 0.0
        %6939 = vmatpush1.msra.mxu0 0.0
        %6940 = vmatprep.subr.mxu0 0.0
        %6941 = vmatpush1.msra.mxu0 0.0
        %6942 = vmatprep.subr.mxu0 0.0
        %6943 = vmatpush1.msra.mxu0 0.0
        %6944 = vmatprep.subr.mxu0 0.0
        %6945 = vmatpush1.msra.mxu0 0.0
        %6946 = vmatprep.subr.mxu0 0.0
        %6947 = vmatpush1.msra.mxu0 0.0
        %6948 = vmatprep.subr.mxu0 0.0
        %6949 = vmatpush1.msra.mxu0 0.0
        %6950 = vmatprep.subr.mxu0 0.0
        %6951 = vmatpush1.msra.mxu0 0.0
        %6952 = vmatprep.subr.mxu0 0.0
        %6953 = vmatpush1.msra.mxu0 0.0
        %6954 = vmatprep.subr.mxu0 0.0
        %6955 = vmatpush1.msra.mxu0 0.0
        %6956 = vmatprep.subr.mxu0 0.0
        %6957 = vmatpush1.msra.mxu0 0.0
        %6958 = vmatprep.subr.mxu0 0.0
        %6959 = vmatpush1.msra.mxu0 0.0
        %6960 = vmatprep.subr.mxu0 0.0
        %6961 = vmatpush1.msra.mxu0 0.0
        %6962 = vmatprep.subr.mxu0 0.0
        %6963 = vmatpush1.msra.mxu0 0.0
        %6964 = vmatprep.subr.mxu0 0.0
        %6965 = vmatpush1.msra.mxu0 0.0
        %6966 = vmatprep.subr.mxu0 0.0
        %6967 = vmatpush1.msra.mxu0 0.0
        %6968 = vmatprep.subr.mxu0 0.0
        %6969 = vmatpush1.msra.mxu0 0.0
        %6970 = vmatprep.subr.mxu0 0.0
        %6971 = vmatpush1.msra.mxu0 0.0
        %6972 = vmatprep.subr.mxu0 0.0
        %6973 = vmatpush1.msra.mxu0 0.0
        %6974 = vmatprep.subr.mxu0 0.0
        %6975 = vmatpush1.msra.mxu0 0.0
        %6976 = vmatprep.subr.mxu0 0.0
        %6977 = vmatpush1.msra.mxu0 0.0
        %6978 = vmatprep.subr.mxu0 0.0
        %6979 = vmatpush1.msra.mxu0 0.0
        %6980 = vmatprep.subr.mxu0 0.0
        %6981 = vmatpush1.msra.mxu0 0.0
        %6982 = vmatprep.subr.mxu0 0.0
        %6983 = vmatpush1.msra.mxu0 0.0
        %6984 = vmatprep.subr.mxu0 0.0
        %6985 = vmatpush1.msra.mxu0 0.0
        %6986 = vmatprep.subr.mxu0 0.0
        %6987 = vmatpush1.msra.mxu0 0.0
        %6988 = vmatprep.subr.mxu0 0.0
        %6989 = vmatpush1.msra.mxu0 0.0
        %6990 = vmatprep.subr.mxu0 0.0
        %6991 = vmatpush1.msra.mxu0 0.0
        %6992 = vmatprep.subr.mxu0 0.0
        %6993 = vmatpush1.msra.mxu0 0.0
        %6994 = vmatprep.subr.mxu0 0.0
        %6995 = vmatpush1.msra.mxu0 0.0
        %6996 = vmatprep.subr.mxu0 0.0
        %6997 = vmatpush1.msra.mxu0 0.0
        %6998 = vmatprep.mubr.f32.mxu0 0.0
        %6999 = vmatmul.mubr.f32.gmra.mrb[0].mxu0 %v6930
        %v7000 = vpop.f32.mrb[0].mxu0
        %v7001 = vadd.f32 0.0, %v7000
        %v7002 = vpop.f32.mrb[0].mxu0
        %7003 = vdwg.mxu0
        %7005 = vrot.lane.b32.xlu0 %v7001, 24
        %v7006 = vpop.permute.xlu0 %7005
        %7008 = vst.msk [vmem:[#allocation3 + $0xe] sm:$0x3] %vm2268, %v7006
        %v7009 = vld [vmem:[#allocation3] sm:$0xff]
        %v7010 = vld [vmem:[#allocation3 + $0x8] sm:$0xff]
        %v7011 = vpack.c.bf16 %v7010, %v7009
        %v7012 = vld [vmem:[%s1076] sm:$0xf]
        %v7013 = vld [vmem:[%s1076 + $0x4] sm:$0xf]
        %v7014 = vld [vmem:[%s1076 + $0x8] sm:$0xf]
        %v7015 = vld [vmem:[%s1076 + $0xc] sm:$0xf]
        %v7016 = vld [vmem:[%s1079] sm:$0x1]
        %v7018 = vlaneseq
        %v7019 = vshrl.u32 %v7018, 7
        %v7020 = vsub.s32 0, %v7019
        %v7021 = vrot.slane %v7016, %v7020
        %v7027 = vunpack.c.l.b16 %v7012
        %v7028 = vunpack.c.l.b16 %v7013
        %v7029 = vunpack.c.l.b16 %v7014
        %v7030 = vunpack.c.l.b16 %v7015
        %v7031 = vpack.c.b16 %v7028, %v7027
        %v7032 = vpack.c.b16 %v7030, %v7029
        %v7036 = vsel %vm1410, %v7011, 0
        %7038 = vmatprep.subr.bf16.mxu0 0
        %7039 = vmatpush1.bf16.msra.mxu0 %v7031
        %7040 = vmatprep.subr.bf16.mxu0 0
        %7041 = vmatpush1.bf16.msra.mxu0 %v7032
        %7042 = vmatprep.subr.bf16.mxu0 0
        %7043 = vmatpush1.bf16.msra.mxu0 0
        %7044 = vmatprep.subr.bf16.mxu0 0
        %7045 = vmatpush1.bf16.msra.mxu0 0
        %7046 = vmatprep.subr.bf16.mxu0 0
        %7047 = vmatpush1.bf16.msra.mxu0 0
        %7048 = vmatprep.subr.bf16.mxu0 0
        %7049 = vmatpush1.bf16.msra.mxu0 0
        %7050 = vmatprep.subr.bf16.mxu0 0
        %7051 = vmatpush1.bf16.msra.mxu0 0
        %7052 = vmatprep.subr.bf16.mxu0 0
        %7053 = vmatpush1.bf16.msra.mxu0 0
        %7054 = vmatprep.subr.bf16.mxu0 0
        %7055 = vmatpush1.bf16.msra.mxu0 0
        %7056 = vmatprep.subr.bf16.mxu0 0
        %7057 = vmatpush1.bf16.msra.mxu0 0
        %7058 = vmatprep.subr.bf16.mxu0 0
        %7059 = vmatpush1.bf16.msra.mxu0 0
        %7060 = vmatprep.subr.bf16.mxu0 0
        %7061 = vmatpush1.bf16.msra.mxu0 0
        %7062 = vmatprep.subr.bf16.mxu0 0
        %7063 = vmatpush1.bf16.msra.mxu0 0
        %7064 = vmatprep.subr.bf16.mxu0 0
        %7065 = vmatpush1.bf16.msra.mxu0 0
        %7066 = vmatprep.subr.bf16.mxu0 0
        %7067 = vmatpush1.bf16.msra.mxu0 0
        %7068 = vmatprep.subr.bf16.mxu0 0
        %7069 = vmatpush1.bf16.msra.mxu0 0
        %7070 = vmatprep.mubr.bf16.mxu0 0
        %7071 = vmatmul.mubr.bf16.gmra.mrb[0].mxu0 %v7036
        %v7072 = vpop.f32.mrb[0].mxu0
        %v7073 = vadd.f32 %v7021, %v7072
        %v7074 = vpop.f32.mrb[0].mxu0
        %v7075 = vpop.f32.mrb[0].mxu0
        %v7076 = vadd.f32 %v7021, %v7075
        %v7077 = vpop.f32.mrb[0].mxu0
        %7078 = vdwg.mxu0
        %v7079 = vadd.f32 %v1384, %v7073
        %v7080 = vadd.f32 %v1385, %v7076
        %v7081 = vld [vmem:[%s1082] sm:$0x1]
        %v7082 = vld [vmem:[%s1085] sm:$0x1]
        %v7083 = vsel %vm1410, %v7079, 0.0
        %7084 = vadd.xlane.f32.xlu0 %v7083
        %v7085 = vpop.xlane.xlu0 %7084
        %v7086 = vsel %vm1410, %v7080, 0.0
        %7087 = vadd.xlane.f32.xlu0 %v7086
        %v7088 = vpop.xlane.xlu0 %7087
        %v7089 = vrcp.pop 32.0
        %v7090 = vmul.f32 %v7085, %v7089
        %v7091 = vmul.f32 %v7088, %v7089
        %v7092 = vsub.f32 %v7079, %v7090
        %v7093 = vsub.f32 %v7080, %v7091
        %v7094 = vmul.f32 %v7092, %v7092
        %v7095 = vmul.f32 %v7093, %v7093
        %v7096 = vsel %vm1410, %v7094, 0.0
        %7097 = vadd.xlane.f32.xlu0 %v7096
        %v7098 = vpop.xlane.xlu0 %7097
        %v7099 = vsel %vm1410, %v7095, 0.0
        %7100 = vadd.xlane.f32.xlu0 %v7099
        %v7101 = vpop.xlane.xlu0 %7100
        %v7102 = vmul.f32 %v7098, %v7089
        %v7103 = vmul.f32 %v7101, %v7089
        %v7104 = vadd.f32 %v7102, 1e-05
        %v7105 = vadd.f32 %v7103, 1e-05
        %v7106 = vrsqrt.pop %v7104
        %v7107 = vrsqrt.pop %v7105
        %v7108 = vmul.f32 %v7092, %v7106
        %v7109 = vmul.f32 %v7093, %v7107
        %v7111 = vlaneseq
        %v7112 = vshrl.u32 %v7111, 7
        %v7113 = vsub.s32 0, %v7112
        %v7114 = vrot.slane %v7081, %v7113
        %v7116 = vmul.f32 %v7108, %v7114
        %v7117 = vmul.f32 %v7109, %v7114
        %v7119 = vlaneseq
        %v7120 = vshrl.u32 %v7119, 7
        %v7121 = vsub.s32 0, %v7120
        %v7122 = vrot.slane %v7082, %v7121
        %v7124 = vadd.f32 %v7116, %v7122
        %v7125 = vadd.f32 %v7117, %v7122
        %v7126 = vpack.c.bf16 %v7125, %v7124
        %v7127 = vld [vmem:[%s1090] sm:$0xff]
        %v7128 = vld [vmem:[%s1090 + $0x8] sm:$0xff]
        %v7129 = vld [vmem:[%s1090 + $0x10] sm:$0xff]
        %v7130 = vld [vmem:[%s1090 + $0x18] sm:$0xff]
        %v7131 = vld [vmem:[%s1090 + $0x20] sm:$0xff]
        %v7132 = vld [vmem:[%s1090 + $0x28] sm:$0xff]
        %v7133 = vld [vmem:[%s1090 + $0x30] sm:$0xff]
        %v7134 = vld [vmem:[%s1090 + $0x38] sm:$0xff]
        %v7135 = vld [vmem:[%s1090 + $0x40] sm:$0xff]
        %v7136 = vld [vmem:[%s1090 + $0x48] sm:$0xff]
        %v7137 = vld [vmem:[%s1090 + $0x50] sm:$0xff]
        %v7138 = vld [vmem:[%s1090 + $0x58] sm:$0xff]
        %v7139 = vld [vmem:[%s1090 + $0x60] sm:$0xff]
        %v7140 = vld [vmem:[%s1090 + $0x68] sm:$0xff]
        %v7141 = vld [vmem:[%s1090 + $0x70] sm:$0xff]
        %v7142 = vld [vmem:[%s1090 + $0x78] sm:$0xff]
        %v7143 = vld [vmem:[%s1090 + $0x80] sm:$0xff]
        %v7144 = vld [vmem:[%s1090 + $0x88] sm:$0xff]
        %v7145 = vld [vmem:[%s1090 + $0x90] sm:$0xff]
        %v7146 = vld [vmem:[%s1090 + $0x98] sm:$0xff]
        %v7147 = vld [vmem:[%s1090 + $0xa0] sm:$0xff]
        %v7148 = vld [vmem:[%s1090 + $0xa8] sm:$0xff]
        %v7149 = vld [vmem:[%s1090 + $0xb0] sm:$0xff]
        %v7150 = vld [vmem:[%s1090 + $0xb8] sm:$0xff]
        %v7151 = vld [vmem:[%s1090 + $0xc0] sm:$0xff]
        %v7152 = vld [vmem:[%s1090 + $0xc8] sm:$0xff]
        %v7153 = vld [vmem:[%s1090 + $0xd0] sm:$0xff]
        %v7154 = vld [vmem:[%s1090 + $0xd8] sm:$0xff]
        %v7155 = vld [vmem:[%s1090 + $0xe0] sm:$0xff]
        %v7156 = vld [vmem:[%s1090 + $0xe8] sm:$0xff]
        %v7157 = vld [vmem:[%s1090 + $0xf0] sm:$0xff]
        %v7158 = vld [vmem:[%s1090 + $0xf8] sm:$0xff]
        %v7159 = vld [vmem:[%s1094] sm:$0xff]
        %v7160 = vld [vmem:[%s1094 + $0x8] sm:$0xff]
        %v7163 = vlaneseq
        %v7164 = vshrl.u32 %v7163, 7
        %v7165 = vsub.s32 0, %v7164
        %v7166 = vrot.slane %v7159, %v7165
        %v7167 = vlaneseq
        %v7168 = vshrl.u32 %v7167, 7
        %v7169 = vsub.s32 1, %v7168
        %v7170 = vrot.slane %v7159, %v7169
        %v7171 = vlaneseq
        %v7172 = vshrl.u32 %v7171, 7
        %v7173 = vsub.s32 2, %v7172
        %v7174 = vrot.slane %v7159, %v7173
        %v7175 = vlaneseq
        %v7176 = vshrl.u32 %v7175, 7
        %v7177 = vsub.s32 3, %v7176
        %v7178 = vrot.slane %v7159, %v7177
        %v7179 = vlaneseq
        %v7180 = vshrl.u32 %v7179, 7
        %v7181 = vsub.s32 4, %v7180
        %v7182 = vrot.slane %v7159, %v7181
        %v7183 = vlaneseq
        %v7184 = vshrl.u32 %v7183, 7
        %v7185 = vsub.s32 5, %v7184
        %v7186 = vrot.slane %v7159, %v7185
        %v7187 = vlaneseq
        %v7188 = vshrl.u32 %v7187, 7
        %v7189 = vsub.s32 6, %v7188
        %v7190 = vrot.slane %v7159, %v7189
        %v7191 = vlaneseq
        %v7192 = vshrl.u32 %v7191, 7
        %v7193 = vsub.s32 7, %v7192
        %v7194 = vrot.slane %v7159, %v7193
        %v7195 = vlaneseq
        %v7196 = vshrl.u32 %v7195, 7
        %v7197 = vsub.s32 0, %v7196
        %v7198 = vrot.slane %v7160, %v7197
        %v7199 = vlaneseq
        %v7200 = vshrl.u32 %v7199, 7
        %v7201 = vsub.s32 1, %v7200
        %v7202 = vrot.slane %v7160, %v7201
        %v7203 = vlaneseq
        %v7204 = vshrl.u32 %v7203, 7
        %v7205 = vsub.s32 2, %v7204
        %v7206 = vrot.slane %v7160, %v7205
        %v7207 = vlaneseq
        %v7208 = vshrl.u32 %v7207, 7
        %v7209 = vsub.s32 3, %v7208
        %v7210 = vrot.slane %v7160, %v7209
        %v7211 = vlaneseq
        %v7212 = vshrl.u32 %v7211, 7
        %v7213 = vsub.s32 4, %v7212
        %v7214 = vrot.slane %v7160, %v7213
        %v7215 = vlaneseq
        %v7216 = vshrl.u32 %v7215, 7
        %v7217 = vsub.s32 5, %v7216
        %v7218 = vrot.slane %v7160, %v7217
        %v7219 = vlaneseq
        %v7220 = vshrl.u32 %v7219, 7
        %v7221 = vsub.s32 6, %v7220
        %v7222 = vrot.slane %v7160, %v7221
        %v7223 = vlaneseq
        %v7224 = vshrl.u32 %v7223, 7
        %v7225 = vsub.s32 7, %v7224
        %v7226 = vrot.slane %v7160, %v7225
        %v7275 = vunpack.c.l.b16 %v7127
        %v7276 = vunpack.c.h.b16 %v7127
        %v7277 = vunpack.c.l.b16 %v7128
        %v7278 = vunpack.c.h.b16 %v7128
        %v7279 = vunpack.c.l.b16 %v7129
        %v7280 = vunpack.c.h.b16 %v7129
        %v7281 = vunpack.c.l.b16 %v7130
        %v7282 = vunpack.c.h.b16 %v7130
        %v7283 = vunpack.c.l.b16 %v7131
        %v7284 = vunpack.c.h.b16 %v7131
        %v7285 = vunpack.c.l.b16 %v7132
        %v7286 = vunpack.c.h.b16 %v7132
        %v7287 = vunpack.c.l.b16 %v7133
        %v7288 = vunpack.c.h.b16 %v7133
        %v7289 = vunpack.c.l.b16 %v7134
        %v7290 = vunpack.c.h.b16 %v7134
        %v7291 = vunpack.c.l.b16 %v7135
        %v7292 = vunpack.c.h.b16 %v7135
        %v7293 = vunpack.c.l.b16 %v7136
        %v7294 = vunpack.c.h.b16 %v7136
        %v7295 = vunpack.c.l.b16 %v7137
        %v7296 = vunpack.c.h.b16 %v7137
        %v7297 = vunpack.c.l.b16 %v7138
        %v7298 = vunpack.c.h.b16 %v7138
        %v7299 = vunpack.c.l.b16 %v7139
        %v7300 = vunpack.c.h.b16 %v7139
        %v7301 = vunpack.c.l.b16 %v7140
        %v7302 = vunpack.c.h.b16 %v7140
        %v7303 = vunpack.c.l.b16 %v7141
        %v7304 = vunpack.c.h.b16 %v7141
        %v7305 = vunpack.c.l.b16 %v7142
        %v7306 = vunpack.c.h.b16 %v7142
        %v7307 = vunpack.c.l.b16 %v7143
        %v7308 = vunpack.c.h.b16 %v7143
        %v7309 = vunpack.c.l.b16 %v7144
        %v7310 = vunpack.c.h.b16 %v7144
        %v7311 = vunpack.c.l.b16 %v7145
        %v7312 = vunpack.c.h.b16 %v7145
        %v7313 = vunpack.c.l.b16 %v7146
        %v7314 = vunpack.c.h.b16 %v7146
        %v7315 = vunpack.c.l.b16 %v7147
        %v7316 = vunpack.c.h.b16 %v7147
        %v7317 = vunpack.c.l.b16 %v7148
        %v7318 = vunpack.c.h.b16 %v7148
        %v7319 = vunpack.c.l.b16 %v7149
        %v7320 = vunpack.c.h.b16 %v7149
        %v7321 = vunpack.c.l.b16 %v7150
        %v7322 = vunpack.c.h.b16 %v7150
        %v7323 = vunpack.c.l.b16 %v7151
        %v7324 = vunpack.c.h.b16 %v7151
        %v7325 = vunpack.c.l.b16 %v7152
        %v7326 = vunpack.c.h.b16 %v7152
        %v7327 = vunpack.c.l.b16 %v7153
        %v7328 = vunpack.c.h.b16 %v7153
        %v7329 = vunpack.c.l.b16 %v7154
        %v7330 = vunpack.c.h.b16 %v7154
        %v7331 = vunpack.c.l.b16 %v7155
        %v7332 = vunpack.c.h.b16 %v7155
        %v7333 = vunpack.c.l.b16 %v7156
        %v7334 = vunpack.c.h.b16 %v7156
        %v7335 = vunpack.c.l.b16 %v7157
        %v7336 = vunpack.c.h.b16 %v7157
        %v7337 = vunpack.c.l.b16 %v7158
        %v7338 = vunpack.c.h.b16 %v7158
        %v7339 = vpack.c.b16 %v7291, %v7275
        %v7340 = vpack.c.b16 %v7292, %v7276
        %v7341 = vpack.c.b16 %v7293, %v7277
        %v7342 = vpack.c.b16 %v7294, %v7278
        %v7343 = vpack.c.b16 %v7295, %v7279
        %v7344 = vpack.c.b16 %v7296, %v7280
        %v7345 = vpack.c.b16 %v7297, %v7281
        %v7346 = vpack.c.b16 %v7298, %v7282
        %v7347 = vpack.c.b16 %v7299, %v7283
        %v7348 = vpack.c.b16 %v7300, %v7284
        %v7349 = vpack.c.b16 %v7301, %v7285
        %v7350 = vpack.c.b16 %v7302, %v7286
        %v7351 = vpack.c.b16 %v7303, %v7287
        %v7352 = vpack.c.b16 %v7304, %v7288
        %v7353 = vpack.c.b16 %v7305, %v7289
        %v7354 = vpack.c.b16 %v7306, %v7290
        %v7355 = vpack.c.b16 %v7323, %v7307
        %v7356 = vpack.c.b16 %v7324, %v7308
        %v7357 = vpack.c.b16 %v7325, %v7309
        %v7358 = vpack.c.b16 %v7326, %v7310
        %v7359 = vpack.c.b16 %v7327, %v7311
        %v7360 = vpack.c.b16 %v7328, %v7312
        %v7361 = vpack.c.b16 %v7329, %v7313
        %v7362 = vpack.c.b16 %v7330, %v7314
        %v7363 = vpack.c.b16 %v7331, %v7315
        %v7364 = vpack.c.b16 %v7332, %v7316
        %v7365 = vpack.c.b16 %v7333, %v7317
        %v7366 = vpack.c.b16 %v7334, %v7318
        %v7367 = vpack.c.b16 %v7335, %v7319
        %v7368 = vpack.c.b16 %v7336, %v7320
        %v7369 = vpack.c.b16 %v7337, %v7321
        %v7370 = vpack.c.b16 %v7338, %v7322
        %v7404 = vsel %vm1410, %v7126, 0
        %7406 = vmatprep.subr.bf16.mxu0 %v7340
        %7407 = vmatpush1.bf16.msra.mxu0 %v7339
        %7408 = vmatprep.subr.bf16.mxu0 %v7356
        %7409 = vmatpush1.bf16.msra.mxu0 %v7355
        %7410 = vmatprep.subr.bf16.mxu0 0
        %7411 = vmatpush1.bf16.msra.mxu0 0
        %7412 = vmatprep.subr.bf16.mxu0 0
        %7413 = vmatpush1.bf16.msra.mxu0 0
        %7414 = vmatprep.subr.bf16.mxu0 0
        %7415 = vmatpush1.bf16.msra.mxu0 0
        %7416 = vmatprep.subr.bf16.mxu0 0
        %7417 = vmatpush1.bf16.msra.mxu0 0
        %7418 = vmatprep.subr.bf16.mxu0 0
        %7419 = vmatpush1.bf16.msra.mxu0 0
        %7420 = vmatprep.subr.bf16.mxu0 0
        %7421 = vmatpush1.bf16.msra.mxu0 0
        %7422 = vmatprep.subr.bf16.mxu0 0
        %7423 = vmatpush1.bf16.msra.mxu0 0
        %7424 = vmatprep.subr.bf16.mxu0 0
        %7425 = vmatpush1.bf16.msra.mxu0 0
        %7426 = vmatprep.subr.bf16.mxu0 0
        %7427 = vmatpush1.bf16.msra.mxu0 0
        %7428 = vmatprep.subr.bf16.mxu0 0
        %7429 = vmatpush1.bf16.msra.mxu0 0
        %7430 = vmatprep.subr.bf16.mxu0 0
        %7431 = vmatpush1.bf16.msra.mxu0 0
        %7432 = vmatprep.subr.bf16.mxu0 0
        %7433 = vmatpush1.bf16.msra.mxu0 0
        %7434 = vmatprep.subr.bf16.mxu0 0
        %7435 = vmatpush1.bf16.msra.mxu0 0
        %7436 = vmatprep.subr.bf16.mxu0 0
        %7437 = vmatpush1.bf16.msra.mxu0 0
        %7438 = vmatprep.mubr.bf16.mxu0 0
        %7439 = vmatmul.mubr.bf16.gmra.mrb[0].mxu0 %v7404
        %v7440 = vpop.f32.mrb[0].mxu0
        %v7441 = vadd.f32 %v7166, %v7440
        %v7442 = vpop.f32.mrb[0].mxu0
        %v7443 = vadd.f32 %v7170, %v7442
        %v7444 = vpop.f32.mrb[0].mxu0
        %v7445 = vadd.f32 %v7166, %v7444
        %v7446 = vpop.f32.mrb[0].mxu0
        %v7447 = vadd.f32 %v7170, %v7446
        %7448 = vdwg.mxu0
        %7449 = vmatprep.subr.bf16.mxu0 %v7342
        %7450 = vmatpush1.bf16.msra.mxu0 %v7341
        %7451 = vmatprep.subr.bf16.mxu0 %v7358
        %7452 = vmatpush1.bf16.msra.mxu0 %v7357
        %7453 = vmatprep.subr.bf16.mxu0 0
        %7454 = vmatpush1.bf16.msra.mxu0 0
        %7455 = vmatprep.subr.bf16.mxu0 0
        %7456 = vmatpush1.bf16.msra.mxu0 0
        %7457 = vmatprep.subr.bf16.mxu0 0
        %7458 = vmatpush1.bf16.msra.mxu0 0
        %7459 = vmatprep.subr.bf16.mxu0 0
        %7460 = vmatpush1.bf16.msra.mxu0 0
        %7461 = vmatprep.subr.bf16.mxu0 0
        %7462 = vmatpush1.bf16.msra.mxu0 0
        %7463 = vmatprep.subr.bf16.mxu0 0
        %7464 = vmatpush1.bf16.msra.mxu0 0
        %7465 = vmatprep.subr.bf16.mxu0 0
        %7466 = vmatpush1.bf16.msra.mxu0 0
        %7467 = vmatprep.subr.bf16.mxu0 0
        %7468 = vmatpush1.bf16.msra.mxu0 0
        %7469 = vmatprep.subr.bf16.mxu0 0
        %7470 = vmatpush1.bf16.msra.mxu0 0
        %7471 = vmatprep.subr.bf16.mxu0 0
        %7472 = vmatpush1.bf16.msra.mxu0 0
        %7473 = vmatprep.subr.bf16.mxu0 0
        %7474 = vmatpush1.bf16.msra.mxu0 0
        %7475 = vmatprep.subr.bf16.mxu0 0
        %7476 = vmatpush1.bf16.msra.mxu0 0
        %7477 = vmatprep.subr.bf16.mxu0 0
        %7478 = vmatpush1.bf16.msra.mxu0 0
        %7479 = vmatprep.subr.bf16.mxu0 0
        %7480 = vmatpush1.bf16.msra.mxu0 0
        %7481 = vmatprep.mubr.bf16.mxu0 0
        %7482 = vmatmul.mubr.bf16.gmra.mrb[0].mxu0 %v7404
        %v7483 = vpop.f32.mrb[0].mxu0
        %v7484 = vadd.f32 %v7174, %v7483
        %v7485 = vpop.f32.mrb[0].mxu0
        %v7486 = vadd.f32 %v7178, %v7485
        %v7487 = vpop.f32.mrb[0].mxu0
        %v7488 = vadd.f32 %v7174, %v7487
        %v7489 = vpop.f32.mrb[0].mxu0
        %v7490 = vadd.f32 %v7178, %v7489
        %7491 = vdwg.mxu0
        %7492 = vmatprep.subr.bf16.mxu0 %v7344
        %7493 = vmatpush1.bf16.msra.mxu0 %v7343
        %7494 = vmatprep.subr.bf16.mxu0 %v7360
        %7495 = vmatpush1.bf16.msra.mxu0 %v7359
        %7496 = vmatprep.subr.bf16.mxu0 0
        %7497 = vmatpush1.bf16.msra.mxu0 0
        %7498 = vmatprep.subr.bf16.mxu0 0
        %7499 = vmatpush1.bf16.msra.mxu0 0
        %7500 = vmatprep.subr.bf16.mxu0 0
        %7501 = vmatpush1.bf16.msra.mxu0 0
        %7502 = vmatprep.subr.bf16.mxu0 0
        %7503 = vmatpush1.bf16.msra.mxu0 0
        %7504 = vmatprep.subr.bf16.mxu0 0
        %7505 = vmatpush1.bf16.msra.mxu0 0
        %7506 = vmatprep.subr.bf16.mxu0 0
        %7507 = vmatpush1.bf16.msra.mxu0 0
        %7508 = vmatprep.subr.bf16.mxu0 0
        %7509 = vmatpush1.bf16.msra.mxu0 0
        %7510 = vmatprep.subr.bf16.mxu0 0
        %7511 = vmatpush1.bf16.msra.mxu0 0
        %7512 = vmatprep.subr.bf16.mxu0 0
        %7513 = vmatpush1.bf16.msra.mxu0 0
        %7514 = vmatprep.subr.bf16.mxu0 0
        %7515 = vmatpush1.bf16.msra.mxu0 0
        %7516 = vmatprep.subr.bf16.mxu0 0
        %7517 = vmatpush1.bf16.msra.mxu0 0
        %7518 = vmatprep.subr.bf16.mxu0 0
        %7519 = vmatpush1.bf16.msra.mxu0 0
        %7520 = vmatprep.subr.bf16.mxu0 0
        %7521 = vmatpush1.bf16.msra.mxu0 0
        %7522 = vmatprep.subr.bf16.mxu0 0
        %7523 = vmatpush1.bf16.msra.mxu0 0
        %7524 = vmatprep.mubr.bf16.mxu0 0
        %7525 = vmatmul.mubr.bf16.gmra.mrb[0].mxu0 %v7404
        %v7526 = vpop.f32.mrb[0].mxu0
        %v7527 = vadd.f32 %v7182, %v7526
        %v7528 = vpop.f32.mrb[0].mxu0
        %v7529 = vadd.f32 %v7186, %v7528
        %v7530 = vpop.f32.mrb[0].mxu0
        %v7531 = vadd.f32 %v7182, %v7530
        %v7532 = vpop.f32.mrb[0].mxu0
        %v7533 = vadd.f32 %v7186, %v7532
        %7534 = vdwg.mxu0
        %7535 = vmatprep.subr.bf16.mxu0 %v7346
        %7536 = vmatpush1.bf16.msra.mxu0 %v7345
        %7537 = vmatprep.subr.bf16.mxu0 %v7362
        %7538 = vmatpush1.bf16.msra.mxu0 %v7361
        %7539 = vmatprep.subr.bf16.mxu0 0
        %7540 = vmatpush1.bf16.msra.mxu0 0
        %7541 = vmatprep.subr.bf16.mxu0 0
        %7542 = vmatpush1.bf16.msra.mxu0 0
        %7543 = vmatprep.subr.bf16.mxu0 0
        %7544 = vmatpush1.bf16.msra.mxu0 0
        %7545 = vmatprep.subr.bf16.mxu0 0
        %7546 = vmatpush1.bf16.msra.mxu0 0
        %7547 = vmatprep.subr.bf16.mxu0 0
        %7548 = vmatpush1.bf16.msra.mxu0 0
        %7549 = vmatprep.subr.bf16.mxu0 0
        %7550 = vmatpush1.bf16.msra.mxu0 0
        %7551 = vmatprep.subr.bf16.mxu0 0
        %7552 = vmatpush1.bf16.msra.mxu0 0
        %7553 = vmatprep.subr.bf16.mxu0 0
        %7554 = vmatpush1.bf16.msra.mxu0 0
        %7555 = vmatprep.subr.bf16.mxu0 0
        %7556 = vmatpush1.bf16.msra.mxu0 0
        %7557 = vmatprep.subr.bf16.mxu0 0
        %7558 = vmatpush1.bf16.msra.mxu0 0
        %7559 = vmatprep.subr.bf16.mxu0 0
        %7560 = vmatpush1.bf16.msra.mxu0 0
        %7561 = vmatprep.subr.bf16.mxu0 0
        %7562 = vmatpush1.bf16.msra.mxu0 0
        %7563 = vmatprep.subr.bf16.mxu0 0
        %7564 = vmatpush1.bf16.msra.mxu0 0
        %7565 = vmatprep.subr.bf16.mxu0 0
        %7566 = vmatpush1.bf16.msra.mxu0 0
        %7567 = vmatprep.mubr.bf16.mxu0 0
        %7568 = vmatmul.mubr.bf16.gmra.mrb[0].mxu0 %v7404
        %v7569 = vpop.f32.mrb[0].mxu0
        %v7570 = vadd.f32 %v7190, %v7569
        %v7571 = vpop.f32.mrb[0].mxu0
        %v7572 = vadd.f32 %v7194, %v7571
        %v7573 = vpop.f32.mrb[0].mxu0
        %v7574 = vadd.f32 %v7190, %v7573
        %v7575 = vpop.f32.mrb[0].mxu0
        %v7576 = vadd.f32 %v7194, %v7575
        %7577 = vdwg.mxu0
        %7578 = vmatprep.subr.bf16.mxu0 %v7348
        %7579 = vmatpush1.bf16.msra.mxu0 %v7347
        %7580 = vmatprep.subr.bf16.mxu0 %v7364
        %7581 = vmatpush1.bf16.msra.mxu0 %v7363
        %7582 = vmatprep.subr.bf16.mxu0 0
        %7583 = vmatpush1.bf16.msra.mxu0 0
        %7584 = vmatprep.subr.bf16.mxu0 0
        %7585 = vmatpush1.bf16.msra.mxu0 0
        %7586 = vmatprep.subr.bf16.mxu0 0
        %7587 = vmatpush1.bf16.msra.mxu0 0
        %7588 = vmatprep.subr.bf16.mxu0 0
        %7589 = vmatpush1.bf16.msra.mxu0 0
        %7590 = vmatprep.subr.bf16.mxu0 0
        %7591 = vmatpush1.bf16.msra.mxu0 0
        %7592 = vmatprep.subr.bf16.mxu0 0
        %7593 = vmatpush1.bf16.msra.mxu0 0
        %7594 = vmatprep.subr.bf16.mxu0 0
        %7595 = vmatpush1.bf16.msra.mxu0 0
        %7596 = vmatprep.subr.bf16.mxu0 0
        %7597 = vmatpush1.bf16.msra.mxu0 0
        %7598 = vmatprep.subr.bf16.mxu0 0
        %7599 = vmatpush1.bf16.msra.mxu0 0
        %7600 = vmatprep.subr.bf16.mxu0 0
        %7601 = vmatpush1.bf16.msra.mxu0 0
        %7602 = vmatprep.subr.bf16.mxu0 0
        %7603 = vmatpush1.bf16.msra.mxu0 0
        %7604 = vmatprep.subr.bf16.mxu0 0
        %7605 = vmatpush1.bf16.msra.mxu0 0
        %7606 = vmatprep.subr.bf16.mxu0 0
        %7607 = vmatpush1.bf16.msra.mxu0 0
        %7608 = vmatprep.subr.bf16.mxu0 0
        %7609 = vmatpush1.bf16.msra.mxu0 0
        %7610 = vmatprep.mubr.bf16.mxu0 0
        %7611 = vmatmul.mubr.bf16.gmra.mrb[0].mxu0 %v7404
        %v7612 = vpop.f32.mrb[0].mxu0
        %v7613 = vadd.f32 %v7198, %v7612
        %v7614 = vpop.f32.mrb[0].mxu0
        %v7615 = vadd.f32 %v7202, %v7614
        %v7616 = vpop.f32.mrb[0].mxu0
        %v7617 = vadd.f32 %v7198, %v7616
        %v7618 = vpop.f32.mrb[0].mxu0
        %v7619 = vadd.f32 %v7202, %v7618
        %7620 = vdwg.mxu0
        %7621 = vmatprep.subr.bf16.mxu0 %v7350
        %7622 = vmatpush1.bf16.msra.mxu0 %v7349
        %7623 = vmatprep.subr.bf16.mxu0 %v7366
        %7624 = vmatpush1.bf16.msra.mxu0 %v7365
        %7625 = vmatprep.subr.bf16.mxu0 0
        %7626 = vmatpush1.bf16.msra.mxu0 0
        %7627 = vmatprep.subr.bf16.mxu0 0
        %7628 = vmatpush1.bf16.msra.mxu0 0
        %7629 = vmatprep.subr.bf16.mxu0 0
        %7630 = vmatpush1.bf16.msra.mxu0 0
        %7631 = vmatprep.subr.bf16.mxu0 0
        %7632 = vmatpush1.bf16.msra.mxu0 0
        %7633 = vmatprep.subr.bf16.mxu0 0
        %7634 = vmatpush1.bf16.msra.mxu0 0
        %7635 = vmatprep.subr.bf16.mxu0 0
        %7636 = vmatpush1.bf16.msra.mxu0 0
        %7637 = vmatprep.subr.bf16.mxu0 0
        %7638 = vmatpush1.bf16.msra.mxu0 0
        %7639 = vmatprep.subr.bf16.mxu0 0
        %7640 = vmatpush1.bf16.msra.mxu0 0
        %7641 = vmatprep.subr.bf16.mxu0 0
        %7642 = vmatpush1.bf16.msra.mxu0 0
        %7643 = vmatprep.subr.bf16.mxu0 0
        %7644 = vmatpush1.bf16.msra.mxu0 0
        %7645 = vmatprep.subr.bf16.mxu0 0
        %7646 = vmatpush1.bf16.msra.mxu0 0
        %7647 = vmatprep.subr.bf16.mxu0 0
        %7648 = vmatpush1.bf16.msra.mxu0 0
        %7649 = vmatprep.subr.bf16.mxu0 0
        %7650 = vmatpush1.bf16.msra.mxu0 0
        %7651 = vmatprep.subr.bf16.mxu0 0
        %7652 = vmatpush1.bf16.msra.mxu0 0
        %7653 = vmatprep.mubr.bf16.mxu0 0
        %7654 = vmatmul.mubr.bf16.gmra.mrb[0].mxu0 %v7404
        %v7655 = vpop.f32.mrb[0].mxu0
        %v7656 = vadd.f32 %v7206, %v7655
        %v7657 = vpop.f32.mrb[0].mxu0
        %v7658 = vadd.f32 %v7210, %v7657
        %v7659 = vpop.f32.mrb[0].mxu0
        %v7660 = vadd.f32 %v7206, %v7659
        %v7661 = vpop.f32.mrb[0].mxu0
        %v7662 = vadd.f32 %v7210, %v7661
        %7663 = vdwg.mxu0
        %7664 = vmatprep.subr.bf16.mxu0 %v7352
        %7665 = vmatpush1.bf16.msra.mxu0 %v7351
        %7666 = vmatprep.subr.bf16.mxu0 %v7368
        %7667 = vmatpush1.bf16.msra.mxu0 %v7367
        %7668 = vmatprep.subr.bf16.mxu0 0
        %7669 = vmatpush1.bf16.msra.mxu0 0
        %7670 = vmatprep.subr.bf16.mxu0 0
        %7671 = vmatpush1.bf16.msra.mxu0 0
        %7672 = vmatprep.subr.bf16.mxu0 0
        %7673 = vmatpush1.bf16.msra.mxu0 0
        %7674 = vmatprep.subr.bf16.mxu0 0
        %7675 = vmatpush1.bf16.msra.mxu0 0
        %7676 = vmatprep.subr.bf16.mxu0 0
        %7677 = vmatpush1.bf16.msra.mxu0 0
        %7678 = vmatprep.subr.bf16.mxu0 0
        %7679 = vmatpush1.bf16.msra.mxu0 0
        %7680 = vmatprep.subr.bf16.mxu0 0
        %7681 = vmatpush1.bf16.msra.mxu0 0
        %7682 = vmatprep.subr.bf16.mxu0 0
        %7683 = vmatpush1.bf16.msra.mxu0 0
        %7684 = vmatprep.subr.bf16.mxu0 0
        %7685 = vmatpush1.bf16.msra.mxu0 0
        %7686 = vmatprep.subr.bf16.mxu0 0
        %7687 = vmatpush1.bf16.msra.mxu0 0
        %7688 = vmatprep.subr.bf16.mxu0 0
        %7689 = vmatpush1.bf16.msra.mxu0 0
        %7690 = vmatprep.subr.bf16.mxu0 0
        %7691 = vmatpush1.bf16.msra.mxu0 0
        %7692 = vmatprep.subr.bf16.mxu0 0
        %7693 = vmatpush1.bf16.msra.mxu0 0
        %7694 = vmatprep.subr.bf16.mxu0 0
        %7695 = vmatpush1.bf16.msra.mxu0 0
        %7696 = vmatprep.mubr.bf16.mxu0 0
        %7697 = vmatmul.mubr.bf16.gmra.mrb[0].mxu0 %v7404
        %v7698 = vpop.f32.mrb[0].mxu0
        %v7699 = vadd.f32 %v7214, %v7698
        %v7700 = vpop.f32.mrb[0].mxu0
        %v7701 = vadd.f32 %v7218, %v7700
        %v7702 = vpop.f32.mrb[0].mxu0
        %v7703 = vadd.f32 %v7214, %v7702
        %v7704 = vpop.f32.mrb[0].mxu0
        %v7705 = vadd.f32 %v7218, %v7704
        %7706 = vdwg.mxu0
        %7707 = vmatprep.subr.bf16.mxu0 %v7354
        %7708 = vmatpush1.bf16.msra.mxu0 %v7353
        %7709 = vmatprep.subr.bf16.mxu0 %v7370
        %7710 = vmatpush1.bf16.msra.mxu0 %v7369
        %7711 = vmatprep.subr.bf16.mxu0 0
        %7712 = vmatpush1.bf16.msra.mxu0 0
        %7713 = vmatprep.subr.bf16.mxu0 0
        %7714 = vmatpush1.bf16.msra.mxu0 0
        %7715 = vmatprep.subr.bf16.mxu0 0
        %7716 = vmatpush1.bf16.msra.mxu0 0
        %7717 = vmatprep.subr.bf16.mxu0 0
        %7718 = vmatpush1.bf16.msra.mxu0 0
        %7719 = vmatprep.subr.bf16.mxu0 0
        %7720 = vmatpush1.bf16.msra.mxu0 0
        %7721 = vmatprep.subr.bf16.mxu0 0
        %7722 = vmatpush1.bf16.msra.mxu0 0
        %7723 = vmatprep.subr.bf16.mxu0 0
        %7724 = vmatpush1.bf16.msra.mxu0 0
        %7725 = vmatprep.subr.bf16.mxu0 0
        %7726 = vmatpush1.bf16.msra.mxu0 0
        %7727 = vmatprep.subr.bf16.mxu0 0
        %7728 = vmatpush1.bf16.msra.mxu0 0
        %7729 = vmatprep.subr.bf16.mxu0 0
        %7730 = vmatpush1.bf16.msra.mxu0 0
        %7731 = vmatprep.subr.bf16.mxu0 0
        %7732 = vmatpush1.bf16.msra.mxu0 0
        %7733 = vmatprep.subr.bf16.mxu0 0
        %7734 = vmatpush1.bf16.msra.mxu0 0
        %7735 = vmatprep.subr.bf16.mxu0 0
        %7736 = vmatpush1.bf16.msra.mxu0 0
        %7737 = vmatprep.subr.bf16.mxu0 0
        %7738 = vmatpush1.bf16.msra.mxu0 0
        %7739 = vmatprep.mubr.bf16.mxu0 0
        %7740 = vmatmul.mubr.bf16.gmra.mrb[0].mxu0 %v7404
        %v7741 = vpop.f32.mrb[0].mxu0
        %v7742 = vadd.f32 %v7222, %v7741
        %v7743 = vpop.f32.mrb[0].mxu0
        %v7744 = vadd.f32 %v7226, %v7743
        %v7745 = vpop.f32.mrb[0].mxu0
        %v7746 = vadd.f32 %v7222, %v7745
        %v7747 = vpop.f32.mrb[0].mxu0
        %v7748 = vadd.f32 %v7226, %v7747
        %7749 = vdwg.mxu0
        %v7750 = vmax.f32 %v7441, 0.0
        %v7751 = vmax.f32 %v7443, 0.0
        %v7752 = vmax.f32 %v7484, 0.0
        %v7753 = vmax.f32 %v7486, 0.0
        %v7754 = vmax.f32 %v7527, 0.0
        %v7755 = vmax.f32 %v7529, 0.0
        %v7756 = vmax.f32 %v7570, 0.0
        %v7757 = vmax.f32 %v7572, 0.0
        %v7758 = vmax.f32 %v7613, 0.0
        %v7759 = vmax.f32 %v7615, 0.0
        %v7760 = vmax.f32 %v7656, 0.0
        %v7761 = vmax.f32 %v7658, 0.0
        %v7762 = vmax.f32 %v7699, 0.0
        %v7763 = vmax.f32 %v7701, 0.0
        %v7764 = vmax.f32 %v7742, 0.0
        %v7765 = vmax.f32 %v7744, 0.0
        %v7766 = vmax.f32 %v7445, 0.0
        %v7767 = vmax.f32 %v7447, 0.0
        %v7768 = vmax.f32 %v7488, 0.0
        %v7769 = vmax.f32 %v7490, 0.0
        %v7770 = vmax.f32 %v7531, 0.0
        %v7771 = vmax.f32 %v7533, 0.0
        %v7772 = vmax.f32 %v7574, 0.0
        %v7773 = vmax.f32 %v7576, 0.0
        %v7774 = vmax.f32 %v7617, 0.0
        %v7775 = vmax.f32 %v7619, 0.0
        %v7776 = vmax.f32 %v7660, 0.0
        %v7777 = vmax.f32 %v7662, 0.0
        %v7778 = vmax.f32 %v7703, 0.0
        %v7779 = vmax.f32 %v7705, 0.0
        %v7780 = vmax.f32 %v7746, 0.0
        %v7781 = vmax.f32 %v7748, 0.0
        %v7782 = vpack.c.bf16 %v7766, %v7750
        %v7783 = vpack.c.bf16 %v7767, %v7751
        %v7784 = vpack.c.bf16 %v7768, %v7752
        %v7785 = vpack.c.bf16 %v7769, %v7753
        %v7786 = vpack.c.bf16 %v7770, %v7754
        %v7787 = vpack.c.bf16 %v7771, %v7755
        %v7788 = vpack.c.bf16 %v7772, %v7756
        %v7789 = vpack.c.bf16 %v7773, %v7757
        %v7790 = vpack.c.bf16 %v7774, %v7758
        %v7791 = vpack.c.bf16 %v7775, %v7759
        %v7792 = vpack.c.bf16 %v7776, %v7760
        %v7793 = vpack.c.bf16 %v7777, %v7761
        %v7794 = vpack.c.bf16 %v7778, %v7762
        %v7795 = vpack.c.bf16 %v7779, %v7763
        %v7796 = vpack.c.bf16 %v7780, %v7764
        %v7797 = vpack.c.bf16 %v7781, %v7765
        %v7798 = vld [vmem:[%s1099] sm:$0xf]
        %v7799 = vld [vmem:[%s1099 + $0x4] sm:$0xf]
        %v7800 = vld [vmem:[%s1099 + $0x8] sm:$0xf]
        %v7801 = vld [vmem:[%s1099 + $0xc] sm:$0xf]
        %v7802 = vld [vmem:[%s1099 + $0x10] sm:$0xf]
        %v7803 = vld [vmem:[%s1099 + $0x14] sm:$0xf]
        %v7804 = vld [vmem:[%s1099 + $0x18] sm:$0xf]
        %v7805 = vld [vmem:[%s1099 + $0x1c] sm:$0xf]
        %v7806 = vld [vmem:[%s1099 + $0x20] sm:$0xf]
        %v7807 = vld [vmem:[%s1099 + $0x24] sm:$0xf]
        %v7808 = vld [vmem:[%s1099 + $0x28] sm:$0xf]
        %v7809 = vld [vmem:[%s1099 + $0x2c] sm:$0xf]
        %v7810 = vld [vmem:[%s1099 + $0x30] sm:$0xf]
        %v7811 = vld [vmem:[%s1099 + $0x34] sm:$0xf]
        %v7812 = vld [vmem:[%s1099 + $0x38] sm:$0xf]
        %v7813 = vld [vmem:[%s1099 + $0x3c] sm:$0xf]
        %v7814 = vld [vmem:[%s1099 + $0x40] sm:$0xf]
        %v7815 = vld [vmem:[%s1099 + $0x44] sm:$0xf]
        %v7816 = vld [vmem:[%s1099 + $0x48] sm:$0xf]
        %v7817 = vld [vmem:[%s1099 + $0x4c] sm:$0xf]
        %v7818 = vld [vmem:[%s1099 + $0x50] sm:$0xf]
        %v7819 = vld [vmem:[%s1099 + $0x54] sm:$0xf]
        %v7820 = vld [vmem:[%s1099 + $0x58] sm:$0xf]
        %v7821 = vld [vmem:[%s1099 + $0x5c] sm:$0xf]
        %v7822 = vld [vmem:[%s1099 + $0x60] sm:$0xf]
        %v7823 = vld [vmem:[%s1099 + $0x64] sm:$0xf]
        %v7824 = vld [vmem:[%s1099 + $0x68] sm:$0xf]
        %v7825 = vld [vmem:[%s1099 + $0x6c] sm:$0xf]
        %v7826 = vld [vmem:[%s1099 + $0x70] sm:$0xf]
        %v7827 = vld [vmem:[%s1099 + $0x74] sm:$0xf]
        %v7828 = vld [vmem:[%s1099 + $0x78] sm:$0xf]
        %v7829 = vld [vmem:[%s1099 + $0x7c] sm:$0xf]
        %v7830 = vld [vmem:[%s1099 + $0x80] sm:$0xf]
        %v7831 = vld [vmem:[%s1099 + $0x84] sm:$0xf]
        %v7832 = vld [vmem:[%s1099 + $0x88] sm:$0xf]
        %v7833 = vld [vmem:[%s1099 + $0x8c] sm:$0xf]
        %v7834 = vld [vmem:[%s1099 + $0x90] sm:$0xf]
        %v7835 = vld [vmem:[%s1099 + $0x94] sm:$0xf]
        %v7836 = vld [vmem:[%s1099 + $0x98] sm:$0xf]
        %v7837 = vld [vmem:[%s1099 + $0x9c] sm:$0xf]
        %v7838 = vld [vmem:[%s1099 + $0xa0] sm:$0xf]
        %v7839 = vld [vmem:[%s1099 + $0xa4] sm:$0xf]
        %v7840 = vld [vmem:[%s1099 + $0xa8] sm:$0xf]
        %v7841 = vld [vmem:[%s1099 + $0xac] sm:$0xf]
        %v7842 = vld [vmem:[%s1099 + $0xb0] sm:$0xf]
        %v7843 = vld [vmem:[%s1099 + $0xb4] sm:$0xf]
        %v7844 = vld [vmem:[%s1099 + $0xb8] sm:$0xf]
        %v7845 = vld [vmem:[%s1099 + $0xbc] sm:$0xf]
        %v7846 = vld [vmem:[%s1099 + $0xc0] sm:$0xf]
        %v7847 = vld [vmem:[%s1099 + $0xc4] sm:$0xf]
        %v7848 = vld [vmem:[%s1099 + $0xc8] sm:$0xf]
        %v7849 = vld [vmem:[%s1099 + $0xcc] sm:$0xf]
        %v7850 = vld [vmem:[%s1099 + $0xd0] sm:$0xf]
        %v7851 = vld [vmem:[%s1099 + $0xd4] sm:$0xf]
        %v7852 = vld [vmem:[%s1099 + $0xd8] sm:$0xf]
        %v7853 = vld [vmem:[%s1099 + $0xdc] sm:$0xf]
        %v7854 = vld [vmem:[%s1099 + $0xe0] sm:$0xf]
        %v7855 = vld [vmem:[%s1099 + $0xe4] sm:$0xf]
        %v7856 = vld [vmem:[%s1099 + $0xe8] sm:$0xf]
        %v7857 = vld [vmem:[%s1099 + $0xec] sm:$0xf]
        %v7858 = vld [vmem:[%s1099 + $0xf0] sm:$0xf]
        %v7859 = vld [vmem:[%s1099 + $0xf4] sm:$0xf]
        %v7860 = vld [vmem:[%s1099 + $0xf8] sm:$0xf]
        %v7861 = vld [vmem:[%s1099 + $0xfc] sm:$0xf]
        %v7862 = vld [vmem:[%s1099 + $0x100] sm:$0xf]
        %v7863 = vld [vmem:[%s1099 + $0x104] sm:$0xf]
        %v7864 = vld [vmem:[%s1099 + $0x108] sm:$0xf]
        %v7865 = vld [vmem:[%s1099 + $0x10c] sm:$0xf]
        %v7866 = vld [vmem:[%s1099 + $0x110] sm:$0xf]
        %v7867 = vld [vmem:[%s1099 + $0x114] sm:$0xf]
        %v7868 = vld [vmem:[%s1099 + $0x118] sm:$0xf]
        %v7869 = vld [vmem:[%s1099 + $0x11c] sm:$0xf]
        %v7870 = vld [vmem:[%s1099 + $0x120] sm:$0xf]
        %v7871 = vld [vmem:[%s1099 + $0x124] sm:$0xf]
        %v7872 = vld [vmem:[%s1099 + $0x128] sm:$0xf]
        %v7873 = vld [vmem:[%s1099 + $0x12c] sm:$0xf]
        %v7874 = vld [vmem:[%s1099 + $0x130] sm:$0xf]
        %v7875 = vld [vmem:[%s1099 + $0x134] sm:$0xf]
        %v7876 = vld [vmem:[%s1099 + $0x138] sm:$0xf]
        %v7877 = vld [vmem:[%s1099 + $0x13c] sm:$0xf]
        %v7878 = vld [vmem:[%s1099 + $0x140] sm:$0xf]
        %v7879 = vld [vmem:[%s1099 + $0x144] sm:$0xf]
        %v7880 = vld [vmem:[%s1099 + $0x148] sm:$0xf]
        %v7881 = vld [vmem:[%s1099 + $0x14c] sm:$0xf]
        %v7882 = vld [vmem:[%s1099 + $0x150] sm:$0xf]
        %v7883 = vld [vmem:[%s1099 + $0x154] sm:$0xf]
        %v7884 = vld [vmem:[%s1099 + $0x158] sm:$0xf]
        %v7885 = vld [vmem:[%s1099 + $0x15c] sm:$0xf]
        %v7886 = vld [vmem:[%s1099 + $0x160] sm:$0xf]
        %v7887 = vld [vmem:[%s1099 + $0x164] sm:$0xf]
        %v7888 = vld [vmem:[%s1099 + $0x168] sm:$0xf]
        %v7889 = vld [vmem:[%s1099 + $0x16c] sm:$0xf]
        %v7890 = vld [vmem:[%s1099 + $0x170] sm:$0xf]
        %v7891 = vld [vmem:[%s1099 + $0x174] sm:$0xf]
        %v7892 = vld [vmem:[%s1099 + $0x178] sm:$0xf]
        %v7893 = vld [vmem:[%s1099 + $0x17c] sm:$0xf]
        %v7894 = vld [vmem:[%s1099 + $0x180] sm:$0xf]
        %v7895 = vld [vmem:[%s1099 + $0x184] sm:$0xf]
        %v7896 = vld [vmem:[%s1099 + $0x188] sm:$0xf]
        %v7897 = vld [vmem:[%s1099 + $0x18c] sm:$0xf]
        %v7898 = vld [vmem:[%s1099 + $0x190] sm:$0xf]
        %v7899 = vld [vmem:[%s1099 + $0x194] sm:$0xf]
        %v7900 = vld [vmem:[%s1099 + $0x198] sm:$0xf]
        %v7901 = vld [vmem:[%s1099 + $0x19c] sm:$0xf]
        %v7902 = vld [vmem:[%s1099 + $0x1a0] sm:$0xf]
        %v7903 = vld [vmem:[%s1099 + $0x1a4] sm:$0xf]
        %v7904 = vld [vmem:[%s1099 + $0x1a8] sm:$0xf]
        %v7905 = vld [vmem:[%s1099 + $0x1ac] sm:$0xf]
        %v7906 = vld [vmem:[%s1099 + $0x1b0] sm:$0xf]
        %v7907 = vld [vmem:[%s1099 + $0x1b4] sm:$0xf]
        %v7908 = vld [vmem:[%s1099 + $0x1b8] sm:$0xf]
        %v7909 = vld [vmem:[%s1099 + $0x1bc] sm:$0xf]
        %v7910 = vld [vmem:[%s1099 + $0x1c0] sm:$0xf]
        %v7911 = vld [vmem:[%s1099 + $0x1c4] sm:$0xf]
        %v7912 = vld [vmem:[%s1099 + $0x1c8] sm:$0xf]
        %v7913 = vld [vmem:[%s1099 + $0x1cc] sm:$0xf]
        %v7914 = vld [vmem:[%s1099 + $0x1d0] sm:$0xf]
        %v7915 = vld [vmem:[%s1099 + $0x1d4] sm:$0xf]
        %v7916 = vld [vmem:[%s1099 + $0x1d8] sm:$0xf]
        %v7917 = vld [vmem:[%s1099 + $0x1dc] sm:$0xf]
        %v7918 = vld [vmem:[%s1099 + $0x1e0] sm:$0xf]
        %v7919 = vld [vmem:[%s1099 + $0x1e4] sm:$0xf]
        %v7920 = vld [vmem:[%s1099 + $0x1e8] sm:$0xf]
        %v7921 = vld [vmem:[%s1099 + $0x1ec] sm:$0xf]
        %v7922 = vld [vmem:[%s1099 + $0x1f0] sm:$0xf]
        %v7923 = vld [vmem:[%s1099 + $0x1f4] sm:$0xf]
        %v7924 = vld [vmem:[%s1099 + $0x1f8] sm:$0xf]
        %v7925 = vld [vmem:[%s1099 + $0x1fc] sm:$0xf]
        %v7926 = vld [vmem:[%s1099 + $0x200] sm:$0xf]
        %v7927 = vld [vmem:[%s1099 + $0x204] sm:$0xf]
        %v7928 = vld [vmem:[%s1099 + $0x208] sm:$0xf]
        %v7929 = vld [vmem:[%s1099 + $0x20c] sm:$0xf]
        %v7930 = vld [vmem:[%s1099 + $0x210] sm:$0xf]
        %v7931 = vld [vmem:[%s1099 + $0x214] sm:$0xf]
        %v7932 = vld [vmem:[%s1099 + $0x218] sm:$0xf]
        %v7933 = vld [vmem:[%s1099 + $0x21c] sm:$0xf]
        %v7934 = vld [vmem:[%s1099 + $0x220] sm:$0xf]
        %v7935 = vld [vmem:[%s1099 + $0x224] sm:$0xf]
        %v7936 = vld [vmem:[%s1099 + $0x228] sm:$0xf]
        %v7937 = vld [vmem:[%s1099 + $0x22c] sm:$0xf]
        %v7938 = vld [vmem:[%s1099 + $0x230] sm:$0xf]
        %v7939 = vld [vmem:[%s1099 + $0x234] sm:$0xf]
        %v7940 = vld [vmem:[%s1099 + $0x238] sm:$0xf]
        %v7941 = vld [vmem:[%s1099 + $0x23c] sm:$0xf]
        %v7942 = vld [vmem:[%s1099 + $0x240] sm:$0xf]
        %v7943 = vld [vmem:[%s1099 + $0x244] sm:$0xf]
        %v7944 = vld [vmem:[%s1099 + $0x248] sm:$0xf]
        %v7945 = vld [vmem:[%s1099 + $0x24c] sm:$0xf]
        %v7946 = vld [vmem:[%s1099 + $0x250] sm:$0xf]
        %v7947 = vld [vmem:[%s1099 + $0x254] sm:$0xf]
        %v7948 = vld [vmem:[%s1099 + $0x258] sm:$0xf]
        %v7949 = vld [vmem:[%s1099 + $0x25c] sm:$0xf]
        %v7950 = vld [vmem:[%s1099 + $0x260] sm:$0xf]
        %v7951 = vld [vmem:[%s1099 + $0x264] sm:$0xf]
        %v7952 = vld [vmem:[%s1099 + $0x268] sm:$0xf]
        %v7953 = vld [vmem:[%s1099 + $0x26c] sm:$0xf]
        %v7954 = vld [vmem:[%s1099 + $0x270] sm:$0xf]
        %v7955 = vld [vmem:[%s1099 + $0x274] sm:$0xf]
        %v7956 = vld [vmem:[%s1099 + $0x278] sm:$0xf]
        %v7957 = vld [vmem:[%s1099 + $0x27c] sm:$0xf]
        %v7958 = vld [vmem:[%s1099 + $0x280] sm:$0xf]
        %v7959 = vld [vmem:[%s1099 + $0x284] sm:$0xf]
        %v7960 = vld [vmem:[%s1099 + $0x288] sm:$0xf]
        %v7961 = vld [vmem:[%s1099 + $0x28c] sm:$0xf]
        %v7962 = vld [vmem:[%s1099 + $0x290] sm:$0xf]
        %v7963 = vld [vmem:[%s1099 + $0x294] sm:$0xf]
        %v7964 = vld [vmem:[%s1099 + $0x298] sm:$0xf]
        %v7965 = vld [vmem:[%s1099 + $0x29c] sm:$0xf]
        %v7966 = vld [vmem:[%s1099 + $0x2a0] sm:$0xf]
        %v7967 = vld [vmem:[%s1099 + $0x2a4] sm:$0xf]
        %v7968 = vld [vmem:[%s1099 + $0x2a8] sm:$0xf]
        %v7969 = vld [vmem:[%s1099 + $0x2ac] sm:$0xf]
        %v7970 = vld [vmem:[%s1099 + $0x2b0] sm:$0xf]
        %v7971 = vld [vmem:[%s1099 + $0x2b4] sm:$0xf]
        %v7972 = vld [vmem:[%s1099 + $0x2b8] sm:$0xf]
        %v7973 = vld [vmem:[%s1099 + $0x2bc] sm:$0xf]
        %v7974 = vld [vmem:[%s1099 + $0x2c0] sm:$0xf]
        %v7975 = vld [vmem:[%s1099 + $0x2c4] sm:$0xf]
        %v7976 = vld [vmem:[%s1099 + $0x2c8] sm:$0xf]
        %v7977 = vld [vmem:[%s1099 + $0x2cc] sm:$0xf]
        %v7978 = vld [vmem:[%s1099 + $0x2d0] sm:$0xf]
        %v7979 = vld [vmem:[%s1099 + $0x2d4] sm:$0xf]
        %v7980 = vld [vmem:[%s1099 + $0x2d8] sm:$0xf]
        %v7981 = vld [vmem:[%s1099 + $0x2dc] sm:$0xf]
        %v7982 = vld [vmem:[%s1099 + $0x2e0] sm:$0xf]
        %v7983 = vld [vmem:[%s1099 + $0x2e4] sm:$0xf]
        %v7984 = vld [vmem:[%s1099 + $0x2e8] sm:$0xf]
        %v7985 = vld [vmem:[%s1099 + $0x2ec] sm:$0xf]
        %v7986 = vld [vmem:[%s1099 + $0x2f0] sm:$0xf]
        %v7987 = vld [vmem:[%s1099 + $0x2f4] sm:$0xf]
        %v7988 = vld [vmem:[%s1099 + $0x2f8] sm:$0xf]
        %v7989 = vld [vmem:[%s1099 + $0x2fc] sm:$0xf]
        %v7990 = vld [vmem:[%s1099 + $0x300] sm:$0xf]
        %v7991 = vld [vmem:[%s1099 + $0x304] sm:$0xf]
        %v7992 = vld [vmem:[%s1099 + $0x308] sm:$0xf]
        %v7993 = vld [vmem:[%s1099 + $0x30c] sm:$0xf]
        %v7994 = vld [vmem:[%s1099 + $0x310] sm:$0xf]
        %v7995 = vld [vmem:[%s1099 + $0x314] sm:$0xf]
        %v7996 = vld [vmem:[%s1099 + $0x318] sm:$0xf]
        %v7997 = vld [vmem:[%s1099 + $0x31c] sm:$0xf]
        %v7998 = vld [vmem:[%s1099 + $0x320] sm:$0xf]
        %v7999 = vld [vmem:[%s1099 + $0x324] sm:$0xf]
        %v8000 = vld [vmem:[%s1099 + $0x328] sm:$0xf]
        %v8001 = vld [vmem:[%s1099 + $0x32c] sm:$0xf]
        %v8002 = vld [vmem:[%s1099 + $0x330] sm:$0xf]
        %v8003 = vld [vmem:[%s1099 + $0x334] sm:$0xf]
        %v8004 = vld [vmem:[%s1099 + $0x338] sm:$0xf]
        %v8005 = vld [vmem:[%s1099 + $0x33c] sm:$0xf]
        %v8006 = vld [vmem:[%s1099 + $0x340] sm:$0xf]
        %v8007 = vld [vmem:[%s1099 + $0x344] sm:$0xf]
        %v8008 = vld [vmem:[%s1099 + $0x348] sm:$0xf]
        %v8009 = vld [vmem:[%s1099 + $0x34c] sm:$0xf]
        %v8010 = vld [vmem:[%s1099 + $0x350] sm:$0xf]
        %v8011 = vld [vmem:[%s1099 + $0x354] sm:$0xf]
        %v8012 = vld [vmem:[%s1099 + $0x358] sm:$0xf]
        %v8013 = vld [vmem:[%s1099 + $0x35c] sm:$0xf]
        %v8014 = vld [vmem:[%s1099 + $0x360] sm:$0xf]
        %v8015 = vld [vmem:[%s1099 + $0x364] sm:$0xf]
        %v8016 = vld [vmem:[%s1099 + $0x368] sm:$0xf]
        %v8017 = vld [vmem:[%s1099 + $0x36c] sm:$0xf]
        %v8018 = vld [vmem:[%s1099 + $0x370] sm:$0xf]
        %v8019 = vld [vmem:[%s1099 + $0x374] sm:$0xf]
        %v8020 = vld [vmem:[%s1099 + $0x378] sm:$0xf]
        %v8021 = vld [vmem:[%s1099 + $0x37c] sm:$0xf]
        %v8022 = vld [vmem:[%s1099 + $0x380] sm:$0xf]
        %v8023 = vld [vmem:[%s1099 + $0x384] sm:$0xf]
        %v8024 = vld [vmem:[%s1099 + $0x388] sm:$0xf]
        %v8025 = vld [vmem:[%s1099 + $0x38c] sm:$0xf]
        %v8026 = vld [vmem:[%s1099 + $0x390] sm:$0xf]
        %v8027 = vld [vmem:[%s1099 + $0x394] sm:$0xf]
        %v8028 = vld [vmem:[%s1099 + $0x398] sm:$0xf]
        %v8029 = vld [vmem:[%s1099 + $0x39c] sm:$0xf]
        %v8030 = vld [vmem:[%s1099 + $0x3a0] sm:$0xf]
        %v8031 = vld [vmem:[%s1099 + $0x3a4] sm:$0xf]
        %v8032 = vld [vmem:[%s1099 + $0x3a8] sm:$0xf]
        %v8033 = vld [vmem:[%s1099 + $0x3ac] sm:$0xf]
        %v8034 = vld [vmem:[%s1099 + $0x3b0] sm:$0xf]
        %v8035 = vld [vmem:[%s1099 + $0x3b4] sm:$0xf]
        %v8036 = vld [vmem:[%s1099 + $0x3b8] sm:$0xf]
        %v8037 = vld [vmem:[%s1099 + $0x3bc] sm:$0xf]
        %v8038 = vld [vmem:[%s1099 + $0x3c0] sm:$0xf]
        %v8039 = vld [vmem:[%s1099 + $0x3c4] sm:$0xf]
        %v8040 = vld [vmem:[%s1099 + $0x3c8] sm:$0xf]
        %v8041 = vld [vmem:[%s1099 + $0x3cc] sm:$0xf]
        %v8042 = vld [vmem:[%s1099 + $0x3d0] sm:$0xf]
        %v8043 = vld [vmem:[%s1099 + $0x3d4] sm:$0xf]
        %v8044 = vld [vmem:[%s1099 + $0x3d8] sm:$0xf]
        %v8045 = vld [vmem:[%s1099 + $0x3dc] sm:$0xf]
        %v8046 = vld [vmem:[%s1099 + $0x3e0] sm:$0xf]
        %v8047 = vld [vmem:[%s1099 + $0x3e4] sm:$0xf]
        %v8048 = vld [vmem:[%s1099 + $0x3e8] sm:$0xf]
        %v8049 = vld [vmem:[%s1099 + $0x3ec] sm:$0xf]
        %v8050 = vld [vmem:[%s1099 + $0x3f0] sm:$0xf]
        %v8051 = vld [vmem:[%s1099 + $0x3f4] sm:$0xf]
        %v8052 = vld [vmem:[%s1099 + $0x3f8] sm:$0xf]
        %v8053 = vld [vmem:[%s1099 + $0x3fc] sm:$0xf]
        %v8054 = vld [vmem:[%s1102] sm:$0x1]
        %v8056 = vlaneseq
        %v8057 = vshrl.u32 %v8056, 7
        %v8058 = vsub.s32 0, %v8057
        %v8059 = vrot.slane %v8054, %v8058
        %v8317 = vunpack.c.l.b16 %v7798
        %v8318 = vunpack.c.l.b16 %v7799
        %v8319 = vunpack.c.l.b16 %v7800
        %v8320 = vunpack.c.l.b16 %v7801
        %v8321 = vunpack.c.l.b16 %v7802
        %v8322 = vunpack.c.l.b16 %v7803
        %v8323 = vunpack.c.l.b16 %v7804
        %v8324 = vunpack.c.l.b16 %v7805
        %v8325 = vunpack.c.l.b16 %v7806
        %v8326 = vunpack.c.l.b16 %v7807
        %v8327 = vunpack.c.l.b16 %v7808
        %v8328 = vunpack.c.l.b16 %v7809
        %v8329 = vunpack.c.l.b16 %v7810
        %v8330 = vunpack.c.l.b16 %v7811
        %v8331 = vunpack.c.l.b16 %v7812
        %v8332 = vunpack.c.l.b16 %v7813
        %v8333 = vunpack.c.l.b16 %v7814
        %v8334 = vunpack.c.l.b16 %v7815
        %v8335 = vunpack.c.l.b16 %v7816
        %v8336 = vunpack.c.l.b16 %v7817
        %v8337 = vunpack.c.l.b16 %v7818
        %v8338 = vunpack.c.l.b16 %v7819
        %v8339 = vunpack.c.l.b16 %v7820
        %v8340 = vunpack.c.l.b16 %v7821
        %v8341 = vunpack.c.l.b16 %v7822
        %v8342 = vunpack.c.l.b16 %v7823
        %v8343 = vunpack.c.l.b16 %v7824
        %v8344 = vunpack.c.l.b16 %v7825
        %v8345 = vunpack.c.l.b16 %v7826
        %v8346 = vunpack.c.l.b16 %v7827
        %v8347 = vunpack.c.l.b16 %v7828
        %v8348 = vunpack.c.l.b16 %v7829
        %v8349 = vunpack.c.l.b16 %v7830
        %v8350 = vunpack.c.l.b16 %v7831
        %v8351 = vunpack.c.l.b16 %v7832
        %v8352 = vunpack.c.l.b16 %v7833
        %v8353 = vunpack.c.l.b16 %v7834
        %v8354 = vunpack.c.l.b16 %v7835
        %v8355 = vunpack.c.l.b16 %v7836
        %v8356 = vunpack.c.l.b16 %v7837
        %v8357 = vunpack.c.l.b16 %v7838
        %v8358 = vunpack.c.l.b16 %v7839
        %v8359 = vunpack.c.l.b16 %v7840
        %v8360 = vunpack.c.l.b16 %v7841
        %v8361 = vunpack.c.l.b16 %v7842
        %v8362 = vunpack.c.l.b16 %v7843
        %v8363 = vunpack.c.l.b16 %v7844
        %v8364 = vunpack.c.l.b16 %v7845
        %v8365 = vunpack.c.l.b16 %v7846
        %v8366 = vunpack.c.l.b16 %v7847
        %v8367 = vunpack.c.l.b16 %v7848
        %v8368 = vunpack.c.l.b16 %v7849
        %v8369 = vunpack.c.l.b16 %v7850
        %v8370 = vunpack.c.l.b16 %v7851
        %v8371 = vunpack.c.l.b16 %v7852
        %v8372 = vunpack.c.l.b16 %v7853
        %v8373 = vunpack.c.l.b16 %v7854
        %v8374 = vunpack.c.l.b16 %v7855
        %v8375 = vunpack.c.l.b16 %v7856
        %v8376 = vunpack.c.l.b16 %v7857
        %v8377 = vunpack.c.l.b16 %v7858
        %v8378 = vunpack.c.l.b16 %v7859
        %v8379 = vunpack.c.l.b16 %v7860
        %v8380 = vunpack.c.l.b16 %v7861
        %v8381 = vunpack.c.l.b16 %v7862
        %v8382 = vunpack.c.l.b16 %v7863
        %v8383 = vunpack.c.l.b16 %v7864
        %v8384 = vunpack.c.l.b16 %v7865
        %v8385 = vunpack.c.l.b16 %v7866
        %v8386 = vunpack.c.l.b16 %v7867
        %v8387 = vunpack.c.l.b16 %v7868
        %v8388 = vunpack.c.l.b16 %v7869
        %v8389 = vunpack.c.l.b16 %v7870
        %v8390 = vunpack.c.l.b16 %v7871
        %v8391 = vunpack.c.l.b16 %v7872
        %v8392 = vunpack.c.l.b16 %v7873
        %v8393 = vunpack.c.l.b16 %v7874
        %v8394 = vunpack.c.l.b16 %v7875
        %v8395 = vunpack.c.l.b16 %v7876
        %v8396 = vunpack.c.l.b16 %v7877
        %v8397 = vunpack.c.l.b16 %v7878
        %v8398 = vunpack.c.l.b16 %v7879
        %v8399 = vunpack.c.l.b16 %v7880
        %v8400 = vunpack.c.l.b16 %v7881
        %v8401 = vunpack.c.l.b16 %v7882
        %v8402 = vunpack.c.l.b16 %v7883
        %v8403 = vunpack.c.l.b16 %v7884
        %v8404 = vunpack.c.l.b16 %v7885
        %v8405 = vunpack.c.l.b16 %v7886
        %v8406 = vunpack.c.l.b16 %v7887
        %v8407 = vunpack.c.l.b16 %v7888
        %v8408 = vunpack.c.l.b16 %v7889
        %v8409 = vunpack.c.l.b16 %v7890
        %v8410 = vunpack.c.l.b16 %v7891
        %v8411 = vunpack.c.l.b16 %v7892
        %v8412 = vunpack.c.l.b16 %v7893
        %v8413 = vunpack.c.l.b16 %v7894
        %v8414 = vunpack.c.l.b16 %v7895
        %v8415 = vunpack.c.l.b16 %v7896
        %v8416 = vunpack.c.l.b16 %v7897
        %v8417 = vunpack.c.l.b16 %v7898
        %v8418 = vunpack.c.l.b16 %v7899
        %v8419 = vunpack.c.l.b16 %v7900
        %v8420 = vunpack.c.l.b16 %v7901
        %v8421 = vunpack.c.l.b16 %v7902
        %v8422 = vunpack.c.l.b16 %v7903
        %v8423 = vunpack.c.l.b16 %v7904
        %v8424 = vunpack.c.l.b16 %v7905
        %v8425 = vunpack.c.l.b16 %v7906
        %v8426 = vunpack.c.l.b16 %v7907
        %v8427 = vunpack.c.l.b16 %v7908
        %v8428 = vunpack.c.l.b16 %v7909
        %v8429 = vunpack.c.l.b16 %v7910
        %v8430 = vunpack.c.l.b16 %v7911
        %v8431 = vunpack.c.l.b16 %v7912
        %v8432 = vunpack.c.l.b16 %v7913
        %v8433 = vunpack.c.l.b16 %v7914
        %v8434 = vunpack.c.l.b16 %v7915
        %v8435 = vunpack.c.l.b16 %v7916
        %v8436 = vunpack.c.l.b16 %v7917
        %v8437 = vunpack.c.l.b16 %v7918
        %v8438 = vunpack.c.l.b16 %v7919
        %v8439 = vunpack.c.l.b16 %v7920
        %v8440 = vunpack.c.l.b16 %v7921
        %v8441 = vunpack.c.l.b16 %v7922
        %v8442 = vunpack.c.l.b16 %v7923
        %v8443 = vunpack.c.l.b16 %v7924
        %v8444 = vunpack.c.l.b16 %v7925
        %v8445 = vunpack.c.l.b16 %v7926
        %v8446 = vunpack.c.l.b16 %v7927
        %v8447 = vunpack.c.l.b16 %v7928
        %v8448 = vunpack.c.l.b16 %v7929
        %v8449 = vunpack.c.l.b16 %v7930
        %v8450 = vunpack.c.l.b16 %v7931
        %v8451 = vunpack.c.l.b16 %v7932
        %v8452 = vunpack.c.l.b16 %v7933
        %v8453 = vunpack.c.l.b16 %v7934
        %v8454 = vunpack.c.l.b16 %v7935
        %v8455 = vunpack.c.l.b16 %v7936
        %v8456 = vunpack.c.l.b16 %v7937
        %v8457 = vunpack.c.l.b16 %v7938
        %v8458 = vunpack.c.l.b16 %v7939
        %v8459 = vunpack.c.l.b16 %v7940
        %v8460 = vunpack.c.l.b16 %v7941
        %v8461 = vunpack.c.l.b16 %v7942
        %v8462 = vunpack.c.l.b16 %v7943
        %v8463 = vunpack.c.l.b16 %v7944
        %v8464 = vunpack.c.l.b16 %v7945
        %v8465 = vunpack.c.l.b16 %v7946
        %v8466 = vunpack.c.l.b16 %v7947
        %v8467 = vunpack.c.l.b16 %v7948
        %v8468 = vunpack.c.l.b16 %v7949
        %v8469 = vunpack.c.l.b16 %v7950
        %v8470 = vunpack.c.l.b16 %v7951
        %v8471 = vunpack.c.l.b16 %v7952
        %v8472 = vunpack.c.l.b16 %v7953
        %v8473 = vunpack.c.l.b16 %v7954
        %v8474 = vunpack.c.l.b16 %v7955
        %v8475 = vunpack.c.l.b16 %v7956
        %v8476 = vunpack.c.l.b16 %v7957
        %v8477 = vunpack.c.l.b16 %v7958
        %v8478 = vunpack.c.l.b16 %v7959
        %v8479 = vunpack.c.l.b16 %v7960
        %v8480 = vunpack.c.l.b16 %v7961
        %v8481 = vunpack.c.l.b16 %v7962
        %v8482 = vunpack.c.l.b16 %v7963
        %v8483 = vunpack.c.l.b16 %v7964
        %v8484 = vunpack.c.l.b16 %v7965
        %v8485 = vunpack.c.l.b16 %v7966
        %v8486 = vunpack.c.l.b16 %v7967
        %v8487 = vunpack.c.l.b16 %v7968
        %v8488 = vunpack.c.l.b16 %v7969
        %v8489 = vunpack.c.l.b16 %v7970
        %v8490 = vunpack.c.l.b16 %v7971
        %v8491 = vunpack.c.l.b16 %v7972
        %v8492 = vunpack.c.l.b16 %v7973
        %v8493 = vunpack.c.l.b16 %v7974
        %v8494 = vunpack.c.l.b16 %v7975
        %v8495 = vunpack.c.l.b16 %v7976
        %v8496 = vunpack.c.l.b16 %v7977
        %v8497 = vunpack.c.l.b16 %v7978
        %v8498 = vunpack.c.l.b16 %v7979
        %v8499 = vunpack.c.l.b16 %v7980
        %v8500 = vunpack.c.l.b16 %v7981
        %v8501 = vunpack.c.l.b16 %v7982
        %v8502 = vunpack.c.l.b16 %v7983
        %v8503 = vunpack.c.l.b16 %v7984
        %v8504 = vunpack.c.l.b16 %v7985
        %v8505 = vunpack.c.l.b16 %v7986
        %v8506 = vunpack.c.l.b16 %v7987
        %v8507 = vunpack.c.l.b16 %v7988
        %v8508 = vunpack.c.l.b16 %v7989
        %v8509 = vunpack.c.l.b16 %v7990
        %v8510 = vunpack.c.l.b16 %v7991
        %v8511 = vunpack.c.l.b16 %v7992
        %v8512 = vunpack.c.l.b16 %v7993
        %v8513 = vunpack.c.l.b16 %v7994
        %v8514 = vunpack.c.l.b16 %v7995
        %v8515 = vunpack.c.l.b16 %v7996
        %v8516 = vunpack.c.l.b16 %v7997
        %v8517 = vunpack.c.l.b16 %v7998
        %v8518 = vunpack.c.l.b16 %v7999
        %v8519 = vunpack.c.l.b16 %v8000
        %v8520 = vunpack.c.l.b16 %v8001
        %v8521 = vunpack.c.l.b16 %v8002
        %v8522 = vunpack.c.l.b16 %v8003
        %v8523 = vunpack.c.l.b16 %v8004
        %v8524 = vunpack.c.l.b16 %v8005
        %v8525 = vunpack.c.l.b16 %v8006
        %v8526 = vunpack.c.l.b16 %v8007
        %v8527 = vunpack.c.l.b16 %v8008
        %v8528 = vunpack.c.l.b16 %v8009
        %v8529 = vunpack.c.l.b16 %v8010
        %v8530 = vunpack.c.l.b16 %v8011
        %v8531 = vunpack.c.l.b16 %v8012
        %v8532 = vunpack.c.l.b16 %v8013
        %v8533 = vunpack.c.l.b16 %v8014
        %v8534 = vunpack.c.l.b16 %v8015
        %v8535 = vunpack.c.l.b16 %v8016
        %v8536 = vunpack.c.l.b16 %v8017
        %v8537 = vunpack.c.l.b16 %v8018
        %v8538 = vunpack.c.l.b16 %v8019
        %v8539 = vunpack.c.l.b16 %v8020
        %v8540 = vunpack.c.l.b16 %v8021
        %v8541 = vunpack.c.l.b16 %v8022
        %v8542 = vunpack.c.l.b16 %v8023
        %v8543 = vunpack.c.l.b16 %v8024
        %v8544 = vunpack.c.l.b16 %v8025
        %v8545 = vunpack.c.l.b16 %v8026
        %v8546 = vunpack.c.l.b16 %v8027
        %v8547 = vunpack.c.l.b16 %v8028
        %v8548 = vunpack.c.l.b16 %v8029
        %v8549 = vunpack.c.l.b16 %v8030
        %v8550 = vunpack.c.l.b16 %v8031
        %v8551 = vunpack.c.l.b16 %v8032
        %v8552 = vunpack.c.l.b16 %v8033
        %v8553 = vunpack.c.l.b16 %v8034
        %v8554 = vunpack.c.l.b16 %v8035
        %v8555 = vunpack.c.l.b16 %v8036
        %v8556 = vunpack.c.l.b16 %v8037
        %v8557 = vunpack.c.l.b16 %v8038
        %v8558 = vunpack.c.l.b16 %v8039
        %v8559 = vunpack.c.l.b16 %v8040
        %v8560 = vunpack.c.l.b16 %v8041
        %v8561 = vunpack.c.l.b16 %v8042
        %v8562 = vunpack.c.l.b16 %v8043
        %v8563 = vunpack.c.l.b16 %v8044
        %v8564 = vunpack.c.l.b16 %v8045
        %v8565 = vunpack.c.l.b16 %v8046
        %v8566 = vunpack.c.l.b16 %v8047
        %v8567 = vunpack.c.l.b16 %v8048
        %v8568 = vunpack.c.l.b16 %v8049
        %v8569 = vunpack.c.l.b16 %v8050
        %v8570 = vunpack.c.l.b16 %v8051
        %v8571 = vunpack.c.l.b16 %v8052
        %v8572 = vunpack.c.l.b16 %v8053
        %v8573 = vpack.c.b16 %v8318, %v8317
        %v8574 = vpack.c.b16 %v8320, %v8319
        %v8575 = vpack.c.b16 %v8322, %v8321
        %v8576 = vpack.c.b16 %v8324, %v8323
        %v8577 = vpack.c.b16 %v8326, %v8325
        %v8578 = vpack.c.b16 %v8328, %v8327
        %v8579 = vpack.c.b16 %v8330, %v8329
        %v8580 = vpack.c.b16 %v8332, %v8331
        %v8581 = vpack.c.b16 %v8334, %v8333
        %v8582 = vpack.c.b16 %v8336, %v8335
        %v8583 = vpack.c.b16 %v8338, %v8337
        %v8584 = vpack.c.b16 %v8340, %v8339
        %v8585 = vpack.c.b16 %v8342, %v8341
        %v8586 = vpack.c.b16 %v8344, %v8343
        %v8587 = vpack.c.b16 %v8346, %v8345
        %v8588 = vpack.c.b16 %v8348, %v8347
        %v8589 = vpack.c.b16 %v8350, %v8349
        %v8590 = vpack.c.b16 %v8352, %v8351
        %v8591 = vpack.c.b16 %v8354, %v8353
        %v8592 = vpack.c.b16 %v8356, %v8355
        %v8593 = vpack.c.b16 %v8358, %v8357
        %v8594 = vpack.c.b16 %v8360, %v8359
        %v8595 = vpack.c.b16 %v8362, %v8361
        %v8596 = vpack.c.b16 %v8364, %v8363
        %v8597 = vpack.c.b16 %v8366, %v8365
        %v8598 = vpack.c.b16 %v8368, %v8367
        %v8599 = vpack.c.b16 %v8370, %v8369
        %v8600 = vpack.c.b16 %v8372, %v8371
        %v8601 = vpack.c.b16 %v8374, %v8373
        %v8602 = vpack.c.b16 %v8376, %v8375
        %v8603 = vpack.c.b16 %v8378, %v8377
        %v8604 = vpack.c.b16 %v8380, %v8379
        %v8605 = vpack.c.b16 %v8382, %v8381
        %v8606 = vpack.c.b16 %v8384, %v8383
        %v8607 = vpack.c.b16 %v8386, %v8385
        %v8608 = vpack.c.b16 %v8388, %v8387
        %v8609 = vpack.c.b16 %v8390, %v8389
        %v8610 = vpack.c.b16 %v8392, %v8391
        %v8611 = vpack.c.b16 %v8394, %v8393
        %v8612 = vpack.c.b16 %v8396, %v8395
        %v8613 = vpack.c.b16 %v8398, %v8397
        %v8614 = vpack.c.b16 %v8400, %v8399
        %v8615 = vpack.c.b16 %v8402, %v8401
        %v8616 = vpack.c.b16 %v8404, %v8403
        %v8617 = vpack.c.b16 %v8406, %v8405
        %v8618 = vpack.c.b16 %v8408, %v8407
        %v8619 = vpack.c.b16 %v8410, %v8409
        %v8620 = vpack.c.b16 %v8412, %v8411
        %v8621 = vpack.c.b16 %v8414, %v8413
        %v8622 = vpack.c.b16 %v8416, %v8415
        %v8623 = vpack.c.b16 %v8418, %v8417
        %v8624 = vpack.c.b16 %v8420, %v8419
        %v8625 = vpack.c.b16 %v8422, %v8421
        %v8626 = vpack.c.b16 %v8424, %v8423
        %v8627 = vpack.c.b16 %v8426, %v8425
        %v8628 = vpack.c.b16 %v8428, %v8427
        %v8629 = vpack.c.b16 %v8430, %v8429
        %v8630 = vpack.c.b16 %v8432, %v8431
        %v8631 = vpack.c.b16 %v8434, %v8433
        %v8632 = vpack.c.b16 %v8436, %v8435
        %v8633 = vpack.c.b16 %v8438, %v8437
        %v8634 = vpack.c.b16 %v8440, %v8439
        %v8635 = vpack.c.b16 %v8442, %v8441
        %v8636 = vpack.c.b16 %v8444, %v8443
        %v8637 = vpack.c.b16 %v8446, %v8445
        %v8638 = vpack.c.b16 %v8448, %v8447
        %v8639 = vpack.c.b16 %v8450, %v8449
        %v8640 = vpack.c.b16 %v8452, %v8451
        %v8641 = vpack.c.b16 %v8454, %v8453
        %v8642 = vpack.c.b16 %v8456, %v8455
        %v8643 = vpack.c.b16 %v8458, %v8457
        %v8644 = vpack.c.b16 %v8460, %v8459
        %v8645 = vpack.c.b16 %v8462, %v8461
        %v8646 = vpack.c.b16 %v8464, %v8463
        %v8647 = vpack.c.b16 %v8466, %v8465
        %v8648 = vpack.c.b16 %v8468, %v8467
        %v8649 = vpack.c.b16 %v8470, %v8469
        %v8650 = vpack.c.b16 %v8472, %v8471
        %v8651 = vpack.c.b16 %v8474, %v8473
        %v8652 = vpack.c.b16 %v8476, %v8475
        %v8653 = vpack.c.b16 %v8478, %v8477
        %v8654 = vpack.c.b16 %v8480, %v8479
        %v8655 = vpack.c.b16 %v8482, %v8481
        %v8656 = vpack.c.b16 %v8484, %v8483
        %v8657 = vpack.c.b16 %v8486, %v8485
        %v8658 = vpack.c.b16 %v8488, %v8487
        %v8659 = vpack.c.b16 %v8490, %v8489
        %v8660 = vpack.c.b16 %v8492, %v8491
        %v8661 = vpack.c.b16 %v8494, %v8493
        %v8662 = vpack.c.b16 %v8496, %v8495
        %v8663 = vpack.c.b16 %v8498, %v8497
        %v8664 = vpack.c.b16 %v8500, %v8499
        %v8665 = vpack.c.b16 %v8502, %v8501
        %v8666 = vpack.c.b16 %v8504, %v8503
        %v8667 = vpack.c.b16 %v8506, %v8505
        %v8668 = vpack.c.b16 %v8508, %v8507
        %v8669 = vpack.c.b16 %v8510, %v8509
        %v8670 = vpack.c.b16 %v8512, %v8511
        %v8671 = vpack.c.b16 %v8514, %v8513
        %v8672 = vpack.c.b16 %v8516, %v8515
        %v8673 = vpack.c.b16 %v8518, %v8517
        %v8674 = vpack.c.b16 %v8520, %v8519
        %v8675 = vpack.c.b16 %v8522, %v8521
        %v8676 = vpack.c.b16 %v8524, %v8523
        %v8677 = vpack.c.b16 %v8526, %v8525
        %v8678 = vpack.c.b16 %v8528, %v8527
        %v8679 = vpack.c.b16 %v8530, %v8529
        %v8680 = vpack.c.b16 %v8532, %v8531
        %v8681 = vpack.c.b16 %v8534, %v8533
        %v8682 = vpack.c.b16 %v8536, %v8535
        %v8683 = vpack.c.b16 %v8538, %v8537
        %v8684 = vpack.c.b16 %v8540, %v8539
        %v8685 = vpack.c.b16 %v8542, %v8541
        %v8686 = vpack.c.b16 %v8544, %v8543
        %v8687 = vpack.c.b16 %v8546, %v8545
        %v8688 = vpack.c.b16 %v8548, %v8547
        %v8689 = vpack.c.b16 %v8550, %v8549
        %v8690 = vpack.c.b16 %v8552, %v8551
        %v8691 = vpack.c.b16 %v8554, %v8553
        %v8692 = vpack.c.b16 %v8556, %v8555
        %v8693 = vpack.c.b16 %v8558, %v8557
        %v8694 = vpack.c.b16 %v8560, %v8559
        %v8695 = vpack.c.b16 %v8562, %v8561
        %v8696 = vpack.c.b16 %v8564, %v8563
        %v8697 = vpack.c.b16 %v8566, %v8565
        %v8698 = vpack.c.b16 %v8568, %v8567
        %v8699 = vpack.c.b16 %v8570, %v8569
        %v8700 = vpack.c.b16 %v8572, %v8571
        %8829 = vmatprep.subr.bf16.mxu0 0
        %8830 = vmatpush1.bf16.msra.mxu0 %v8573
        %8831 = vmatprep.subr.bf16.mxu0 0
        %8832 = vmatpush1.bf16.msra.mxu0 %v8574
        %8833 = vmatprep.subr.bf16.mxu0 0
        %8834 = vmatpush1.bf16.msra.mxu0 %v8575
        %8835 = vmatprep.subr.bf16.mxu0 0
        %8836 = vmatpush1.bf16.msra.mxu0 %v8576
        %8837 = vmatprep.subr.bf16.mxu0 0
        %8838 = vmatpush1.bf16.msra.mxu0 %v8577
        %8839 = vmatprep.subr.bf16.mxu0 0
        %8840 = vmatpush1.bf16.msra.mxu0 %v8578
        %8841 = vmatprep.subr.bf16.mxu0 0
        %8842 = vmatpush1.bf16.msra.mxu0 %v8579
        %8843 = vmatprep.subr.bf16.mxu0 0
        %8844 = vmatpush1.bf16.msra.mxu0 %v8580
        %8845 = vmatprep.subr.bf16.mxu0 0
        %8846 = vmatpush1.bf16.msra.mxu0 %v8581
        %8847 = vmatprep.subr.bf16.mxu0 0
        %8848 = vmatpush1.bf16.msra.mxu0 %v8582
        %8849 = vmatprep.subr.bf16.mxu0 0
        %8850 = vmatpush1.bf16.msra.mxu0 %v8583
        %8851 = vmatprep.subr.bf16.mxu0 0
        %8852 = vmatpush1.bf16.msra.mxu0 %v8584
        %8853 = vmatprep.subr.bf16.mxu0 0
        %8854 = vmatpush1.bf16.msra.mxu0 %v8585
        %8855 = vmatprep.subr.bf16.mxu0 0
        %8856 = vmatpush1.bf16.msra.mxu0 %v8586
        %8857 = vmatprep.subr.bf16.mxu0 0
        %8858 = vmatpush1.bf16.msra.mxu0 %v8587
        %8859 = vmatprep.subr.bf16.mxu0 0
        %8860 = vmatpush1.bf16.msra.mxu0 %v8588
        %8861 = vmatprep.mubr.bf16.mxu0 %v7783
        %8862 = vmatmul.mubr.bf16.gmra.mrb[0].mxu0 %v7782
        %v8863 = vpop.f32.mrb[0].mxu0
        %v8864 = vadd.f32 %v8059, %v8863
        %v8865 = vpop.f32.mrb[0].mxu0
        %v8866 = vpop.f32.mrb[0].mxu0
        %v8867 = vadd.f32 %v8059, %v8866
        %v8868 = vpop.f32.mrb[0].mxu0
        %8869 = vdwg.mxu0
        %8870 = vmatprep.subr.bf16.mxu0 0
        %8871 = vmatpush1.bf16.msra.mxu0 %v8589
        %8872 = vmatprep.subr.bf16.mxu0 0
        %8873 = vmatpush1.bf16.msra.mxu0 %v8590
        %8874 = vmatprep.subr.bf16.mxu0 0
        %8875 = vmatpush1.bf16.msra.mxu0 %v8591
        %8876 = vmatprep.subr.bf16.mxu0 0
        %8877 = vmatpush1.bf16.msra.mxu0 %v8592
        %8878 = vmatprep.subr.bf16.mxu0 0
        %8879 = vmatpush1.bf16.msra.mxu0 %v8593
        %8880 = vmatprep.subr.bf16.mxu0 0
        %8881 = vmatpush1.bf16.msra.mxu0 %v8594
        %8882 = vmatprep.subr.bf16.mxu0 0
        %8883 = vmatpush1.bf16.msra.mxu0 %v8595
        %8884 = vmatprep.subr.bf16.mxu0 0
        %8885 = vmatpush1.bf16.msra.mxu0 %v8596
        %8886 = vmatprep.subr.bf16.mxu0 0
        %8887 = vmatpush1.bf16.msra.mxu0 %v8597
        %8888 = vmatprep.subr.bf16.mxu0 0
        %8889 = vmatpush1.bf16.msra.mxu0 %v8598
        %8890 = vmatprep.subr.bf16.mxu0 0
        %8891 = vmatpush1.bf16.msra.mxu0 %v8599
        %8892 = vmatprep.subr.bf16.mxu0 0
        %8893 = vmatpush1.bf16.msra.mxu0 %v8600
        %8894 = vmatprep.subr.bf16.mxu0 0
        %8895 = vmatpush1.bf16.msra.mxu0 %v8601
        %8896 = vmatprep.subr.bf16.mxu0 0
        %8897 = vmatpush1.bf16.msra.mxu0 %v8602
        %8898 = vmatprep.subr.bf16.mxu0 0
        %8899 = vmatpush1.bf16.msra.mxu0 %v8603
        %8900 = vmatprep.subr.bf16.mxu0 0
        %8901 = vmatpush1.bf16.msra.mxu0 %v8604
        %8902 = vmatprep.mubr.bf16.mxu0 %v7785
        %8903 = vmatmul.mubr.bf16.gmra.mrb[0].mxu0 %v7784
        %v8904 = vpop.f32.mrb[0].mxu0
        %v8905 = vadd.f32 %v8864, %v8904
        %v8906 = vpop.f32.mrb[0].mxu0
        %v8907 = vpop.f32.mrb[0].mxu0
        %v8908 = vadd.f32 %v8867, %v8907
        %v8909 = vpop.f32.mrb[0].mxu0
        %8910 = vdwg.mxu0
        %8911 = vmatprep.subr.bf16.mxu0 0
        %8912 = vmatpush1.bf16.msra.mxu0 %v8605
        %8913 = vmatprep.subr.bf16.mxu0 0
        %8914 = vmatpush1.bf16.msra.mxu0 %v8606
        %8915 = vmatprep.subr.bf16.mxu0 0
        %8916 = vmatpush1.bf16.msra.mxu0 %v8607
        %8917 = vmatprep.subr.bf16.mxu0 0
        %8918 = vmatpush1.bf16.msra.mxu0 %v8608
        %8919 = vmatprep.subr.bf16.mxu0 0
        %8920 = vmatpush1.bf16.msra.mxu0 %v8609
        %8921 = vmatprep.subr.bf16.mxu0 0
        %8922 = vmatpush1.bf16.msra.mxu0 %v8610
        %8923 = vmatprep.subr.bf16.mxu0 0
        %8924 = vmatpush1.bf16.msra.mxu0 %v8611
        %8925 = vmatprep.subr.bf16.mxu0 0
        %8926 = vmatpush1.bf16.msra.mxu0 %v8612
        %8927 = vmatprep.subr.bf16.mxu0 0
        %8928 = vmatpush1.bf16.msra.mxu0 %v8613
        %8929 = vmatprep.subr.bf16.mxu0 0
        %8930 = vmatpush1.bf16.msra.mxu0 %v8614
        %8931 = vmatprep.subr.bf16.mxu0 0
        %8932 = vmatpush1.bf16.msra.mxu0 %v8615
        %8933 = vmatprep.subr.bf16.mxu0 0
        %8934 = vmatpush1.bf16.msra.mxu0 %v8616
        %8935 = vmatprep.subr.bf16.mxu0 0
        %8936 = vmatpush1.bf16.msra.mxu0 %v8617
        %8937 = vmatprep.subr.bf16.mxu0 0
        %8938 = vmatpush1.bf16.msra.mxu0 %v8618
        %8939 = vmatprep.subr.bf16.mxu0 0
        %8940 = vmatpush1.bf16.msra.mxu0 %v8619
        %8941 = vmatprep.subr.bf16.mxu0 0
        %8942 = vmatpush1.bf16.msra.mxu0 %v8620
        %8943 = vmatprep.mubr.bf16.mxu0 %v7787
        %8944 = vmatmul.mubr.bf16.gmra.mrb[0].mxu0 %v7786
        %v8945 = vpop.f32.mrb[0].mxu0
        %v8946 = vadd.f32 %v8905, %v8945
        %v8947 = vpop.f32.mrb[0].mxu0
        %v8948 = vpop.f32.mrb[0].mxu0
        %v8949 = vadd.f32 %v8908, %v8948
        %v8950 = vpop.f32.mrb[0].mxu0
        %8951 = vdwg.mxu0
        %8952 = vmatprep.subr.bf16.mxu0 0
        %8953 = vmatpush1.bf16.msra.mxu0 %v8621
        %8954 = vmatprep.subr.bf16.mxu0 0
        %8955 = vmatpush1.bf16.msra.mxu0 %v8622
        %8956 = vmatprep.subr.bf16.mxu0 0
        %8957 = vmatpush1.bf16.msra.mxu0 %v8623
        %8958 = vmatprep.subr.bf16.mxu0 0
        %8959 = vmatpush1.bf16.msra.mxu0 %v8624
        %8960 = vmatprep.subr.bf16.mxu0 0
        %8961 = vmatpush1.bf16.msra.mxu0 %v8625
        %8962 = vmatprep.subr.bf16.mxu0 0
        %8963 = vmatpush1.bf16.msra.mxu0 %v8626
        %8964 = vmatprep.subr.bf16.mxu0 0
        %8965 = vmatpush1.bf16.msra.mxu0 %v8627
        %8966 = vmatprep.subr.bf16.mxu0 0
        %8967 = vmatpush1.bf16.msra.mxu0 %v8628
        %8968 = vmatprep.subr.bf16.mxu0 0
        %8969 = vmatpush1.bf16.msra.mxu0 %v8629
        %8970 = vmatprep.subr.bf16.mxu0 0
        %8971 = vmatpush1.bf16.msra.mxu0 %v8630
        %8972 = vmatprep.subr.bf16.mxu0 0
        %8973 = vmatpush1.bf16.msra.mxu0 %v8631
        %8974 = vmatprep.subr.bf16.mxu0 0
        %8975 = vmatpush1.bf16.msra.mxu0 %v8632
        %8976 = vmatprep.subr.bf16.mxu0 0
        %8977 = vmatpush1.bf16.msra.mxu0 %v8633
        %8978 = vmatprep.subr.bf16.mxu0 0
        %8979 = vmatpush1.bf16.msra.mxu0 %v8634
        %8980 = vmatprep.subr.bf16.mxu0 0
        %8981 = vmatpush1.bf16.msra.mxu0 %v8635
        %8982 = vmatprep.subr.bf16.mxu0 0
        %8983 = vmatpush1.bf16.msra.mxu0 %v8636
        %8984 = vmatprep.mubr.bf16.mxu0 %v7789
        %8985 = vmatmul.mubr.bf16.gmra.mrb[0].mxu0 %v7788
        %v8986 = vpop.f32.mrb[0].mxu0
        %v8987 = vadd.f32 %v8946, %v8986
        %v8988 = vpop.f32.mrb[0].mxu0
        %v8989 = vpop.f32.mrb[0].mxu0
        %v8990 = vadd.f32 %v8949, %v8989
        %v8991 = vpop.f32.mrb[0].mxu0
        %8992 = vdwg.mxu0
        %8993 = vmatprep.subr.bf16.mxu0 0
        %8994 = vmatpush1.bf16.msra.mxu0 %v8637
        %8995 = vmatprep.subr.bf16.mxu0 0
        %8996 = vmatpush1.bf16.msra.mxu0 %v8638
        %8997 = vmatprep.subr.bf16.mxu0 0
        %8998 = vmatpush1.bf16.msra.mxu0 %v8639
        %8999 = vmatprep.subr.bf16.mxu0 0
        %9000 = vmatpush1.bf16.msra.mxu0 %v8640
        %9001 = vmatprep.subr.bf16.mxu0 0
        %9002 = vmatpush1.bf16.msra.mxu0 %v8641
        %9003 = vmatprep.subr.bf16.mxu0 0
        %9004 = vmatpush1.bf16.msra.mxu0 %v8642
        %9005 = vmatprep.subr.bf16.mxu0 0
        %9006 = vmatpush1.bf16.msra.mxu0 %v8643
        %9007 = vmatprep.subr.bf16.mxu0 0
        %9008 = vmatpush1.bf16.msra.mxu0 %v8644
        %9009 = vmatprep.subr.bf16.mxu0 0
        %9010 = vmatpush1.bf16.msra.mxu0 %v8645
        %9011 = vmatprep.subr.bf16.mxu0 0
        %9012 = vmatpush1.bf16.msra.mxu0 %v8646
        %9013 = vmatprep.subr.bf16.mxu0 0
        %9014 = vmatpush1.bf16.msra.mxu0 %v8647
        %9015 = vmatprep.subr.bf16.mxu0 0
        %9016 = vmatpush1.bf16.msra.mxu0 %v8648
        %9017 = vmatprep.subr.bf16.mxu0 0
        %9018 = vmatpush1.bf16.msra.mxu0 %v8649
        %9019 = vmatprep.subr.bf16.mxu0 0
        %9020 = vmatpush1.bf16.msra.mxu0 %v8650
        %9021 = vmatprep.subr.bf16.mxu0 0
        %9022 = vmatpush1.bf16.msra.mxu0 %v8651
        %9023 = vmatprep.subr.bf16.mxu0 0
        %9024 = vmatpush1.bf16.msra.mxu0 %v8652
        %9025 = vmatprep.mubr.bf16.mxu0 %v7791
        %9026 = vmatmul.mubr.bf16.gmra.mrb[0].mxu0 %v7790
        %v9027 = vpop.f32.mrb[0].mxu0
        %v9028 = vadd.f32 %v8987, %v9027
        %v9029 = vpop.f32.mrb[0].mxu0
        %v9030 = vpop.f32.mrb[0].mxu0
        %v9031 = vadd.f32 %v8990, %v9030
        %v9032 = vpop.f32.mrb[0].mxu0
        %9033 = vdwg.mxu0
        %9034 = vmatprep.subr.bf16.mxu0 0
        %9035 = vmatpush1.bf16.msra.mxu0 %v8653
        %9036 = vmatprep.subr.bf16.mxu0 0
        %9037 = vmatpush1.bf16.msra.mxu0 %v8654
        %9038 = vmatprep.subr.bf16.mxu0 0
        %9039 = vmatpush1.bf16.msra.mxu0 %v8655
        %9040 = vmatprep.subr.bf16.mxu0 0
        %9041 = vmatpush1.bf16.msra.mxu0 %v8656
        %9042 = vmatprep.subr.bf16.mxu0 0
        %9043 = vmatpush1.bf16.msra.mxu0 %v8657
        %9044 = vmatprep.subr.bf16.mxu0 0
        %9045 = vmatpush1.bf16.msra.mxu0 %v8658
        %9046 = vmatprep.subr.bf16.mxu0 0
        %9047 = vmatpush1.bf16.msra.mxu0 %v8659
        %9048 = vmatprep.subr.bf16.mxu0 0
        %9049 = vmatpush1.bf16.msra.mxu0 %v8660
        %9050 = vmatprep.subr.bf16.mxu0 0
        %9051 = vmatpush1.bf16.msra.mxu0 %v8661
        %9052 = vmatprep.subr.bf16.mxu0 0
        %9053 = vmatpush1.bf16.msra.mxu0 %v8662
        %9054 = vmatprep.subr.bf16.mxu0 0
        %9055 = vmatpush1.bf16.msra.mxu0 %v8663
        %9056 = vmatprep.subr.bf16.mxu0 0
        %9057 = vmatpush1.bf16.msra.mxu0 %v8664
        %9058 = vmatprep.subr.bf16.mxu0 0
        %9059 = vmatpush1.bf16.msra.mxu0 %v8665
        %9060 = vmatprep.subr.bf16.mxu0 0
        %9061 = vmatpush1.bf16.msra.mxu0 %v8666
        %9062 = vmatprep.subr.bf16.mxu0 0
        %9063 = vmatpush1.bf16.msra.mxu0 %v8667
        %9064 = vmatprep.subr.bf16.mxu0 0
        %9065 = vmatpush1.bf16.msra.mxu0 %v8668
        %9066 = vmatprep.mubr.bf16.mxu0 %v7793
        %9067 = vmatmul.mubr.bf16.gmra.mrb[0].mxu0 %v7792
        %v9068 = vpop.f32.mrb[0].mxu0
        %v9069 = vadd.f32 %v9028, %v9068
        %v9070 = vpop.f32.mrb[0].mxu0
        %v9071 = vpop.f32.mrb[0].mxu0
        %v9072 = vadd.f32 %v9031, %v9071
        %v9073 = vpop.f32.mrb[0].mxu0
        %9074 = vdwg.mxu0
        %9075 = vmatprep.subr.bf16.mxu0 0
        %9076 = vmatpush1.bf16.msra.mxu0 %v8669
        %9077 = vmatprep.subr.bf16.mxu0 0
        %9078 = vmatpush1.bf16.msra.mxu0 %v8670
        %9079 = vmatprep.subr.bf16.mxu0 0
        %9080 = vmatpush1.bf16.msra.mxu0 %v8671
        %9081 = vmatprep.subr.bf16.mxu0 0
        %9082 = vmatpush1.bf16.msra.mxu0 %v8672
        %9083 = vmatprep.subr.bf16.mxu0 0
        %9084 = vmatpush1.bf16.msra.mxu0 %v8673
        %9085 = vmatprep.subr.bf16.mxu0 0
        %9086 = vmatpush1.bf16.msra.mxu0 %v8674
        %9087 = vmatprep.subr.bf16.mxu0 0
        %9088 = vmatpush1.bf16.msra.mxu0 %v8675
        %9089 = vmatprep.subr.bf16.mxu0 0
        %9090 = vmatpush1.bf16.msra.mxu0 %v8676
        %9091 = vmatprep.subr.bf16.mxu0 0
        %9092 = vmatpush1.bf16.msra.mxu0 %v8677
        %9093 = vmatprep.subr.bf16.mxu0 0
        %9094 = vmatpush1.bf16.msra.mxu0 %v8678
        %9095 = vmatprep.subr.bf16.mxu0 0
        %9096 = vmatpush1.bf16.msra.mxu0 %v8679
        %9097 = vmatprep.subr.bf16.mxu0 0
        %9098 = vmatpush1.bf16.msra.mxu0 %v8680
        %9099 = vmatprep.subr.bf16.mxu0 0
        %9100 = vmatpush1.bf16.msra.mxu0 %v8681
        %9101 = vmatprep.subr.bf16.mxu0 0
        %9102 = vmatpush1.bf16.msra.mxu0 %v8682
        %9103 = vmatprep.subr.bf16.mxu0 0
        %9104 = vmatpush1.bf16.msra.mxu0 %v8683
        %9105 = vmatprep.subr.bf16.mxu0 0
        %9106 = vmatpush1.bf16.msra.mxu0 %v8684
        %9107 = vmatprep.mubr.bf16.mxu0 %v7795
        %9108 = vmatmul.mubr.bf16.gmra.mrb[0].mxu0 %v7794
        %v9109 = vpop.f32.mrb[0].mxu0
        %v9110 = vadd.f32 %v9069, %v9109
        %v9111 = vpop.f32.mrb[0].mxu0
        %v9112 = vpop.f32.mrb[0].mxu0
        %v9113 = vadd.f32 %v9072, %v9112
        %v9114 = vpop.f32.mrb[0].mxu0
        %9115 = vdwg.mxu0
        %9116 = vmatprep.subr.bf16.mxu0 0
        %9117 = vmatpush1.bf16.msra.mxu0 %v8685
        %9118 = vmatprep.subr.bf16.mxu0 0
        %9119 = vmatpush1.bf16.msra.mxu0 %v8686
        %9120 = vmatprep.subr.bf16.mxu0 0
        %9121 = vmatpush1.bf16.msra.mxu0 %v8687
        %9122 = vmatprep.subr.bf16.mxu0 0
        %9123 = vmatpush1.bf16.msra.mxu0 %v8688
        %9124 = vmatprep.subr.bf16.mxu0 0
        %9125 = vmatpush1.bf16.msra.mxu0 %v8689
        %9126 = vmatprep.subr.bf16.mxu0 0
        %9127 = vmatpush1.bf16.msra.mxu0 %v8690
        %9128 = vmatprep.subr.bf16.mxu0 0
        %9129 = vmatpush1.bf16.msra.mxu0 %v8691
        %9130 = vmatprep.subr.bf16.mxu0 0
        %9131 = vmatpush1.bf16.msra.mxu0 %v8692
        %9132 = vmatprep.subr.bf16.mxu0 0
        %9133 = vmatpush1.bf16.msra.mxu0 %v8693
        %9134 = vmatprep.subr.bf16.mxu0 0
        %9135 = vmatpush1.bf16.msra.mxu0 %v8694
        %9136 = vmatprep.subr.bf16.mxu0 0
        %9137 = vmatpush1.bf16.msra.mxu0 %v8695
        %9138 = vmatprep.subr.bf16.mxu0 0
        %9139 = vmatpush1.bf16.msra.mxu0 %v8696
        %9140 = vmatprep.subr.bf16.mxu0 0
        %9141 = vmatpush1.bf16.msra.mxu0 %v8697
        %9142 = vmatprep.subr.bf16.mxu0 0
        %9143 = vmatpush1.bf16.msra.mxu0 %v8698
        %9144 = vmatprep.subr.bf16.mxu0 0
        %9145 = vmatpush1.bf16.msra.mxu0 %v8699
        %9146 = vmatprep.subr.bf16.mxu0 0
        %9147 = vmatpush1.bf16.msra.mxu0 %v8700
        %9148 = vmatprep.mubr.bf16.mxu0 %v7797
        %9149 = vmatmul.mubr.bf16.gmra.mrb[0].mxu0 %v7796
        %v9150 = vpop.f32.mrb[0].mxu0
        %v9151 = vadd.f32 %v9110, %v9150
        %v9152 = vpop.f32.mrb[0].mxu0
        %v9153 = vpop.f32.mrb[0].mxu0
        %v9154 = vadd.f32 %v9113, %v9153
        %v9155 = vpop.f32.mrb[0].mxu0
        %9156 = vdwg.mxu0
        %v9157 = vadd.f32 %v7124, %v9151
        %v9158 = vadd.f32 %v7125, %v9154
        %v9159 = vld [vmem:[%s1105] sm:$0x1]
        %v9160 = vld [vmem:[%s1108] sm:$0x1]
        %v9161 = vsel %vm1410, %v9157, 0.0
        %9162 = vadd.xlane.f32.xlu0 %v9161
        %v9163 = vpop.xlane.xlu0 %9162
        %v9164 = vsel %vm1410, %v9158, 0.0
        %9165 = vadd.xlane.f32.xlu0 %v9164
        %v9166 = vpop.xlane.xlu0 %9165
        %v9167 = vmul.f32 %v9163, %v7089
        %v9168 = vmul.f32 %v9166, %v7089
        %v9169 = vsub.f32 %v9157, %v9167
        %v9170 = vsub.f32 %v9158, %v9168
        %v9171 = vmul.f32 %v9169, %v9169
        %v9172 = vmul.f32 %v9170, %v9170
        %v9173 = vsel %vm1410, %v9171, 0.0
        %9174 = vadd.xlane.f32.xlu0 %v9173
        %v9175 = vpop.xlane.xlu0 %9174
        %v9176 = vsel %vm1410, %v9172, 0.0
        %9177 = vadd.xlane.f32.xlu0 %v9176
        %v9178 = vpop.xlane.xlu0 %9177
        %v9179 = vmul.f32 %v9175, %v7089
        %v9180 = vmul.f32 %v9178, %v7089
        %v9181 = vadd.f32 %v9179, 1e-05
        %v9182 = vadd.f32 %v9180, 1e-05
        %v9183 = vrsqrt.pop %v9181
        %v9184 = vrsqrt.pop %v9182
        %v9185 = vmul.f32 %v9169, %v9183
        %v9186 = vmul.f32 %v9170, %v9184
        %v9188 = vlaneseq
        %v9189 = vshrl.u32 %v9188, 7
        %v9190 = vsub.s32 0, %v9189
        %v9191 = vrot.slane %v9159, %v9190
        %v9193 = vmul.f32 %v9185, %v9191
        %v9194 = vmul.f32 %v9186, %v9191
        %v9196 = vlaneseq
        %v9197 = vshrl.u32 %v9196, 7
        %v9198 = vsub.s32 0, %v9197
        %v9199 = vrot.slane %v9160, %v9198
        %v9201 = vadd.f32 %v9193, %v9199
        %v9202 = vadd.f32 %v9194, %v9199
        %9203 = vst.msk [vmem:[#allocation2] sm:$0xff] %vm1410, %v9201
        %9204 = vst.msk [vmem:[#allocation2 + $0x8] sm:$0xff] %vm1410, %v9202
        %p9205 = scmp.eq.s32.totalorder %s44, 1
        // Predicated region
        $region133: #{tpu_custom_call.1} parent=127 // pred_check
          %p9206 = pneg %p9205
        $region134: #{tpu_custom_call.1} parent=127 // pred_check_branch
          %9208 = sbr.rel (%p9206) target = $region136
        $region135: #{tpu_custom_call.1} parent=127 // pred_region
          %v9209 = vpack.c.bf16 %v9202, %v9201
          %v9210 = vld [vmem:[%s25] sm:$0xf]
          %v9211 = vld [vmem:[%s25 + $0x4] sm:$0xf]
          %v9212 = vld [vmem:[%s25 + $0x8] sm:$0xf]
          %v9213 = vld [vmem:[%s25 + $0xc] sm:$0xf]
          %v9214 = vld [vmem:[%s26] sm:$0x1]
          %v9216 = vlaneseq
          %v9217 = vshrl.u32 %v9216, 7
          %v9218 = vsub.s32 0, %v9217
          %v9219 = vrot.slane %v9214, %v9218
          %v9225 = vunpack.c.l.b16 %v9210
          %v9226 = vunpack.c.l.b16 %v9211
          %v9227 = vunpack.c.l.b16 %v9212
          %v9228 = vunpack.c.l.b16 %v9213
          %v9229 = vpack.c.b16 %v9226, %v9225
          %v9230 = vpack.c.b16 %v9228, %v9227
          %v9234 = vsel %vm1410, %v9209, 0
          %9236 = vmatprep.subr.bf16.mxu0 0
          %9237 = vmatpush1.bf16.msra.mxu0 %v9229
          %9238 = vmatprep.subr.bf16.mxu0 0
          %9239 = vmatpush1.bf16.msra.mxu0 %v9230
          %9240 = vmatprep.subr.bf16.mxu0 0
          %9241 = vmatpush1.bf16.msra.mxu0 0
          %9242 = vmatprep.subr.bf16.mxu0 0
          %9243 = vmatpush1.bf16.msra.mxu0 0
          %9244 = vmatprep.subr.bf16.mxu0 0
          %9245 = vmatpush1.bf16.msra.mxu0 0
          %9246 = vmatprep.subr.bf16.mxu0 0
          %9247 = vmatpush1.bf16.msra.mxu0 0
          %9248 = vmatprep.subr.bf16.mxu0 0
          %9249 = vmatpush1.bf16.msra.mxu0 0
          %9250 = vmatprep.subr.bf16.mxu0 0
          %9251 = vmatpush1.bf16.msra.mxu0 0
          %9252 = vmatprep.subr.bf16.mxu0 0
          %9253 = vmatpush1.bf16.msra.mxu0 0
          %9254 = vmatprep.subr.bf16.mxu0 0
          %9255 = vmatpush1.bf16.msra.mxu0 0
          %9256 = vmatprep.subr.bf16.mxu0 0
          %9257 = vmatpush1.bf16.msra.mxu0 0
          %9258 = vmatprep.subr.bf16.mxu0 0
          %9259 = vmatpush1.bf16.msra.mxu0 0
          %9260 = vmatprep.subr.bf16.mxu0 0
          %9261 = vmatpush1.bf16.msra.mxu0 0
          %9262 = vmatprep.subr.bf16.mxu0 0
          %9263 = vmatpush1.bf16.msra.mxu0 0
          %9264 = vmatprep.subr.bf16.mxu0 0
          %9265 = vmatpush1.bf16.msra.mxu0 0
          %9266 = vmatprep.subr.bf16.mxu0 0
          %9267 = vmatpush1.bf16.msra.mxu0 0
          %9268 = vmatprep.mubr.bf16.mxu0 0
          %9269 = vmatmul.mubr.bf16.gmra.mrb[0].mxu0 %v9234
          %v9270 = vpop.f32.mrb[0].mxu0
          %v9271 = vadd.f32 %v9219, %v9270
          %v9272 = vpop.f32.mrb[0].mxu0
          %v9273 = vpop.f32.mrb[0].mxu0
          %v9274 = vadd.f32 %v9219, %v9273
          %v9275 = vpop.f32.mrb[0].mxu0
          %9276 = vdwg.mxu0
          %9277 = vst [vmem:[#allocation4] sm:$0xff] %v9271
          %9278 = vst [vmem:[#allocation4 + $0x8] sm:$0xff] %v9274
        $region136: #{tpu_custom_call.1} parent=127 // pred_fallthru
          _
        // Predicated region
        $region137: #{tpu_custom_call.1} parent=127 // pred_check
          %p9279 = pneg %p726
        $region138: #{tpu_custom_call.1} parent=127 // pred_check_branch
          %9281 = sbr.rel (%p9279) target = $region140
        $region139: #{tpu_custom_call.1} parent=127 // pred_region
          %s9282 = smul.u32 2, %s43
          %s9284 = ssub.s32 256, 256
          %9285 = vsyncadd [#allocation5], %s9284
          %s9286 = smul.addr %s9282, 128
          %s9287 = scalar_lea.hbm %s27, %s9286
          %s9288 = sshll.u32 [#allocation4], 4
          %s9289 = int_to_ptr.vmem [resolvable:$true] %s9288
          %9294 = dma.vmem_to_hbm [thread:$0]  %s9289, 256, %s9287, [#allocation5], 128, 128, 8
        $region140: #{tpu_custom_call.1} parent=127 // pred_fallthru
          _
        // Predicated region
        $region141: #{tpu_custom_call.1} parent=127 // pred_check
          %p9295 = pneg %p726
        $region142: #{tpu_custom_call.1} parent=127 // pred_check_branch
          %9297 = sbr.rel (%p9295) target = $region144
        $region143: #{tpu_custom_call.1} parent=127 // pred_region
          %9298 = dma.done [#allocation5], 256
        $region144: #{tpu_custom_call.1} parent=127 // pred_fallthru
          _
      $region128: #{tpu_custom_call.1} parent=5 // pred_fallthru
        _
      %p9299 = scmp.le.s32.totalorder 2, %s34
      // Predicated region
      $region145: #{tpu_custom_call.1} parent=5 // pred_check
        %p9300 = pneg %p9299
      $region146: #{tpu_custom_call.1} parent=5 // pred_check_branch
        %9302 = sbr.rel (%p9300) target = $region148
      $region147: #{tpu_custom_call.1} parent=5 // pred_region
        %s9303 = ssub.s32 %s34, 2
      $region148: #{tpu_custom_call.1} parent=5 // pred_fallthru
        _
    $region6: #{tpu_custom_call.1} parent=1 // loop_footer
      %s38 = sadd.s32 1, %s34
    $region7: #{tpu_custom_call.1} parent=1 // loop_footer_branch
      %33 = sbr.rel target = $region3
    $region8: #{tpu_custom_call.1} parent=1 // loop_exit
      _
    %9304 = vsyncpa [#allocation5], 1
    %s9305 = scalar_lea.sflag [#allocation5], 1
    %9306 = vsyncpa %s9305, 1

</llo_original>
